<compile_context>
chip_gen: v7x
topology: tpu7x:2x2x1
jax: 0.10.0
libtpu: 0.0.40
codegen_flags: <defaults>
</compile_context>

<pallas_src>
import jax
import jax.numpy as jnp
from jax.experimental import pallas as pl
from jax.experimental.pallas import tpu as pltpu


# --------------------------------------------------------------------------
# Fused forward pass (single Pallas kernel)
# --------------------------------------------------------------------------
def pallas_forward(image_nchw, demographics, p):
    B, Cin, H1, W1 = image_nchw.shape
    C1, C2, C3 = 16, 32, 64
    H2, W2 = H1 // 2, W1 // 2
    H3, W3 = H2 // 2, W2 // 2
    NC = p["wc"].shape[1]
    PAD = 8  # tile-aligned sublane offset of the interior in the padded scratch

    # ---- layer-1 im2col in the wrapper (XLA, done once; K = 9*Cin = 27) ----
    x = jnp.transpose(image_nchw, (0, 2, 3, 1)).astype(jnp.float32)      # NHWC
    xp = jnp.pad(x, ((0, 0), (1, 1), (1, 1), (0, 0)))
    patches = jnp.concatenate(
        [xp[:, dy:dy + H1, dx:dx + W1, :] for dy in range(3) for dx in range(3)],
        axis=-1)                                                         # (B,H,W,27)
    x1 = patches.reshape(B * H1 * W1, 9 * Cin)

    # HWIO weights: (dy,dx,ci,co) -> row index t*Cin+ci matches patch layout.
    w1 = p["w1"].reshape(9 * Cin, C1)
    w2 = p["w2"].reshape(9, C1, C2)
    w3 = p["w3"].reshape(9, C2, C3)

    def kernel(x1_ref, w1_ref, s1_ref, b1_ref,
               w2_ref, s2_ref, b2_ref,
               w3_ref, s3_ref, b3_ref,
               demo_ref, wd_ref, bd_ref, sd_ref, bdn_ref,
               wci_ref, wcd_ref,
               o_ref, pad2_ref, pad3_ref):
        # ----- conv block 1: single im2col matmul + BN + ReLU + maxpool 2x2 -----
        y = jnp.dot(x1_ref[...], w1_ref[...], preferred_element_type=jnp.float32)
        y = jnp.maximum(y * s1_ref[0] + b1_ref[0], 0.0)                  # (B*H1*W1, C1)
        y = y.reshape(B * H1, W1, C1)
        y = jnp.max(y.reshape(B * H1, W2, 2, C1), axis=2)                # pool W
        y = jnp.max(y.reshape(B * H2, 2, W2, C1), axis=1)                # pool H -> (B*H2, W2, C1)

        # zero-pad in VMEM (interior stored at tile-aligned sublane offset PAD)
        pad2_ref[...] = jnp.zeros_like(pad2_ref)
        pad2_ref[:, 1:1 + H2, PAD:PAD + W2, :] = y.reshape(B, H2, W2, C1)

        # ----- conv block 2: 9 taps (K=C1), batch flattened into M + BN/ReLU/pool -----
        xp2 = pad2_ref[...]
        acc = jnp.zeros((B * H2 * W2, C2), jnp.float32)
        for t in range(9):
            dy, dx = t // 3, t % 3
            patch = xp2[:, dy:dy + H2, PAD - 1 + dx:PAD - 1 + dx + W2, :]
            acc = acc + jnp.dot(patch.reshape(B * H2 * W2, C1), w2_ref[t],
                                preferred_element_type=jnp.float32)
        y = jnp.maximum(acc * s2_ref[0] + b2_ref[0], 0.0)                # (B*H2*W2, C2)
        y = y.reshape(B * H2, W2, C2)
        y = jnp.max(y.reshape(B * H2, W3, 2, C2), axis=2)                # pool W
        y = jnp.max(y.reshape(B * H3, 2, W3, C2), axis=1)                # pool H -> (B*H3, W3, C2)

        pad3_ref[...] = jnp.zeros_like(pad3_ref)
        pad3_ref[:, 1:1 + H3, PAD:PAD + W3, :] = y.reshape(B, H3, W3, C2)

        # ----- conv block 3: 9 taps (K=C2) + BN + ReLU + global average pool -----
        xp3 = pad3_ref[...]
        acc = jnp.zeros((B * H3 * W3, C3), jnp.float32)
        for t in range(9):
            dy, dx = t // 3, t % 3
            patch = xp3[:, dy:dy + H3, PAD - 1 + dx:PAD - 1 + dx + W3, :]
            acc = acc + jnp.dot(patch.reshape(B * H3 * W3, C2), w3_ref[t],
                                preferred_element_type=jnp.float32)
        y = jnp.maximum(acc * s3_ref[0] + b3_ref[0], 0.0)                # (B*H3*W3, C3)
        img = jnp.mean(y.reshape(B, H3 * W3, C3), axis=1)                # (B, C3)

        # ----- demographics MLP + split-matmul concat classifier + softmax -----
        d = jnp.dot(demo_ref[...], wd_ref[...],
                    preferred_element_type=jnp.float32) + bd_ref[0]
        d = jnp.maximum(d, 0.0)                                          # ReLU
        d = d * sd_ref[0] + bdn_ref[0]                                   # folded BN1d

        logits = (jnp.dot(img, wci_ref[...], preferred_element_type=jnp.float32) +
                  jnp.dot(d, wcd_ref[...], preferred_element_type=jnp.float32))
        m = jnp.max(logits, axis=1, keepdims=True)
        e = jnp.exp(logits - m)
        o_ref[...] = e / jnp.sum(e, axis=1, keepdims=True)               # softmax

    return pl.pallas_call(
        kernel,
        out_shape=jax.ShapeDtypeStruct((B, NC), jnp.float32),
        scratch_shapes=[
            pltpu.VMEM((B, H2 + 2, W2 + 2 * PAD, C1), jnp.float32),  # padded layer-2 input
            pltpu.VMEM((B, H3 + 2, W3 + 2 * PAD, C2), jnp.float32),  # padded layer-3 input
        ],
    )(x1, w1, p["s1"].reshape(1, C1), p["b1"].reshape(1, C1),
      w2, p["s2"].reshape(1, C2), p["b2"].reshape(1, C2),
      w3, p["s3"].reshape(1, C3), p["b3"].reshape(1, C3),
      demographics.astype(jnp.float32), p["wd"], p["bd"].reshape(1, -1),
      p["sd"].reshape(1, -1), p["bdn"].reshape(1, -1),
      p["wc"][:C3], p["wc"][C3:])


# --------------------------------------------------------------------------
# Pure-JAX reference (for correctness check)
# --------------------------------------------------------------------------
def reference_forward(image_nchw, demographics, p):
    x = jnp.transpose(image_nchw, (0, 2, 3, 1)).astype(jnp.float32)

    def conv_bn_relu(x, w, s, b):
        y = jax.lax.conv_general_dilated(
            x, w, window_strides=(1, 1), padding="SAME",
            dimension_numbers=("NHWC", "HWIO", "NHWC"))
        return jnp.maximum(y * s + b, 0.0)

    def maxpool2(x):
        return jax.lax.reduce_window(x, -jnp.inf, jax.lax.max,
                                     (1, 2, 2, 1), (1, 2, 2, 1), "VALID")

    x = maxpool2(conv_bn_relu(x, p["w1"], p["s1"], p["b1"]))
    x = maxpool2(conv_bn_relu(x, p["w2"], p["s2"], p["b2"]))
    x = conv_bn_relu(x, p["w3"], p["s3"], p["b3"])
    img_feat = jnp.mean(x, axis=(1, 2))                               # (B, 64)

    d = jnp.maximum(demographics @ p["wd"] + p["bd"], 0.0)
    d = d * p["sd"] + p["bdn"]

    feats = jnp.concatenate([img_feat, d], axis=1)                    # (B, 80)
    logits = feats @ p["wc"]
    return jax.nn.softmax(logits, axis=1)


# --------------------------------------------------------------------------
# Deterministic synthetic parameters
# --------------------------------------------------------------------------
def make_params(num_classes=10, num_demographics=3):
    key = jax.random.PRNGKey(42)
    ks = jax.random.split(key, 5)

    def bn_fold(c, off):
        idx = jnp.arange(c, dtype=jnp.float32)
        gamma = 1.0 + 0.1 * jnp.cos(idx + off)
        beta = 0.05 * jnp.sin(idx + off)
        mean = 0.02 * jnp.sin(0.5 * idx + off)
        var = 1.0 + 0.2 * jnp.abs(jnp.cos(0.3 * idx + off))
        scale = gamma / jnp.sqrt(var + 1e-5)    # PyTorch BN eps
        bias = beta - mean * scale
        return scale.astype(jnp.float32), bias.astype(jnp.float32)

    s1, b1 = bn_fold(16, 0.0)
    s2, b2 = bn_fold(32, 1.0)
    s3, b3 = bn_fold(64, 2.0)
    sd, bdn = bn_fold(16, 3.0)

    return dict(
        w1=0.2 * jax.random.normal(ks[0], (3, 3, 3, 16), jnp.float32),
        w2=0.1 * jax.random.normal(ks[1], (3, 3, 16, 32), jnp.float32),
        w3=0.1 * jax.random.normal(ks[2], (3, 3, 32, 64), jnp.float32),
        wd=0.3 * jax.random.normal(ks[3], (num_demographics, 16), jnp.float32),
        bd=0.01 * jnp.arange(16, dtype=jnp.float32),
        wc=0.1 * jax.random.normal(ks[4], (64 + 16, num_classes), jnp.float32),
        s1=s1, b1=b1, s2=s2, b2=b2, s3=s3, b3=b3, sd=sd, bdn=bdn,
    )


# --------------------------------------------------------------------------
if __name__ == "__main__":
    key = jax.random.PRNGKey(0)
    k_img, k_demo = jax.random.split(key)
    # PyTorch-convention NCHW input; small spatial size for the demo.
    image = jax.random.normal(k_img, (2, 3, 16, 16), jnp.float32)
    demographics = jax.random.normal(k_demo, (2, 3), jnp.float32)

    params = make_params(num_classes=10, num_demographics=3)

    probs = jax.block_until_ready(
        jax.jit(pallas_forward)(image, demographics, params))
    ref = reference_forward(image, demographics, params)

    assert probs.shape == (2, 10)
    assert bool(jnp.all(jnp.isfinite(probs)))
    assert bool(jnp.allclose(jnp.sum(probs, axis=1), 1.0, atol=1e-4))
    assert bool(jnp.allclose(probs, ref, atol=1e-3, rtol=1e-3))

    print("KERNEL_OK")
</pallas_src>

<mosaic_0001>
module attributes {stable_mosaic.version = 11 : i64} {
  func.func @kernel(%arg0: memref<512x27xf32, #tpu.memory_space<vmem>>, %arg1: memref<27x16xf32, #tpu.memory_space<vmem>>, %arg2: memref<1x16xf32, #tpu.memory_space<vmem>>, %arg3: memref<1x16xf32, #tpu.memory_space<vmem>>, %arg4: memref<9x16x32xf32, #tpu.memory_space<vmem>>, %arg5: memref<1x32xf32, #tpu.memory_space<vmem>>, %arg6: memref<1x32xf32, #tpu.memory_space<vmem>>, %arg7: memref<9x32x64xf32, #tpu.memory_space<vmem>>, %arg8: memref<1x64xf32, #tpu.memory_space<vmem>>, %arg9: memref<1x64xf32, #tpu.memory_space<vmem>>, %arg10: memref<2x3xf32, #tpu.memory_space<vmem>>, %arg11: memref<3x16xf32, #tpu.memory_space<vmem>>, %arg12: memref<1x16xf32, #tpu.memory_space<vmem>>, %arg13: memref<1x16xf32, #tpu.memory_space<vmem>>, %arg14: memref<1x16xf32, #tpu.memory_space<vmem>>, %arg15: memref<64x10xf32, #tpu.memory_space<vmem>>, %arg16: memref<16x10xf32, #tpu.memory_space<vmem>>, %arg17: memref<2x10xf32, #tpu.memory_space<vmem>>, %arg18: memref<2x10x24x16xf32, #tpu.memory_space<vmem>>, %arg19: memref<2x6x20x32xf32, #tpu.memory_space<vmem>>) attributes {dimension_semantics = [], scalar_prefetch = 0 : i64, scratch_operands = 2 : i64, tpu.core_type = #tpu.core_type<tc>} {
    %c0 = arith.constant 0 : index
    %c0_0 = arith.constant 0 : index
    %0 = vector.load %arg0[%c0, %c0_0] : memref<512x27xf32, #tpu.memory_space<vmem>>, vector<512x27xf32>
    %c0_1 = arith.constant 0 : index
    %c0_2 = arith.constant 0 : index
    %1 = vector.load %arg1[%c0_1, %c0_2] : memref<27x16xf32, #tpu.memory_space<vmem>>, vector<27x16xf32>
    %cst = arith.constant dense<0.000000e+00> : vector<512x16xf32>
    %2 = tpu.matmul %0, %1, %cst {dimension_numbers = #tpu.dot_dimension_numbers<[1], [0], [0], [1], [0, 0, 1, 1], [], []>} : vector<512x27xf32>, vector<27x16xf32>, vector<512x16xf32> -> vector<512x16xf32>
    %c0_3 = arith.constant 0 : index
    %c0_4 = arith.constant 0 : index
    %3 = vector.load %arg2[%c0_3, %c0_4] : memref<1x16xf32, #tpu.memory_space<vmem>>, vector<1x16xf32>
    %4 = vector.shape_cast %3 : vector<1x16xf32> to vector<16xf32>
    %5 = vector.shape_cast %4 : vector<16xf32> to vector<1x16xf32>
    %6 = vector.broadcast %5 : vector<1x16xf32> to vector<512x16xf32>
    %7 = arith.mulf %2, %6 : vector<512x16xf32>
    %c0_5 = arith.constant 0 : index
    %c0_6 = arith.constant 0 : index
    %8 = vector.load %arg3[%c0_5, %c0_6] : memref<1x16xf32, #tpu.memory_space<vmem>>, vector<1x16xf32>
    %9 = vector.shape_cast %8 : vector<1x16xf32> to vector<16xf32>
    %10 = vector.shape_cast %9 : vector<16xf32> to vector<1x16xf32>
    %11 = vector.broadcast %10 : vector<1x16xf32> to vector<512x16xf32>
    %12 = arith.addf %7, %11 : vector<512x16xf32>
    %cst_7 = arith.constant 0.000000e+00 : f32
    %13 = vector.broadcast %cst_7 : f32 to vector<512x16xf32>
    %14 = arith.maximumf %12, %13 : vector<512x16xf32>
    %15 = vector.shape_cast %14 : vector<512x16xf32> to vector<32x16x16xf32>
    %16 = vector.shape_cast %15 : vector<32x16x16xf32> to vector<32x8x2x16xf32>
    %cst_8 = arith.constant dense<0xFF800000> : vector<32x8x16xf32>
    %17 = vector.multi_reduction <maximumf>, %16, %cst_8 [2] : vector<32x8x2x16xf32> to vector<32x8x16xf32>
    %18 = vector.shape_cast %17 : vector<32x8x16xf32> to vector<16x2x8x16xf32>
    %cst_9 = arith.constant dense<0xFF800000> : vector<16x8x16xf32>
    %19 = vector.multi_reduction <maximumf>, %18, %cst_9 [1] : vector<16x2x8x16xf32> to vector<16x8x16xf32>
    %cst_10 = arith.constant 0.000000e+00 : f32
    %20 = vector.broadcast %cst_10 : f32 to vector<2x10x24x16xf32>
    %c0_11 = arith.constant 0 : index
    %c0_12 = arith.constant 0 : index
    %c0_13 = arith.constant 0 : index
    %c0_14 = arith.constant 0 : index
    %21 = vector.load %arg18[%c0_11, %c0_12, %c0_13, %c0_14] : memref<2x10x24x16xf32, #tpu.memory_space<vmem>>, vector<2x10x24x16xf32>
    tpu.vector_store %arg18[%c0_11, %c0_12, %c0_13, %c0_14], %20 {strides = array<i32>} : memref<2x10x24x16xf32, #tpu.memory_space<vmem>>, vector<2x10x24x16xf32>,
    %22 = vector.shape_cast %19 : vector<16x8x16xf32> to vector<2x8x8x16xf32>
    %c0_15 = arith.constant 0 : index
    %c1 = arith.constant 1 : index
    %c8 = arith.constant 8 : index
    %c0_16 = arith.constant 0 : index
    %23 = vector.load %arg18[%c0_15, %c1, %c8, %c0_16] : memref<2x10x24x16xf32, #tpu.memory_space<vmem>>, vector<2x8x8x16xf32>
    tpu.vector_store %arg18[%c0_15, %c1, %c8, %c0_16], %22 {strides = array<i32>} : memref<2x10x24x16xf32, #tpu.memory_space<vmem>>, vector<2x8x8x16xf32>,
    %c0_17 = arith.constant 0 : index
    %c0_18 = arith.constant 0 : index
    %c0_19 = arith.constant 0 : index
    %c0_20 = arith.constant 0 : index
    %24 = vector.load %arg18[%c0_17, %c0_18, %c0_19, %c0_20] : memref<2x10x24x16xf32, #tpu.memory_space<vmem>>, vector<2x10x24x16xf32>
    %cst_21 = arith.constant 0.000000e+00 : f32
    %25 = vector.broadcast %cst_21 : f32 to vector<128x32xf32>
    %26 = vector.extract_strided_slice %24 {offsets = [0, 0, 7, 0], sizes = [2, 8, 8, 16], strides = [1, 1, 1, 1]} : vector<2x10x24x16xf32> to vector<2x8x8x16xf32>
    %27 = vector.shape_cast %26 : vector<2x8x8x16xf32> to vector<128x16xf32>
    %c0_22 = arith.constant 0 : index
    %c0_23 = arith.constant 0 : index
    %c0_24 = arith.constant 0 : index
    %28 = vector.load %arg4[%c0_22, %c0_23, %c0_24] : memref<9x16x32xf32, #tpu.memory_space<vmem>>, vector<1x16x32xf32>
    %29 = vector.shape_cast %28 : vector<1x16x32xf32> to vector<16x32xf32>
    %cst_25 = arith.constant dense<0.000000e+00> : vector<128x32xf32>
    %30 = tpu.matmul %27, %29, %cst_25 {dimension_numbers = #tpu.dot_dimension_numbers<[1], [0], [0], [1], [0, 0, 1, 1], [], []>} : vector<128x16xf32>, vector<16x32xf32>, vector<128x32xf32> -> vector<128x32xf32>
    %31 = arith.addf %25, %30 : vector<128x32xf32>
    %32 = vector.extract_strided_slice %24 {offsets = [0, 0, 8, 0], sizes = [2, 8, 8, 16], strides = [1, 1, 1, 1]} : vector<2x10x24x16xf32> to vector<2x8x8x16xf32>
    %33 = vector.shape_cast %32 : vector<2x8x8x16xf32> to vector<128x16xf32>
    %c1_26 = arith.constant 1 : index
    %c0_27 = arith.constant 0 : index
    %c0_28 = arith.constant 0 : index
    %34 = vector.load %arg4[%c1_26, %c0_27, %c0_28] : memref<9x16x32xf32, #tpu.memory_space<vmem>>, vector<1x16x32xf32>
    %35 = vector.shape_cast %34 : vector<1x16x32xf32> to vector<16x32xf32>
    %cst_29 = arith.constant dense<0.000000e+00> : vector<128x32xf32>
    %36 = tpu.matmul %33, %35, %cst_29 {dimension_numbers = #tpu.dot_dimension_numbers<[1], [0], [0], [1], [0, 0, 1, 1], [], []>} : vector<128x16xf32>, vector<16x32xf32>, vector<128x32xf32> -> vector<128x32xf32>
    %37 = arith.addf %31, %36 : vector<128x32xf32>
    %38 = vector.extract_strided_slice %24 {offsets = [0, 0, 9, 0], sizes = [2, 8, 8, 16], strides = [1, 1, 1, 1]} : vector<2x10x24x16xf32> to vector<2x8x8x16xf32>
    %39 = vector.shape_cast %38 : vector<2x8x8x16xf32> to vector<128x16xf32>
    %c2 = arith.constant 2 : index
    %c0_30 = arith.constant 0 : index
    %c0_31 = arith.constant 0 : index
    %40 = vector.load %arg4[%c2, %c0_30, %c0_31] : memref<9x16x32xf32, #tpu.memory_space<vmem>>, vector<1x16x32xf32>
    %41 = vector.shape_cast %40 : vector<1x16x32xf32> to vector<16x32xf32>
    %cst_32 = arith.constant dense<0.000000e+00> : vector<128x32xf32>
    %42 = tpu.matmul %39, %41, %cst_32 {dimension_numbers = #tpu.dot_dimension_numbers<[1], [0], [0], [1], [0, 0, 1, 1], [], []>} : vector<128x16xf32>, vector<16x32xf32>, vector<128x32xf32> -> vector<128x32xf32>
    %43 = arith.addf %37, %42 : vector<128x32xf32>
    %44 = vector.extract_strided_slice %24 {offsets = [0, 1, 7, 0], sizes = [2, 8, 8, 16], strides = [1, 1, 1, 1]} : vector<2x10x24x16xf32> to vector<2x8x8x16xf32>
    %45 = vector.shape_cast %44 : vector<2x8x8x16xf32> to vector<128x16xf32>
    %c3 = arith.constant 3 : index
    %c0_33 = arith.constant 0 : index
    %c0_34 = arith.constant 0 : index
    %46 = vector.load %arg4[%c3, %c0_33, %c0_34] : memref<9x16x32xf32, #tpu.memory_space<vmem>>, vector<1x16x32xf32>
    %47 = vector.shape_cast %46 : vector<1x16x32xf32> to vector<16x32xf32>
    %cst_35 = arith.constant dense<0.000000e+00> : vector<128x32xf32>
    %48 = tpu.matmul %45, %47, %cst_35 {dimension_numbers = #tpu.dot_dimension_numbers<[1], [0], [0], [1], [0, 0, 1, 1], [], []>} : vector<128x16xf32>, vector<16x32xf32>, vector<128x32xf32> -> vector<128x32xf32>
    %49 = arith.addf %43, %48 : vector<128x32xf32>
    %50 = vector.extract_strided_slice %24 {offsets = [0, 1, 8, 0], sizes = [2, 8, 8, 16], strides = [1, 1, 1, 1]} : vector<2x10x24x16xf32> to vector<2x8x8x16xf32>
    %51 = vector.shape_cast %50 : vector<2x8x8x16xf32> to vector<128x16xf32>
    %c4 = arith.constant 4 : index
    %c0_36 = arith.constant 0 : index
    %c0_37 = arith.constant 0 : index
    %52 = vector.load %arg4[%c4, %c0_36, %c0_37] : memref<9x16x32xf32, #tpu.memory_space<vmem>>, vector<1x16x32xf32>
    %53 = vector.shape_cast %52 : vector<1x16x32xf32> to vector<16x32xf32>
    %cst_38 = arith.constant dense<0.000000e+00> : vector<128x32xf32>
    %54 = tpu.matmul %51, %53, %cst_38 {dimension_numbers = #tpu.dot_dimension_numbers<[1], [0], [0], [1], [0, 0, 1, 1], [], []>} : vector<128x16xf32>, vector<16x32xf32>, vector<128x32xf32> -> vector<128x32xf32>
    %55 = arith.addf %49, %54 : vector<128x32xf32>
    %56 = vector.extract_strided_slice %24 {offsets = [0, 1, 9, 0], sizes = [2, 8, 8, 16], strides = [1, 1, 1, 1]} : vector<2x10x24x16xf32> to vector<2x8x8x16xf32>
    %57 = vector.shape_cast %56 : vector<2x8x8x16xf32> to vector<128x16xf32>
    %c5 = arith.constant 5 : index
    %c0_39 = arith.constant 0 : index
    %c0_40 = arith.constant 0 : index
    %58 = vector.load %arg4[%c5, %c0_39, %c0_40] : memref<9x16x32xf32, #tpu.memory_space<vmem>>, vector<1x16x32xf32>
    %59 = vector.shape_cast %58 : vector<1x16x32xf32> to vector<16x32xf32>
    %cst_41 = arith.constant dense<0.000000e+00> : vector<128x32xf32>
    %60 = tpu.matmul %57, %59, %cst_41 {dimension_numbers = #tpu.dot_dimension_numbers<[1], [0], [0], [1], [0, 0, 1, 1], [], []>} : vector<128x16xf32>, vector<16x32xf32>, vector<128x32xf32> -> vector<128x32xf32>
    %61 = arith.addf %55, %60 : vector<128x32xf32>
    %62 = vector.extract_strided_slice %24 {offsets = [0, 2, 7, 0], sizes = [2, 8, 8, 16], strides = [1, 1, 1, 1]} : vector<2x10x24x16xf32> to vector<2x8x8x16xf32>
    %63 = vector.shape_cast %62 : vector<2x8x8x16xf32> to vector<128x16xf32>
    %c6 = arith.constant 6 : index
    %c0_42 = arith.constant 0 : index
    %c0_43 = arith.constant 0 : index
    %64 = vector.load %arg4[%c6, %c0_42, %c0_43] : memref<9x16x32xf32, #tpu.memory_space<vmem>>, vector<1x16x32xf32>
    %65 = vector.shape_cast %64 : vector<1x16x32xf32> to vector<16x32xf32>
    %cst_44 = arith.constant dense<0.000000e+00> : vector<128x32xf32>
    %66 = tpu.matmul %63, %65, %cst_44 {dimension_numbers = #tpu.dot_dimension_numbers<[1], [0], [0], [1], [0, 0, 1, 1], [], []>} : vector<128x16xf32>, vector<16x32xf32>, vector<128x32xf32> -> vector<128x32xf32>
    %67 = arith.addf %61, %66 : vector<128x32xf32>
    %68 = vector.extract_strided_slice %24 {offsets = [0, 2, 8, 0], sizes = [2, 8, 8, 16], strides = [1, 1, 1, 1]} : vector<2x10x24x16xf32> to vector<2x8x8x16xf32>
    %69 = vector.shape_cast %68 : vector<2x8x8x16xf32> to vector<128x16xf32>
    %c7 = arith.constant 7 : index
    %c0_45 = arith.constant 0 : index
    %c0_46 = arith.constant 0 : index
    %70 = vector.load %arg4[%c7, %c0_45, %c0_46] : memref<9x16x32xf32, #tpu.memory_space<vmem>>, vector<1x16x32xf32>
    %71 = vector.shape_cast %70 : vector<1x16x32xf32> to vector<16x32xf32>
    %cst_47 = arith.constant dense<0.000000e+00> : vector<128x32xf32>
    %72 = tpu.matmul %69, %71, %cst_47 {dimension_numbers = #tpu.dot_dimension_numbers<[1], [0], [0], [1], [0, 0, 1, 1], [], []>} : vector<128x16xf32>, vector<16x32xf32>, vector<128x32xf32> -> vector<128x32xf32>
    %73 = arith.addf %67, %72 : vector<128x32xf32>
    %74 = vector.extract_strided_slice %24 {offsets = [0, 2, 9, 0], sizes = [2, 8, 8, 16], strides = [1, 1, 1, 1]} : vector<2x10x24x16xf32> to vector<2x8x8x16xf32>
    %75 = vector.shape_cast %74 : vector<2x8x8x16xf32> to vector<128x16xf32>
    %c8_48 = arith.constant 8 : index
    %c0_49 = arith.constant 0 : index
    %c0_50 = arith.constant 0 : index
    %76 = vector.load %arg4[%c8_48, %c0_49, %c0_50] : memref<9x16x32xf32, #tpu.memory_space<vmem>>, vector<1x16x32xf32>
    %77 = vector.shape_cast %76 : vector<1x16x32xf32> to vector<16x32xf32>
    %cst_51 = arith.constant dense<0.000000e+00> : vector<128x32xf32>
    %78 = tpu.matmul %75, %77, %cst_51 {dimension_numbers = #tpu.dot_dimension_numbers<[1], [0], [0], [1], [0, 0, 1, 1], [], []>} : vector<128x16xf32>, vector<16x32xf32>, vector<128x32xf32> -> vector<128x32xf32>
    %79 = arith.addf %73, %78 : vector<128x32xf32>
    %c0_52 = arith.constant 0 : index
    %c0_53 = arith.constant 0 : index
    %80 = vector.load %arg5[%c0_52, %c0_53] : memref<1x32xf32, #tpu.memory_space<vmem>>, vector<1x32xf32>
    %81 = vector.shape_cast %80 : vector<1x32xf32> to vector<32xf32>
    %82 = vector.shape_cast %81 : vector<32xf32> to vector<1x32xf32>
    %83 = vector.broadcast %82 : vector<1x32xf32> to vector<128x32xf32>
    %84 = arith.mulf %79, %83 : vector<128x32xf32>
    %c0_54 = arith.constant 0 : index
    %c0_55 = arith.constant 0 : index
    %85 = vector.load %arg6[%c0_54, %c0_55] : memref<1x32xf32, #tpu.memory_space<vmem>>, vector<1x32xf32>
    %86 = vector.shape_cast %85 : vector<1x32xf32> to vector<32xf32>
    %87 = vector.shape_cast %86 : vector<32xf32> to vector<1x32xf32>
    %88 = vector.broadcast %87 : vector<1x32xf32> to vector<128x32xf32>
    %89 = arith.addf %84, %88 : vector<128x32xf32>
    %cst_56 = arith.constant 0.000000e+00 : f32
    %90 = vector.broadcast %cst_56 : f32 to vector<128x32xf32>
    %91 = arith.maximumf %89, %90 : vector<128x32xf32>
    %92 = vector.shape_cast %91 : vector<128x32xf32> to vector<16x8x32xf32>
    %93 = vector.shape_cast %92 : vector<16x8x32xf32> to vector<16x4x2x32xf32>
    %cst_57 = arith.constant dense<0xFF800000> : vector<16x4x32xf32>
    %94 = vector.multi_reduction <maximumf>, %93, %cst_57 [2] : vector<16x4x2x32xf32> to vector<16x4x32xf32>
    %95 = vector.shape_cast %94 : vector<16x4x32xf32> to vector<8x2x4x32xf32>
    %cst_58 = arith.constant dense<0xFF800000> : vector<8x4x32xf32>
    %96 = vector.multi_reduction <maximumf>, %95, %cst_58 [1] : vector<8x2x4x32xf32> to vector<8x4x32xf32>
    %cst_59 = arith.constant 0.000000e+00 : f32
    %97 = vector.broadcast %cst_59 : f32 to vector<2x6x20x32xf32>
    %c0_60 = arith.constant 0 : index
    %c0_61 = arith.constant 0 : index
    %c0_62 = arith.constant 0 : index
    %c0_63 = arith.constant 0 : index
    %98 = vector.load %arg19[%c0_60, %c0_61, %c0_62, %c0_63] : memref<2x6x20x32xf32, #tpu.memory_space<vmem>>, vector<2x6x20x32xf32>
    tpu.vector_store %arg19[%c0_60, %c0_61, %c0_62, %c0_63], %97 {strides = array<i32>} : memref<2x6x20x32xf32, #tpu.memory_space<vmem>>, vector<2x6x20x32xf32>,
    %99 = vector.shape_cast %96 : vector<8x4x32xf32> to vector<2x4x4x32xf32>
    %c0_64 = arith.constant 0 : index
    %c1_65 = arith.constant 1 : index
    %c8_66 = arith.constant 8 : index
    %c0_67 = arith.constant 0 : index
    %100 = vector.load %arg19[%c0_64, %c1_65, %c8_66, %c0_67] : memref<2x6x20x32xf32, #tpu.memory_space<vmem>>, vector<2x4x4x32xf32>
    tpu.vector_store %arg19[%c0_64, %c1_65, %c8_66, %c0_67], %99 {strides = array<i32>} : memref<2x6x20x32xf32, #tpu.memory_space<vmem>>, vector<2x4x4x32xf32>,
    %c0_68 = arith.constant 0 : index
    %c0_69 = arith.constant 0 : index
    %c0_70 = arith.constant 0 : index
    %c0_71 = arith.constant 0 : index
    %101 = vector.load %arg19[%c0_68, %c0_69, %c0_70, %c0_71] : memref<2x6x20x32xf32, #tpu.memory_space<vmem>>, vector<2x6x20x32xf32>
    %cst_72 = arith.constant 0.000000e+00 : f32
    %102 = vector.broadcast %cst_72 : f32 to vector<32x64xf32>
    %103 = vector.extract_strided_slice %101 {offsets = [0, 0, 7, 0], sizes = [2, 4, 4, 32], strides = [1, 1, 1, 1]} : vector<2x6x20x32xf32> to vector<2x4x4x32xf32>
    %104 = vector.shape_cast %103 : vector<2x4x4x32xf32> to vector<32x32xf32>
    %c0_73 = arith.constant 0 : index
    %c0_74 = arith.constant 0 : index
    %c0_75 = arith.constant 0 : index
    %105 = vector.load %arg7[%c0_73, %c0_74, %c0_75] : memref<9x32x64xf32, #tpu.memory_space<vmem>>, vector<1x32x64xf32>
    %106 = vector.shape_cast %105 : vector<1x32x64xf32> to vector<32x64xf32>
    %cst_76 = arith.constant dense<0.000000e+00> : vector<32x64xf32>
    %107 = tpu.matmul %104, %106, %cst_76 {dimension_numbers = #tpu.dot_dimension_numbers<[1], [0], [0], [1], [0, 0, 1, 1], [], []>} : vector<32x32xf32>, vector<32x64xf32>, vector<32x64xf32> -> vector<32x64xf32>
    %108 = arith.addf %102, %107 : vector<32x64xf32>
    %109 = vector.extract_strided_slice %101 {offsets = [0, 0, 8, 0], sizes = [2, 4, 4, 32], strides = [1, 1, 1, 1]} : vector<2x6x20x32xf32> to vector<2x4x4x32xf32>
    %110 = vector.shape_cast %109 : vector<2x4x4x32xf32> to vector<32x32xf32>
    %c1_77 = arith.constant 1 : index
    %c0_78 = arith.constant 0 : index
    %c0_79 = arith.constant 0 : index
    %111 = vector.load %arg7[%c1_77, %c0_78, %c0_79] : memref<9x32x64xf32, #tpu.memory_space<vmem>>, vector<1x32x64xf32>
    %112 = vector.shape_cast %111 : vector<1x32x64xf32> to vector<32x64xf32>
    %cst_80 = arith.constant dense<0.000000e+00> : vector<32x64xf32>
    %113 = tpu.matmul %110, %112, %cst_80 {dimension_numbers = #tpu.dot_dimension_numbers<[1], [0], [0], [1], [0, 0, 1, 1], [], []>} : vector<32x32xf32>, vector<32x64xf32>, vector<32x64xf32> -> vector<32x64xf32>
    %114 = arith.addf %108, %113 : vector<32x64xf32>
    %115 = vector.extract_strided_slice %101 {offsets = [0, 0, 9, 0], sizes = [2, 4, 4, 32], strides = [1, 1, 1, 1]} : vector<2x6x20x32xf32> to vector<2x4x4x32xf32>
    %116 = vector.shape_cast %115 : vector<2x4x4x32xf32> to vector<32x32xf32>
    %c2_81 = arith.constant 2 : index
    %c0_82 = arith.constant 0 : index
    %c0_83 = arith.constant 0 : index
    %117 = vector.load %arg7[%c2_81, %c0_82, %c0_83] : memref<9x32x64xf32, #tpu.memory_space<vmem>>, vector<1x32x64xf32>
    %118 = vector.shape_cast %117 : vector<1x32x64xf32> to vector<32x64xf32>
    %cst_84 = arith.constant dense<0.000000e+00> : vector<32x64xf32>
    %119 = tpu.matmul %116, %118, %cst_84 {dimension_numbers = #tpu.dot_dimension_numbers<[1], [0], [0], [1], [0, 0, 1, 1], [], []>} : vector<32x32xf32>, vector<32x64xf32>, vector<32x64xf32> -> vector<32x64xf32>
    %120 = arith.addf %114, %119 : vector<32x64xf32>
    %121 = vector.extract_strided_slice %101 {offsets = [0, 1, 7, 0], sizes = [2, 4, 4, 32], strides = [1, 1, 1, 1]} : vector<2x6x20x32xf32> to vector<2x4x4x32xf32>
    %122 = vector.shape_cast %121 : vector<2x4x4x32xf32> to vector<32x32xf32>
    %c3_85 = arith.constant 3 : index
    %c0_86 = arith.constant 0 : index
    %c0_87 = arith.constant 0 : index
    %123 = vector.load %arg7[%c3_85, %c0_86, %c0_87] : memref<9x32x64xf32, #tpu.memory_space<vmem>>, vector<1x32x64xf32>
    %124 = vector.shape_cast %123 : vector<1x32x64xf32> to vector<32x64xf32>
    %cst_88 = arith.constant dense<0.000000e+00> : vector<32x64xf32>
    %125 = tpu.matmul %122, %124, %cst_88 {dimension_numbers = #tpu.dot_dimension_numbers<[1], [0], [0], [1], [0, 0, 1, 1], [], []>} : vector<32x32xf32>, vector<32x64xf32>, vector<32x64xf32> -> vector<32x64xf32>
    %126 = arith.addf %120, %125 : vector<32x64xf32>
    %127 = vector.extract_strided_slice %101 {offsets = [0, 1, 8, 0], sizes = [2, 4, 4, 32], strides = [1, 1, 1, 1]} : vector<2x6x20x32xf32> to vector<2x4x4x32xf32>
    %128 = vector.shape_cast %127 : vector<2x4x4x32xf32> to vector<32x32xf32>
    %c4_89 = arith.constant 4 : index
    %c0_90 = arith.constant 0 : index
    %c0_91 = arith.constant 0 : index
    %129 = vector.load %arg7[%c4_89, %c0_90, %c0_91] : memref<9x32x64xf32, #tpu.memory_space<vmem>>, vector<1x32x64xf32>
    %130 = vector.shape_cast %129 : vector<1x32x64xf32> to vector<32x64xf32>
    %cst_92 = arith.constant dense<0.000000e+00> : vector<32x64xf32>
    %131 = tpu.matmul %128, %130, %cst_92 {dimension_numbers = #tpu.dot_dimension_numbers<[1], [0], [0], [1], [0, 0, 1, 1], [], []>} : vector<32x32xf32>, vector<32x64xf32>, vector<32x64xf32> -> vector<32x64xf32>
    %132 = arith.addf %126, %131 : vector<32x64xf32>
    %133 = vector.extract_strided_slice %101 {offsets = [0, 1, 9, 0], sizes = [2, 4, 4, 32], strides = [1, 1, 1, 1]} : vector<2x6x20x32xf32> to vector<2x4x4x32xf32>
    %134 = vector.shape_cast %133 : vector<2x4x4x32xf32> to vector<32x32xf32>
    %c5_93 = arith.constant 5 : index
    %c0_94 = arith.constant 0 : index
    %c0_95 = arith.constant 0 : index
    %135 = vector.load %arg7[%c5_93, %c0_94, %c0_95] : memref<9x32x64xf32, #tpu.memory_space<vmem>>, vector<1x32x64xf32>
    %136 = vector.shape_cast %135 : vector<1x32x64xf32> to vector<32x64xf32>
    %cst_96 = arith.constant dense<0.000000e+00> : vector<32x64xf32>
    %137 = tpu.matmul %134, %136, %cst_96 {dimension_numbers = #tpu.dot_dimension_numbers<[1], [0], [0], [1], [0, 0, 1, 1], [], []>} : vector<32x32xf32>, vector<32x64xf32>, vector<32x64xf32> -> vector<32x64xf32>
    %138 = arith.addf %132, %137 : vector<32x64xf32>
    %139 = vector.extract_strided_slice %101 {offsets = [0, 2, 7, 0], sizes = [2, 4, 4, 32], strides = [1, 1, 1, 1]} : vector<2x6x20x32xf32> to vector<2x4x4x32xf32>
    %140 = vector.shape_cast %139 : vector<2x4x4x32xf32> to vector<32x32xf32>
    %c6_97 = arith.constant 6 : index
    %c0_98 = arith.constant 0 : index
    %c0_99 = arith.constant 0 : index
    %141 = vector.load %arg7[%c6_97, %c0_98, %c0_99] : memref<9x32x64xf32, #tpu.memory_space<vmem>>, vector<1x32x64xf32>
    %142 = vector.shape_cast %141 : vector<1x32x64xf32> to vector<32x64xf32>
    %cst_100 = arith.constant dense<0.000000e+00> : vector<32x64xf32>
    %143 = tpu.matmul %140, %142, %cst_100 {dimension_numbers = #tpu.dot_dimension_numbers<[1], [0], [0], [1], [0, 0, 1, 1], [], []>} : vector<32x32xf32>, vector<32x64xf32>, vector<32x64xf32> -> vector<32x64xf32>
    %144 = arith.addf %138, %143 : vector<32x64xf32>
    %145 = vector.extract_strided_slice %101 {offsets = [0, 2, 8, 0], sizes = [2, 4, 4, 32], strides = [1, 1, 1, 1]} : vector<2x6x20x32xf32> to vector<2x4x4x32xf32>
    %146 = vector.shape_cast %145 : vector<2x4x4x32xf32> to vector<32x32xf32>
    %c7_101 = arith.constant 7 : index
    %c0_102 = arith.constant 0 : index
    %c0_103 = arith.constant 0 : index
    %147 = vector.load %arg7[%c7_101, %c0_102, %c0_103] : memref<9x32x64xf32, #tpu.memory_space<vmem>>, vector<1x32x64xf32>
    %148 = vector.shape_cast %147 : vector<1x32x64xf32> to vector<32x64xf32>
    %cst_104 = arith.constant dense<0.000000e+00> : vector<32x64xf32>
    %149 = tpu.matmul %146, %148, %cst_104 {dimension_numbers = #tpu.dot_dimension_numbers<[1], [0], [0], [1], [0, 0, 1, 1], [], []>} : vector<32x32xf32>, vector<32x64xf32>, vector<32x64xf32> -> vector<32x64xf32>
    %150 = arith.addf %144, %149 : vector<32x64xf32>
    %151 = vector.extract_strided_slice %101 {offsets = [0, 2, 9, 0], sizes = [2, 4, 4, 32], strides = [1, 1, 1, 1]} : vector<2x6x20x32xf32> to vector<2x4x4x32xf32>
    %152 = vector.shape_cast %151 : vector<2x4x4x32xf32> to vector<32x32xf32>
    %c8_105 = arith.constant 8 : index
    %c0_106 = arith.constant 0 : index
    %c0_107 = arith.constant 0 : index
    %153 = vector.load %arg7[%c8_105, %c0_106, %c0_107] : memref<9x32x64xf32, #tpu.memory_space<vmem>>, vector<1x32x64xf32>
    %154 = vector.shape_cast %153 : vector<1x32x64xf32> to vector<32x64xf32>
    %cst_108 = arith.constant dense<0.000000e+00> : vector<32x64xf32>
    %155 = tpu.matmul %152, %154, %cst_108 {dimension_numbers = #tpu.dot_dimension_numbers<[1], [0], [0], [1], [0, 0, 1, 1], [], []>} : vector<32x32xf32>, vector<32x64xf32>, vector<32x64xf32> -> vector<32x64xf32>
    %156 = arith.addf %150, %155 : vector<32x64xf32>
    %c0_109 = arith.constant 0 : index
    %c0_110 = arith.constant 0 : index
    %157 = vector.load %arg8[%c0_109, %c0_110] : memref<1x64xf32, #tpu.memory_space<vmem>>, vector<1x64xf32>
    %158 = vector.shape_cast %157 : vector<1x64xf32> to vector<64xf32>
    %159 = vector.shape_cast %158 : vector<64xf32> to vector<1x64xf32>
    %160 = vector.broadcast %159 : vector<1x64xf32> to vector<32x64xf32>
    %161 = arith.mulf %156, %160 : vector<32x64xf32>
    %c0_111 = arith.constant 0 : index
    %c0_112 = arith.constant 0 : index
    %162 = vector.load %arg9[%c0_111, %c0_112] : memref<1x64xf32, #tpu.memory_space<vmem>>, vector<1x64xf32>
    %163 = vector.shape_cast %162 : vector<1x64xf32> to vector<64xf32>
    %164 = vector.shape_cast %163 : vector<64xf32> to vector<1x64xf32>
    %165 = vector.broadcast %164 : vector<1x64xf32> to vector<32x64xf32>
    %166 = arith.addf %161, %165 : vector<32x64xf32>
    %cst_113 = arith.constant 0.000000e+00 : f32
    %167 = vector.broadcast %cst_113 : f32 to vector<32x64xf32>
    %168 = arith.maximumf %166, %167 : vector<32x64xf32>
    %169 = vector.shape_cast %168 : vector<32x64xf32> to vector<2x16x64xf32>
    %cst_114 = arith.constant dense<0.000000e+00> : vector<2x64xf32>
    %170 = vector.multi_reduction <add>, %169, %cst_114 [1] : vector<2x16x64xf32> to vector<2x64xf32>
    %cst_115 = arith.constant 1.600000e+01 : f32
    %171 = vector.broadcast %cst_115 : f32 to vector<2x64xf32>
    %172 = arith.divf %170, %171 : vector<2x64xf32>
    %c0_116 = arith.constant 0 : index
    %c0_117 = arith.constant 0 : index
    %173 = vector.load %arg10[%c0_116, %c0_117] : memref<2x3xf32, #tpu.memory_space<vmem>>, vector<2x3xf32>
    %c0_118 = arith.constant 0 : index
    %c0_119 = arith.constant 0 : index
    %174 = vector.load %arg11[%c0_118, %c0_119] : memref<3x16xf32, #tpu.memory_space<vmem>>, vector<3x16xf32>
    %cst_120 = arith.constant dense<0.000000e+00> : vector<2x16xf32>
    %175 = tpu.matmul %173, %174, %cst_120 {dimension_numbers = #tpu.dot_dimension_numbers<[1], [0], [0], [1], [0, 0, 1, 1], [], []>} : vector<2x3xf32>, vector<3x16xf32>, vector<2x16xf32> -> vector<2x16xf32>
    %c0_121 = arith.constant 0 : index
    %c0_122 = arith.constant 0 : index
    %176 = vector.load %arg12[%c0_121, %c0_122] : memref<1x16xf32, #tpu.memory_space<vmem>>, vector<1x16xf32>
    %177 = vector.shape_cast %176 : vector<1x16xf32> to vector<16xf32>
    %178 = vector.shape_cast %177 : vector<16xf32> to vector<1x16xf32>
    %179 = vector.broadcast %178 : vector<1x16xf32> to vector<2x16xf32>
    %180 = arith.addf %175, %179 : vector<2x16xf32>
    %cst_123 = arith.constant 0.000000e+00 : f32
    %181 = vector.broadcast %cst_123 : f32 to vector<2x16xf32>
    %182 = arith.maximumf %180, %181 : vector<2x16xf32>
    %c0_124 = arith.constant 0 : index
    %c0_125 = arith.constant 0 : index
    %183 = vector.load %arg13[%c0_124, %c0_125] : memref<1x16xf32, #tpu.memory_space<vmem>>, vector<1x16xf32>
    %184 = vector.shape_cast %183 : vector<1x16xf32> to vector<16xf32>
    %185 = vector.shape_cast %184 : vector<16xf32> to vector<1x16xf32>
    %186 = vector.broadcast %185 : vector<1x16xf32> to vector<2x16xf32>
    %187 = arith.mulf %182, %186 : vector<2x16xf32>
    %c0_126 = arith.constant 0 : index
    %c0_127 = arith.constant 0 : index
    %188 = vector.load %arg14[%c0_126, %c0_127] : memref<1x16xf32, #tpu.memory_space<vmem>>, vector<1x16xf32>
    %189 = vector.shape_cast %188 : vector<1x16xf32> to vector<16xf32>
    %190 = vector.shape_cast %189 : vector<16xf32> to vector<1x16xf32>
    %191 = vector.broadcast %190 : vector<1x16xf32> to vector<2x16xf32>
    %192 = arith.addf %187, %191 : vector<2x16xf32>
    %c0_128 = arith.constant 0 : index
    %c0_129 = arith.constant 0 : index
    %193 = vector.load %arg15[%c0_128, %c0_129] : memref<64x10xf32, #tpu.memory_space<vmem>>, vector<64x10xf32>
    %cst_130 = arith.constant dense<0.000000e+00> : vector<2x10xf32>
    %194 = tpu.matmul %172, %193, %cst_130 {dimension_numbers = #tpu.dot_dimension_numbers<[1], [0], [0], [1], [0, 0, 1, 1], [], []>} : vector<2x64xf32>, vector<64x10xf32>, vector<2x10xf32> -> vector<2x10xf32>
    %c0_131 = arith.constant 0 : index
    %c0_132 = arith.constant 0 : index
    %195 = vector.load %arg16[%c0_131, %c0_132] : memref<16x10xf32, #tpu.memory_space<vmem>>, vector<16x10xf32>
    %cst_133 = arith.constant dense<0.000000e+00> : vector<2x10xf32>
    %196 = tpu.matmul %192, %195, %cst_133 {dimension_numbers = #tpu.dot_dimension_numbers<[1], [0], [0], [1], [0, 0, 1, 1], [], []>} : vector<2x16xf32>, vector<16x10xf32>, vector<2x10xf32> -> vector<2x10xf32>
    %197 = arith.addf %194, %196 : vector<2x10xf32>
    %cst_134 = arith.constant dense<0xFF800000> : vector<2xf32>
    %198 = vector.multi_reduction <maximumf>, %197, %cst_134 [1] : vector<2x10xf32> to vector<2xf32>
    %199 = vector.shape_cast %198 : vector<2xf32> to vector<2x1xf32>
    %200 = vector.broadcast %199 : vector<2x1xf32> to vector<2x10xf32>
    %201 = arith.subf %197, %200 : vector<2x10xf32>
    %202 = math.exp %201 : vector<2x10xf32>
    %cst_135 = arith.constant dense<0.000000e+00> : vector<2xf32>
    %203 = vector.multi_reduction <add>, %202, %cst_135 [1] : vector<2x10xf32> to vector<2xf32>
    %204 = vector.shape_cast %203 : vector<2xf32> to vector<2x1xf32>
    %205 = vector.broadcast %204 : vector<2x1xf32> to vector<2x10xf32>
    %206 = arith.divf %202, %205 : vector<2x10xf32>
    %c0_136 = arith.constant 0 : index
    %c0_137 = arith.constant 0 : index
    %207 = vector.load %arg17[%c0_136, %c0_137] : memref<2x10xf32, #tpu.memory_space<vmem>>, vector<2x10xf32>
    tpu.vector_store %arg17[%c0_136, %c0_137], %206 {strides = array<i32>} : memref<2x10xf32, #tpu.memory_space<vmem>>, vector<2x10xf32>,
    return
  }
}

</mosaic_0001>

<llo_original>
// kernel: pallas_forward.1
$region0: #{pallas_forward.1}
  #allocation0 [shape = 'u32[]', space=smem, size = 0x4, offset = 0x4, fixed_abs, tag = 'smem constant byte address 0x4 - core index']
  #allocation1 [shape = 'u32[144,128]{1,0:T(1,128)}', space=vmem, size = 0x12000, scoped, tag = 'internal scratch']
  #allocation2 [shape = 'f32[2,10,24,16]{3,2,1,0:T(8,128)}', space=vmem, size = 0x3c000, scoped, tag = 'scratch operand']
  #allocation3 [shape = 'f32[2,6,20,32]{3,2,1,0:T(8,128)}', space=vmem, size = 0x24000, scoped, tag = 'scratch operand']
  %s0 = inlined_call_operand.vmem [shape: f32[512,27], index: 0, kind: input, shape index: {}]
  %s1 = inlined_call_operand.vmem [shape: f32[27,16], index: 1, kind: input, shape index: {}]
  %s2 = inlined_call_operand.vmem [shape: f32[1,16], index: 2, kind: input, shape index: {}]
  %s3 = inlined_call_operand.vmem [shape: f32[1,16], index: 3, kind: input, shape index: {}]
  %s4 = inlined_call_operand.vmem [shape: f32[9,16,32], index: 4, kind: input, shape index: {}]
  %s5 = inlined_call_operand.vmem [shape: f32[1,32], index: 5, kind: input, shape index: {}]
  %s6 = inlined_call_operand.vmem [shape: f32[1,32], index: 6, kind: input, shape index: {}]
  %s7 = inlined_call_operand.vmem [shape: f32[9,32,64], index: 7, kind: input, shape index: {}]
  %s8 = inlined_call_operand.vmem [shape: f32[1,64], index: 8, kind: input, shape index: {}]
  %s9 = inlined_call_operand.vmem [shape: f32[1,64], index: 9, kind: input, shape index: {}]
  %s10 = inlined_call_operand.vmem [shape: f32[2,3], index: 10, kind: input, shape index: {}]
  %s11 = inlined_call_operand.vmem [shape: f32[3,16], index: 11, kind: input, shape index: {}]
  %s12 = inlined_call_operand.vmem [shape: f32[1,16], index: 12, kind: input, shape index: {}]
  %s13 = inlined_call_operand.vmem [shape: f32[1,16], index: 13, kind: input, shape index: {}]
  %s14 = inlined_call_operand.vmem [shape: f32[1,16], index: 14, kind: input, shape index: {}]
  %s15 = inlined_call_operand.vmem [shape: f32[64,10], index: 15, kind: input, shape index: {}]
  %s16 = inlined_call_operand.vmem [shape: f32[16,10], index: 16, kind: input, shape index: {}]
  %s17 = inlined_call_operand.hbm [shape: f32[2,10], index: 17, kind: output, shape index: {}]
  %s18 = sld [smem:[#allocation0]]
  $region78: #{pallas_forward.1} parent=0
    _
  %s20 = ssub.s32 1, %s18
  %s21 = scalar_select 0, %s20, %s18
  $region1: #{pallas_forward.1} parent=0
    #allocation4 [shape = 'u8[1024]{0}', space=vmem, size = 0x400, scoped, tag = 'output window, operand 0, single buffered']
    #allocation5 [shape = 's32[1]{0}', space=sflag, size = 0x4, scoped, tag = 'scoped memory for pallas_forward.1']
    %22 = vsyncpa [#allocation5], 0
    // Predicated region
    $region2: #{pallas_forward.1} parent=1 // pred_check
      _
    $region3: #{pallas_forward.1} parent=1 // pred_check_branch
      %24 = sbr.rel (0) target = $region5
    $region4: #{pallas_forward.1} parent=1 // pred_region
      _
    $region5: #{pallas_forward.1} parent=1 // pred_fallthru
      _
    // Predicated region
    $region6: #{pallas_forward.1} parent=1 // pred_check
      _
    $region7: #{pallas_forward.1} parent=1 // pred_check_branch
      %26 = sbr.rel (0) target = $region9
    $region8: #{pallas_forward.1} parent=1 // pred_region
      _
    $region9: #{pallas_forward.1} parent=1 // pred_fallthru
      _
    // Predicated region
    $region10: #{pallas_forward.1} parent=1 // pred_check
      _
    $region11: #{pallas_forward.1} parent=1 // pred_check_branch
      %28 = sbr.rel (0) target = $region13
    $region12: #{pallas_forward.1} parent=1 // pred_region
      _
    $region13: #{pallas_forward.1} parent=1 // pred_fallthru
      _
    // Predicated region
    $region14: #{pallas_forward.1} parent=1 // pred_check
      _
    $region15: #{pallas_forward.1} parent=1 // pred_check_branch
      %30 = sbr.rel (0) target = $region17
    $region16: #{pallas_forward.1} parent=1 // pred_region
      _
    $region17: #{pallas_forward.1} parent=1 // pred_fallthru
      _
    // Predicated region
    $region18: #{pallas_forward.1} parent=1 // pred_check
      _
    $region19: #{pallas_forward.1} parent=1 // pred_check_branch
      %32 = sbr.rel (0) target = $region21
    $region20: #{pallas_forward.1} parent=1 // pred_region
      _
    $region21: #{pallas_forward.1} parent=1 // pred_fallthru
      _
    // Predicated region
    $region22: #{pallas_forward.1} parent=1 // pred_check
      _
    $region23: #{pallas_forward.1} parent=1 // pred_check_branch
      %34 = sbr.rel (0) target = $region25
    $region24: #{pallas_forward.1} parent=1 // pred_region
      _
    $region25: #{pallas_forward.1} parent=1 // pred_fallthru
      _
    // Predicated region
    $region26: #{pallas_forward.1} parent=1 // pred_check
      _
    $region27: #{pallas_forward.1} parent=1 // pred_check_branch
      %36 = sbr.rel (0) target = $region29
    $region28: #{pallas_forward.1} parent=1 // pred_region
      _
    $region29: #{pallas_forward.1} parent=1 // pred_fallthru
      _
    // Predicated region
    $region30: #{pallas_forward.1} parent=1 // pred_check
      _
    $region31: #{pallas_forward.1} parent=1 // pred_check_branch
      %38 = sbr.rel (0) target = $region33
    $region32: #{pallas_forward.1} parent=1 // pred_region
      _
    $region33: #{pallas_forward.1} parent=1 // pred_fallthru
      _
    // Predicated region
    $region34: #{pallas_forward.1} parent=1 // pred_check
      _
    $region35: #{pallas_forward.1} parent=1 // pred_check_branch
      %40 = sbr.rel (0) target = $region37
    $region36: #{pallas_forward.1} parent=1 // pred_region
      _
    $region37: #{pallas_forward.1} parent=1 // pred_fallthru
      _
    // Predicated region
    $region38: #{pallas_forward.1} parent=1 // pred_check
      _
    $region39: #{pallas_forward.1} parent=1 // pred_check_branch
      %42 = sbr.rel (0) target = $region41
    $region40: #{pallas_forward.1} parent=1 // pred_region
      _
    $region41: #{pallas_forward.1} parent=1 // pred_fallthru
      _
    // Predicated region
    $region42: #{pallas_forward.1} parent=1 // pred_check
      _
    $region43: #{pallas_forward.1} parent=1 // pred_check_branch
      %44 = sbr.rel (0) target = $region45
    $region44: #{pallas_forward.1} parent=1 // pred_region
      _
    $region45: #{pallas_forward.1} parent=1 // pred_fallthru
      _
    // Predicated region
    $region46: #{pallas_forward.1} parent=1 // pred_check
      _
    $region47: #{pallas_forward.1} parent=1 // pred_check_branch
      %46 = sbr.rel (0) target = $region49
    $region48: #{pallas_forward.1} parent=1 // pred_region
      _
    $region49: #{pallas_forward.1} parent=1 // pred_fallthru
      _
    // Predicated region
    $region50: #{pallas_forward.1} parent=1 // pred_check
      _
    $region51: #{pallas_forward.1} parent=1 // pred_check_branch
      %48 = sbr.rel (0) target = $region53
    $region52: #{pallas_forward.1} parent=1 // pred_region
      _
    $region53: #{pallas_forward.1} parent=1 // pred_fallthru
      _
    // Predicated region
    $region54: #{pallas_forward.1} parent=1 // pred_check
      _
    $region55: #{pallas_forward.1} parent=1 // pred_check_branch
      %50 = sbr.rel (0) target = $region57
    $region56: #{pallas_forward.1} parent=1 // pred_region
      _
    $region57: #{pallas_forward.1} parent=1 // pred_fallthru
      _
    // Predicated region
    $region58: #{pallas_forward.1} parent=1 // pred_check
      _
    $region59: #{pallas_forward.1} parent=1 // pred_check_branch
      %52 = sbr.rel (0) target = $region61
    $region60: #{pallas_forward.1} parent=1 // pred_region
      _
    $region61: #{pallas_forward.1} parent=1 // pred_fallthru
      _
    // Predicated region
    $region62: #{pallas_forward.1} parent=1 // pred_check
      _
    $region63: #{pallas_forward.1} parent=1 // pred_check_branch
      %54 = sbr.rel (0) target = $region65
    $region64: #{pallas_forward.1} parent=1 // pred_region
      _
    $region65: #{pallas_forward.1} parent=1 // pred_fallthru
      _
    // Predicated region
    $region66: #{pallas_forward.1} parent=1 // pred_check
      _
    $region67: #{pallas_forward.1} parent=1 // pred_check_branch
      %56 = sbr.rel (0) target = $region69
    $region68: #{pallas_forward.1} parent=1 // pred_region
      _
    $region69: #{pallas_forward.1} parent=1 // pred_fallthru
      _
    %v57 = vld [vmem:[%s0] sm:$0xff]
    %v58 = vld [vmem:[%s0 + $0x8] sm:$0xff]
    %v59 = vld [vmem:[%s0 + $0x10] sm:$0xff]
    %v60 = vld [vmem:[%s0 + $0x18] sm:$0xff]
    %v61 = vld [vmem:[%s0 + $0x20] sm:$0xff]
    %v62 = vld [vmem:[%s0 + $0x28] sm:$0xff]
    %v63 = vld [vmem:[%s0 + $0x30] sm:$0xff]
    %v64 = vld [vmem:[%s0 + $0x38] sm:$0xff]
    %v65 = vld [vmem:[%s0 + $0x40] sm:$0xff]
    %v66 = vld [vmem:[%s0 + $0x48] sm:$0xff]
    %v67 = vld [vmem:[%s0 + $0x50] sm:$0xff]
    %v68 = vld [vmem:[%s0 + $0x58] sm:$0xff]
    %v69 = vld [vmem:[%s0 + $0x60] sm:$0xff]
    %v70 = vld [vmem:[%s0 + $0x68] sm:$0xff]
    %v71 = vld [vmem:[%s0 + $0x70] sm:$0xff]
    %v72 = vld [vmem:[%s0 + $0x78] sm:$0xff]
    %v73 = vld [vmem:[%s0 + $0x80] sm:$0xff]
    %v74 = vld [vmem:[%s0 + $0x88] sm:$0xff]
    %v75 = vld [vmem:[%s0 + $0x90] sm:$0xff]
    %v76 = vld [vmem:[%s0 + $0x98] sm:$0xff]
    %v77 = vld [vmem:[%s0 + $0xa0] sm:$0xff]
    %v78 = vld [vmem:[%s0 + $0xa8] sm:$0xff]
    %v79 = vld [vmem:[%s0 + $0xb0] sm:$0xff]
    %v80 = vld [vmem:[%s0 + $0xb8] sm:$0xff]
    %v81 = vld [vmem:[%s0 + $0xc0] sm:$0xff]
    %v82 = vld [vmem:[%s0 + $0xc8] sm:$0xff]
    %v83 = vld [vmem:[%s0 + $0xd0] sm:$0xff]
    %v84 = vld [vmem:[%s0 + $0xd8] sm:$0xff]
    %v85 = vld [vmem:[%s0 + $0xe0] sm:$0xff]
    %v86 = vld [vmem:[%s0 + $0xe8] sm:$0xff]
    %v87 = vld [vmem:[%s0 + $0xf0] sm:$0xff]
    %v88 = vld [vmem:[%s0 + $0xf8] sm:$0xff]
    %v89 = vld [vmem:[%s0 + $0x100] sm:$0xff]
    %v90 = vld [vmem:[%s0 + $0x108] sm:$0xff]
    %v91 = vld [vmem:[%s0 + $0x110] sm:$0xff]
    %v92 = vld [vmem:[%s0 + $0x118] sm:$0xff]
    %v93 = vld [vmem:[%s0 + $0x120] sm:$0xff]
    %v94 = vld [vmem:[%s0 + $0x128] sm:$0xff]
    %v95 = vld [vmem:[%s0 + $0x130] sm:$0xff]
    %v96 = vld [vmem:[%s0 + $0x138] sm:$0xff]
    %v97 = vld [vmem:[%s0 + $0x140] sm:$0xff]
    %v98 = vld [vmem:[%s0 + $0x148] sm:$0xff]
    %v99 = vld [vmem:[%s0 + $0x150] sm:$0xff]
    %v100 = vld [vmem:[%s0 + $0x158] sm:$0xff]
    %v101 = vld [vmem:[%s0 + $0x160] sm:$0xff]
    %v102 = vld [vmem:[%s0 + $0x168] sm:$0xff]
    %v103 = vld [vmem:[%s0 + $0x170] sm:$0xff]
    %v104 = vld [vmem:[%s0 + $0x178] sm:$0xff]
    %v105 = vld [vmem:[%s0 + $0x180] sm:$0xff]
    %v106 = vld [vmem:[%s0 + $0x188] sm:$0xff]
    %v107 = vld [vmem:[%s0 + $0x190] sm:$0xff]
    %v108 = vld [vmem:[%s0 + $0x198] sm:$0xff]
    %v109 = vld [vmem:[%s0 + $0x1a0] sm:$0xff]
    %v110 = vld [vmem:[%s0 + $0x1a8] sm:$0xff]
    %v111 = vld [vmem:[%s0 + $0x1b0] sm:$0xff]
    %v112 = vld [vmem:[%s0 + $0x1b8] sm:$0xff]
    %v113 = vld [vmem:[%s0 + $0x1c0] sm:$0xff]
    %v114 = vld [vmem:[%s0 + $0x1c8] sm:$0xff]
    %v115 = vld [vmem:[%s0 + $0x1d0] sm:$0xff]
    %v116 = vld [vmem:[%s0 + $0x1d8] sm:$0xff]
    %v117 = vld [vmem:[%s0 + $0x1e0] sm:$0xff]
    %v118 = vld [vmem:[%s0 + $0x1e8] sm:$0xff]
    %v119 = vld [vmem:[%s0 + $0x1f0] sm:$0xff]
    %v120 = vld [vmem:[%s0 + $0x1f8] sm:$0xff]
    %v121 = vld [vmem:[%s1] sm:$0xff]
    %v122 = vld [vmem:[%s1 + $0x8] sm:$0xff]
    %v123 = vld [vmem:[%s1 + $0x10] sm:$0xff]
    %v124 = vld [vmem:[%s1 + $0x18] sm:$0x7]
    %vm125 = vcmask 220160
    %v127 = vsel %vm125, %v57, 0
    %v130 = vsel %vm125, %v58, 0
    %v133 = vsel %vm125, %v59, 0
    %v136 = vsel %vm125, %v60, 0
    %v139 = vsel %vm125, %v61, 0
    %v142 = vsel %vm125, %v62, 0
    %v145 = vsel %vm125, %v63, 0
    %v148 = vsel %vm125, %v64, 0
    %v151 = vsel %vm125, %v65, 0
    %v154 = vsel %vm125, %v66, 0
    %v157 = vsel %vm125, %v67, 0
    %v160 = vsel %vm125, %v68, 0
    %v163 = vsel %vm125, %v69, 0
    %v166 = vsel %vm125, %v70, 0
    %v169 = vsel %vm125, %v71, 0
    %v172 = vsel %vm125, %v72, 0
    %v175 = vsel %vm125, %v73, 0
    %v178 = vsel %vm125, %v74, 0
    %v181 = vsel %vm125, %v75, 0
    %v184 = vsel %vm125, %v76, 0
    %v187 = vsel %vm125, %v77, 0
    %v190 = vsel %vm125, %v78, 0
    %v193 = vsel %vm125, %v79, 0
    %v196 = vsel %vm125, %v80, 0
    %v199 = vsel %vm125, %v81, 0
    %v202 = vsel %vm125, %v82, 0
    %v205 = vsel %vm125, %v83, 0
    %v208 = vsel %vm125, %v84, 0
    %v211 = vsel %vm125, %v85, 0
    %v214 = vsel %vm125, %v86, 0
    %v217 = vsel %vm125, %v87, 0
    %v220 = vsel %vm125, %v88, 0
    %v223 = vsel %vm125, %v89, 0
    %v226 = vsel %vm125, %v90, 0
    %v229 = vsel %vm125, %v91, 0
    %v232 = vsel %vm125, %v92, 0
    %v235 = vsel %vm125, %v93, 0
    %v238 = vsel %vm125, %v94, 0
    %v241 = vsel %vm125, %v95, 0
    %v244 = vsel %vm125, %v96, 0
    %v247 = vsel %vm125, %v97, 0
    %v250 = vsel %vm125, %v98, 0
    %v253 = vsel %vm125, %v99, 0
    %v256 = vsel %vm125, %v100, 0
    %v259 = vsel %vm125, %v101, 0
    %v262 = vsel %vm125, %v102, 0
    %v265 = vsel %vm125, %v103, 0
    %v268 = vsel %vm125, %v104, 0
    %v271 = vsel %vm125, %v105, 0
    %v274 = vsel %vm125, %v106, 0
    %v277 = vsel %vm125, %v107, 0
    %v280 = vsel %vm125, %v108, 0
    %v283 = vsel %vm125, %v109, 0
    %v286 = vsel %vm125, %v110, 0
    %v289 = vsel %vm125, %v111, 0
    %v292 = vsel %vm125, %v112, 0
    %v295 = vsel %vm125, %v113, 0
    %v298 = vsel %vm125, %v114, 0
    %v301 = vsel %vm125, %v115, 0
    %v304 = vsel %vm125, %v116, 0
    %v307 = vsel %vm125, %v117, 0
    %v310 = vsel %vm125, %v118, 0
    %v313 = vsel %vm125, %v119, 0
    %v316 = vsel %vm125, %v120, 0
    %vm318 = vcmask 1042432
    %v320 = vsel %vm318, %v124, 0
    %322 = vmatprep.subr.mxu0 0.0
    %323 = vmatpush1.msra.mxu0 %v121
    %324 = vmatprep.subr.mxu0 0.0
    %325 = vmatpush1.msra.mxu0 %v122
    %326 = vmatprep.subr.mxu0 0.0
    %327 = vmatpush1.msra.mxu0 %v123
    %328 = vmatprep.subr.mxu0 0.0
    %329 = vmatpush1.msra.mxu0 %v320
    %330 = vmatprep.subr.mxu0 0.0
    %331 = vmatpush1.msra.mxu0 0.0
    %332 = vmatprep.subr.mxu0 0.0
    %333 = vmatpush1.msra.mxu0 0.0
    %334 = vmatprep.subr.mxu0 0.0
    %335 = vmatpush1.msra.mxu0 0.0
    %336 = vmatprep.subr.mxu0 0.0
    %337 = vmatpush1.msra.mxu0 0.0
    %338 = vmatprep.subr.mxu0 0.0
    %339 = vmatpush1.msra.mxu0 0.0
    %340 = vmatprep.subr.mxu0 0.0
    %341 = vmatpush1.msra.mxu0 0.0
    %342 = vmatprep.subr.mxu0 0.0
    %343 = vmatpush1.msra.mxu0 0.0
    %344 = vmatprep.subr.mxu0 0.0
    %345 = vmatpush1.msra.mxu0 0.0
    %346 = vmatprep.subr.mxu0 0.0
    %347 = vmatpush1.msra.mxu0 0.0
    %348 = vmatprep.subr.mxu0 0.0
    %349 = vmatpush1.msra.mxu0 0.0
    %350 = vmatprep.subr.mxu0 0.0
    %351 = vmatpush1.msra.mxu0 0.0
    %352 = vmatprep.subr.mxu0 0.0
    %353 = vmatpush1.msra.mxu0 0.0
    %354 = vmatprep.subr.mxu0 0.0
    %355 = vmatpush1.msra.mxu0 0.0
    %356 = vmatprep.subr.mxu0 0.0
    %357 = vmatpush1.msra.mxu0 0.0
    %358 = vmatprep.subr.mxu0 0.0
    %359 = vmatpush1.msra.mxu0 0.0
    %360 = vmatprep.subr.mxu0 0.0
    %361 = vmatpush1.msra.mxu0 0.0
    %362 = vmatprep.subr.mxu0 0.0
    %363 = vmatpush1.msra.mxu0 0.0
    %364 = vmatprep.subr.mxu0 0.0
    %365 = vmatpush1.msra.mxu0 0.0
    %366 = vmatprep.subr.mxu0 0.0
    %367 = vmatpush1.msra.mxu0 0.0
    %368 = vmatprep.subr.mxu0 0.0
    %369 = vmatpush1.msra.mxu0 0.0
    %370 = vmatprep.subr.mxu0 0.0
    %371 = vmatpush1.msra.mxu0 0.0
    %372 = vmatprep.subr.mxu0 0.0
    %373 = vmatpush1.msra.mxu0 0.0
    %374 = vmatprep.subr.mxu0 0.0
    %375 = vmatpush1.msra.mxu0 0.0
    %376 = vmatprep.subr.mxu0 0.0
    %377 = vmatpush1.msra.mxu0 0.0
    %378 = vmatprep.subr.mxu0 0.0
    %379 = vmatpush1.msra.mxu0 0.0
    %380 = vmatprep.subr.mxu0 0.0
    %381 = vmatpush1.msra.mxu0 0.0
    %382 = vmatprep.subr.mxu0 0.0
    %383 = vmatpush1.msra.mxu0 0.0
    %384 = vmatprep.subr.mxu0 0.0
    %385 = vmatpush1.msra.mxu0 0.0
    %386 = vmatprep.mubr.f32.mxu0 0.0
    %387 = vmatmul.mubr.f32.gmra.mrb[0].mxu0 %v127
    %v388 = vpop.f32.mrb[0].mxu0
    %v389 = vadd.f32 0.0, %v388
    %v390 = vpop.f32.mrb[0].mxu0
    %391 = vmatprep.mubr.f32.mxu0 0.0
    %392 = vmatmul.mubr.f32.gmra.mrb[0].mxu0 %v130
    %v393 = vpop.f32.mrb[0].mxu0
    %v394 = vadd.f32 0.0, %v393
    %v395 = vpop.f32.mrb[0].mxu0
    %396 = vmatprep.mubr.f32.mxu0 0.0
    %397 = vmatmul.mubr.f32.gmra.mrb[0].mxu0 %v133
    %v398 = vpop.f32.mrb[0].mxu0
    %v399 = vadd.f32 0.0, %v398
    %v400 = vpop.f32.mrb[0].mxu0
    %401 = vmatprep.mubr.f32.mxu0 0.0
    %402 = vmatmul.mubr.f32.gmra.mrb[0].mxu0 %v136
    %v403 = vpop.f32.mrb[0].mxu0
    %v404 = vadd.f32 0.0, %v403
    %v405 = vpop.f32.mrb[0].mxu0
    %406 = vmatprep.mubr.f32.mxu0 0.0
    %407 = vmatmul.mubr.f32.gmra.mrb[0].mxu0 %v139
    %v408 = vpop.f32.mrb[0].mxu0
    %v409 = vadd.f32 0.0, %v408
    %v410 = vpop.f32.mrb[0].mxu0
    %411 = vmatprep.mubr.f32.mxu0 0.0
    %412 = vmatmul.mubr.f32.gmra.mrb[0].mxu0 %v142
    %v413 = vpop.f32.mrb[0].mxu0
    %v414 = vadd.f32 0.0, %v413
    %v415 = vpop.f32.mrb[0].mxu0
    %416 = vmatprep.mubr.f32.mxu0 0.0
    %417 = vmatmul.mubr.f32.gmra.mrb[0].mxu0 %v145
    %v418 = vpop.f32.mrb[0].mxu0
    %v419 = vadd.f32 0.0, %v418
    %v420 = vpop.f32.mrb[0].mxu0
    %421 = vmatprep.mubr.f32.mxu0 0.0
    %422 = vmatmul.mubr.f32.gmra.mrb[0].mxu0 %v148
    %v423 = vpop.f32.mrb[0].mxu0
    %v424 = vadd.f32 0.0, %v423
    %v425 = vpop.f32.mrb[0].mxu0
    %426 = vmatprep.mubr.f32.mxu0 0.0
    %427 = vmatmul.mubr.f32.gmra.mrb[0].mxu0 %v151
    %v428 = vpop.f32.mrb[0].mxu0
    %v429 = vadd.f32 0.0, %v428
    %v430 = vpop.f32.mrb[0].mxu0
    %431 = vmatprep.mubr.f32.mxu0 0.0
    %432 = vmatmul.mubr.f32.gmra.mrb[0].mxu0 %v154
    %v433 = vpop.f32.mrb[0].mxu0
    %v434 = vadd.f32 0.0, %v433
    %v435 = vpop.f32.mrb[0].mxu0
    %436 = vmatprep.mubr.f32.mxu0 0.0
    %437 = vmatmul.mubr.f32.gmra.mrb[0].mxu0 %v157
    %v438 = vpop.f32.mrb[0].mxu0
    %v439 = vadd.f32 0.0, %v438
    %v440 = vpop.f32.mrb[0].mxu0
    %441 = vmatprep.mubr.f32.mxu0 0.0
    %442 = vmatmul.mubr.f32.gmra.mrb[0].mxu0 %v160
    %v443 = vpop.f32.mrb[0].mxu0
    %v444 = vadd.f32 0.0, %v443
    %v445 = vpop.f32.mrb[0].mxu0
    %446 = vmatprep.mubr.f32.mxu0 0.0
    %447 = vmatmul.mubr.f32.gmra.mrb[0].mxu0 %v163
    %v448 = vpop.f32.mrb[0].mxu0
    %v449 = vadd.f32 0.0, %v448
    %v450 = vpop.f32.mrb[0].mxu0
    %451 = vmatprep.mubr.f32.mxu0 0.0
    %452 = vmatmul.mubr.f32.gmra.mrb[0].mxu0 %v166
    %v453 = vpop.f32.mrb[0].mxu0
    %v454 = vadd.f32 0.0, %v453
    %v455 = vpop.f32.mrb[0].mxu0
    %456 = vmatprep.mubr.f32.mxu0 0.0
    %457 = vmatmul.mubr.f32.gmra.mrb[0].mxu0 %v169
    %v458 = vpop.f32.mrb[0].mxu0
    %v459 = vadd.f32 0.0, %v458
    %v460 = vpop.f32.mrb[0].mxu0
    %461 = vmatprep.mubr.f32.mxu0 0.0
    %462 = vmatmul.mubr.f32.gmra.mrb[0].mxu0 %v172
    %v463 = vpop.f32.mrb[0].mxu0
    %v464 = vadd.f32 0.0, %v463
    %v465 = vpop.f32.mrb[0].mxu0
    %466 = vmatprep.mubr.f32.mxu0 0.0
    %467 = vmatmul.mubr.f32.gmra.mrb[0].mxu0 %v175
    %v468 = vpop.f32.mrb[0].mxu0
    %v469 = vadd.f32 0.0, %v468
    %v470 = vpop.f32.mrb[0].mxu0
    %471 = vmatprep.mubr.f32.mxu0 0.0
    %472 = vmatmul.mubr.f32.gmra.mrb[0].mxu0 %v178
    %v473 = vpop.f32.mrb[0].mxu0
    %v474 = vadd.f32 0.0, %v473
    %v475 = vpop.f32.mrb[0].mxu0
    %476 = vmatprep.mubr.f32.mxu0 0.0
    %477 = vmatmul.mubr.f32.gmra.mrb[0].mxu0 %v181
    %v478 = vpop.f32.mrb[0].mxu0
    %v479 = vadd.f32 0.0, %v478
    %v480 = vpop.f32.mrb[0].mxu0
    %481 = vmatprep.mubr.f32.mxu0 0.0
    %482 = vmatmul.mubr.f32.gmra.mrb[0].mxu0 %v184
    %v483 = vpop.f32.mrb[0].mxu0
    %v484 = vadd.f32 0.0, %v483
    %v485 = vpop.f32.mrb[0].mxu0
    %486 = vmatprep.mubr.f32.mxu0 0.0
    %487 = vmatmul.mubr.f32.gmra.mrb[0].mxu0 %v187
    %v488 = vpop.f32.mrb[0].mxu0
    %v489 = vadd.f32 0.0, %v488
    %v490 = vpop.f32.mrb[0].mxu0
    %491 = vmatprep.mubr.f32.mxu0 0.0
    %492 = vmatmul.mubr.f32.gmra.mrb[0].mxu0 %v190
    %v493 = vpop.f32.mrb[0].mxu0
    %v494 = vadd.f32 0.0, %v493
    %v495 = vpop.f32.mrb[0].mxu0
    %496 = vmatprep.mubr.f32.mxu0 0.0
    %497 = vmatmul.mubr.f32.gmra.mrb[0].mxu0 %v193
    %v498 = vpop.f32.mrb[0].mxu0
    %v499 = vadd.f32 0.0, %v498
    %v500 = vpop.f32.mrb[0].mxu0
    %501 = vmatprep.mubr.f32.mxu0 0.0
    %502 = vmatmul.mubr.f32.gmra.mrb[0].mxu0 %v196
    %v503 = vpop.f32.mrb[0].mxu0
    %v504 = vadd.f32 0.0, %v503
    %v505 = vpop.f32.mrb[0].mxu0
    %506 = vmatprep.mubr.f32.mxu0 0.0
    %507 = vmatmul.mubr.f32.gmra.mrb[0].mxu0 %v199
    %v508 = vpop.f32.mrb[0].mxu0
    %v509 = vadd.f32 0.0, %v508
    %v510 = vpop.f32.mrb[0].mxu0
    %511 = vmatprep.mubr.f32.mxu0 0.0
    %512 = vmatmul.mubr.f32.gmra.mrb[0].mxu0 %v202
    %v513 = vpop.f32.mrb[0].mxu0
    %v514 = vadd.f32 0.0, %v513
    %v515 = vpop.f32.mrb[0].mxu0
    %516 = vmatprep.mubr.f32.mxu0 0.0
    %517 = vmatmul.mubr.f32.gmra.mrb[0].mxu0 %v205
    %v518 = vpop.f32.mrb[0].mxu0
    %v519 = vadd.f32 0.0, %v518
    %v520 = vpop.f32.mrb[0].mxu0
    %521 = vmatprep.mubr.f32.mxu0 0.0
    %522 = vmatmul.mubr.f32.gmra.mrb[0].mxu0 %v208
    %v523 = vpop.f32.mrb[0].mxu0
    %v524 = vadd.f32 0.0, %v523
    %v525 = vpop.f32.mrb[0].mxu0
    %526 = vmatprep.mubr.f32.mxu0 0.0
    %527 = vmatmul.mubr.f32.gmra.mrb[0].mxu0 %v211
    %v528 = vpop.f32.mrb[0].mxu0
    %v529 = vadd.f32 0.0, %v528
    %v530 = vpop.f32.mrb[0].mxu0
    %531 = vmatprep.mubr.f32.mxu0 0.0
    %532 = vmatmul.mubr.f32.gmra.mrb[0].mxu0 %v214
    %v533 = vpop.f32.mrb[0].mxu0
    %v534 = vadd.f32 0.0, %v533
    %v535 = vpop.f32.mrb[0].mxu0
    %536 = vmatprep.mubr.f32.mxu0 0.0
    %537 = vmatmul.mubr.f32.gmra.mrb[0].mxu0 %v217
    %v538 = vpop.f32.mrb[0].mxu0
    %v539 = vadd.f32 0.0, %v538
    %v540 = vpop.f32.mrb[0].mxu0
    %541 = vmatprep.mubr.f32.mxu0 0.0
    %542 = vmatmul.mubr.f32.gmra.mrb[0].mxu0 %v220
    %v543 = vpop.f32.mrb[0].mxu0
    %v544 = vadd.f32 0.0, %v543
    %v545 = vpop.f32.mrb[0].mxu0
    %546 = vmatprep.mubr.f32.mxu0 0.0
    %547 = vmatmul.mubr.f32.gmra.mrb[0].mxu0 %v223
    %v548 = vpop.f32.mrb[0].mxu0
    %v549 = vadd.f32 0.0, %v548
    %v550 = vpop.f32.mrb[0].mxu0
    %551 = vmatprep.mubr.f32.mxu0 0.0
    %552 = vmatmul.mubr.f32.gmra.mrb[0].mxu0 %v226
    %v553 = vpop.f32.mrb[0].mxu0
    %v554 = vadd.f32 0.0, %v553
    %v555 = vpop.f32.mrb[0].mxu0
    %556 = vmatprep.mubr.f32.mxu0 0.0
    %557 = vmatmul.mubr.f32.gmra.mrb[0].mxu0 %v229
    %v558 = vpop.f32.mrb[0].mxu0
    %v559 = vadd.f32 0.0, %v558
    %v560 = vpop.f32.mrb[0].mxu0
    %561 = vmatprep.mubr.f32.mxu0 0.0
    %562 = vmatmul.mubr.f32.gmra.mrb[0].mxu0 %v232
    %v563 = vpop.f32.mrb[0].mxu0
    %v564 = vadd.f32 0.0, %v563
    %v565 = vpop.f32.mrb[0].mxu0
    %566 = vmatprep.mubr.f32.mxu0 0.0
    %567 = vmatmul.mubr.f32.gmra.mrb[0].mxu0 %v235
    %v568 = vpop.f32.mrb[0].mxu0
    %v569 = vadd.f32 0.0, %v568
    %v570 = vpop.f32.mrb[0].mxu0
    %571 = vmatprep.mubr.f32.mxu0 0.0
    %572 = vmatmul.mubr.f32.gmra.mrb[0].mxu0 %v238
    %v573 = vpop.f32.mrb[0].mxu0
    %v574 = vadd.f32 0.0, %v573
    %v575 = vpop.f32.mrb[0].mxu0
    %576 = vmatprep.mubr.f32.mxu0 0.0
    %577 = vmatmul.mubr.f32.gmra.mrb[0].mxu0 %v241
    %v578 = vpop.f32.mrb[0].mxu0
    %v579 = vadd.f32 0.0, %v578
    %v580 = vpop.f32.mrb[0].mxu0
    %581 = vmatprep.mubr.f32.mxu0 0.0
    %582 = vmatmul.mubr.f32.gmra.mrb[0].mxu0 %v244
    %v583 = vpop.f32.mrb[0].mxu0
    %v584 = vadd.f32 0.0, %v583
    %v585 = vpop.f32.mrb[0].mxu0
    %586 = vmatprep.mubr.f32.mxu0 0.0
    %587 = vmatmul.mubr.f32.gmra.mrb[0].mxu0 %v247
    %v588 = vpop.f32.mrb[0].mxu0
    %v589 = vadd.f32 0.0, %v588
    %v590 = vpop.f32.mrb[0].mxu0
    %591 = vmatprep.mubr.f32.mxu0 0.0
    %592 = vmatmul.mubr.f32.gmra.mrb[0].mxu0 %v250
    %v593 = vpop.f32.mrb[0].mxu0
    %v594 = vadd.f32 0.0, %v593
    %v595 = vpop.f32.mrb[0].mxu0
    %596 = vmatprep.mubr.f32.mxu0 0.0
    %597 = vmatmul.mubr.f32.gmra.mrb[0].mxu0 %v253
    %v598 = vpop.f32.mrb[0].mxu0
    %v599 = vadd.f32 0.0, %v598
    %v600 = vpop.f32.mrb[0].mxu0
    %601 = vmatprep.mubr.f32.mxu0 0.0
    %602 = vmatmul.mubr.f32.gmra.mrb[0].mxu0 %v256
    %v603 = vpop.f32.mrb[0].mxu0
    %v604 = vadd.f32 0.0, %v603
    %v605 = vpop.f32.mrb[0].mxu0
    %606 = vmatprep.mubr.f32.mxu0 0.0
    %607 = vmatmul.mubr.f32.gmra.mrb[0].mxu0 %v259
    %v608 = vpop.f32.mrb[0].mxu0
    %v609 = vadd.f32 0.0, %v608
    %v610 = vpop.f32.mrb[0].mxu0
    %611 = vmatprep.mubr.f32.mxu0 0.0
    %612 = vmatmul.mubr.f32.gmra.mrb[0].mxu0 %v262
    %v613 = vpop.f32.mrb[0].mxu0
    %v614 = vadd.f32 0.0, %v613
    %v615 = vpop.f32.mrb[0].mxu0
    %616 = vmatprep.mubr.f32.mxu0 0.0
    %617 = vmatmul.mubr.f32.gmra.mrb[0].mxu0 %v265
    %v618 = vpop.f32.mrb[0].mxu0
    %v619 = vadd.f32 0.0, %v618
    %v620 = vpop.f32.mrb[0].mxu0
    %621 = vmatprep.mubr.f32.mxu0 0.0
    %622 = vmatmul.mubr.f32.gmra.mrb[0].mxu0 %v268
    %v623 = vpop.f32.mrb[0].mxu0
    %v624 = vadd.f32 0.0, %v623
    %v625 = vpop.f32.mrb[0].mxu0
    %626 = vmatprep.mubr.f32.mxu0 0.0
    %627 = vmatmul.mubr.f32.gmra.mrb[0].mxu0 %v271
    %v628 = vpop.f32.mrb[0].mxu0
    %v629 = vadd.f32 0.0, %v628
    %v630 = vpop.f32.mrb[0].mxu0
    %631 = vmatprep.mubr.f32.mxu0 0.0
    %632 = vmatmul.mubr.f32.gmra.mrb[0].mxu0 %v274
    %v633 = vpop.f32.mrb[0].mxu0
    %v634 = vadd.f32 0.0, %v633
    %v635 = vpop.f32.mrb[0].mxu0
    %636 = vmatprep.mubr.f32.mxu0 0.0
    %637 = vmatmul.mubr.f32.gmra.mrb[0].mxu0 %v277
    %v638 = vpop.f32.mrb[0].mxu0
    %v639 = vadd.f32 0.0, %v638
    %v640 = vpop.f32.mrb[0].mxu0
    %641 = vmatprep.mubr.f32.mxu0 0.0
    %642 = vmatmul.mubr.f32.gmra.mrb[0].mxu0 %v280
    %v643 = vpop.f32.mrb[0].mxu0
    %v644 = vadd.f32 0.0, %v643
    %v645 = vpop.f32.mrb[0].mxu0
    %646 = vmatprep.mubr.f32.mxu0 0.0
    %647 = vmatmul.mubr.f32.gmra.mrb[0].mxu0 %v283
    %v648 = vpop.f32.mrb[0].mxu0
    %v649 = vadd.f32 0.0, %v648
    %v650 = vpop.f32.mrb[0].mxu0
    %651 = vmatprep.mubr.f32.mxu0 0.0
    %652 = vmatmul.mubr.f32.gmra.mrb[0].mxu0 %v286
    %v653 = vpop.f32.mrb[0].mxu0
    %v654 = vadd.f32 0.0, %v653
    %v655 = vpop.f32.mrb[0].mxu0
    %656 = vmatprep.mubr.f32.mxu0 0.0
    %657 = vmatmul.mubr.f32.gmra.mrb[0].mxu0 %v289
    %v658 = vpop.f32.mrb[0].mxu0
    %v659 = vadd.f32 0.0, %v658
    %v660 = vpop.f32.mrb[0].mxu0
    %661 = vmatprep.mubr.f32.mxu0 0.0
    %662 = vmatmul.mubr.f32.gmra.mrb[0].mxu0 %v292
    %v663 = vpop.f32.mrb[0].mxu0
    %v664 = vadd.f32 0.0, %v663
    %v665 = vpop.f32.mrb[0].mxu0
    %666 = vmatprep.mubr.f32.mxu0 0.0
    %667 = vmatmul.mubr.f32.gmra.mrb[0].mxu0 %v295
    %v668 = vpop.f32.mrb[0].mxu0
    %v669 = vadd.f32 0.0, %v668
    %v670 = vpop.f32.mrb[0].mxu0
    %671 = vmatprep.mubr.f32.mxu0 0.0
    %672 = vmatmul.mubr.f32.gmra.mrb[0].mxu0 %v298
    %v673 = vpop.f32.mrb[0].mxu0
    %v674 = vadd.f32 0.0, %v673
    %v675 = vpop.f32.mrb[0].mxu0
    %676 = vmatprep.mubr.f32.mxu0 0.0
    %677 = vmatmul.mubr.f32.gmra.mrb[0].mxu0 %v301
    %v678 = vpop.f32.mrb[0].mxu0
    %v679 = vadd.f32 0.0, %v678
    %v680 = vpop.f32.mrb[0].mxu0
    %681 = vmatprep.mubr.f32.mxu0 0.0
    %682 = vmatmul.mubr.f32.gmra.mrb[0].mxu0 %v304
    %v683 = vpop.f32.mrb[0].mxu0
    %v684 = vadd.f32 0.0, %v683
    %v685 = vpop.f32.mrb[0].mxu0
    %686 = vmatprep.mubr.f32.mxu0 0.0
    %687 = vmatmul.mubr.f32.gmra.mrb[0].mxu0 %v307
    %v688 = vpop.f32.mrb[0].mxu0
    %v689 = vadd.f32 0.0, %v688
    %v690 = vpop.f32.mrb[0].mxu0
    %691 = vmatprep.mubr.f32.mxu0 0.0
    %692 = vmatmul.mubr.f32.gmra.mrb[0].mxu0 %v310
    %v693 = vpop.f32.mrb[0].mxu0
    %v694 = vadd.f32 0.0, %v693
    %v695 = vpop.f32.mrb[0].mxu0
    %696 = vmatprep.mubr.f32.mxu0 0.0
    %697 = vmatmul.mubr.f32.gmra.mrb[0].mxu0 %v313
    %v698 = vpop.f32.mrb[0].mxu0
    %v699 = vadd.f32 0.0, %v698
    %v700 = vpop.f32.mrb[0].mxu0
    %701 = vmatprep.mubr.f32.mxu0 0.0
    %702 = vmatmul.mubr.f32.gmra.mrb[0].mxu0 %v316
    %v703 = vpop.f32.mrb[0].mxu0
    %v704 = vadd.f32 0.0, %v703
    %v705 = vpop.f32.mrb[0].mxu0
    %706 = vdwg.mxu0
    %v707 = vld [vmem:[%s2] sm:$0x1]
    %v709 = vlaneseq
    %v710 = vshrl.u32 %v709, 7
    %v711 = vsub.s32 0, %v710
    %v712 = vrot.slane %v707, %v711
    %v714 = vmul.f32 %v389, %v712
    %v715 = vmul.f32 %v394, %v712
    %v716 = vmul.f32 %v399, %v712
    %v717 = vmul.f32 %v404, %v712
    %v718 = vmul.f32 %v409, %v712
    %v719 = vmul.f32 %v414, %v712
    %v720 = vmul.f32 %v419, %v712
    %v721 = vmul.f32 %v424, %v712
    %v722 = vmul.f32 %v429, %v712
    %v723 = vmul.f32 %v434, %v712
    %v724 = vmul.f32 %v439, %v712
    %v725 = vmul.f32 %v444, %v712
    %v726 = vmul.f32 %v449, %v712
    %v727 = vmul.f32 %v454, %v712
    %v728 = vmul.f32 %v459, %v712
    %v729 = vmul.f32 %v464, %v712
    %v730 = vmul.f32 %v469, %v712
    %v731 = vmul.f32 %v474, %v712
    %v732 = vmul.f32 %v479, %v712
    %v733 = vmul.f32 %v484, %v712
    %v734 = vmul.f32 %v489, %v712
    %v735 = vmul.f32 %v494, %v712
    %v736 = vmul.f32 %v499, %v712
    %v737 = vmul.f32 %v504, %v712
    %v738 = vmul.f32 %v509, %v712
    %v739 = vmul.f32 %v514, %v712
    %v740 = vmul.f32 %v519, %v712
    %v741 = vmul.f32 %v524, %v712
    %v742 = vmul.f32 %v529, %v712
    %v743 = vmul.f32 %v534, %v712
    %v744 = vmul.f32 %v539, %v712
    %v745 = vmul.f32 %v544, %v712
    %v746 = vmul.f32 %v549, %v712
    %v747 = vmul.f32 %v554, %v712
    %v748 = vmul.f32 %v559, %v712
    %v749 = vmul.f32 %v564, %v712
    %v750 = vmul.f32 %v569, %v712
    %v751 = vmul.f32 %v574, %v712
    %v752 = vmul.f32 %v579, %v712
    %v753 = vmul.f32 %v584, %v712
    %v754 = vmul.f32 %v589, %v712
    %v755 = vmul.f32 %v594, %v712
    %v756 = vmul.f32 %v599, %v712
    %v757 = vmul.f32 %v604, %v712
    %v758 = vmul.f32 %v609, %v712
    %v759 = vmul.f32 %v614, %v712
    %v760 = vmul.f32 %v619, %v712
    %v761 = vmul.f32 %v624, %v712
    %v762 = vmul.f32 %v629, %v712
    %v763 = vmul.f32 %v634, %v712
    %v764 = vmul.f32 %v639, %v712
    %v765 = vmul.f32 %v644, %v712
    %v766 = vmul.f32 %v649, %v712
    %v767 = vmul.f32 %v654, %v712
    %v768 = vmul.f32 %v659, %v712
    %v769 = vmul.f32 %v664, %v712
    %v770 = vmul.f32 %v669, %v712
    %v771 = vmul.f32 %v674, %v712
    %v772 = vmul.f32 %v679, %v712
    %v773 = vmul.f32 %v684, %v712
    %v774 = vmul.f32 %v689, %v712
    %v775 = vmul.f32 %v694, %v712
    %v776 = vmul.f32 %v699, %v712
    %v777 = vmul.f32 %v704, %v712
    %v778 = vld [vmem:[%s3] sm:$0x1]
    %v780 = vlaneseq
    %v781 = vshrl.u32 %v780, 7
    %v782 = vsub.s32 0, %v781
    %v783 = vrot.slane %v778, %v782
    %v785 = vadd.f32 %v714, %v783
    %v786 = vadd.f32 %v715, %v783
    %v787 = vadd.f32 %v716, %v783
    %v788 = vadd.f32 %v717, %v783
    %v789 = vadd.f32 %v718, %v783
    %v790 = vadd.f32 %v719, %v783
    %v791 = vadd.f32 %v720, %v783
    %v792 = vadd.f32 %v721, %v783
    %v793 = vadd.f32 %v722, %v783
    %v794 = vadd.f32 %v723, %v783
    %v795 = vadd.f32 %v724, %v783
    %v796 = vadd.f32 %v725, %v783
    %v797 = vadd.f32 %v726, %v783
    %v798 = vadd.f32 %v727, %v783
    %v799 = vadd.f32 %v728, %v783
    %v800 = vadd.f32 %v729, %v783
    %v801 = vadd.f32 %v730, %v783
    %v802 = vadd.f32 %v731, %v783
    %v803 = vadd.f32 %v732, %v783
    %v804 = vadd.f32 %v733, %v783
    %v805 = vadd.f32 %v734, %v783
    %v806 = vadd.f32 %v735, %v783
    %v807 = vadd.f32 %v736, %v783
    %v808 = vadd.f32 %v737, %v783
    %v809 = vadd.f32 %v738, %v783
    %v810 = vadd.f32 %v739, %v783
    %v811 = vadd.f32 %v740, %v783
    %v812 = vadd.f32 %v741, %v783
    %v813 = vadd.f32 %v742, %v783
    %v814 = vadd.f32 %v743, %v783
    %v815 = vadd.f32 %v744, %v783
    %v816 = vadd.f32 %v745, %v783
    %v817 = vadd.f32 %v746, %v783
    %v818 = vadd.f32 %v747, %v783
    %v819 = vadd.f32 %v748, %v783
    %v820 = vadd.f32 %v749, %v783
    %v821 = vadd.f32 %v750, %v783
    %v822 = vadd.f32 %v751, %v783
    %v823 = vadd.f32 %v752, %v783
    %v824 = vadd.f32 %v753, %v783
    %v825 = vadd.f32 %v754, %v783
    %v826 = vadd.f32 %v755, %v783
    %v827 = vadd.f32 %v756, %v783
    %v828 = vadd.f32 %v757, %v783
    %v829 = vadd.f32 %v758, %v783
    %v830 = vadd.f32 %v759, %v783
    %v831 = vadd.f32 %v760, %v783
    %v832 = vadd.f32 %v761, %v783
    %v833 = vadd.f32 %v762, %v783
    %v834 = vadd.f32 %v763, %v783
    %v835 = vadd.f32 %v764, %v783
    %v836 = vadd.f32 %v765, %v783
    %v837 = vadd.f32 %v766, %v783
    %v838 = vadd.f32 %v767, %v783
    %v839 = vadd.f32 %v768, %v783
    %v840 = vadd.f32 %v769, %v783
    %v841 = vadd.f32 %v770, %v783
    %v842 = vadd.f32 %v771, %v783
    %v843 = vadd.f32 %v772, %v783
    %v844 = vadd.f32 %v773, %v783
    %v845 = vadd.f32 %v774, %v783
    %v846 = vadd.f32 %v775, %v783
    %v847 = vadd.f32 %v776, %v783
    %v848 = vadd.f32 %v777, %v783
    %v849 = vmax.f32 %v785, 0.0
    %v850 = vmax.f32 %v786, 0.0
    %v851 = vmax.f32 %v787, 0.0
    %v852 = vmax.f32 %v788, 0.0
    %v853 = vmax.f32 %v789, 0.0
    %v854 = vmax.f32 %v790, 0.0
    %v855 = vmax.f32 %v791, 0.0
    %v856 = vmax.f32 %v792, 0.0
    %v857 = vmax.f32 %v793, 0.0
    %v858 = vmax.f32 %v794, 0.0
    %v859 = vmax.f32 %v795, 0.0
    %v860 = vmax.f32 %v796, 0.0
    %v861 = vmax.f32 %v797, 0.0
    %v862 = vmax.f32 %v798, 0.0
    %v863 = vmax.f32 %v799, 0.0
    %v864 = vmax.f32 %v800, 0.0
    %v865 = vmax.f32 %v801, 0.0
    %v866 = vmax.f32 %v802, 0.0
    %v867 = vmax.f32 %v803, 0.0
    %v868 = vmax.f32 %v804, 0.0
    %v869 = vmax.f32 %v805, 0.0
    %v870 = vmax.f32 %v806, 0.0
    %v871 = vmax.f32 %v807, 0.0
    %v872 = vmax.f32 %v808, 0.0
    %v873 = vmax.f32 %v809, 0.0
    %v874 = vmax.f32 %v810, 0.0
    %v875 = vmax.f32 %v811, 0.0
    %v876 = vmax.f32 %v812, 0.0
    %v877 = vmax.f32 %v813, 0.0
    %v878 = vmax.f32 %v814, 0.0
    %v879 = vmax.f32 %v815, 0.0
    %v880 = vmax.f32 %v816, 0.0
    %v881 = vmax.f32 %v817, 0.0
    %v882 = vmax.f32 %v818, 0.0
    %v883 = vmax.f32 %v819, 0.0
    %v884 = vmax.f32 %v820, 0.0
    %v885 = vmax.f32 %v821, 0.0
    %v886 = vmax.f32 %v822, 0.0
    %v887 = vmax.f32 %v823, 0.0
    %v888 = vmax.f32 %v824, 0.0
    %v889 = vmax.f32 %v825, 0.0
    %v890 = vmax.f32 %v826, 0.0
    %v891 = vmax.f32 %v827, 0.0
    %v892 = vmax.f32 %v828, 0.0
    %v893 = vmax.f32 %v829, 0.0
    %v894 = vmax.f32 %v830, 0.0
    %v895 = vmax.f32 %v831, 0.0
    %v896 = vmax.f32 %v832, 0.0
    %v897 = vmax.f32 %v833, 0.0
    %v898 = vmax.f32 %v834, 0.0
    %v899 = vmax.f32 %v835, 0.0
    %v900 = vmax.f32 %v836, 0.0
    %v901 = vmax.f32 %v837, 0.0
    %v902 = vmax.f32 %v838, 0.0
    %v903 = vmax.f32 %v839, 0.0
    %v904 = vmax.f32 %v840, 0.0
    %v905 = vmax.f32 %v841, 0.0
    %v906 = vmax.f32 %v842, 0.0
    %v907 = vmax.f32 %v843, 0.0
    %v908 = vmax.f32 %v844, 0.0
    %v909 = vmax.f32 %v845, 0.0
    %v910 = vmax.f32 %v846, 0.0
    %v911 = vmax.f32 %v847, 0.0
    %v912 = vmax.f32 %v848, 0.0
    %v977 = vcombine.high %v849, %v849
    %v979 = vunpack.c.l.s4 1983009808
    %v980 = vunpack.c.0.s8 %v979
    %v981 = vlaneseq
    %v982 = vshrl.u32 %v981, 7
    %v983 = vsub.s32 %v980, %v982
    %v984 = vrot.slane %v849, %v983
    %v986 = vunpack.c.l.s4 1983009808
    %v987 = vunpack.c.0.s8 %v986
    %v988 = vlaneseq
    %v989 = vshrl.u32 %v988, 7
    %v990 = vsub.s32 %v987, %v989
    %v991 = vrot.slane %v977, %v990
    %v992 = vcombine.high %v984, %v984
    %v993 = vcombine.high %v991, %v991
    %v994 = vcombine.high %v850, %v850
    %v996 = vunpack.c.l.s4 1983009808
    %v997 = vunpack.c.0.s8 %v996
    %v998 = vlaneseq
    %v999 = vshrl.u32 %v998, 7
    %v1000 = vsub.s32 %v997, %v999
    %v1001 = vrot.slane %v850, %v1000
    %v1003 = vunpack.c.l.s4 1983009808
    %v1004 = vunpack.c.0.s8 %v1003
    %v1005 = vlaneseq
    %v1006 = vshrl.u32 %v1005, 7
    %v1007 = vsub.s32 %v1004, %v1006
    %v1008 = vrot.slane %v994, %v1007
    %v1009 = vcombine.high %v1001, %v1001
    %v1010 = vcombine.high %v1008, %v1008
    %v1011 = vcombine.high %v851, %v851
    %v1013 = vunpack.c.l.s4 1983009808
    %v1014 = vunpack.c.0.s8 %v1013
    %v1015 = vlaneseq
    %v1016 = vshrl.u32 %v1015, 7
    %v1017 = vsub.s32 %v1014, %v1016
    %v1018 = vrot.slane %v851, %v1017
    %v1020 = vunpack.c.l.s4 1983009808
    %v1021 = vunpack.c.0.s8 %v1020
    %v1022 = vlaneseq
    %v1023 = vshrl.u32 %v1022, 7
    %v1024 = vsub.s32 %v1021, %v1023
    %v1025 = vrot.slane %v1011, %v1024
    %v1026 = vcombine.high %v1018, %v1018
    %v1027 = vcombine.high %v1025, %v1025
    %v1028 = vcombine.high %v852, %v852
    %v1030 = vunpack.c.l.s4 1983009808
    %v1031 = vunpack.c.0.s8 %v1030
    %v1032 = vlaneseq
    %v1033 = vshrl.u32 %v1032, 7
    %v1034 = vsub.s32 %v1031, %v1033
    %v1035 = vrot.slane %v852, %v1034
    %v1037 = vunpack.c.l.s4 1983009808
    %v1038 = vunpack.c.0.s8 %v1037
    %v1039 = vlaneseq
    %v1040 = vshrl.u32 %v1039, 7
    %v1041 = vsub.s32 %v1038, %v1040
    %v1042 = vrot.slane %v1028, %v1041
    %v1043 = vcombine.high %v1035, %v1035
    %v1044 = vcombine.high %v1042, %v1042
    %v1045 = vcombine.high %v853, %v853
    %v1047 = vunpack.c.l.s4 1983009808
    %v1048 = vunpack.c.0.s8 %v1047
    %v1049 = vlaneseq
    %v1050 = vshrl.u32 %v1049, 7
    %v1051 = vsub.s32 %v1048, %v1050
    %v1052 = vrot.slane %v853, %v1051
    %v1054 = vunpack.c.l.s4 1983009808
    %v1055 = vunpack.c.0.s8 %v1054
    %v1056 = vlaneseq
    %v1057 = vshrl.u32 %v1056, 7
    %v1058 = vsub.s32 %v1055, %v1057
    %v1059 = vrot.slane %v1045, %v1058
    %v1060 = vcombine.high %v1052, %v1052
    %v1061 = vcombine.high %v1059, %v1059
    %v1062 = vcombine.high %v854, %v854
    %v1064 = vunpack.c.l.s4 1983009808
    %v1065 = vunpack.c.0.s8 %v1064
    %v1066 = vlaneseq
    %v1067 = vshrl.u32 %v1066, 7
    %v1068 = vsub.s32 %v1065, %v1067
    %v1069 = vrot.slane %v854, %v1068
    %v1071 = vunpack.c.l.s4 1983009808
    %v1072 = vunpack.c.0.s8 %v1071
    %v1073 = vlaneseq
    %v1074 = vshrl.u32 %v1073, 7
    %v1075 = vsub.s32 %v1072, %v1074
    %v1076 = vrot.slane %v1062, %v1075
    %v1077 = vcombine.high %v1069, %v1069
    %v1078 = vcombine.high %v1076, %v1076
    %v1079 = vcombine.high %v855, %v855
    %v1081 = vunpack.c.l.s4 1983009808
    %v1082 = vunpack.c.0.s8 %v1081
    %v1083 = vlaneseq
    %v1084 = vshrl.u32 %v1083, 7
    %v1085 = vsub.s32 %v1082, %v1084
    %v1086 = vrot.slane %v855, %v1085
    %v1088 = vunpack.c.l.s4 1983009808
    %v1089 = vunpack.c.0.s8 %v1088
    %v1090 = vlaneseq
    %v1091 = vshrl.u32 %v1090, 7
    %v1092 = vsub.s32 %v1089, %v1091
    %v1093 = vrot.slane %v1079, %v1092
    %v1094 = vcombine.high %v1086, %v1086
    %v1095 = vcombine.high %v1093, %v1093
    %v1096 = vcombine.high %v856, %v856
    %v1098 = vunpack.c.l.s4 1983009808
    %v1099 = vunpack.c.0.s8 %v1098
    %v1100 = vlaneseq
    %v1101 = vshrl.u32 %v1100, 7
    %v1102 = vsub.s32 %v1099, %v1101
    %v1103 = vrot.slane %v856, %v1102
    %v1105 = vunpack.c.l.s4 1983009808
    %v1106 = vunpack.c.0.s8 %v1105
    %v1107 = vlaneseq
    %v1108 = vshrl.u32 %v1107, 7
    %v1109 = vsub.s32 %v1106, %v1108
    %v1110 = vrot.slane %v1096, %v1109
    %v1111 = vcombine.high %v1103, %v1103
    %v1112 = vcombine.high %v1110, %v1110
    %v1113 = vcombine.high %v857, %v857
    %v1115 = vunpack.c.l.s4 1983009808
    %v1116 = vunpack.c.0.s8 %v1115
    %v1117 = vlaneseq
    %v1118 = vshrl.u32 %v1117, 7
    %v1119 = vsub.s32 %v1116, %v1118
    %v1120 = vrot.slane %v857, %v1119
    %v1122 = vunpack.c.l.s4 1983009808
    %v1123 = vunpack.c.0.s8 %v1122
    %v1124 = vlaneseq
    %v1125 = vshrl.u32 %v1124, 7
    %v1126 = vsub.s32 %v1123, %v1125
    %v1127 = vrot.slane %v1113, %v1126
    %v1128 = vcombine.high %v1120, %v1120
    %v1129 = vcombine.high %v1127, %v1127
    %v1130 = vcombine.high %v858, %v858
    %v1132 = vunpack.c.l.s4 1983009808
    %v1133 = vunpack.c.0.s8 %v1132
    %v1134 = vlaneseq
    %v1135 = vshrl.u32 %v1134, 7
    %v1136 = vsub.s32 %v1133, %v1135
    %v1137 = vrot.slane %v858, %v1136
    %v1139 = vunpack.c.l.s4 1983009808
    %v1140 = vunpack.c.0.s8 %v1139
    %v1141 = vlaneseq
    %v1142 = vshrl.u32 %v1141, 7
    %v1143 = vsub.s32 %v1140, %v1142
    %v1144 = vrot.slane %v1130, %v1143
    %v1145 = vcombine.high %v1137, %v1137
    %v1146 = vcombine.high %v1144, %v1144
    %v1147 = vcombine.high %v859, %v859
    %v1149 = vunpack.c.l.s4 1983009808
    %v1150 = vunpack.c.0.s8 %v1149
    %v1151 = vlaneseq
    %v1152 = vshrl.u32 %v1151, 7
    %v1153 = vsub.s32 %v1150, %v1152
    %v1154 = vrot.slane %v859, %v1153
    %v1156 = vunpack.c.l.s4 1983009808
    %v1157 = vunpack.c.0.s8 %v1156
    %v1158 = vlaneseq
    %v1159 = vshrl.u32 %v1158, 7
    %v1160 = vsub.s32 %v1157, %v1159
    %v1161 = vrot.slane %v1147, %v1160
    %v1162 = vcombine.high %v1154, %v1154
    %v1163 = vcombine.high %v1161, %v1161
    %v1164 = vcombine.high %v860, %v860
    %v1166 = vunpack.c.l.s4 1983009808
    %v1167 = vunpack.c.0.s8 %v1166
    %v1168 = vlaneseq
    %v1169 = vshrl.u32 %v1168, 7
    %v1170 = vsub.s32 %v1167, %v1169
    %v1171 = vrot.slane %v860, %v1170
    %v1173 = vunpack.c.l.s4 1983009808
    %v1174 = vunpack.c.0.s8 %v1173
    %v1175 = vlaneseq
    %v1176 = vshrl.u32 %v1175, 7
    %v1177 = vsub.s32 %v1174, %v1176
    %v1178 = vrot.slane %v1164, %v1177
    %v1179 = vcombine.high %v1171, %v1171
    %v1180 = vcombine.high %v1178, %v1178
    %v1181 = vcombine.high %v861, %v861
    %v1183 = vunpack.c.l.s4 1983009808
    %v1184 = vunpack.c.0.s8 %v1183
    %v1185 = vlaneseq
    %v1186 = vshrl.u32 %v1185, 7
    %v1187 = vsub.s32 %v1184, %v1186
    %v1188 = vrot.slane %v861, %v1187
    %v1190 = vunpack.c.l.s4 1983009808
    %v1191 = vunpack.c.0.s8 %v1190
    %v1192 = vlaneseq
    %v1193 = vshrl.u32 %v1192, 7
    %v1194 = vsub.s32 %v1191, %v1193
    %v1195 = vrot.slane %v1181, %v1194
    %v1196 = vcombine.high %v1188, %v1188
    %v1197 = vcombine.high %v1195, %v1195
    %v1198 = vcombine.high %v862, %v862
    %v1200 = vunpack.c.l.s4 1983009808
    %v1201 = vunpack.c.0.s8 %v1200
    %v1202 = vlaneseq
    %v1203 = vshrl.u32 %v1202, 7
    %v1204 = vsub.s32 %v1201, %v1203
    %v1205 = vrot.slane %v862, %v1204
    %v1207 = vunpack.c.l.s4 1983009808
    %v1208 = vunpack.c.0.s8 %v1207
    %v1209 = vlaneseq
    %v1210 = vshrl.u32 %v1209, 7
    %v1211 = vsub.s32 %v1208, %v1210
    %v1212 = vrot.slane %v1198, %v1211
    %v1213 = vcombine.high %v1205, %v1205
    %v1214 = vcombine.high %v1212, %v1212
    %v1215 = vcombine.high %v863, %v863
    %v1217 = vunpack.c.l.s4 1983009808
    %v1218 = vunpack.c.0.s8 %v1217
    %v1219 = vlaneseq
    %v1220 = vshrl.u32 %v1219, 7
    %v1221 = vsub.s32 %v1218, %v1220
    %v1222 = vrot.slane %v863, %v1221
    %v1224 = vunpack.c.l.s4 1983009808
    %v1225 = vunpack.c.0.s8 %v1224
    %v1226 = vlaneseq
    %v1227 = vshrl.u32 %v1226, 7
    %v1228 = vsub.s32 %v1225, %v1227
    %v1229 = vrot.slane %v1215, %v1228
    %v1230 = vcombine.high %v1222, %v1222
    %v1231 = vcombine.high %v1229, %v1229
    %v1232 = vcombine.high %v864, %v864
    %v1234 = vunpack.c.l.s4 1983009808
    %v1235 = vunpack.c.0.s8 %v1234
    %v1236 = vlaneseq
    %v1237 = vshrl.u32 %v1236, 7
    %v1238 = vsub.s32 %v1235, %v1237
    %v1239 = vrot.slane %v864, %v1238
    %v1241 = vunpack.c.l.s4 1983009808
    %v1242 = vunpack.c.0.s8 %v1241
    %v1243 = vlaneseq
    %v1244 = vshrl.u32 %v1243, 7
    %v1245 = vsub.s32 %v1242, %v1244
    %v1246 = vrot.slane %v1232, %v1245
    %v1247 = vcombine.high %v1239, %v1239
    %v1248 = vcombine.high %v1246, %v1246
    %v1249 = vcombine.high %v865, %v865
    %v1251 = vunpack.c.l.s4 1983009808
    %v1252 = vunpack.c.0.s8 %v1251
    %v1253 = vlaneseq
    %v1254 = vshrl.u32 %v1253, 7
    %v1255 = vsub.s32 %v1252, %v1254
    %v1256 = vrot.slane %v865, %v1255
    %v1258 = vunpack.c.l.s4 1983009808
    %v1259 = vunpack.c.0.s8 %v1258
    %v1260 = vlaneseq
    %v1261 = vshrl.u32 %v1260, 7
    %v1262 = vsub.s32 %v1259, %v1261
    %v1263 = vrot.slane %v1249, %v1262
    %v1264 = vcombine.high %v1256, %v1256
    %v1265 = vcombine.high %v1263, %v1263
    %v1266 = vcombine.high %v866, %v866
    %v1268 = vunpack.c.l.s4 1983009808
    %v1269 = vunpack.c.0.s8 %v1268
    %v1270 = vlaneseq
    %v1271 = vshrl.u32 %v1270, 7
    %v1272 = vsub.s32 %v1269, %v1271
    %v1273 = vrot.slane %v866, %v1272
    %v1275 = vunpack.c.l.s4 1983009808
    %v1276 = vunpack.c.0.s8 %v1275
    %v1277 = vlaneseq
    %v1278 = vshrl.u32 %v1277, 7
    %v1279 = vsub.s32 %v1276, %v1278
    %v1280 = vrot.slane %v1266, %v1279
    %v1281 = vcombine.high %v1273, %v1273
    %v1282 = vcombine.high %v1280, %v1280
    %v1283 = vcombine.high %v867, %v867
    %v1285 = vunpack.c.l.s4 1983009808
    %v1286 = vunpack.c.0.s8 %v1285
    %v1287 = vlaneseq
    %v1288 = vshrl.u32 %v1287, 7
    %v1289 = vsub.s32 %v1286, %v1288
    %v1290 = vrot.slane %v867, %v1289
    %v1292 = vunpack.c.l.s4 1983009808
    %v1293 = vunpack.c.0.s8 %v1292
    %v1294 = vlaneseq
    %v1295 = vshrl.u32 %v1294, 7
    %v1296 = vsub.s32 %v1293, %v1295
    %v1297 = vrot.slane %v1283, %v1296
    %v1298 = vcombine.high %v1290, %v1290
    %v1299 = vcombine.high %v1297, %v1297
    %v1300 = vcombine.high %v868, %v868
    %v1302 = vunpack.c.l.s4 1983009808
    %v1303 = vunpack.c.0.s8 %v1302
    %v1304 = vlaneseq
    %v1305 = vshrl.u32 %v1304, 7
    %v1306 = vsub.s32 %v1303, %v1305
    %v1307 = vrot.slane %v868, %v1306
    %v1309 = vunpack.c.l.s4 1983009808
    %v1310 = vunpack.c.0.s8 %v1309
    %v1311 = vlaneseq
    %v1312 = vshrl.u32 %v1311, 7
    %v1313 = vsub.s32 %v1310, %v1312
    %v1314 = vrot.slane %v1300, %v1313
    %v1315 = vcombine.high %v1307, %v1307
    %v1316 = vcombine.high %v1314, %v1314
    %v1317 = vcombine.high %v869, %v869
    %v1319 = vunpack.c.l.s4 1983009808
    %v1320 = vunpack.c.0.s8 %v1319
    %v1321 = vlaneseq
    %v1322 = vshrl.u32 %v1321, 7
    %v1323 = vsub.s32 %v1320, %v1322
    %v1324 = vrot.slane %v869, %v1323
    %v1326 = vunpack.c.l.s4 1983009808
    %v1327 = vunpack.c.0.s8 %v1326
    %v1328 = vlaneseq
    %v1329 = vshrl.u32 %v1328, 7
    %v1330 = vsub.s32 %v1327, %v1329
    %v1331 = vrot.slane %v1317, %v1330
    %v1332 = vcombine.high %v1324, %v1324
    %v1333 = vcombine.high %v1331, %v1331
    %v1334 = vcombine.high %v870, %v870
    %v1336 = vunpack.c.l.s4 1983009808
    %v1337 = vunpack.c.0.s8 %v1336
    %v1338 = vlaneseq
    %v1339 = vshrl.u32 %v1338, 7
    %v1340 = vsub.s32 %v1337, %v1339
    %v1341 = vrot.slane %v870, %v1340
    %v1343 = vunpack.c.l.s4 1983009808
    %v1344 = vunpack.c.0.s8 %v1343
    %v1345 = vlaneseq
    %v1346 = vshrl.u32 %v1345, 7
    %v1347 = vsub.s32 %v1344, %v1346
    %v1348 = vrot.slane %v1334, %v1347
    %v1349 = vcombine.high %v1341, %v1341
    %v1350 = vcombine.high %v1348, %v1348
    %v1351 = vcombine.high %v871, %v871
    %v1353 = vunpack.c.l.s4 1983009808
    %v1354 = vunpack.c.0.s8 %v1353
    %v1355 = vlaneseq
    %v1356 = vshrl.u32 %v1355, 7
    %v1357 = vsub.s32 %v1354, %v1356
    %v1358 = vrot.slane %v871, %v1357
    %v1360 = vunpack.c.l.s4 1983009808
    %v1361 = vunpack.c.0.s8 %v1360
    %v1362 = vlaneseq
    %v1363 = vshrl.u32 %v1362, 7
    %v1364 = vsub.s32 %v1361, %v1363
    %v1365 = vrot.slane %v1351, %v1364
    %v1366 = vcombine.high %v1358, %v1358
    %v1367 = vcombine.high %v1365, %v1365
    %v1368 = vcombine.high %v872, %v872
    %v1370 = vunpack.c.l.s4 1983009808
    %v1371 = vunpack.c.0.s8 %v1370
    %v1372 = vlaneseq
    %v1373 = vshrl.u32 %v1372, 7
    %v1374 = vsub.s32 %v1371, %v1373
    %v1375 = vrot.slane %v872, %v1374
    %v1377 = vunpack.c.l.s4 1983009808
    %v1378 = vunpack.c.0.s8 %v1377
    %v1379 = vlaneseq
    %v1380 = vshrl.u32 %v1379, 7
    %v1381 = vsub.s32 %v1378, %v1380
    %v1382 = vrot.slane %v1368, %v1381
    %v1383 = vcombine.high %v1375, %v1375
    %v1384 = vcombine.high %v1382, %v1382
    %v1385 = vcombine.high %v873, %v873
    %v1387 = vunpack.c.l.s4 1983009808
    %v1388 = vunpack.c.0.s8 %v1387
    %v1389 = vlaneseq
    %v1390 = vshrl.u32 %v1389, 7
    %v1391 = vsub.s32 %v1388, %v1390
    %v1392 = vrot.slane %v873, %v1391
    %v1394 = vunpack.c.l.s4 1983009808
    %v1395 = vunpack.c.0.s8 %v1394
    %v1396 = vlaneseq
    %v1397 = vshrl.u32 %v1396, 7
    %v1398 = vsub.s32 %v1395, %v1397
    %v1399 = vrot.slane %v1385, %v1398
    %v1400 = vcombine.high %v1392, %v1392
    %v1401 = vcombine.high %v1399, %v1399
    %v1402 = vcombine.high %v874, %v874
    %v1404 = vunpack.c.l.s4 1983009808
    %v1405 = vunpack.c.0.s8 %v1404
    %v1406 = vlaneseq
    %v1407 = vshrl.u32 %v1406, 7
    %v1408 = vsub.s32 %v1405, %v1407
    %v1409 = vrot.slane %v874, %v1408
    %v1411 = vunpack.c.l.s4 1983009808
    %v1412 = vunpack.c.0.s8 %v1411
    %v1413 = vlaneseq
    %v1414 = vshrl.u32 %v1413, 7
    %v1415 = vsub.s32 %v1412, %v1414
    %v1416 = vrot.slane %v1402, %v1415
    %v1417 = vcombine.high %v1409, %v1409
    %v1418 = vcombine.high %v1416, %v1416
    %v1419 = vcombine.high %v875, %v875
    %v1421 = vunpack.c.l.s4 1983009808
    %v1422 = vunpack.c.0.s8 %v1421
    %v1423 = vlaneseq
    %v1424 = vshrl.u32 %v1423, 7
    %v1425 = vsub.s32 %v1422, %v1424
    %v1426 = vrot.slane %v875, %v1425
    %v1428 = vunpack.c.l.s4 1983009808
    %v1429 = vunpack.c.0.s8 %v1428
    %v1430 = vlaneseq
    %v1431 = vshrl.u32 %v1430, 7
    %v1432 = vsub.s32 %v1429, %v1431
    %v1433 = vrot.slane %v1419, %v1432
    %v1434 = vcombine.high %v1426, %v1426
    %v1435 = vcombine.high %v1433, %v1433
    %v1436 = vcombine.high %v876, %v876
    %v1438 = vunpack.c.l.s4 1983009808
    %v1439 = vunpack.c.0.s8 %v1438
    %v1440 = vlaneseq
    %v1441 = vshrl.u32 %v1440, 7
    %v1442 = vsub.s32 %v1439, %v1441
    %v1443 = vrot.slane %v876, %v1442
    %v1445 = vunpack.c.l.s4 1983009808
    %v1446 = vunpack.c.0.s8 %v1445
    %v1447 = vlaneseq
    %v1448 = vshrl.u32 %v1447, 7
    %v1449 = vsub.s32 %v1446, %v1448
    %v1450 = vrot.slane %v1436, %v1449
    %v1451 = vcombine.high %v1443, %v1443
    %v1452 = vcombine.high %v1450, %v1450
    %v1453 = vcombine.high %v877, %v877
    %v1455 = vunpack.c.l.s4 1983009808
    %v1456 = vunpack.c.0.s8 %v1455
    %v1457 = vlaneseq
    %v1458 = vshrl.u32 %v1457, 7
    %v1459 = vsub.s32 %v1456, %v1458
    %v1460 = vrot.slane %v877, %v1459
    %v1462 = vunpack.c.l.s4 1983009808
    %v1463 = vunpack.c.0.s8 %v1462
    %v1464 = vlaneseq
    %v1465 = vshrl.u32 %v1464, 7
    %v1466 = vsub.s32 %v1463, %v1465
    %v1467 = vrot.slane %v1453, %v1466
    %v1468 = vcombine.high %v1460, %v1460
    %v1469 = vcombine.high %v1467, %v1467
    %v1470 = vcombine.high %v878, %v878
    %v1472 = vunpack.c.l.s4 1983009808
    %v1473 = vunpack.c.0.s8 %v1472
    %v1474 = vlaneseq
    %v1475 = vshrl.u32 %v1474, 7
    %v1476 = vsub.s32 %v1473, %v1475
    %v1477 = vrot.slane %v878, %v1476
    %v1479 = vunpack.c.l.s4 1983009808
    %v1480 = vunpack.c.0.s8 %v1479
    %v1481 = vlaneseq
    %v1482 = vshrl.u32 %v1481, 7
    %v1483 = vsub.s32 %v1480, %v1482
    %v1484 = vrot.slane %v1470, %v1483
    %v1485 = vcombine.high %v1477, %v1477
    %v1486 = vcombine.high %v1484, %v1484
    %v1487 = vcombine.high %v879, %v879
    %v1489 = vunpack.c.l.s4 1983009808
    %v1490 = vunpack.c.0.s8 %v1489
    %v1491 = vlaneseq
    %v1492 = vshrl.u32 %v1491, 7
    %v1493 = vsub.s32 %v1490, %v1492
    %v1494 = vrot.slane %v879, %v1493
    %v1496 = vunpack.c.l.s4 1983009808
    %v1497 = vunpack.c.0.s8 %v1496
    %v1498 = vlaneseq
    %v1499 = vshrl.u32 %v1498, 7
    %v1500 = vsub.s32 %v1497, %v1499
    %v1501 = vrot.slane %v1487, %v1500
    %v1502 = vcombine.high %v1494, %v1494
    %v1503 = vcombine.high %v1501, %v1501
    %v1504 = vcombine.high %v880, %v880
    %v1506 = vunpack.c.l.s4 1983009808
    %v1507 = vunpack.c.0.s8 %v1506
    %v1508 = vlaneseq
    %v1509 = vshrl.u32 %v1508, 7
    %v1510 = vsub.s32 %v1507, %v1509
    %v1511 = vrot.slane %v880, %v1510
    %v1513 = vunpack.c.l.s4 1983009808
    %v1514 = vunpack.c.0.s8 %v1513
    %v1515 = vlaneseq
    %v1516 = vshrl.u32 %v1515, 7
    %v1517 = vsub.s32 %v1514, %v1516
    %v1518 = vrot.slane %v1504, %v1517
    %v1519 = vcombine.high %v1511, %v1511
    %v1520 = vcombine.high %v1518, %v1518
    %v1521 = vcombine.high %v881, %v881
    %v1523 = vunpack.c.l.s4 1983009808
    %v1524 = vunpack.c.0.s8 %v1523
    %v1525 = vlaneseq
    %v1526 = vshrl.u32 %v1525, 7
    %v1527 = vsub.s32 %v1524, %v1526
    %v1528 = vrot.slane %v881, %v1527
    %v1530 = vunpack.c.l.s4 1983009808
    %v1531 = vunpack.c.0.s8 %v1530
    %v1532 = vlaneseq
    %v1533 = vshrl.u32 %v1532, 7
    %v1534 = vsub.s32 %v1531, %v1533
    %v1535 = vrot.slane %v1521, %v1534
    %v1536 = vcombine.high %v1528, %v1528
    %v1537 = vcombine.high %v1535, %v1535
    %v1538 = vcombine.high %v882, %v882
    %v1540 = vunpack.c.l.s4 1983009808
    %v1541 = vunpack.c.0.s8 %v1540
    %v1542 = vlaneseq
    %v1543 = vshrl.u32 %v1542, 7
    %v1544 = vsub.s32 %v1541, %v1543
    %v1545 = vrot.slane %v882, %v1544
    %v1547 = vunpack.c.l.s4 1983009808
    %v1548 = vunpack.c.0.s8 %v1547
    %v1549 = vlaneseq
    %v1550 = vshrl.u32 %v1549, 7
    %v1551 = vsub.s32 %v1548, %v1550
    %v1552 = vrot.slane %v1538, %v1551
    %v1553 = vcombine.high %v1545, %v1545
    %v1554 = vcombine.high %v1552, %v1552
    %v1555 = vcombine.high %v883, %v883
    %v1557 = vunpack.c.l.s4 1983009808
    %v1558 = vunpack.c.0.s8 %v1557
    %v1559 = vlaneseq
    %v1560 = vshrl.u32 %v1559, 7
    %v1561 = vsub.s32 %v1558, %v1560
    %v1562 = vrot.slane %v883, %v1561
    %v1564 = vunpack.c.l.s4 1983009808
    %v1565 = vunpack.c.0.s8 %v1564
    %v1566 = vlaneseq
    %v1567 = vshrl.u32 %v1566, 7
    %v1568 = vsub.s32 %v1565, %v1567
    %v1569 = vrot.slane %v1555, %v1568
    %v1570 = vcombine.high %v1562, %v1562
    %v1571 = vcombine.high %v1569, %v1569
    %v1572 = vcombine.high %v884, %v884
    %v1574 = vunpack.c.l.s4 1983009808
    %v1575 = vunpack.c.0.s8 %v1574
    %v1576 = vlaneseq
    %v1577 = vshrl.u32 %v1576, 7
    %v1578 = vsub.s32 %v1575, %v1577
    %v1579 = vrot.slane %v884, %v1578
    %v1581 = vunpack.c.l.s4 1983009808
    %v1582 = vunpack.c.0.s8 %v1581
    %v1583 = vlaneseq
    %v1584 = vshrl.u32 %v1583, 7
    %v1585 = vsub.s32 %v1582, %v1584
    %v1586 = vrot.slane %v1572, %v1585
    %v1587 = vcombine.high %v1579, %v1579
    %v1588 = vcombine.high %v1586, %v1586
    %v1589 = vcombine.high %v885, %v885
    %v1591 = vunpack.c.l.s4 1983009808
    %v1592 = vunpack.c.0.s8 %v1591
    %v1593 = vlaneseq
    %v1594 = vshrl.u32 %v1593, 7
    %v1595 = vsub.s32 %v1592, %v1594
    %v1596 = vrot.slane %v885, %v1595
    %v1598 = vunpack.c.l.s4 1983009808
    %v1599 = vunpack.c.0.s8 %v1598
    %v1600 = vlaneseq
    %v1601 = vshrl.u32 %v1600, 7
    %v1602 = vsub.s32 %v1599, %v1601
    %v1603 = vrot.slane %v1589, %v1602
    %v1604 = vcombine.high %v1596, %v1596
    %v1605 = vcombine.high %v1603, %v1603
    %v1606 = vcombine.high %v886, %v886
    %v1608 = vunpack.c.l.s4 1983009808
    %v1609 = vunpack.c.0.s8 %v1608
    %v1610 = vlaneseq
    %v1611 = vshrl.u32 %v1610, 7
    %v1612 = vsub.s32 %v1609, %v1611
    %v1613 = vrot.slane %v886, %v1612
    %v1615 = vunpack.c.l.s4 1983009808
    %v1616 = vunpack.c.0.s8 %v1615
    %v1617 = vlaneseq
    %v1618 = vshrl.u32 %v1617, 7
    %v1619 = vsub.s32 %v1616, %v1618
    %v1620 = vrot.slane %v1606, %v1619
    %v1621 = vcombine.high %v1613, %v1613
    %v1622 = vcombine.high %v1620, %v1620
    %v1623 = vcombine.high %v887, %v887
    %v1625 = vunpack.c.l.s4 1983009808
    %v1626 = vunpack.c.0.s8 %v1625
    %v1627 = vlaneseq
    %v1628 = vshrl.u32 %v1627, 7
    %v1629 = vsub.s32 %v1626, %v1628
    %v1630 = vrot.slane %v887, %v1629
    %v1632 = vunpack.c.l.s4 1983009808
    %v1633 = vunpack.c.0.s8 %v1632
    %v1634 = vlaneseq
    %v1635 = vshrl.u32 %v1634, 7
    %v1636 = vsub.s32 %v1633, %v1635
    %v1637 = vrot.slane %v1623, %v1636
    %v1638 = vcombine.high %v1630, %v1630
    %v1639 = vcombine.high %v1637, %v1637
    %v1640 = vcombine.high %v888, %v888
    %v1642 = vunpack.c.l.s4 1983009808
    %v1643 = vunpack.c.0.s8 %v1642
    %v1644 = vlaneseq
    %v1645 = vshrl.u32 %v1644, 7
    %v1646 = vsub.s32 %v1643, %v1645
    %v1647 = vrot.slane %v888, %v1646
    %v1649 = vunpack.c.l.s4 1983009808
    %v1650 = vunpack.c.0.s8 %v1649
    %v1651 = vlaneseq
    %v1652 = vshrl.u32 %v1651, 7
    %v1653 = vsub.s32 %v1650, %v1652
    %v1654 = vrot.slane %v1640, %v1653
    %v1655 = vcombine.high %v1647, %v1647
    %v1656 = vcombine.high %v1654, %v1654
    %v1657 = vcombine.high %v889, %v889
    %v1659 = vunpack.c.l.s4 1983009808
    %v1660 = vunpack.c.0.s8 %v1659
    %v1661 = vlaneseq
    %v1662 = vshrl.u32 %v1661, 7
    %v1663 = vsub.s32 %v1660, %v1662
    %v1664 = vrot.slane %v889, %v1663
    %v1666 = vunpack.c.l.s4 1983009808
    %v1667 = vunpack.c.0.s8 %v1666
    %v1668 = vlaneseq
    %v1669 = vshrl.u32 %v1668, 7
    %v1670 = vsub.s32 %v1667, %v1669
    %v1671 = vrot.slane %v1657, %v1670
    %v1672 = vcombine.high %v1664, %v1664
    %v1673 = vcombine.high %v1671, %v1671
    %v1674 = vcombine.high %v890, %v890
    %v1676 = vunpack.c.l.s4 1983009808
    %v1677 = vunpack.c.0.s8 %v1676
    %v1678 = vlaneseq
    %v1679 = vshrl.u32 %v1678, 7
    %v1680 = vsub.s32 %v1677, %v1679
    %v1681 = vrot.slane %v890, %v1680
    %v1683 = vunpack.c.l.s4 1983009808
    %v1684 = vunpack.c.0.s8 %v1683
    %v1685 = vlaneseq
    %v1686 = vshrl.u32 %v1685, 7
    %v1687 = vsub.s32 %v1684, %v1686
    %v1688 = vrot.slane %v1674, %v1687
    %v1689 = vcombine.high %v1681, %v1681
    %v1690 = vcombine.high %v1688, %v1688
    %v1691 = vcombine.high %v891, %v891
    %v1693 = vunpack.c.l.s4 1983009808
    %v1694 = vunpack.c.0.s8 %v1693
    %v1695 = vlaneseq
    %v1696 = vshrl.u32 %v1695, 7
    %v1697 = vsub.s32 %v1694, %v1696
    %v1698 = vrot.slane %v891, %v1697
    %v1700 = vunpack.c.l.s4 1983009808
    %v1701 = vunpack.c.0.s8 %v1700
    %v1702 = vlaneseq
    %v1703 = vshrl.u32 %v1702, 7
    %v1704 = vsub.s32 %v1701, %v1703
    %v1705 = vrot.slane %v1691, %v1704
    %v1706 = vcombine.high %v1698, %v1698
    %v1707 = vcombine.high %v1705, %v1705
    %v1708 = vcombine.high %v892, %v892
    %v1710 = vunpack.c.l.s4 1983009808
    %v1711 = vunpack.c.0.s8 %v1710
    %v1712 = vlaneseq
    %v1713 = vshrl.u32 %v1712, 7
    %v1714 = vsub.s32 %v1711, %v1713
    %v1715 = vrot.slane %v892, %v1714
    %v1717 = vunpack.c.l.s4 1983009808
    %v1718 = vunpack.c.0.s8 %v1717
    %v1719 = vlaneseq
    %v1720 = vshrl.u32 %v1719, 7
    %v1721 = vsub.s32 %v1718, %v1720
    %v1722 = vrot.slane %v1708, %v1721
    %v1723 = vcombine.high %v1715, %v1715
    %v1724 = vcombine.high %v1722, %v1722
    %v1725 = vcombine.high %v893, %v893
    %v1727 = vunpack.c.l.s4 1983009808
    %v1728 = vunpack.c.0.s8 %v1727
    %v1729 = vlaneseq
    %v1730 = vshrl.u32 %v1729, 7
    %v1731 = vsub.s32 %v1728, %v1730
    %v1732 = vrot.slane %v893, %v1731
    %v1734 = vunpack.c.l.s4 1983009808
    %v1735 = vunpack.c.0.s8 %v1734
    %v1736 = vlaneseq
    %v1737 = vshrl.u32 %v1736, 7
    %v1738 = vsub.s32 %v1735, %v1737
    %v1739 = vrot.slane %v1725, %v1738
    %v1740 = vcombine.high %v1732, %v1732
    %v1741 = vcombine.high %v1739, %v1739
    %v1742 = vcombine.high %v894, %v894
    %v1744 = vunpack.c.l.s4 1983009808
    %v1745 = vunpack.c.0.s8 %v1744
    %v1746 = vlaneseq
    %v1747 = vshrl.u32 %v1746, 7
    %v1748 = vsub.s32 %v1745, %v1747
    %v1749 = vrot.slane %v894, %v1748
    %v1751 = vunpack.c.l.s4 1983009808
    %v1752 = vunpack.c.0.s8 %v1751
    %v1753 = vlaneseq
    %v1754 = vshrl.u32 %v1753, 7
    %v1755 = vsub.s32 %v1752, %v1754
    %v1756 = vrot.slane %v1742, %v1755
    %v1757 = vcombine.high %v1749, %v1749
    %v1758 = vcombine.high %v1756, %v1756
    %v1759 = vcombine.high %v895, %v895
    %v1761 = vunpack.c.l.s4 1983009808
    %v1762 = vunpack.c.0.s8 %v1761
    %v1763 = vlaneseq
    %v1764 = vshrl.u32 %v1763, 7
    %v1765 = vsub.s32 %v1762, %v1764
    %v1766 = vrot.slane %v895, %v1765
    %v1768 = vunpack.c.l.s4 1983009808
    %v1769 = vunpack.c.0.s8 %v1768
    %v1770 = vlaneseq
    %v1771 = vshrl.u32 %v1770, 7
    %v1772 = vsub.s32 %v1769, %v1771
    %v1773 = vrot.slane %v1759, %v1772
    %v1774 = vcombine.high %v1766, %v1766
    %v1775 = vcombine.high %v1773, %v1773
    %v1776 = vcombine.high %v896, %v896
    %v1778 = vunpack.c.l.s4 1983009808
    %v1779 = vunpack.c.0.s8 %v1778
    %v1780 = vlaneseq
    %v1781 = vshrl.u32 %v1780, 7
    %v1782 = vsub.s32 %v1779, %v1781
    %v1783 = vrot.slane %v896, %v1782
    %v1785 = vunpack.c.l.s4 1983009808
    %v1786 = vunpack.c.0.s8 %v1785
    %v1787 = vlaneseq
    %v1788 = vshrl.u32 %v1787, 7
    %v1789 = vsub.s32 %v1786, %v1788
    %v1790 = vrot.slane %v1776, %v1789
    %v1791 = vcombine.high %v1783, %v1783
    %v1792 = vcombine.high %v1790, %v1790
    %v1793 = vcombine.high %v897, %v897
    %v1795 = vunpack.c.l.s4 1983009808
    %v1796 = vunpack.c.0.s8 %v1795
    %v1797 = vlaneseq
    %v1798 = vshrl.u32 %v1797, 7
    %v1799 = vsub.s32 %v1796, %v1798
    %v1800 = vrot.slane %v897, %v1799
    %v1802 = vunpack.c.l.s4 1983009808
    %v1803 = vunpack.c.0.s8 %v1802
    %v1804 = vlaneseq
    %v1805 = vshrl.u32 %v1804, 7
    %v1806 = vsub.s32 %v1803, %v1805
    %v1807 = vrot.slane %v1793, %v1806
    %v1808 = vcombine.high %v1800, %v1800
    %v1809 = vcombine.high %v1807, %v1807
    %v1810 = vcombine.high %v898, %v898
    %v1812 = vunpack.c.l.s4 1983009808
    %v1813 = vunpack.c.0.s8 %v1812
    %v1814 = vlaneseq
    %v1815 = vshrl.u32 %v1814, 7
    %v1816 = vsub.s32 %v1813, %v1815
    %v1817 = vrot.slane %v898, %v1816
    %v1819 = vunpack.c.l.s4 1983009808
    %v1820 = vunpack.c.0.s8 %v1819
    %v1821 = vlaneseq
    %v1822 = vshrl.u32 %v1821, 7
    %v1823 = vsub.s32 %v1820, %v1822
    %v1824 = vrot.slane %v1810, %v1823
    %v1825 = vcombine.high %v1817, %v1817
    %v1826 = vcombine.high %v1824, %v1824
    %v1827 = vcombine.high %v899, %v899
    %v1829 = vunpack.c.l.s4 1983009808
    %v1830 = vunpack.c.0.s8 %v1829
    %v1831 = vlaneseq
    %v1832 = vshrl.u32 %v1831, 7
    %v1833 = vsub.s32 %v1830, %v1832
    %v1834 = vrot.slane %v899, %v1833
    %v1836 = vunpack.c.l.s4 1983009808
    %v1837 = vunpack.c.0.s8 %v1836
    %v1838 = vlaneseq
    %v1839 = vshrl.u32 %v1838, 7
    %v1840 = vsub.s32 %v1837, %v1839
    %v1841 = vrot.slane %v1827, %v1840
    %v1842 = vcombine.high %v1834, %v1834
    %v1843 = vcombine.high %v1841, %v1841
    %v1844 = vcombine.high %v900, %v900
    %v1846 = vunpack.c.l.s4 1983009808
    %v1847 = vunpack.c.0.s8 %v1846
    %v1848 = vlaneseq
    %v1849 = vshrl.u32 %v1848, 7
    %v1850 = vsub.s32 %v1847, %v1849
    %v1851 = vrot.slane %v900, %v1850
    %v1853 = vunpack.c.l.s4 1983009808
    %v1854 = vunpack.c.0.s8 %v1853
    %v1855 = vlaneseq
    %v1856 = vshrl.u32 %v1855, 7
    %v1857 = vsub.s32 %v1854, %v1856
    %v1858 = vrot.slane %v1844, %v1857
    %v1859 = vcombine.high %v1851, %v1851
    %v1860 = vcombine.high %v1858, %v1858
    %v1861 = vcombine.high %v901, %v901
    %v1863 = vunpack.c.l.s4 1983009808
    %v1864 = vunpack.c.0.s8 %v1863
    %v1865 = vlaneseq
    %v1866 = vshrl.u32 %v1865, 7
    %v1867 = vsub.s32 %v1864, %v1866
    %v1868 = vrot.slane %v901, %v1867
    %v1870 = vunpack.c.l.s4 1983009808
    %v1871 = vunpack.c.0.s8 %v1870
    %v1872 = vlaneseq
    %v1873 = vshrl.u32 %v1872, 7
    %v1874 = vsub.s32 %v1871, %v1873
    %v1875 = vrot.slane %v1861, %v1874
    %v1876 = vcombine.high %v1868, %v1868
    %v1877 = vcombine.high %v1875, %v1875
    %v1878 = vcombine.high %v902, %v902
    %v1880 = vunpack.c.l.s4 1983009808
    %v1881 = vunpack.c.0.s8 %v1880
    %v1882 = vlaneseq
    %v1883 = vshrl.u32 %v1882, 7
    %v1884 = vsub.s32 %v1881, %v1883
    %v1885 = vrot.slane %v902, %v1884
    %v1887 = vunpack.c.l.s4 1983009808
    %v1888 = vunpack.c.0.s8 %v1887
    %v1889 = vlaneseq
    %v1890 = vshrl.u32 %v1889, 7
    %v1891 = vsub.s32 %v1888, %v1890
    %v1892 = vrot.slane %v1878, %v1891
    %v1893 = vcombine.high %v1885, %v1885
    %v1894 = vcombine.high %v1892, %v1892
    %v1895 = vcombine.high %v903, %v903
    %v1897 = vunpack.c.l.s4 1983009808
    %v1898 = vunpack.c.0.s8 %v1897
    %v1899 = vlaneseq
    %v1900 = vshrl.u32 %v1899, 7
    %v1901 = vsub.s32 %v1898, %v1900
    %v1902 = vrot.slane %v903, %v1901
    %v1904 = vunpack.c.l.s4 1983009808
    %v1905 = vunpack.c.0.s8 %v1904
    %v1906 = vlaneseq
    %v1907 = vshrl.u32 %v1906, 7
    %v1908 = vsub.s32 %v1905, %v1907
    %v1909 = vrot.slane %v1895, %v1908
    %v1910 = vcombine.high %v1902, %v1902
    %v1911 = vcombine.high %v1909, %v1909
    %v1912 = vcombine.high %v904, %v904
    %v1914 = vunpack.c.l.s4 1983009808
    %v1915 = vunpack.c.0.s8 %v1914
    %v1916 = vlaneseq
    %v1917 = vshrl.u32 %v1916, 7
    %v1918 = vsub.s32 %v1915, %v1917
    %v1919 = vrot.slane %v904, %v1918
    %v1921 = vunpack.c.l.s4 1983009808
    %v1922 = vunpack.c.0.s8 %v1921
    %v1923 = vlaneseq
    %v1924 = vshrl.u32 %v1923, 7
    %v1925 = vsub.s32 %v1922, %v1924
    %v1926 = vrot.slane %v1912, %v1925
    %v1927 = vcombine.high %v1919, %v1919
    %v1928 = vcombine.high %v1926, %v1926
    %v1929 = vcombine.high %v905, %v905
    %v1931 = vunpack.c.l.s4 1983009808
    %v1932 = vunpack.c.0.s8 %v1931
    %v1933 = vlaneseq
    %v1934 = vshrl.u32 %v1933, 7
    %v1935 = vsub.s32 %v1932, %v1934
    %v1936 = vrot.slane %v905, %v1935
    %v1938 = vunpack.c.l.s4 1983009808
    %v1939 = vunpack.c.0.s8 %v1938
    %v1940 = vlaneseq
    %v1941 = vshrl.u32 %v1940, 7
    %v1942 = vsub.s32 %v1939, %v1941
    %v1943 = vrot.slane %v1929, %v1942
    %v1944 = vcombine.high %v1936, %v1936
    %v1945 = vcombine.high %v1943, %v1943
    %v1946 = vcombine.high %v906, %v906
    %v1948 = vunpack.c.l.s4 1983009808
    %v1949 = vunpack.c.0.s8 %v1948
    %v1950 = vlaneseq
    %v1951 = vshrl.u32 %v1950, 7
    %v1952 = vsub.s32 %v1949, %v1951
    %v1953 = vrot.slane %v906, %v1952
    %v1955 = vunpack.c.l.s4 1983009808
    %v1956 = vunpack.c.0.s8 %v1955
    %v1957 = vlaneseq
    %v1958 = vshrl.u32 %v1957, 7
    %v1959 = vsub.s32 %v1956, %v1958
    %v1960 = vrot.slane %v1946, %v1959
    %v1961 = vcombine.high %v1953, %v1953
    %v1962 = vcombine.high %v1960, %v1960
    %v1963 = vcombine.high %v907, %v907
    %v1965 = vunpack.c.l.s4 1983009808
    %v1966 = vunpack.c.0.s8 %v1965
    %v1967 = vlaneseq
    %v1968 = vshrl.u32 %v1967, 7
    %v1969 = vsub.s32 %v1966, %v1968
    %v1970 = vrot.slane %v907, %v1969
    %v1972 = vunpack.c.l.s4 1983009808
    %v1973 = vunpack.c.0.s8 %v1972
    %v1974 = vlaneseq
    %v1975 = vshrl.u32 %v1974, 7
    %v1976 = vsub.s32 %v1973, %v1975
    %v1977 = vrot.slane %v1963, %v1976
    %v1978 = vcombine.high %v1970, %v1970
    %v1979 = vcombine.high %v1977, %v1977
    %v1980 = vcombine.high %v908, %v908
    %v1982 = vunpack.c.l.s4 1983009808
    %v1983 = vunpack.c.0.s8 %v1982
    %v1984 = vlaneseq
    %v1985 = vshrl.u32 %v1984, 7
    %v1986 = vsub.s32 %v1983, %v1985
    %v1987 = vrot.slane %v908, %v1986
    %v1989 = vunpack.c.l.s4 1983009808
    %v1990 = vunpack.c.0.s8 %v1989
    %v1991 = vlaneseq
    %v1992 = vshrl.u32 %v1991, 7
    %v1993 = vsub.s32 %v1990, %v1992
    %v1994 = vrot.slane %v1980, %v1993
    %v1995 = vcombine.high %v1987, %v1987
    %v1996 = vcombine.high %v1994, %v1994
    %v1997 = vcombine.high %v909, %v909
    %v1999 = vunpack.c.l.s4 1983009808
    %v2000 = vunpack.c.0.s8 %v1999
    %v2001 = vlaneseq
    %v2002 = vshrl.u32 %v2001, 7
    %v2003 = vsub.s32 %v2000, %v2002
    %v2004 = vrot.slane %v909, %v2003
    %v2006 = vunpack.c.l.s4 1983009808
    %v2007 = vunpack.c.0.s8 %v2006
    %v2008 = vlaneseq
    %v2009 = vshrl.u32 %v2008, 7
    %v2010 = vsub.s32 %v2007, %v2009
    %v2011 = vrot.slane %v1997, %v2010
    %v2012 = vcombine.high %v2004, %v2004
    %v2013 = vcombine.high %v2011, %v2011
    %v2014 = vcombine.high %v910, %v910
    %v2016 = vunpack.c.l.s4 1983009808
    %v2017 = vunpack.c.0.s8 %v2016
    %v2018 = vlaneseq
    %v2019 = vshrl.u32 %v2018, 7
    %v2020 = vsub.s32 %v2017, %v2019
    %v2021 = vrot.slane %v910, %v2020
    %v2023 = vunpack.c.l.s4 1983009808
    %v2024 = vunpack.c.0.s8 %v2023
    %v2025 = vlaneseq
    %v2026 = vshrl.u32 %v2025, 7
    %v2027 = vsub.s32 %v2024, %v2026
    %v2028 = vrot.slane %v2014, %v2027
    %v2029 = vcombine.high %v2021, %v2021
    %v2030 = vcombine.high %v2028, %v2028
    %v2031 = vcombine.high %v911, %v911
    %v2033 = vunpack.c.l.s4 1983009808
    %v2034 = vunpack.c.0.s8 %v2033
    %v2035 = vlaneseq
    %v2036 = vshrl.u32 %v2035, 7
    %v2037 = vsub.s32 %v2034, %v2036
    %v2038 = vrot.slane %v911, %v2037
    %v2040 = vunpack.c.l.s4 1983009808
    %v2041 = vunpack.c.0.s8 %v2040
    %v2042 = vlaneseq
    %v2043 = vshrl.u32 %v2042, 7
    %v2044 = vsub.s32 %v2041, %v2043
    %v2045 = vrot.slane %v2031, %v2044
    %v2046 = vcombine.high %v2038, %v2038
    %v2047 = vcombine.high %v2045, %v2045
    %v2048 = vcombine.high %v912, %v912
    %v2050 = vunpack.c.l.s4 1983009808
    %v2051 = vunpack.c.0.s8 %v2050
    %v2052 = vlaneseq
    %v2053 = vshrl.u32 %v2052, 7
    %v2054 = vsub.s32 %v2051, %v2053
    %v2055 = vrot.slane %v912, %v2054
    %v2057 = vunpack.c.l.s4 1983009808
    %v2058 = vunpack.c.0.s8 %v2057
    %v2059 = vlaneseq
    %v2060 = vshrl.u32 %v2059, 7
    %v2061 = vsub.s32 %v2058, %v2060
    %v2062 = vrot.slane %v2048, %v2061
    %v2063 = vcombine.high %v2055, %v2055
    %v2064 = vcombine.high %v2062, %v2062
    %vm2321 = vcmask 123904
    %v2322 = vsel %vm2321, %v984, -inf
    %v2323 = vrot.slane %v2322, 4
    %v2324 = vmax.f32 %v2322, %v2323
    %v2325 = vrot.slane %v2324, 2
    %v2326 = vmax.f32 %v2324, %v2325
    %v2327 = vrot.slane %v2326, 1
    %v2328 = vmax.f32 %v2326, %v2327
    %v2329 = vsel %vm2321, %v992, -inf
    %v2330 = vrot.slane %v2329, 4
    %v2331 = vmax.f32 %v2329, %v2330
    %v2332 = vrot.slane %v2331, 2
    %v2333 = vmax.f32 %v2331, %v2332
    %v2334 = vrot.slane %v2333, 1
    %v2335 = vmax.f32 %v2333, %v2334
    %v2336 = vsel %vm2321, %v991, -inf
    %v2337 = vrot.slane %v2336, 4
    %v2338 = vmax.f32 %v2336, %v2337
    %v2339 = vrot.slane %v2338, 2
    %v2340 = vmax.f32 %v2338, %v2339
    %v2341 = vrot.slane %v2340, 1
    %v2342 = vmax.f32 %v2340, %v2341
    %v2343 = vsel %vm2321, %v993, -inf
    %v2344 = vrot.slane %v2343, 4
    %v2345 = vmax.f32 %v2343, %v2344
    %v2346 = vrot.slane %v2345, 2
    %v2347 = vmax.f32 %v2345, %v2346
    %v2348 = vrot.slane %v2347, 1
    %v2349 = vmax.f32 %v2347, %v2348
    %v2350 = vsel %vm2321, %v1001, -inf
    %v2351 = vrot.slane %v2350, 4
    %v2352 = vmax.f32 %v2350, %v2351
    %v2353 = vrot.slane %v2352, 2
    %v2354 = vmax.f32 %v2352, %v2353
    %v2355 = vrot.slane %v2354, 1
    %v2356 = vmax.f32 %v2354, %v2355
    %v2357 = vsel %vm2321, %v1009, -inf
    %v2358 = vrot.slane %v2357, 4
    %v2359 = vmax.f32 %v2357, %v2358
    %v2360 = vrot.slane %v2359, 2
    %v2361 = vmax.f32 %v2359, %v2360
    %v2362 = vrot.slane %v2361, 1
    %v2363 = vmax.f32 %v2361, %v2362
    %v2364 = vsel %vm2321, %v1008, -inf
    %v2365 = vrot.slane %v2364, 4
    %v2366 = vmax.f32 %v2364, %v2365
    %v2367 = vrot.slane %v2366, 2
    %v2368 = vmax.f32 %v2366, %v2367
    %v2369 = vrot.slane %v2368, 1
    %v2370 = vmax.f32 %v2368, %v2369
    %v2371 = vsel %vm2321, %v1010, -inf
    %v2372 = vrot.slane %v2371, 4
    %v2373 = vmax.f32 %v2371, %v2372
    %v2374 = vrot.slane %v2373, 2
    %v2375 = vmax.f32 %v2373, %v2374
    %v2376 = vrot.slane %v2375, 1
    %v2377 = vmax.f32 %v2375, %v2376
    %v2378 = vsel %vm2321, %v1018, -inf
    %v2379 = vrot.slane %v2378, 4
    %v2380 = vmax.f32 %v2378, %v2379
    %v2381 = vrot.slane %v2380, 2
    %v2382 = vmax.f32 %v2380, %v2381
    %v2383 = vrot.slane %v2382, 1
    %v2384 = vmax.f32 %v2382, %v2383
    %v2385 = vsel %vm2321, %v1026, -inf
    %v2386 = vrot.slane %v2385, 4
    %v2387 = vmax.f32 %v2385, %v2386
    %v2388 = vrot.slane %v2387, 2
    %v2389 = vmax.f32 %v2387, %v2388
    %v2390 = vrot.slane %v2389, 1
    %v2391 = vmax.f32 %v2389, %v2390
    %v2392 = vsel %vm2321, %v1025, -inf
    %v2393 = vrot.slane %v2392, 4
    %v2394 = vmax.f32 %v2392, %v2393
    %v2395 = vrot.slane %v2394, 2
    %v2396 = vmax.f32 %v2394, %v2395
    %v2397 = vrot.slane %v2396, 1
    %v2398 = vmax.f32 %v2396, %v2397
    %v2399 = vsel %vm2321, %v1027, -inf
    %v2400 = vrot.slane %v2399, 4
    %v2401 = vmax.f32 %v2399, %v2400
    %v2402 = vrot.slane %v2401, 2
    %v2403 = vmax.f32 %v2401, %v2402
    %v2404 = vrot.slane %v2403, 1
    %v2405 = vmax.f32 %v2403, %v2404
    %v2406 = vsel %vm2321, %v1035, -inf
    %v2407 = vrot.slane %v2406, 4
    %v2408 = vmax.f32 %v2406, %v2407
    %v2409 = vrot.slane %v2408, 2
    %v2410 = vmax.f32 %v2408, %v2409
    %v2411 = vrot.slane %v2410, 1
    %v2412 = vmax.f32 %v2410, %v2411
    %v2413 = vsel %vm2321, %v1043, -inf
    %v2414 = vrot.slane %v2413, 4
    %v2415 = vmax.f32 %v2413, %v2414
    %v2416 = vrot.slane %v2415, 2
    %v2417 = vmax.f32 %v2415, %v2416
    %v2418 = vrot.slane %v2417, 1
    %v2419 = vmax.f32 %v2417, %v2418
    %v2420 = vsel %vm2321, %v1042, -inf
    %v2421 = vrot.slane %v2420, 4
    %v2422 = vmax.f32 %v2420, %v2421
    %v2423 = vrot.slane %v2422, 2
    %v2424 = vmax.f32 %v2422, %v2423
    %v2425 = vrot.slane %v2424, 1
    %v2426 = vmax.f32 %v2424, %v2425
    %v2427 = vsel %vm2321, %v1044, -inf
    %v2428 = vrot.slane %v2427, 4
    %v2429 = vmax.f32 %v2427, %v2428
    %v2430 = vrot.slane %v2429, 2
    %v2431 = vmax.f32 %v2429, %v2430
    %v2432 = vrot.slane %v2431, 1
    %v2433 = vmax.f32 %v2431, %v2432
    %v2434 = vsel %vm2321, %v1052, -inf
    %v2435 = vrot.slane %v2434, 4
    %v2436 = vmax.f32 %v2434, %v2435
    %v2437 = vrot.slane %v2436, 2
    %v2438 = vmax.f32 %v2436, %v2437
    %v2439 = vrot.slane %v2438, 1
    %v2440 = vmax.f32 %v2438, %v2439
    %v2441 = vsel %vm2321, %v1060, -inf
    %v2442 = vrot.slane %v2441, 4
    %v2443 = vmax.f32 %v2441, %v2442
    %v2444 = vrot.slane %v2443, 2
    %v2445 = vmax.f32 %v2443, %v2444
    %v2446 = vrot.slane %v2445, 1
    %v2447 = vmax.f32 %v2445, %v2446
    %v2448 = vsel %vm2321, %v1059, -inf
    %v2449 = vrot.slane %v2448, 4
    %v2450 = vmax.f32 %v2448, %v2449
    %v2451 = vrot.slane %v2450, 2
    %v2452 = vmax.f32 %v2450, %v2451
    %v2453 = vrot.slane %v2452, 1
    %v2454 = vmax.f32 %v2452, %v2453
    %v2455 = vsel %vm2321, %v1061, -inf
    %v2456 = vrot.slane %v2455, 4
    %v2457 = vmax.f32 %v2455, %v2456
    %v2458 = vrot.slane %v2457, 2
    %v2459 = vmax.f32 %v2457, %v2458
    %v2460 = vrot.slane %v2459, 1
    %v2461 = vmax.f32 %v2459, %v2460
    %v2462 = vsel %vm2321, %v1069, -inf
    %v2463 = vrot.slane %v2462, 4
    %v2464 = vmax.f32 %v2462, %v2463
    %v2465 = vrot.slane %v2464, 2
    %v2466 = vmax.f32 %v2464, %v2465
    %v2467 = vrot.slane %v2466, 1
    %v2468 = vmax.f32 %v2466, %v2467
    %v2469 = vsel %vm2321, %v1077, -inf
    %v2470 = vrot.slane %v2469, 4
    %v2471 = vmax.f32 %v2469, %v2470
    %v2472 = vrot.slane %v2471, 2
    %v2473 = vmax.f32 %v2471, %v2472
    %v2474 = vrot.slane %v2473, 1
    %v2475 = vmax.f32 %v2473, %v2474
    %v2476 = vsel %vm2321, %v1076, -inf
    %v2477 = vrot.slane %v2476, 4
    %v2478 = vmax.f32 %v2476, %v2477
    %v2479 = vrot.slane %v2478, 2
    %v2480 = vmax.f32 %v2478, %v2479
    %v2481 = vrot.slane %v2480, 1
    %v2482 = vmax.f32 %v2480, %v2481
    %v2483 = vsel %vm2321, %v1078, -inf
    %v2484 = vrot.slane %v2483, 4
    %v2485 = vmax.f32 %v2483, %v2484
    %v2486 = vrot.slane %v2485, 2
    %v2487 = vmax.f32 %v2485, %v2486
    %v2488 = vrot.slane %v2487, 1
    %v2489 = vmax.f32 %v2487, %v2488
    %v2490 = vsel %vm2321, %v1086, -inf
    %v2491 = vrot.slane %v2490, 4
    %v2492 = vmax.f32 %v2490, %v2491
    %v2493 = vrot.slane %v2492, 2
    %v2494 = vmax.f32 %v2492, %v2493
    %v2495 = vrot.slane %v2494, 1
    %v2496 = vmax.f32 %v2494, %v2495
    %v2497 = vsel %vm2321, %v1094, -inf
    %v2498 = vrot.slane %v2497, 4
    %v2499 = vmax.f32 %v2497, %v2498
    %v2500 = vrot.slane %v2499, 2
    %v2501 = vmax.f32 %v2499, %v2500
    %v2502 = vrot.slane %v2501, 1
    %v2503 = vmax.f32 %v2501, %v2502
    %v2504 = vsel %vm2321, %v1093, -inf
    %v2505 = vrot.slane %v2504, 4
    %v2506 = vmax.f32 %v2504, %v2505
    %v2507 = vrot.slane %v2506, 2
    %v2508 = vmax.f32 %v2506, %v2507
    %v2509 = vrot.slane %v2508, 1
    %v2510 = vmax.f32 %v2508, %v2509
    %v2511 = vsel %vm2321, %v1095, -inf
    %v2512 = vrot.slane %v2511, 4
    %v2513 = vmax.f32 %v2511, %v2512
    %v2514 = vrot.slane %v2513, 2
    %v2515 = vmax.f32 %v2513, %v2514
    %v2516 = vrot.slane %v2515, 1
    %v2517 = vmax.f32 %v2515, %v2516
    %v2518 = vsel %vm2321, %v1103, -inf
    %v2519 = vrot.slane %v2518, 4
    %v2520 = vmax.f32 %v2518, %v2519
    %v2521 = vrot.slane %v2520, 2
    %v2522 = vmax.f32 %v2520, %v2521
    %v2523 = vrot.slane %v2522, 1
    %v2524 = vmax.f32 %v2522, %v2523
    %v2525 = vsel %vm2321, %v1111, -inf
    %v2526 = vrot.slane %v2525, 4
    %v2527 = vmax.f32 %v2525, %v2526
    %v2528 = vrot.slane %v2527, 2
    %v2529 = vmax.f32 %v2527, %v2528
    %v2530 = vrot.slane %v2529, 1
    %v2531 = vmax.f32 %v2529, %v2530
    %v2532 = vsel %vm2321, %v1110, -inf
    %v2533 = vrot.slane %v2532, 4
    %v2534 = vmax.f32 %v2532, %v2533
    %v2535 = vrot.slane %v2534, 2
    %v2536 = vmax.f32 %v2534, %v2535
    %v2537 = vrot.slane %v2536, 1
    %v2538 = vmax.f32 %v2536, %v2537
    %v2539 = vsel %vm2321, %v1112, -inf
    %v2540 = vrot.slane %v2539, 4
    %v2541 = vmax.f32 %v2539, %v2540
    %v2542 = vrot.slane %v2541, 2
    %v2543 = vmax.f32 %v2541, %v2542
    %v2544 = vrot.slane %v2543, 1
    %v2545 = vmax.f32 %v2543, %v2544
    %v2546 = vsel %vm2321, %v1120, -inf
    %v2547 = vrot.slane %v2546, 4
    %v2548 = vmax.f32 %v2546, %v2547
    %v2549 = vrot.slane %v2548, 2
    %v2550 = vmax.f32 %v2548, %v2549
    %v2551 = vrot.slane %v2550, 1
    %v2552 = vmax.f32 %v2550, %v2551
    %v2553 = vsel %vm2321, %v1128, -inf
    %v2554 = vrot.slane %v2553, 4
    %v2555 = vmax.f32 %v2553, %v2554
    %v2556 = vrot.slane %v2555, 2
    %v2557 = vmax.f32 %v2555, %v2556
    %v2558 = vrot.slane %v2557, 1
    %v2559 = vmax.f32 %v2557, %v2558
    %v2560 = vsel %vm2321, %v1127, -inf
    %v2561 = vrot.slane %v2560, 4
    %v2562 = vmax.f32 %v2560, %v2561
    %v2563 = vrot.slane %v2562, 2
    %v2564 = vmax.f32 %v2562, %v2563
    %v2565 = vrot.slane %v2564, 1
    %v2566 = vmax.f32 %v2564, %v2565
    %v2567 = vsel %vm2321, %v1129, -inf
    %v2568 = vrot.slane %v2567, 4
    %v2569 = vmax.f32 %v2567, %v2568
    %v2570 = vrot.slane %v2569, 2
    %v2571 = vmax.f32 %v2569, %v2570
    %v2572 = vrot.slane %v2571, 1
    %v2573 = vmax.f32 %v2571, %v2572
    %v2574 = vsel %vm2321, %v1137, -inf
    %v2575 = vrot.slane %v2574, 4
    %v2576 = vmax.f32 %v2574, %v2575
    %v2577 = vrot.slane %v2576, 2
    %v2578 = vmax.f32 %v2576, %v2577
    %v2579 = vrot.slane %v2578, 1
    %v2580 = vmax.f32 %v2578, %v2579
    %v2581 = vsel %vm2321, %v1145, -inf
    %v2582 = vrot.slane %v2581, 4
    %v2583 = vmax.f32 %v2581, %v2582
    %v2584 = vrot.slane %v2583, 2
    %v2585 = vmax.f32 %v2583, %v2584
    %v2586 = vrot.slane %v2585, 1
    %v2587 = vmax.f32 %v2585, %v2586
    %v2588 = vsel %vm2321, %v1144, -inf
    %v2589 = vrot.slane %v2588, 4
    %v2590 = vmax.f32 %v2588, %v2589
    %v2591 = vrot.slane %v2590, 2
    %v2592 = vmax.f32 %v2590, %v2591
    %v2593 = vrot.slane %v2592, 1
    %v2594 = vmax.f32 %v2592, %v2593
    %v2595 = vsel %vm2321, %v1146, -inf
    %v2596 = vrot.slane %v2595, 4
    %v2597 = vmax.f32 %v2595, %v2596
    %v2598 = vrot.slane %v2597, 2
    %v2599 = vmax.f32 %v2597, %v2598
    %v2600 = vrot.slane %v2599, 1
    %v2601 = vmax.f32 %v2599, %v2600
    %v2602 = vsel %vm2321, %v1154, -inf
    %v2603 = vrot.slane %v2602, 4
    %v2604 = vmax.f32 %v2602, %v2603
    %v2605 = vrot.slane %v2604, 2
    %v2606 = vmax.f32 %v2604, %v2605
    %v2607 = vrot.slane %v2606, 1
    %v2608 = vmax.f32 %v2606, %v2607
    %v2609 = vsel %vm2321, %v1162, -inf
    %v2610 = vrot.slane %v2609, 4
    %v2611 = vmax.f32 %v2609, %v2610
    %v2612 = vrot.slane %v2611, 2
    %v2613 = vmax.f32 %v2611, %v2612
    %v2614 = vrot.slane %v2613, 1
    %v2615 = vmax.f32 %v2613, %v2614
    %v2616 = vsel %vm2321, %v1161, -inf
    %v2617 = vrot.slane %v2616, 4
    %v2618 = vmax.f32 %v2616, %v2617
    %v2619 = vrot.slane %v2618, 2
    %v2620 = vmax.f32 %v2618, %v2619
    %v2621 = vrot.slane %v2620, 1
    %v2622 = vmax.f32 %v2620, %v2621
    %v2623 = vsel %vm2321, %v1163, -inf
    %v2624 = vrot.slane %v2623, 4
    %v2625 = vmax.f32 %v2623, %v2624
    %v2626 = vrot.slane %v2625, 2
    %v2627 = vmax.f32 %v2625, %v2626
    %v2628 = vrot.slane %v2627, 1
    %v2629 = vmax.f32 %v2627, %v2628
    %v2630 = vsel %vm2321, %v1171, -inf
    %v2631 = vrot.slane %v2630, 4
    %v2632 = vmax.f32 %v2630, %v2631
    %v2633 = vrot.slane %v2632, 2
    %v2634 = vmax.f32 %v2632, %v2633
    %v2635 = vrot.slane %v2634, 1
    %v2636 = vmax.f32 %v2634, %v2635
    %v2637 = vsel %vm2321, %v1179, -inf
    %v2638 = vrot.slane %v2637, 4
    %v2639 = vmax.f32 %v2637, %v2638
    %v2640 = vrot.slane %v2639, 2
    %v2641 = vmax.f32 %v2639, %v2640
    %v2642 = vrot.slane %v2641, 1
    %v2643 = vmax.f32 %v2641, %v2642
    %v2644 = vsel %vm2321, %v1178, -inf
    %v2645 = vrot.slane %v2644, 4
    %v2646 = vmax.f32 %v2644, %v2645
    %v2647 = vrot.slane %v2646, 2
    %v2648 = vmax.f32 %v2646, %v2647
    %v2649 = vrot.slane %v2648, 1
    %v2650 = vmax.f32 %v2648, %v2649
    %v2651 = vsel %vm2321, %v1180, -inf
    %v2652 = vrot.slane %v2651, 4
    %v2653 = vmax.f32 %v2651, %v2652
    %v2654 = vrot.slane %v2653, 2
    %v2655 = vmax.f32 %v2653, %v2654
    %v2656 = vrot.slane %v2655, 1
    %v2657 = vmax.f32 %v2655, %v2656
    %v2658 = vsel %vm2321, %v1188, -inf
    %v2659 = vrot.slane %v2658, 4
    %v2660 = vmax.f32 %v2658, %v2659
    %v2661 = vrot.slane %v2660, 2
    %v2662 = vmax.f32 %v2660, %v2661
    %v2663 = vrot.slane %v2662, 1
    %v2664 = vmax.f32 %v2662, %v2663
    %v2665 = vsel %vm2321, %v1196, -inf
    %v2666 = vrot.slane %v2665, 4
    %v2667 = vmax.f32 %v2665, %v2666
    %v2668 = vrot.slane %v2667, 2
    %v2669 = vmax.f32 %v2667, %v2668
    %v2670 = vrot.slane %v2669, 1
    %v2671 = vmax.f32 %v2669, %v2670
    %v2672 = vsel %vm2321, %v1195, -inf
    %v2673 = vrot.slane %v2672, 4
    %v2674 = vmax.f32 %v2672, %v2673
    %v2675 = vrot.slane %v2674, 2
    %v2676 = vmax.f32 %v2674, %v2675
    %v2677 = vrot.slane %v2676, 1
    %v2678 = vmax.f32 %v2676, %v2677
    %v2679 = vsel %vm2321, %v1197, -inf
    %v2680 = vrot.slane %v2679, 4
    %v2681 = vmax.f32 %v2679, %v2680
    %v2682 = vrot.slane %v2681, 2
    %v2683 = vmax.f32 %v2681, %v2682
    %v2684 = vrot.slane %v2683, 1
    %v2685 = vmax.f32 %v2683, %v2684
    %v2686 = vsel %vm2321, %v1205, -inf
    %v2687 = vrot.slane %v2686, 4
    %v2688 = vmax.f32 %v2686, %v2687
    %v2689 = vrot.slane %v2688, 2
    %v2690 = vmax.f32 %v2688, %v2689
    %v2691 = vrot.slane %v2690, 1
    %v2692 = vmax.f32 %v2690, %v2691
    %v2693 = vsel %vm2321, %v1213, -inf
    %v2694 = vrot.slane %v2693, 4
    %v2695 = vmax.f32 %v2693, %v2694
    %v2696 = vrot.slane %v2695, 2
    %v2697 = vmax.f32 %v2695, %v2696
    %v2698 = vrot.slane %v2697, 1
    %v2699 = vmax.f32 %v2697, %v2698
    %v2700 = vsel %vm2321, %v1212, -inf
    %v2701 = vrot.slane %v2700, 4
    %v2702 = vmax.f32 %v2700, %v2701
    %v2703 = vrot.slane %v2702, 2
    %v2704 = vmax.f32 %v2702, %v2703
    %v2705 = vrot.slane %v2704, 1
    %v2706 = vmax.f32 %v2704, %v2705
    %v2707 = vsel %vm2321, %v1214, -inf
    %v2708 = vrot.slane %v2707, 4
    %v2709 = vmax.f32 %v2707, %v2708
    %v2710 = vrot.slane %v2709, 2
    %v2711 = vmax.f32 %v2709, %v2710
    %v2712 = vrot.slane %v2711, 1
    %v2713 = vmax.f32 %v2711, %v2712
    %v2714 = vsel %vm2321, %v1222, -inf
    %v2715 = vrot.slane %v2714, 4
    %v2716 = vmax.f32 %v2714, %v2715
    %v2717 = vrot.slane %v2716, 2
    %v2718 = vmax.f32 %v2716, %v2717
    %v2719 = vrot.slane %v2718, 1
    %v2720 = vmax.f32 %v2718, %v2719
    %v2721 = vsel %vm2321, %v1230, -inf
    %v2722 = vrot.slane %v2721, 4
    %v2723 = vmax.f32 %v2721, %v2722
    %v2724 = vrot.slane %v2723, 2
    %v2725 = vmax.f32 %v2723, %v2724
    %v2726 = vrot.slane %v2725, 1
    %v2727 = vmax.f32 %v2725, %v2726
    %v2728 = vsel %vm2321, %v1229, -inf
    %v2729 = vrot.slane %v2728, 4
    %v2730 = vmax.f32 %v2728, %v2729
    %v2731 = vrot.slane %v2730, 2
    %v2732 = vmax.f32 %v2730, %v2731
    %v2733 = vrot.slane %v2732, 1
    %v2734 = vmax.f32 %v2732, %v2733
    %v2735 = vsel %vm2321, %v1231, -inf
    %v2736 = vrot.slane %v2735, 4
    %v2737 = vmax.f32 %v2735, %v2736
    %v2738 = vrot.slane %v2737, 2
    %v2739 = vmax.f32 %v2737, %v2738
    %v2740 = vrot.slane %v2739, 1
    %v2741 = vmax.f32 %v2739, %v2740
    %v2742 = vsel %vm2321, %v1239, -inf
    %v2743 = vrot.slane %v2742, 4
    %v2744 = vmax.f32 %v2742, %v2743
    %v2745 = vrot.slane %v2744, 2
    %v2746 = vmax.f32 %v2744, %v2745
    %v2747 = vrot.slane %v2746, 1
    %v2748 = vmax.f32 %v2746, %v2747
    %v2749 = vsel %vm2321, %v1247, -inf
    %v2750 = vrot.slane %v2749, 4
    %v2751 = vmax.f32 %v2749, %v2750
    %v2752 = vrot.slane %v2751, 2
    %v2753 = vmax.f32 %v2751, %v2752
    %v2754 = vrot.slane %v2753, 1
    %v2755 = vmax.f32 %v2753, %v2754
    %v2756 = vsel %vm2321, %v1246, -inf
    %v2757 = vrot.slane %v2756, 4
    %v2758 = vmax.f32 %v2756, %v2757
    %v2759 = vrot.slane %v2758, 2
    %v2760 = vmax.f32 %v2758, %v2759
    %v2761 = vrot.slane %v2760, 1
    %v2762 = vmax.f32 %v2760, %v2761
    %v2763 = vsel %vm2321, %v1248, -inf
    %v2764 = vrot.slane %v2763, 4
    %v2765 = vmax.f32 %v2763, %v2764
    %v2766 = vrot.slane %v2765, 2
    %v2767 = vmax.f32 %v2765, %v2766
    %v2768 = vrot.slane %v2767, 1
    %v2769 = vmax.f32 %v2767, %v2768
    %v2770 = vsel %vm2321, %v1256, -inf
    %v2771 = vrot.slane %v2770, 4
    %v2772 = vmax.f32 %v2770, %v2771
    %v2773 = vrot.slane %v2772, 2
    %v2774 = vmax.f32 %v2772, %v2773
    %v2775 = vrot.slane %v2774, 1
    %v2776 = vmax.f32 %v2774, %v2775
    %v2777 = vsel %vm2321, %v1264, -inf
    %v2778 = vrot.slane %v2777, 4
    %v2779 = vmax.f32 %v2777, %v2778
    %v2780 = vrot.slane %v2779, 2
    %v2781 = vmax.f32 %v2779, %v2780
    %v2782 = vrot.slane %v2781, 1
    %v2783 = vmax.f32 %v2781, %v2782
    %v2784 = vsel %vm2321, %v1263, -inf
    %v2785 = vrot.slane %v2784, 4
    %v2786 = vmax.f32 %v2784, %v2785
    %v2787 = vrot.slane %v2786, 2
    %v2788 = vmax.f32 %v2786, %v2787
    %v2789 = vrot.slane %v2788, 1
    %v2790 = vmax.f32 %v2788, %v2789
    %v2791 = vsel %vm2321, %v1265, -inf
    %v2792 = vrot.slane %v2791, 4
    %v2793 = vmax.f32 %v2791, %v2792
    %v2794 = vrot.slane %v2793, 2
    %v2795 = vmax.f32 %v2793, %v2794
    %v2796 = vrot.slane %v2795, 1
    %v2797 = vmax.f32 %v2795, %v2796
    %v2798 = vsel %vm2321, %v1273, -inf
    %v2799 = vrot.slane %v2798, 4
    %v2800 = vmax.f32 %v2798, %v2799
    %v2801 = vrot.slane %v2800, 2
    %v2802 = vmax.f32 %v2800, %v2801
    %v2803 = vrot.slane %v2802, 1
    %v2804 = vmax.f32 %v2802, %v2803
    %v2805 = vsel %vm2321, %v1281, -inf
    %v2806 = vrot.slane %v2805, 4
    %v2807 = vmax.f32 %v2805, %v2806
    %v2808 = vrot.slane %v2807, 2
    %v2809 = vmax.f32 %v2807, %v2808
    %v2810 = vrot.slane %v2809, 1
    %v2811 = vmax.f32 %v2809, %v2810
    %v2812 = vsel %vm2321, %v1280, -inf
    %v2813 = vrot.slane %v2812, 4
    %v2814 = vmax.f32 %v2812, %v2813
    %v2815 = vrot.slane %v2814, 2
    %v2816 = vmax.f32 %v2814, %v2815
    %v2817 = vrot.slane %v2816, 1
    %v2818 = vmax.f32 %v2816, %v2817
    %v2819 = vsel %vm2321, %v1282, -inf
    %v2820 = vrot.slane %v2819, 4
    %v2821 = vmax.f32 %v2819, %v2820
    %v2822 = vrot.slane %v2821, 2
    %v2823 = vmax.f32 %v2821, %v2822
    %v2824 = vrot.slane %v2823, 1
    %v2825 = vmax.f32 %v2823, %v2824
    %v2826 = vsel %vm2321, %v1290, -inf
    %v2827 = vrot.slane %v2826, 4
    %v2828 = vmax.f32 %v2826, %v2827
    %v2829 = vrot.slane %v2828, 2
    %v2830 = vmax.f32 %v2828, %v2829
    %v2831 = vrot.slane %v2830, 1
    %v2832 = vmax.f32 %v2830, %v2831
    %v2833 = vsel %vm2321, %v1298, -inf
    %v2834 = vrot.slane %v2833, 4
    %v2835 = vmax.f32 %v2833, %v2834
    %v2836 = vrot.slane %v2835, 2
    %v2837 = vmax.f32 %v2835, %v2836
    %v2838 = vrot.slane %v2837, 1
    %v2839 = vmax.f32 %v2837, %v2838
    %v2840 = vsel %vm2321, %v1297, -inf
    %v2841 = vrot.slane %v2840, 4
    %v2842 = vmax.f32 %v2840, %v2841
    %v2843 = vrot.slane %v2842, 2
    %v2844 = vmax.f32 %v2842, %v2843
    %v2845 = vrot.slane %v2844, 1
    %v2846 = vmax.f32 %v2844, %v2845
    %v2847 = vsel %vm2321, %v1299, -inf
    %v2848 = vrot.slane %v2847, 4
    %v2849 = vmax.f32 %v2847, %v2848
    %v2850 = vrot.slane %v2849, 2
    %v2851 = vmax.f32 %v2849, %v2850
    %v2852 = vrot.slane %v2851, 1
    %v2853 = vmax.f32 %v2851, %v2852
    %v2854 = vsel %vm2321, %v1307, -inf
    %v2855 = vrot.slane %v2854, 4
    %v2856 = vmax.f32 %v2854, %v2855
    %v2857 = vrot.slane %v2856, 2
    %v2858 = vmax.f32 %v2856, %v2857
    %v2859 = vrot.slane %v2858, 1
    %v2860 = vmax.f32 %v2858, %v2859
    %v2861 = vsel %vm2321, %v1315, -inf
    %v2862 = vrot.slane %v2861, 4
    %v2863 = vmax.f32 %v2861, %v2862
    %v2864 = vrot.slane %v2863, 2
    %v2865 = vmax.f32 %v2863, %v2864
    %v2866 = vrot.slane %v2865, 1
    %v2867 = vmax.f32 %v2865, %v2866
    %v2868 = vsel %vm2321, %v1314, -inf
    %v2869 = vrot.slane %v2868, 4
    %v2870 = vmax.f32 %v2868, %v2869
    %v2871 = vrot.slane %v2870, 2
    %v2872 = vmax.f32 %v2870, %v2871
    %v2873 = vrot.slane %v2872, 1
    %v2874 = vmax.f32 %v2872, %v2873
    %v2875 = vsel %vm2321, %v1316, -inf
    %v2876 = vrot.slane %v2875, 4
    %v2877 = vmax.f32 %v2875, %v2876
    %v2878 = vrot.slane %v2877, 2
    %v2879 = vmax.f32 %v2877, %v2878
    %v2880 = vrot.slane %v2879, 1
    %v2881 = vmax.f32 %v2879, %v2880
    %v2882 = vsel %vm2321, %v1324, -inf
    %v2883 = vrot.slane %v2882, 4
    %v2884 = vmax.f32 %v2882, %v2883
    %v2885 = vrot.slane %v2884, 2
    %v2886 = vmax.f32 %v2884, %v2885
    %v2887 = vrot.slane %v2886, 1
    %v2888 = vmax.f32 %v2886, %v2887
    %v2889 = vsel %vm2321, %v1332, -inf
    %v2890 = vrot.slane %v2889, 4
    %v2891 = vmax.f32 %v2889, %v2890
    %v2892 = vrot.slane %v2891, 2
    %v2893 = vmax.f32 %v2891, %v2892
    %v2894 = vrot.slane %v2893, 1
    %v2895 = vmax.f32 %v2893, %v2894
    %v2896 = vsel %vm2321, %v1331, -inf
    %v2897 = vrot.slane %v2896, 4
    %v2898 = vmax.f32 %v2896, %v2897
    %v2899 = vrot.slane %v2898, 2
    %v2900 = vmax.f32 %v2898, %v2899
    %v2901 = vrot.slane %v2900, 1
    %v2902 = vmax.f32 %v2900, %v2901
    %v2903 = vsel %vm2321, %v1333, -inf
    %v2904 = vrot.slane %v2903, 4
    %v2905 = vmax.f32 %v2903, %v2904
    %v2906 = vrot.slane %v2905, 2
    %v2907 = vmax.f32 %v2905, %v2906
    %v2908 = vrot.slane %v2907, 1
    %v2909 = vmax.f32 %v2907, %v2908
    %v2910 = vsel %vm2321, %v1341, -inf
    %v2911 = vrot.slane %v2910, 4
    %v2912 = vmax.f32 %v2910, %v2911
    %v2913 = vrot.slane %v2912, 2
    %v2914 = vmax.f32 %v2912, %v2913
    %v2915 = vrot.slane %v2914, 1
    %v2916 = vmax.f32 %v2914, %v2915
    %v2917 = vsel %vm2321, %v1349, -inf
    %v2918 = vrot.slane %v2917, 4
    %v2919 = vmax.f32 %v2917, %v2918
    %v2920 = vrot.slane %v2919, 2
    %v2921 = vmax.f32 %v2919, %v2920
    %v2922 = vrot.slane %v2921, 1
    %v2923 = vmax.f32 %v2921, %v2922
    %v2924 = vsel %vm2321, %v1348, -inf
    %v2925 = vrot.slane %v2924, 4
    %v2926 = vmax.f32 %v2924, %v2925
    %v2927 = vrot.slane %v2926, 2
    %v2928 = vmax.f32 %v2926, %v2927
    %v2929 = vrot.slane %v2928, 1
    %v2930 = vmax.f32 %v2928, %v2929
    %v2931 = vsel %vm2321, %v1350, -inf
    %v2932 = vrot.slane %v2931, 4
    %v2933 = vmax.f32 %v2931, %v2932
    %v2934 = vrot.slane %v2933, 2
    %v2935 = vmax.f32 %v2933, %v2934
    %v2936 = vrot.slane %v2935, 1
    %v2937 = vmax.f32 %v2935, %v2936
    %v2938 = vsel %vm2321, %v1358, -inf
    %v2939 = vrot.slane %v2938, 4
    %v2940 = vmax.f32 %v2938, %v2939
    %v2941 = vrot.slane %v2940, 2
    %v2942 = vmax.f32 %v2940, %v2941
    %v2943 = vrot.slane %v2942, 1
    %v2944 = vmax.f32 %v2942, %v2943
    %v2945 = vsel %vm2321, %v1366, -inf
    %v2946 = vrot.slane %v2945, 4
    %v2947 = vmax.f32 %v2945, %v2946
    %v2948 = vrot.slane %v2947, 2
    %v2949 = vmax.f32 %v2947, %v2948
    %v2950 = vrot.slane %v2949, 1
    %v2951 = vmax.f32 %v2949, %v2950
    %v2952 = vsel %vm2321, %v1365, -inf
    %v2953 = vrot.slane %v2952, 4
    %v2954 = vmax.f32 %v2952, %v2953
    %v2955 = vrot.slane %v2954, 2
    %v2956 = vmax.f32 %v2954, %v2955
    %v2957 = vrot.slane %v2956, 1
    %v2958 = vmax.f32 %v2956, %v2957
    %v2959 = vsel %vm2321, %v1367, -inf
    %v2960 = vrot.slane %v2959, 4
    %v2961 = vmax.f32 %v2959, %v2960
    %v2962 = vrot.slane %v2961, 2
    %v2963 = vmax.f32 %v2961, %v2962
    %v2964 = vrot.slane %v2963, 1
    %v2965 = vmax.f32 %v2963, %v2964
    %v2966 = vsel %vm2321, %v1375, -inf
    %v2967 = vrot.slane %v2966, 4
    %v2968 = vmax.f32 %v2966, %v2967
    %v2969 = vrot.slane %v2968, 2
    %v2970 = vmax.f32 %v2968, %v2969
    %v2971 = vrot.slane %v2970, 1
    %v2972 = vmax.f32 %v2970, %v2971
    %v2973 = vsel %vm2321, %v1383, -inf
    %v2974 = vrot.slane %v2973, 4
    %v2975 = vmax.f32 %v2973, %v2974
    %v2976 = vrot.slane %v2975, 2
    %v2977 = vmax.f32 %v2975, %v2976
    %v2978 = vrot.slane %v2977, 1
    %v2979 = vmax.f32 %v2977, %v2978
    %v2980 = vsel %vm2321, %v1382, -inf
    %v2981 = vrot.slane %v2980, 4
    %v2982 = vmax.f32 %v2980, %v2981
    %v2983 = vrot.slane %v2982, 2
    %v2984 = vmax.f32 %v2982, %v2983
    %v2985 = vrot.slane %v2984, 1
    %v2986 = vmax.f32 %v2984, %v2985
    %v2987 = vsel %vm2321, %v1384, -inf
    %v2988 = vrot.slane %v2987, 4
    %v2989 = vmax.f32 %v2987, %v2988
    %v2990 = vrot.slane %v2989, 2
    %v2991 = vmax.f32 %v2989, %v2990
    %v2992 = vrot.slane %v2991, 1
    %v2993 = vmax.f32 %v2991, %v2992
    %v2994 = vsel %vm2321, %v1392, -inf
    %v2995 = vrot.slane %v2994, 4
    %v2996 = vmax.f32 %v2994, %v2995
    %v2997 = vrot.slane %v2996, 2
    %v2998 = vmax.f32 %v2996, %v2997
    %v2999 = vrot.slane %v2998, 1
    %v3000 = vmax.f32 %v2998, %v2999
    %v3001 = vsel %vm2321, %v1400, -inf
    %v3002 = vrot.slane %v3001, 4
    %v3003 = vmax.f32 %v3001, %v3002
    %v3004 = vrot.slane %v3003, 2
    %v3005 = vmax.f32 %v3003, %v3004
    %v3006 = vrot.slane %v3005, 1
    %v3007 = vmax.f32 %v3005, %v3006
    %v3008 = vsel %vm2321, %v1399, -inf
    %v3009 = vrot.slane %v3008, 4
    %v3010 = vmax.f32 %v3008, %v3009
    %v3011 = vrot.slane %v3010, 2
    %v3012 = vmax.f32 %v3010, %v3011
    %v3013 = vrot.slane %v3012, 1
    %v3014 = vmax.f32 %v3012, %v3013
    %v3015 = vsel %vm2321, %v1401, -inf
    %v3016 = vrot.slane %v3015, 4
    %v3017 = vmax.f32 %v3015, %v3016
    %v3018 = vrot.slane %v3017, 2
    %v3019 = vmax.f32 %v3017, %v3018
    %v3020 = vrot.slane %v3019, 1
    %v3021 = vmax.f32 %v3019, %v3020
    %v3022 = vsel %vm2321, %v1409, -inf
    %v3023 = vrot.slane %v3022, 4
    %v3024 = vmax.f32 %v3022, %v3023
    %v3025 = vrot.slane %v3024, 2
    %v3026 = vmax.f32 %v3024, %v3025
    %v3027 = vrot.slane %v3026, 1
    %v3028 = vmax.f32 %v3026, %v3027
    %v3029 = vsel %vm2321, %v1417, -inf
    %v3030 = vrot.slane %v3029, 4
    %v3031 = vmax.f32 %v3029, %v3030
    %v3032 = vrot.slane %v3031, 2
    %v3033 = vmax.f32 %v3031, %v3032
    %v3034 = vrot.slane %v3033, 1
    %v3035 = vmax.f32 %v3033, %v3034
    %v3036 = vsel %vm2321, %v1416, -inf
    %v3037 = vrot.slane %v3036, 4
    %v3038 = vmax.f32 %v3036, %v3037
    %v3039 = vrot.slane %v3038, 2
    %v3040 = vmax.f32 %v3038, %v3039
    %v3041 = vrot.slane %v3040, 1
    %v3042 = vmax.f32 %v3040, %v3041
    %v3043 = vsel %vm2321, %v1418, -inf
    %v3044 = vrot.slane %v3043, 4
    %v3045 = vmax.f32 %v3043, %v3044
    %v3046 = vrot.slane %v3045, 2
    %v3047 = vmax.f32 %v3045, %v3046
    %v3048 = vrot.slane %v3047, 1
    %v3049 = vmax.f32 %v3047, %v3048
    %v3050 = vsel %vm2321, %v1426, -inf
    %v3051 = vrot.slane %v3050, 4
    %v3052 = vmax.f32 %v3050, %v3051
    %v3053 = vrot.slane %v3052, 2
    %v3054 = vmax.f32 %v3052, %v3053
    %v3055 = vrot.slane %v3054, 1
    %v3056 = vmax.f32 %v3054, %v3055
    %v3057 = vsel %vm2321, %v1434, -inf
    %v3058 = vrot.slane %v3057, 4
    %v3059 = vmax.f32 %v3057, %v3058
    %v3060 = vrot.slane %v3059, 2
    %v3061 = vmax.f32 %v3059, %v3060
    %v3062 = vrot.slane %v3061, 1
    %v3063 = vmax.f32 %v3061, %v3062
    %v3064 = vsel %vm2321, %v1433, -inf
    %v3065 = vrot.slane %v3064, 4
    %v3066 = vmax.f32 %v3064, %v3065
    %v3067 = vrot.slane %v3066, 2
    %v3068 = vmax.f32 %v3066, %v3067
    %v3069 = vrot.slane %v3068, 1
    %v3070 = vmax.f32 %v3068, %v3069
    %v3071 = vsel %vm2321, %v1435, -inf
    %v3072 = vrot.slane %v3071, 4
    %v3073 = vmax.f32 %v3071, %v3072
    %v3074 = vrot.slane %v3073, 2
    %v3075 = vmax.f32 %v3073, %v3074
    %v3076 = vrot.slane %v3075, 1
    %v3077 = vmax.f32 %v3075, %v3076
    %v3078 = vsel %vm2321, %v1443, -inf
    %v3079 = vrot.slane %v3078, 4
    %v3080 = vmax.f32 %v3078, %v3079
    %v3081 = vrot.slane %v3080, 2
    %v3082 = vmax.f32 %v3080, %v3081
    %v3083 = vrot.slane %v3082, 1
    %v3084 = vmax.f32 %v3082, %v3083
    %v3085 = vsel %vm2321, %v1451, -inf
    %v3086 = vrot.slane %v3085, 4
    %v3087 = vmax.f32 %v3085, %v3086
    %v3088 = vrot.slane %v3087, 2
    %v3089 = vmax.f32 %v3087, %v3088
    %v3090 = vrot.slane %v3089, 1
    %v3091 = vmax.f32 %v3089, %v3090
    %v3092 = vsel %vm2321, %v1450, -inf
    %v3093 = vrot.slane %v3092, 4
    %v3094 = vmax.f32 %v3092, %v3093
    %v3095 = vrot.slane %v3094, 2
    %v3096 = vmax.f32 %v3094, %v3095
    %v3097 = vrot.slane %v3096, 1
    %v3098 = vmax.f32 %v3096, %v3097
    %v3099 = vsel %vm2321, %v1452, -inf
    %v3100 = vrot.slane %v3099, 4
    %v3101 = vmax.f32 %v3099, %v3100
    %v3102 = vrot.slane %v3101, 2
    %v3103 = vmax.f32 %v3101, %v3102
    %v3104 = vrot.slane %v3103, 1
    %v3105 = vmax.f32 %v3103, %v3104
    %v3106 = vsel %vm2321, %v1460, -inf
    %v3107 = vrot.slane %v3106, 4
    %v3108 = vmax.f32 %v3106, %v3107
    %v3109 = vrot.slane %v3108, 2
    %v3110 = vmax.f32 %v3108, %v3109
    %v3111 = vrot.slane %v3110, 1
    %v3112 = vmax.f32 %v3110, %v3111
    %v3113 = vsel %vm2321, %v1468, -inf
    %v3114 = vrot.slane %v3113, 4
    %v3115 = vmax.f32 %v3113, %v3114
    %v3116 = vrot.slane %v3115, 2
    %v3117 = vmax.f32 %v3115, %v3116
    %v3118 = vrot.slane %v3117, 1
    %v3119 = vmax.f32 %v3117, %v3118
    %v3120 = vsel %vm2321, %v1467, -inf
    %v3121 = vrot.slane %v3120, 4
    %v3122 = vmax.f32 %v3120, %v3121
    %v3123 = vrot.slane %v3122, 2
    %v3124 = vmax.f32 %v3122, %v3123
    %v3125 = vrot.slane %v3124, 1
    %v3126 = vmax.f32 %v3124, %v3125
    %v3127 = vsel %vm2321, %v1469, -inf
    %v3128 = vrot.slane %v3127, 4
    %v3129 = vmax.f32 %v3127, %v3128
    %v3130 = vrot.slane %v3129, 2
    %v3131 = vmax.f32 %v3129, %v3130
    %v3132 = vrot.slane %v3131, 1
    %v3133 = vmax.f32 %v3131, %v3132
    %v3134 = vsel %vm2321, %v1477, -inf
    %v3135 = vrot.slane %v3134, 4
    %v3136 = vmax.f32 %v3134, %v3135
    %v3137 = vrot.slane %v3136, 2
    %v3138 = vmax.f32 %v3136, %v3137
    %v3139 = vrot.slane %v3138, 1
    %v3140 = vmax.f32 %v3138, %v3139
    %v3141 = vsel %vm2321, %v1485, -inf
    %v3142 = vrot.slane %v3141, 4
    %v3143 = vmax.f32 %v3141, %v3142
    %v3144 = vrot.slane %v3143, 2
    %v3145 = vmax.f32 %v3143, %v3144
    %v3146 = vrot.slane %v3145, 1
    %v3147 = vmax.f32 %v3145, %v3146
    %v3148 = vsel %vm2321, %v1484, -inf
    %v3149 = vrot.slane %v3148, 4
    %v3150 = vmax.f32 %v3148, %v3149
    %v3151 = vrot.slane %v3150, 2
    %v3152 = vmax.f32 %v3150, %v3151
    %v3153 = vrot.slane %v3152, 1
    %v3154 = vmax.f32 %v3152, %v3153
    %v3155 = vsel %vm2321, %v1486, -inf
    %v3156 = vrot.slane %v3155, 4
    %v3157 = vmax.f32 %v3155, %v3156
    %v3158 = vrot.slane %v3157, 2
    %v3159 = vmax.f32 %v3157, %v3158
    %v3160 = vrot.slane %v3159, 1
    %v3161 = vmax.f32 %v3159, %v3160
    %v3162 = vsel %vm2321, %v1494, -inf
    %v3163 = vrot.slane %v3162, 4
    %v3164 = vmax.f32 %v3162, %v3163
    %v3165 = vrot.slane %v3164, 2
    %v3166 = vmax.f32 %v3164, %v3165
    %v3167 = vrot.slane %v3166, 1
    %v3168 = vmax.f32 %v3166, %v3167
    %v3169 = vsel %vm2321, %v1502, -inf
    %v3170 = vrot.slane %v3169, 4
    %v3171 = vmax.f32 %v3169, %v3170
    %v3172 = vrot.slane %v3171, 2
    %v3173 = vmax.f32 %v3171, %v3172
    %v3174 = vrot.slane %v3173, 1
    %v3175 = vmax.f32 %v3173, %v3174
    %v3176 = vsel %vm2321, %v1501, -inf
    %v3177 = vrot.slane %v3176, 4
    %v3178 = vmax.f32 %v3176, %v3177
    %v3179 = vrot.slane %v3178, 2
    %v3180 = vmax.f32 %v3178, %v3179
    %v3181 = vrot.slane %v3180, 1
    %v3182 = vmax.f32 %v3180, %v3181
    %v3183 = vsel %vm2321, %v1503, -inf
    %v3184 = vrot.slane %v3183, 4
    %v3185 = vmax.f32 %v3183, %v3184
    %v3186 = vrot.slane %v3185, 2
    %v3187 = vmax.f32 %v3185, %v3186
    %v3188 = vrot.slane %v3187, 1
    %v3189 = vmax.f32 %v3187, %v3188
    %v3190 = vsel %vm2321, %v1511, -inf
    %v3191 = vrot.slane %v3190, 4
    %v3192 = vmax.f32 %v3190, %v3191
    %v3193 = vrot.slane %v3192, 2
    %v3194 = vmax.f32 %v3192, %v3193
    %v3195 = vrot.slane %v3194, 1
    %v3196 = vmax.f32 %v3194, %v3195
    %v3197 = vsel %vm2321, %v1519, -inf
    %v3198 = vrot.slane %v3197, 4
    %v3199 = vmax.f32 %v3197, %v3198
    %v3200 = vrot.slane %v3199, 2
    %v3201 = vmax.f32 %v3199, %v3200
    %v3202 = vrot.slane %v3201, 1
    %v3203 = vmax.f32 %v3201, %v3202
    %v3204 = vsel %vm2321, %v1518, -inf
    %v3205 = vrot.slane %v3204, 4
    %v3206 = vmax.f32 %v3204, %v3205
    %v3207 = vrot.slane %v3206, 2
    %v3208 = vmax.f32 %v3206, %v3207
    %v3209 = vrot.slane %v3208, 1
    %v3210 = vmax.f32 %v3208, %v3209
    %v3211 = vsel %vm2321, %v1520, -inf
    %v3212 = vrot.slane %v3211, 4
    %v3213 = vmax.f32 %v3211, %v3212
    %v3214 = vrot.slane %v3213, 2
    %v3215 = vmax.f32 %v3213, %v3214
    %v3216 = vrot.slane %v3215, 1
    %v3217 = vmax.f32 %v3215, %v3216
    %v3218 = vsel %vm2321, %v1528, -inf
    %v3219 = vrot.slane %v3218, 4
    %v3220 = vmax.f32 %v3218, %v3219
    %v3221 = vrot.slane %v3220, 2
    %v3222 = vmax.f32 %v3220, %v3221
    %v3223 = vrot.slane %v3222, 1
    %v3224 = vmax.f32 %v3222, %v3223
    %v3225 = vsel %vm2321, %v1536, -inf
    %v3226 = vrot.slane %v3225, 4
    %v3227 = vmax.f32 %v3225, %v3226
    %v3228 = vrot.slane %v3227, 2
    %v3229 = vmax.f32 %v3227, %v3228
    %v3230 = vrot.slane %v3229, 1
    %v3231 = vmax.f32 %v3229, %v3230
    %v3232 = vsel %vm2321, %v1535, -inf
    %v3233 = vrot.slane %v3232, 4
    %v3234 = vmax.f32 %v3232, %v3233
    %v3235 = vrot.slane %v3234, 2
    %v3236 = vmax.f32 %v3234, %v3235
    %v3237 = vrot.slane %v3236, 1
    %v3238 = vmax.f32 %v3236, %v3237
    %v3239 = vsel %vm2321, %v1537, -inf
    %v3240 = vrot.slane %v3239, 4
    %v3241 = vmax.f32 %v3239, %v3240
    %v3242 = vrot.slane %v3241, 2
    %v3243 = vmax.f32 %v3241, %v3242
    %v3244 = vrot.slane %v3243, 1
    %v3245 = vmax.f32 %v3243, %v3244
    %v3246 = vsel %vm2321, %v1545, -inf
    %v3247 = vrot.slane %v3246, 4
    %v3248 = vmax.f32 %v3246, %v3247
    %v3249 = vrot.slane %v3248, 2
    %v3250 = vmax.f32 %v3248, %v3249
    %v3251 = vrot.slane %v3250, 1
    %v3252 = vmax.f32 %v3250, %v3251
    %v3253 = vsel %vm2321, %v1553, -inf
    %v3254 = vrot.slane %v3253, 4
    %v3255 = vmax.f32 %v3253, %v3254
    %v3256 = vrot.slane %v3255, 2
    %v3257 = vmax.f32 %v3255, %v3256
    %v3258 = vrot.slane %v3257, 1
    %v3259 = vmax.f32 %v3257, %v3258
    %v3260 = vsel %vm2321, %v1552, -inf
    %v3261 = vrot.slane %v3260, 4
    %v3262 = vmax.f32 %v3260, %v3261
    %v3263 = vrot.slane %v3262, 2
    %v3264 = vmax.f32 %v3262, %v3263
    %v3265 = vrot.slane %v3264, 1
    %v3266 = vmax.f32 %v3264, %v3265
    %v3267 = vsel %vm2321, %v1554, -inf
    %v3268 = vrot.slane %v3267, 4
    %v3269 = vmax.f32 %v3267, %v3268
    %v3270 = vrot.slane %v3269, 2
    %v3271 = vmax.f32 %v3269, %v3270
    %v3272 = vrot.slane %v3271, 1
    %v3273 = vmax.f32 %v3271, %v3272
    %v3274 = vsel %vm2321, %v1562, -inf
    %v3275 = vrot.slane %v3274, 4
    %v3276 = vmax.f32 %v3274, %v3275
    %v3277 = vrot.slane %v3276, 2
    %v3278 = vmax.f32 %v3276, %v3277
    %v3279 = vrot.slane %v3278, 1
    %v3280 = vmax.f32 %v3278, %v3279
    %v3281 = vsel %vm2321, %v1570, -inf
    %v3282 = vrot.slane %v3281, 4
    %v3283 = vmax.f32 %v3281, %v3282
    %v3284 = vrot.slane %v3283, 2
    %v3285 = vmax.f32 %v3283, %v3284
    %v3286 = vrot.slane %v3285, 1
    %v3287 = vmax.f32 %v3285, %v3286
    %v3288 = vsel %vm2321, %v1569, -inf
    %v3289 = vrot.slane %v3288, 4
    %v3290 = vmax.f32 %v3288, %v3289
    %v3291 = vrot.slane %v3290, 2
    %v3292 = vmax.f32 %v3290, %v3291
    %v3293 = vrot.slane %v3292, 1
    %v3294 = vmax.f32 %v3292, %v3293
    %v3295 = vsel %vm2321, %v1571, -inf
    %v3296 = vrot.slane %v3295, 4
    %v3297 = vmax.f32 %v3295, %v3296
    %v3298 = vrot.slane %v3297, 2
    %v3299 = vmax.f32 %v3297, %v3298
    %v3300 = vrot.slane %v3299, 1
    %v3301 = vmax.f32 %v3299, %v3300
    %v3302 = vsel %vm2321, %v1579, -inf
    %v3303 = vrot.slane %v3302, 4
    %v3304 = vmax.f32 %v3302, %v3303
    %v3305 = vrot.slane %v3304, 2
    %v3306 = vmax.f32 %v3304, %v3305
    %v3307 = vrot.slane %v3306, 1
    %v3308 = vmax.f32 %v3306, %v3307
    %v3309 = vsel %vm2321, %v1587, -inf
    %v3310 = vrot.slane %v3309, 4
    %v3311 = vmax.f32 %v3309, %v3310
    %v3312 = vrot.slane %v3311, 2
    %v3313 = vmax.f32 %v3311, %v3312
    %v3314 = vrot.slane %v3313, 1
    %v3315 = vmax.f32 %v3313, %v3314
    %v3316 = vsel %vm2321, %v1586, -inf
    %v3317 = vrot.slane %v3316, 4
    %v3318 = vmax.f32 %v3316, %v3317
    %v3319 = vrot.slane %v3318, 2
    %v3320 = vmax.f32 %v3318, %v3319
    %v3321 = vrot.slane %v3320, 1
    %v3322 = vmax.f32 %v3320, %v3321
    %v3323 = vsel %vm2321, %v1588, -inf
    %v3324 = vrot.slane %v3323, 4
    %v3325 = vmax.f32 %v3323, %v3324
    %v3326 = vrot.slane %v3325, 2
    %v3327 = vmax.f32 %v3325, %v3326
    %v3328 = vrot.slane %v3327, 1
    %v3329 = vmax.f32 %v3327, %v3328
    %v3330 = vsel %vm2321, %v1596, -inf
    %v3331 = vrot.slane %v3330, 4
    %v3332 = vmax.f32 %v3330, %v3331
    %v3333 = vrot.slane %v3332, 2
    %v3334 = vmax.f32 %v3332, %v3333
    %v3335 = vrot.slane %v3334, 1
    %v3336 = vmax.f32 %v3334, %v3335
    %v3337 = vsel %vm2321, %v1604, -inf
    %v3338 = vrot.slane %v3337, 4
    %v3339 = vmax.f32 %v3337, %v3338
    %v3340 = vrot.slane %v3339, 2
    %v3341 = vmax.f32 %v3339, %v3340
    %v3342 = vrot.slane %v3341, 1
    %v3343 = vmax.f32 %v3341, %v3342
    %v3344 = vsel %vm2321, %v1603, -inf
    %v3345 = vrot.slane %v3344, 4
    %v3346 = vmax.f32 %v3344, %v3345
    %v3347 = vrot.slane %v3346, 2
    %v3348 = vmax.f32 %v3346, %v3347
    %v3349 = vrot.slane %v3348, 1
    %v3350 = vmax.f32 %v3348, %v3349
    %v3351 = vsel %vm2321, %v1605, -inf
    %v3352 = vrot.slane %v3351, 4
    %v3353 = vmax.f32 %v3351, %v3352
    %v3354 = vrot.slane %v3353, 2
    %v3355 = vmax.f32 %v3353, %v3354
    %v3356 = vrot.slane %v3355, 1
    %v3357 = vmax.f32 %v3355, %v3356
    %v3358 = vsel %vm2321, %v1613, -inf
    %v3359 = vrot.slane %v3358, 4
    %v3360 = vmax.f32 %v3358, %v3359
    %v3361 = vrot.slane %v3360, 2
    %v3362 = vmax.f32 %v3360, %v3361
    %v3363 = vrot.slane %v3362, 1
    %v3364 = vmax.f32 %v3362, %v3363
    %v3365 = vsel %vm2321, %v1621, -inf
    %v3366 = vrot.slane %v3365, 4
    %v3367 = vmax.f32 %v3365, %v3366
    %v3368 = vrot.slane %v3367, 2
    %v3369 = vmax.f32 %v3367, %v3368
    %v3370 = vrot.slane %v3369, 1
    %v3371 = vmax.f32 %v3369, %v3370
    %v3372 = vsel %vm2321, %v1620, -inf
    %v3373 = vrot.slane %v3372, 4
    %v3374 = vmax.f32 %v3372, %v3373
    %v3375 = vrot.slane %v3374, 2
    %v3376 = vmax.f32 %v3374, %v3375
    %v3377 = vrot.slane %v3376, 1
    %v3378 = vmax.f32 %v3376, %v3377
    %v3379 = vsel %vm2321, %v1622, -inf
    %v3380 = vrot.slane %v3379, 4
    %v3381 = vmax.f32 %v3379, %v3380
    %v3382 = vrot.slane %v3381, 2
    %v3383 = vmax.f32 %v3381, %v3382
    %v3384 = vrot.slane %v3383, 1
    %v3385 = vmax.f32 %v3383, %v3384
    %v3386 = vsel %vm2321, %v1630, -inf
    %v3387 = vrot.slane %v3386, 4
    %v3388 = vmax.f32 %v3386, %v3387
    %v3389 = vrot.slane %v3388, 2
    %v3390 = vmax.f32 %v3388, %v3389
    %v3391 = vrot.slane %v3390, 1
    %v3392 = vmax.f32 %v3390, %v3391
    %v3393 = vsel %vm2321, %v1638, -inf
    %v3394 = vrot.slane %v3393, 4
    %v3395 = vmax.f32 %v3393, %v3394
    %v3396 = vrot.slane %v3395, 2
    %v3397 = vmax.f32 %v3395, %v3396
    %v3398 = vrot.slane %v3397, 1
    %v3399 = vmax.f32 %v3397, %v3398
    %v3400 = vsel %vm2321, %v1637, -inf
    %v3401 = vrot.slane %v3400, 4
    %v3402 = vmax.f32 %v3400, %v3401
    %v3403 = vrot.slane %v3402, 2
    %v3404 = vmax.f32 %v3402, %v3403
    %v3405 = vrot.slane %v3404, 1
    %v3406 = vmax.f32 %v3404, %v3405
    %v3407 = vsel %vm2321, %v1639, -inf
    %v3408 = vrot.slane %v3407, 4
    %v3409 = vmax.f32 %v3407, %v3408
    %v3410 = vrot.slane %v3409, 2
    %v3411 = vmax.f32 %v3409, %v3410
    %v3412 = vrot.slane %v3411, 1
    %v3413 = vmax.f32 %v3411, %v3412
    %v3414 = vsel %vm2321, %v1647, -inf
    %v3415 = vrot.slane %v3414, 4
    %v3416 = vmax.f32 %v3414, %v3415
    %v3417 = vrot.slane %v3416, 2
    %v3418 = vmax.f32 %v3416, %v3417
    %v3419 = vrot.slane %v3418, 1
    %v3420 = vmax.f32 %v3418, %v3419
    %v3421 = vsel %vm2321, %v1655, -inf
    %v3422 = vrot.slane %v3421, 4
    %v3423 = vmax.f32 %v3421, %v3422
    %v3424 = vrot.slane %v3423, 2
    %v3425 = vmax.f32 %v3423, %v3424
    %v3426 = vrot.slane %v3425, 1
    %v3427 = vmax.f32 %v3425, %v3426
    %v3428 = vsel %vm2321, %v1654, -inf
    %v3429 = vrot.slane %v3428, 4
    %v3430 = vmax.f32 %v3428, %v3429
    %v3431 = vrot.slane %v3430, 2
    %v3432 = vmax.f32 %v3430, %v3431
    %v3433 = vrot.slane %v3432, 1
    %v3434 = vmax.f32 %v3432, %v3433
    %v3435 = vsel %vm2321, %v1656, -inf
    %v3436 = vrot.slane %v3435, 4
    %v3437 = vmax.f32 %v3435, %v3436
    %v3438 = vrot.slane %v3437, 2
    %v3439 = vmax.f32 %v3437, %v3438
    %v3440 = vrot.slane %v3439, 1
    %v3441 = vmax.f32 %v3439, %v3440
    %v3442 = vsel %vm2321, %v1664, -inf
    %v3443 = vrot.slane %v3442, 4
    %v3444 = vmax.f32 %v3442, %v3443
    %v3445 = vrot.slane %v3444, 2
    %v3446 = vmax.f32 %v3444, %v3445
    %v3447 = vrot.slane %v3446, 1
    %v3448 = vmax.f32 %v3446, %v3447
    %v3449 = vsel %vm2321, %v1672, -inf
    %v3450 = vrot.slane %v3449, 4
    %v3451 = vmax.f32 %v3449, %v3450
    %v3452 = vrot.slane %v3451, 2
    %v3453 = vmax.f32 %v3451, %v3452
    %v3454 = vrot.slane %v3453, 1
    %v3455 = vmax.f32 %v3453, %v3454
    %v3456 = vsel %vm2321, %v1671, -inf
    %v3457 = vrot.slane %v3456, 4
    %v3458 = vmax.f32 %v3456, %v3457
    %v3459 = vrot.slane %v3458, 2
    %v3460 = vmax.f32 %v3458, %v3459
    %v3461 = vrot.slane %v3460, 1
    %v3462 = vmax.f32 %v3460, %v3461
    %v3463 = vsel %vm2321, %v1673, -inf
    %v3464 = vrot.slane %v3463, 4
    %v3465 = vmax.f32 %v3463, %v3464
    %v3466 = vrot.slane %v3465, 2
    %v3467 = vmax.f32 %v3465, %v3466
    %v3468 = vrot.slane %v3467, 1
    %v3469 = vmax.f32 %v3467, %v3468
    %v3470 = vsel %vm2321, %v1681, -inf
    %v3471 = vrot.slane %v3470, 4
    %v3472 = vmax.f32 %v3470, %v3471
    %v3473 = vrot.slane %v3472, 2
    %v3474 = vmax.f32 %v3472, %v3473
    %v3475 = vrot.slane %v3474, 1
    %v3476 = vmax.f32 %v3474, %v3475
    %v3477 = vsel %vm2321, %v1689, -inf
    %v3478 = vrot.slane %v3477, 4
    %v3479 = vmax.f32 %v3477, %v3478
    %v3480 = vrot.slane %v3479, 2
    %v3481 = vmax.f32 %v3479, %v3480
    %v3482 = vrot.slane %v3481, 1
    %v3483 = vmax.f32 %v3481, %v3482
    %v3484 = vsel %vm2321, %v1688, -inf
    %v3485 = vrot.slane %v3484, 4
    %v3486 = vmax.f32 %v3484, %v3485
    %v3487 = vrot.slane %v3486, 2
    %v3488 = vmax.f32 %v3486, %v3487
    %v3489 = vrot.slane %v3488, 1
    %v3490 = vmax.f32 %v3488, %v3489
    %v3491 = vsel %vm2321, %v1690, -inf
    %v3492 = vrot.slane %v3491, 4
    %v3493 = vmax.f32 %v3491, %v3492
    %v3494 = vrot.slane %v3493, 2
    %v3495 = vmax.f32 %v3493, %v3494
    %v3496 = vrot.slane %v3495, 1
    %v3497 = vmax.f32 %v3495, %v3496
    %v3498 = vsel %vm2321, %v1698, -inf
    %v3499 = vrot.slane %v3498, 4
    %v3500 = vmax.f32 %v3498, %v3499
    %v3501 = vrot.slane %v3500, 2
    %v3502 = vmax.f32 %v3500, %v3501
    %v3503 = vrot.slane %v3502, 1
    %v3504 = vmax.f32 %v3502, %v3503
    %v3505 = vsel %vm2321, %v1706, -inf
    %v3506 = vrot.slane %v3505, 4
    %v3507 = vmax.f32 %v3505, %v3506
    %v3508 = vrot.slane %v3507, 2
    %v3509 = vmax.f32 %v3507, %v3508
    %v3510 = vrot.slane %v3509, 1
    %v3511 = vmax.f32 %v3509, %v3510
    %v3512 = vsel %vm2321, %v1705, -inf
    %v3513 = vrot.slane %v3512, 4
    %v3514 = vmax.f32 %v3512, %v3513
    %v3515 = vrot.slane %v3514, 2
    %v3516 = vmax.f32 %v3514, %v3515
    %v3517 = vrot.slane %v3516, 1
    %v3518 = vmax.f32 %v3516, %v3517
    %v3519 = vsel %vm2321, %v1707, -inf
    %v3520 = vrot.slane %v3519, 4
    %v3521 = vmax.f32 %v3519, %v3520
    %v3522 = vrot.slane %v3521, 2
    %v3523 = vmax.f32 %v3521, %v3522
    %v3524 = vrot.slane %v3523, 1
    %v3525 = vmax.f32 %v3523, %v3524
    %v3526 = vsel %vm2321, %v1715, -inf
    %v3527 = vrot.slane %v3526, 4
    %v3528 = vmax.f32 %v3526, %v3527
    %v3529 = vrot.slane %v3528, 2
    %v3530 = vmax.f32 %v3528, %v3529
    %v3531 = vrot.slane %v3530, 1
    %v3532 = vmax.f32 %v3530, %v3531
    %v3533 = vsel %vm2321, %v1723, -inf
    %v3534 = vrot.slane %v3533, 4
    %v3535 = vmax.f32 %v3533, %v3534
    %v3536 = vrot.slane %v3535, 2
    %v3537 = vmax.f32 %v3535, %v3536
    %v3538 = vrot.slane %v3537, 1
    %v3539 = vmax.f32 %v3537, %v3538
    %v3540 = vsel %vm2321, %v1722, -inf
    %v3541 = vrot.slane %v3540, 4
    %v3542 = vmax.f32 %v3540, %v3541
    %v3543 = vrot.slane %v3542, 2
    %v3544 = vmax.f32 %v3542, %v3543
    %v3545 = vrot.slane %v3544, 1
    %v3546 = vmax.f32 %v3544, %v3545
    %v3547 = vsel %vm2321, %v1724, -inf
    %v3548 = vrot.slane %v3547, 4
    %v3549 = vmax.f32 %v3547, %v3548
    %v3550 = vrot.slane %v3549, 2
    %v3551 = vmax.f32 %v3549, %v3550
    %v3552 = vrot.slane %v3551, 1
    %v3553 = vmax.f32 %v3551, %v3552
    %v3554 = vsel %vm2321, %v1732, -inf
    %v3555 = vrot.slane %v3554, 4
    %v3556 = vmax.f32 %v3554, %v3555
    %v3557 = vrot.slane %v3556, 2
    %v3558 = vmax.f32 %v3556, %v3557
    %v3559 = vrot.slane %v3558, 1
    %v3560 = vmax.f32 %v3558, %v3559
    %v3561 = vsel %vm2321, %v1740, -inf
    %v3562 = vrot.slane %v3561, 4
    %v3563 = vmax.f32 %v3561, %v3562
    %v3564 = vrot.slane %v3563, 2
    %v3565 = vmax.f32 %v3563, %v3564
    %v3566 = vrot.slane %v3565, 1
    %v3567 = vmax.f32 %v3565, %v3566
    %v3568 = vsel %vm2321, %v1739, -inf
    %v3569 = vrot.slane %v3568, 4
    %v3570 = vmax.f32 %v3568, %v3569
    %v3571 = vrot.slane %v3570, 2
    %v3572 = vmax.f32 %v3570, %v3571
    %v3573 = vrot.slane %v3572, 1
    %v3574 = vmax.f32 %v3572, %v3573
    %v3575 = vsel %vm2321, %v1741, -inf
    %v3576 = vrot.slane %v3575, 4
    %v3577 = vmax.f32 %v3575, %v3576
    %v3578 = vrot.slane %v3577, 2
    %v3579 = vmax.f32 %v3577, %v3578
    %v3580 = vrot.slane %v3579, 1
    %v3581 = vmax.f32 %v3579, %v3580
    %v3582 = vsel %vm2321, %v1749, -inf
    %v3583 = vrot.slane %v3582, 4
    %v3584 = vmax.f32 %v3582, %v3583
    %v3585 = vrot.slane %v3584, 2
    %v3586 = vmax.f32 %v3584, %v3585
    %v3587 = vrot.slane %v3586, 1
    %v3588 = vmax.f32 %v3586, %v3587
    %v3589 = vsel %vm2321, %v1757, -inf
    %v3590 = vrot.slane %v3589, 4
    %v3591 = vmax.f32 %v3589, %v3590
    %v3592 = vrot.slane %v3591, 2
    %v3593 = vmax.f32 %v3591, %v3592
    %v3594 = vrot.slane %v3593, 1
    %v3595 = vmax.f32 %v3593, %v3594
    %v3596 = vsel %vm2321, %v1756, -inf
    %v3597 = vrot.slane %v3596, 4
    %v3598 = vmax.f32 %v3596, %v3597
    %v3599 = vrot.slane %v3598, 2
    %v3600 = vmax.f32 %v3598, %v3599
    %v3601 = vrot.slane %v3600, 1
    %v3602 = vmax.f32 %v3600, %v3601
    %v3603 = vsel %vm2321, %v1758, -inf
    %v3604 = vrot.slane %v3603, 4
    %v3605 = vmax.f32 %v3603, %v3604
    %v3606 = vrot.slane %v3605, 2
    %v3607 = vmax.f32 %v3605, %v3606
    %v3608 = vrot.slane %v3607, 1
    %v3609 = vmax.f32 %v3607, %v3608
    %v3610 = vsel %vm2321, %v1766, -inf
    %v3611 = vrot.slane %v3610, 4
    %v3612 = vmax.f32 %v3610, %v3611
    %v3613 = vrot.slane %v3612, 2
    %v3614 = vmax.f32 %v3612, %v3613
    %v3615 = vrot.slane %v3614, 1
    %v3616 = vmax.f32 %v3614, %v3615
    %v3617 = vsel %vm2321, %v1774, -inf
    %v3618 = vrot.slane %v3617, 4
    %v3619 = vmax.f32 %v3617, %v3618
    %v3620 = vrot.slane %v3619, 2
    %v3621 = vmax.f32 %v3619, %v3620
    %v3622 = vrot.slane %v3621, 1
    %v3623 = vmax.f32 %v3621, %v3622
    %v3624 = vsel %vm2321, %v1773, -inf
    %v3625 = vrot.slane %v3624, 4
    %v3626 = vmax.f32 %v3624, %v3625
    %v3627 = vrot.slane %v3626, 2
    %v3628 = vmax.f32 %v3626, %v3627
    %v3629 = vrot.slane %v3628, 1
    %v3630 = vmax.f32 %v3628, %v3629
    %v3631 = vsel %vm2321, %v1775, -inf
    %v3632 = vrot.slane %v3631, 4
    %v3633 = vmax.f32 %v3631, %v3632
    %v3634 = vrot.slane %v3633, 2
    %v3635 = vmax.f32 %v3633, %v3634
    %v3636 = vrot.slane %v3635, 1
    %v3637 = vmax.f32 %v3635, %v3636
    %v3638 = vsel %vm2321, %v1783, -inf
    %v3639 = vrot.slane %v3638, 4
    %v3640 = vmax.f32 %v3638, %v3639
    %v3641 = vrot.slane %v3640, 2
    %v3642 = vmax.f32 %v3640, %v3641
    %v3643 = vrot.slane %v3642, 1
    %v3644 = vmax.f32 %v3642, %v3643
    %v3645 = vsel %vm2321, %v1791, -inf
    %v3646 = vrot.slane %v3645, 4
    %v3647 = vmax.f32 %v3645, %v3646
    %v3648 = vrot.slane %v3647, 2
    %v3649 = vmax.f32 %v3647, %v3648
    %v3650 = vrot.slane %v3649, 1
    %v3651 = vmax.f32 %v3649, %v3650
    %v3652 = vsel %vm2321, %v1790, -inf
    %v3653 = vrot.slane %v3652, 4
    %v3654 = vmax.f32 %v3652, %v3653
    %v3655 = vrot.slane %v3654, 2
    %v3656 = vmax.f32 %v3654, %v3655
    %v3657 = vrot.slane %v3656, 1
    %v3658 = vmax.f32 %v3656, %v3657
    %v3659 = vsel %vm2321, %v1792, -inf
    %v3660 = vrot.slane %v3659, 4
    %v3661 = vmax.f32 %v3659, %v3660
    %v3662 = vrot.slane %v3661, 2
    %v3663 = vmax.f32 %v3661, %v3662
    %v3664 = vrot.slane %v3663, 1
    %v3665 = vmax.f32 %v3663, %v3664
    %v3666 = vsel %vm2321, %v1800, -inf
    %v3667 = vrot.slane %v3666, 4
    %v3668 = vmax.f32 %v3666, %v3667
    %v3669 = vrot.slane %v3668, 2
    %v3670 = vmax.f32 %v3668, %v3669
    %v3671 = vrot.slane %v3670, 1
    %v3672 = vmax.f32 %v3670, %v3671
    %v3673 = vsel %vm2321, %v1808, -inf
    %v3674 = vrot.slane %v3673, 4
    %v3675 = vmax.f32 %v3673, %v3674
    %v3676 = vrot.slane %v3675, 2
    %v3677 = vmax.f32 %v3675, %v3676
    %v3678 = vrot.slane %v3677, 1
    %v3679 = vmax.f32 %v3677, %v3678
    %v3680 = vsel %vm2321, %v1807, -inf
    %v3681 = vrot.slane %v3680, 4
    %v3682 = vmax.f32 %v3680, %v3681
    %v3683 = vrot.slane %v3682, 2
    %v3684 = vmax.f32 %v3682, %v3683
    %v3685 = vrot.slane %v3684, 1
    %v3686 = vmax.f32 %v3684, %v3685
    %v3687 = vsel %vm2321, %v1809, -inf
    %v3688 = vrot.slane %v3687, 4
    %v3689 = vmax.f32 %v3687, %v3688
    %v3690 = vrot.slane %v3689, 2
    %v3691 = vmax.f32 %v3689, %v3690
    %v3692 = vrot.slane %v3691, 1
    %v3693 = vmax.f32 %v3691, %v3692
    %v3694 = vsel %vm2321, %v1817, -inf
    %v3695 = vrot.slane %v3694, 4
    %v3696 = vmax.f32 %v3694, %v3695
    %v3697 = vrot.slane %v3696, 2
    %v3698 = vmax.f32 %v3696, %v3697
    %v3699 = vrot.slane %v3698, 1
    %v3700 = vmax.f32 %v3698, %v3699
    %v3701 = vsel %vm2321, %v1825, -inf
    %v3702 = vrot.slane %v3701, 4
    %v3703 = vmax.f32 %v3701, %v3702
    %v3704 = vrot.slane %v3703, 2
    %v3705 = vmax.f32 %v3703, %v3704
    %v3706 = vrot.slane %v3705, 1
    %v3707 = vmax.f32 %v3705, %v3706
    %v3708 = vsel %vm2321, %v1824, -inf
    %v3709 = vrot.slane %v3708, 4
    %v3710 = vmax.f32 %v3708, %v3709
    %v3711 = vrot.slane %v3710, 2
    %v3712 = vmax.f32 %v3710, %v3711
    %v3713 = vrot.slane %v3712, 1
    %v3714 = vmax.f32 %v3712, %v3713
    %v3715 = vsel %vm2321, %v1826, -inf
    %v3716 = vrot.slane %v3715, 4
    %v3717 = vmax.f32 %v3715, %v3716
    %v3718 = vrot.slane %v3717, 2
    %v3719 = vmax.f32 %v3717, %v3718
    %v3720 = vrot.slane %v3719, 1
    %v3721 = vmax.f32 %v3719, %v3720
    %v3722 = vsel %vm2321, %v1834, -inf
    %v3723 = vrot.slane %v3722, 4
    %v3724 = vmax.f32 %v3722, %v3723
    %v3725 = vrot.slane %v3724, 2
    %v3726 = vmax.f32 %v3724, %v3725
    %v3727 = vrot.slane %v3726, 1
    %v3728 = vmax.f32 %v3726, %v3727
    %v3729 = vsel %vm2321, %v1842, -inf
    %v3730 = vrot.slane %v3729, 4
    %v3731 = vmax.f32 %v3729, %v3730
    %v3732 = vrot.slane %v3731, 2
    %v3733 = vmax.f32 %v3731, %v3732
    %v3734 = vrot.slane %v3733, 1
    %v3735 = vmax.f32 %v3733, %v3734
    %v3736 = vsel %vm2321, %v1841, -inf
    %v3737 = vrot.slane %v3736, 4
    %v3738 = vmax.f32 %v3736, %v3737
    %v3739 = vrot.slane %v3738, 2
    %v3740 = vmax.f32 %v3738, %v3739
    %v3741 = vrot.slane %v3740, 1
    %v3742 = vmax.f32 %v3740, %v3741
    %v3743 = vsel %vm2321, %v1843, -inf
    %v3744 = vrot.slane %v3743, 4
    %v3745 = vmax.f32 %v3743, %v3744
    %v3746 = vrot.slane %v3745, 2
    %v3747 = vmax.f32 %v3745, %v3746
    %v3748 = vrot.slane %v3747, 1
    %v3749 = vmax.f32 %v3747, %v3748
    %v3750 = vsel %vm2321, %v1851, -inf
    %v3751 = vrot.slane %v3750, 4
    %v3752 = vmax.f32 %v3750, %v3751
    %v3753 = vrot.slane %v3752, 2
    %v3754 = vmax.f32 %v3752, %v3753
    %v3755 = vrot.slane %v3754, 1
    %v3756 = vmax.f32 %v3754, %v3755
    %v3757 = vsel %vm2321, %v1859, -inf
    %v3758 = vrot.slane %v3757, 4
    %v3759 = vmax.f32 %v3757, %v3758
    %v3760 = vrot.slane %v3759, 2
    %v3761 = vmax.f32 %v3759, %v3760
    %v3762 = vrot.slane %v3761, 1
    %v3763 = vmax.f32 %v3761, %v3762
    %v3764 = vsel %vm2321, %v1858, -inf
    %v3765 = vrot.slane %v3764, 4
    %v3766 = vmax.f32 %v3764, %v3765
    %v3767 = vrot.slane %v3766, 2
    %v3768 = vmax.f32 %v3766, %v3767
    %v3769 = vrot.slane %v3768, 1
    %v3770 = vmax.f32 %v3768, %v3769
    %v3771 = vsel %vm2321, %v1860, -inf
    %v3772 = vrot.slane %v3771, 4
    %v3773 = vmax.f32 %v3771, %v3772
    %v3774 = vrot.slane %v3773, 2
    %v3775 = vmax.f32 %v3773, %v3774
    %v3776 = vrot.slane %v3775, 1
    %v3777 = vmax.f32 %v3775, %v3776
    %v3778 = vsel %vm2321, %v1868, -inf
    %v3779 = vrot.slane %v3778, 4
    %v3780 = vmax.f32 %v3778, %v3779
    %v3781 = vrot.slane %v3780, 2
    %v3782 = vmax.f32 %v3780, %v3781
    %v3783 = vrot.slane %v3782, 1
    %v3784 = vmax.f32 %v3782, %v3783
    %v3785 = vsel %vm2321, %v1876, -inf
    %v3786 = vrot.slane %v3785, 4
    %v3787 = vmax.f32 %v3785, %v3786
    %v3788 = vrot.slane %v3787, 2
    %v3789 = vmax.f32 %v3787, %v3788
    %v3790 = vrot.slane %v3789, 1
    %v3791 = vmax.f32 %v3789, %v3790
    %v3792 = vsel %vm2321, %v1875, -inf
    %v3793 = vrot.slane %v3792, 4
    %v3794 = vmax.f32 %v3792, %v3793
    %v3795 = vrot.slane %v3794, 2
    %v3796 = vmax.f32 %v3794, %v3795
    %v3797 = vrot.slane %v3796, 1
    %v3798 = vmax.f32 %v3796, %v3797
    %v3799 = vsel %vm2321, %v1877, -inf
    %v3800 = vrot.slane %v3799, 4
    %v3801 = vmax.f32 %v3799, %v3800
    %v3802 = vrot.slane %v3801, 2
    %v3803 = vmax.f32 %v3801, %v3802
    %v3804 = vrot.slane %v3803, 1
    %v3805 = vmax.f32 %v3803, %v3804
    %v3806 = vsel %vm2321, %v1885, -inf
    %v3807 = vrot.slane %v3806, 4
    %v3808 = vmax.f32 %v3806, %v3807
    %v3809 = vrot.slane %v3808, 2
    %v3810 = vmax.f32 %v3808, %v3809
    %v3811 = vrot.slane %v3810, 1
    %v3812 = vmax.f32 %v3810, %v3811
    %v3813 = vsel %vm2321, %v1893, -inf
    %v3814 = vrot.slane %v3813, 4
    %v3815 = vmax.f32 %v3813, %v3814
    %v3816 = vrot.slane %v3815, 2
    %v3817 = vmax.f32 %v3815, %v3816
    %v3818 = vrot.slane %v3817, 1
    %v3819 = vmax.f32 %v3817, %v3818
    %v3820 = vsel %vm2321, %v1892, -inf
    %v3821 = vrot.slane %v3820, 4
    %v3822 = vmax.f32 %v3820, %v3821
    %v3823 = vrot.slane %v3822, 2
    %v3824 = vmax.f32 %v3822, %v3823
    %v3825 = vrot.slane %v3824, 1
    %v3826 = vmax.f32 %v3824, %v3825
    %v3827 = vsel %vm2321, %v1894, -inf
    %v3828 = vrot.slane %v3827, 4
    %v3829 = vmax.f32 %v3827, %v3828
    %v3830 = vrot.slane %v3829, 2
    %v3831 = vmax.f32 %v3829, %v3830
    %v3832 = vrot.slane %v3831, 1
    %v3833 = vmax.f32 %v3831, %v3832
    %v3834 = vsel %vm2321, %v1902, -inf
    %v3835 = vrot.slane %v3834, 4
    %v3836 = vmax.f32 %v3834, %v3835
    %v3837 = vrot.slane %v3836, 2
    %v3838 = vmax.f32 %v3836, %v3837
    %v3839 = vrot.slane %v3838, 1
    %v3840 = vmax.f32 %v3838, %v3839
    %v3841 = vsel %vm2321, %v1910, -inf
    %v3842 = vrot.slane %v3841, 4
    %v3843 = vmax.f32 %v3841, %v3842
    %v3844 = vrot.slane %v3843, 2
    %v3845 = vmax.f32 %v3843, %v3844
    %v3846 = vrot.slane %v3845, 1
    %v3847 = vmax.f32 %v3845, %v3846
    %v3848 = vsel %vm2321, %v1909, -inf
    %v3849 = vrot.slane %v3848, 4
    %v3850 = vmax.f32 %v3848, %v3849
    %v3851 = vrot.slane %v3850, 2
    %v3852 = vmax.f32 %v3850, %v3851
    %v3853 = vrot.slane %v3852, 1
    %v3854 = vmax.f32 %v3852, %v3853
    %v3855 = vsel %vm2321, %v1911, -inf
    %v3856 = vrot.slane %v3855, 4
    %v3857 = vmax.f32 %v3855, %v3856
    %v3858 = vrot.slane %v3857, 2
    %v3859 = vmax.f32 %v3857, %v3858
    %v3860 = vrot.slane %v3859, 1
    %v3861 = vmax.f32 %v3859, %v3860
    %v3862 = vsel %vm2321, %v1919, -inf
    %v3863 = vrot.slane %v3862, 4
    %v3864 = vmax.f32 %v3862, %v3863
    %v3865 = vrot.slane %v3864, 2
    %v3866 = vmax.f32 %v3864, %v3865
    %v3867 = vrot.slane %v3866, 1
    %v3868 = vmax.f32 %v3866, %v3867
    %v3869 = vsel %vm2321, %v1927, -inf
    %v3870 = vrot.slane %v3869, 4
    %v3871 = vmax.f32 %v3869, %v3870
    %v3872 = vrot.slane %v3871, 2
    %v3873 = vmax.f32 %v3871, %v3872
    %v3874 = vrot.slane %v3873, 1
    %v3875 = vmax.f32 %v3873, %v3874
    %v3876 = vsel %vm2321, %v1926, -inf
    %v3877 = vrot.slane %v3876, 4
    %v3878 = vmax.f32 %v3876, %v3877
    %v3879 = vrot.slane %v3878, 2
    %v3880 = vmax.f32 %v3878, %v3879
    %v3881 = vrot.slane %v3880, 1
    %v3882 = vmax.f32 %v3880, %v3881
    %v3883 = vsel %vm2321, %v1928, -inf
    %v3884 = vrot.slane %v3883, 4
    %v3885 = vmax.f32 %v3883, %v3884
    %v3886 = vrot.slane %v3885, 2
    %v3887 = vmax.f32 %v3885, %v3886
    %v3888 = vrot.slane %v3887, 1
    %v3889 = vmax.f32 %v3887, %v3888
    %v3890 = vsel %vm2321, %v1936, -inf
    %v3891 = vrot.slane %v3890, 4
    %v3892 = vmax.f32 %v3890, %v3891
    %v3893 = vrot.slane %v3892, 2
    %v3894 = vmax.f32 %v3892, %v3893
    %v3895 = vrot.slane %v3894, 1
    %v3896 = vmax.f32 %v3894, %v3895
    %v3897 = vsel %vm2321, %v1944, -inf
    %v3898 = vrot.slane %v3897, 4
    %v3899 = vmax.f32 %v3897, %v3898
    %v3900 = vrot.slane %v3899, 2
    %v3901 = vmax.f32 %v3899, %v3900
    %v3902 = vrot.slane %v3901, 1
    %v3903 = vmax.f32 %v3901, %v3902
    %v3904 = vsel %vm2321, %v1943, -inf
    %v3905 = vrot.slane %v3904, 4
    %v3906 = vmax.f32 %v3904, %v3905
    %v3907 = vrot.slane %v3906, 2
    %v3908 = vmax.f32 %v3906, %v3907
    %v3909 = vrot.slane %v3908, 1
    %v3910 = vmax.f32 %v3908, %v3909
    %v3911 = vsel %vm2321, %v1945, -inf
    %v3912 = vrot.slane %v3911, 4
    %v3913 = vmax.f32 %v3911, %v3912
    %v3914 = vrot.slane %v3913, 2
    %v3915 = vmax.f32 %v3913, %v3914
    %v3916 = vrot.slane %v3915, 1
    %v3917 = vmax.f32 %v3915, %v3916
    %v3918 = vsel %vm2321, %v1953, -inf
    %v3919 = vrot.slane %v3918, 4
    %v3920 = vmax.f32 %v3918, %v3919
    %v3921 = vrot.slane %v3920, 2
    %v3922 = vmax.f32 %v3920, %v3921
    %v3923 = vrot.slane %v3922, 1
    %v3924 = vmax.f32 %v3922, %v3923
    %v3925 = vsel %vm2321, %v1961, -inf
    %v3926 = vrot.slane %v3925, 4
    %v3927 = vmax.f32 %v3925, %v3926
    %v3928 = vrot.slane %v3927, 2
    %v3929 = vmax.f32 %v3927, %v3928
    %v3930 = vrot.slane %v3929, 1
    %v3931 = vmax.f32 %v3929, %v3930
    %v3932 = vsel %vm2321, %v1960, -inf
    %v3933 = vrot.slane %v3932, 4
    %v3934 = vmax.f32 %v3932, %v3933
    %v3935 = vrot.slane %v3934, 2
    %v3936 = vmax.f32 %v3934, %v3935
    %v3937 = vrot.slane %v3936, 1
    %v3938 = vmax.f32 %v3936, %v3937
    %v3939 = vsel %vm2321, %v1962, -inf
    %v3940 = vrot.slane %v3939, 4
    %v3941 = vmax.f32 %v3939, %v3940
    %v3942 = vrot.slane %v3941, 2
    %v3943 = vmax.f32 %v3941, %v3942
    %v3944 = vrot.slane %v3943, 1
    %v3945 = vmax.f32 %v3943, %v3944
    %v3946 = vsel %vm2321, %v1970, -inf
    %v3947 = vrot.slane %v3946, 4
    %v3948 = vmax.f32 %v3946, %v3947
    %v3949 = vrot.slane %v3948, 2
    %v3950 = vmax.f32 %v3948, %v3949
    %v3951 = vrot.slane %v3950, 1
    %v3952 = vmax.f32 %v3950, %v3951
    %v3953 = vsel %vm2321, %v1978, -inf
    %v3954 = vrot.slane %v3953, 4
    %v3955 = vmax.f32 %v3953, %v3954
    %v3956 = vrot.slane %v3955, 2
    %v3957 = vmax.f32 %v3955, %v3956
    %v3958 = vrot.slane %v3957, 1
    %v3959 = vmax.f32 %v3957, %v3958
    %v3960 = vsel %vm2321, %v1977, -inf
    %v3961 = vrot.slane %v3960, 4
    %v3962 = vmax.f32 %v3960, %v3961
    %v3963 = vrot.slane %v3962, 2
    %v3964 = vmax.f32 %v3962, %v3963
    %v3965 = vrot.slane %v3964, 1
    %v3966 = vmax.f32 %v3964, %v3965
    %v3967 = vsel %vm2321, %v1979, -inf
    %v3968 = vrot.slane %v3967, 4
    %v3969 = vmax.f32 %v3967, %v3968
    %v3970 = vrot.slane %v3969, 2
    %v3971 = vmax.f32 %v3969, %v3970
    %v3972 = vrot.slane %v3971, 1
    %v3973 = vmax.f32 %v3971, %v3972
    %v3974 = vsel %vm2321, %v1987, -inf
    %v3975 = vrot.slane %v3974, 4
    %v3976 = vmax.f32 %v3974, %v3975
    %v3977 = vrot.slane %v3976, 2
    %v3978 = vmax.f32 %v3976, %v3977
    %v3979 = vrot.slane %v3978, 1
    %v3980 = vmax.f32 %v3978, %v3979
    %v3981 = vsel %vm2321, %v1995, -inf
    %v3982 = vrot.slane %v3981, 4
    %v3983 = vmax.f32 %v3981, %v3982
    %v3984 = vrot.slane %v3983, 2
    %v3985 = vmax.f32 %v3983, %v3984
    %v3986 = vrot.slane %v3985, 1
    %v3987 = vmax.f32 %v3985, %v3986
    %v3988 = vsel %vm2321, %v1994, -inf
    %v3989 = vrot.slane %v3988, 4
    %v3990 = vmax.f32 %v3988, %v3989
    %v3991 = vrot.slane %v3990, 2
    %v3992 = vmax.f32 %v3990, %v3991
    %v3993 = vrot.slane %v3992, 1
    %v3994 = vmax.f32 %v3992, %v3993
    %v3995 = vsel %vm2321, %v1996, -inf
    %v3996 = vrot.slane %v3995, 4
    %v3997 = vmax.f32 %v3995, %v3996
    %v3998 = vrot.slane %v3997, 2
    %v3999 = vmax.f32 %v3997, %v3998
    %v4000 = vrot.slane %v3999, 1
    %v4001 = vmax.f32 %v3999, %v4000
    %v4002 = vsel %vm2321, %v2004, -inf
    %v4003 = vrot.slane %v4002, 4
    %v4004 = vmax.f32 %v4002, %v4003
    %v4005 = vrot.slane %v4004, 2
    %v4006 = vmax.f32 %v4004, %v4005
    %v4007 = vrot.slane %v4006, 1
    %v4008 = vmax.f32 %v4006, %v4007
    %v4009 = vsel %vm2321, %v2012, -inf
    %v4010 = vrot.slane %v4009, 4
    %v4011 = vmax.f32 %v4009, %v4010
    %v4012 = vrot.slane %v4011, 2
    %v4013 = vmax.f32 %v4011, %v4012
    %v4014 = vrot.slane %v4013, 1
    %v4015 = vmax.f32 %v4013, %v4014
    %v4016 = vsel %vm2321, %v2011, -inf
    %v4017 = vrot.slane %v4016, 4
    %v4018 = vmax.f32 %v4016, %v4017
    %v4019 = vrot.slane %v4018, 2
    %v4020 = vmax.f32 %v4018, %v4019
    %v4021 = vrot.slane %v4020, 1
    %v4022 = vmax.f32 %v4020, %v4021
    %v4023 = vsel %vm2321, %v2013, -inf
    %v4024 = vrot.slane %v4023, 4
    %v4025 = vmax.f32 %v4023, %v4024
    %v4026 = vrot.slane %v4025, 2
    %v4027 = vmax.f32 %v4025, %v4026
    %v4028 = vrot.slane %v4027, 1
    %v4029 = vmax.f32 %v4027, %v4028
    %v4030 = vsel %vm2321, %v2021, -inf
    %v4031 = vrot.slane %v4030, 4
    %v4032 = vmax.f32 %v4030, %v4031
    %v4033 = vrot.slane %v4032, 2
    %v4034 = vmax.f32 %v4032, %v4033
    %v4035 = vrot.slane %v4034, 1
    %v4036 = vmax.f32 %v4034, %v4035
    %v4037 = vsel %vm2321, %v2029, -inf
    %v4038 = vrot.slane %v4037, 4
    %v4039 = vmax.f32 %v4037, %v4038
    %v4040 = vrot.slane %v4039, 2
    %v4041 = vmax.f32 %v4039, %v4040
    %v4042 = vrot.slane %v4041, 1
    %v4043 = vmax.f32 %v4041, %v4042
    %v4044 = vsel %vm2321, %v2028, -inf
    %v4045 = vrot.slane %v4044, 4
    %v4046 = vmax.f32 %v4044, %v4045
    %v4047 = vrot.slane %v4046, 2
    %v4048 = vmax.f32 %v4046, %v4047
    %v4049 = vrot.slane %v4048, 1
    %v4050 = vmax.f32 %v4048, %v4049
    %v4051 = vsel %vm2321, %v2030, -inf
    %v4052 = vrot.slane %v4051, 4
    %v4053 = vmax.f32 %v4051, %v4052
    %v4054 = vrot.slane %v4053, 2
    %v4055 = vmax.f32 %v4053, %v4054
    %v4056 = vrot.slane %v4055, 1
    %v4057 = vmax.f32 %v4055, %v4056
    %v4058 = vsel %vm2321, %v2038, -inf
    %v4059 = vrot.slane %v4058, 4
    %v4060 = vmax.f32 %v4058, %v4059
    %v4061 = vrot.slane %v4060, 2
    %v4062 = vmax.f32 %v4060, %v4061
    %v4063 = vrot.slane %v4062, 1
    %v4064 = vmax.f32 %v4062, %v4063
    %v4065 = vsel %vm2321, %v2046, -inf
    %v4066 = vrot.slane %v4065, 4
    %v4067 = vmax.f32 %v4065, %v4066
    %v4068 = vrot.slane %v4067, 2
    %v4069 = vmax.f32 %v4067, %v4068
    %v4070 = vrot.slane %v4069, 1
    %v4071 = vmax.f32 %v4069, %v4070
    %v4072 = vsel %vm2321, %v2045, -inf
    %v4073 = vrot.slane %v4072, 4
    %v4074 = vmax.f32 %v4072, %v4073
    %v4075 = vrot.slane %v4074, 2
    %v4076 = vmax.f32 %v4074, %v4075
    %v4077 = vrot.slane %v4076, 1
    %v4078 = vmax.f32 %v4076, %v4077
    %v4079 = vsel %vm2321, %v2047, -inf
    %v4080 = vrot.slane %v4079, 4
    %v4081 = vmax.f32 %v4079, %v4080
    %v4082 = vrot.slane %v4081, 2
    %v4083 = vmax.f32 %v4081, %v4082
    %v4084 = vrot.slane %v4083, 1
    %v4085 = vmax.f32 %v4083, %v4084
    %v4086 = vsel %vm2321, %v2055, -inf
    %v4087 = vrot.slane %v4086, 4
    %v4088 = vmax.f32 %v4086, %v4087
    %v4089 = vrot.slane %v4088, 2
    %v4090 = vmax.f32 %v4088, %v4089
    %v4091 = vrot.slane %v4090, 1
    %v4092 = vmax.f32 %v4090, %v4091
    %v4093 = vsel %vm2321, %v2063, -inf
    %v4094 = vrot.slane %v4093, 4
    %v4095 = vmax.f32 %v4093, %v4094
    %v4096 = vrot.slane %v4095, 2
    %v4097 = vmax.f32 %v4095, %v4096
    %v4098 = vrot.slane %v4097, 1
    %v4099 = vmax.f32 %v4097, %v4098
    %v4100 = vsel %vm2321, %v2062, -inf
    %v4101 = vrot.slane %v4100, 4
    %v4102 = vmax.f32 %v4100, %v4101
    %v4103 = vrot.slane %v4102, 2
    %v4104 = vmax.f32 %v4102, %v4103
    %v4105 = vrot.slane %v4104, 1
    %v4106 = vmax.f32 %v4104, %v4105
    %v4107 = vsel %vm2321, %v2064, -inf
    %v4108 = vrot.slane %v4107, 4
    %v4109 = vmax.f32 %v4107, %v4108
    %v4110 = vrot.slane %v4109, 2
    %v4111 = vmax.f32 %v4109, %v4110
    %v4112 = vrot.slane %v4111, 1
    %v4113 = vmax.f32 %v4111, %v4112
    %vm4114 = vcmask 130048
    %v4115 = vsel %vm4114, %v2328, -inf
    %v4116 = vsel %vm4114, %v2384, -inf
    %v4117 = vmax.f32 %v4115, %v4116
    %v4118 = vsel %vm4114, %v2335, -inf
    %v4119 = vsel %vm4114, %v2391, -inf
    %v4120 = vmax.f32 %v4118, %v4119
    %v4121 = vsel %vm4114, %v2342, -inf
    %v4122 = vsel %vm4114, %v2398, -inf
    %v4123 = vmax.f32 %v4121, %v4122
    %v4124 = vsel %vm4114, %v2349, -inf
    %v4125 = vsel %vm4114, %v2405, -inf
    %v4126 = vmax.f32 %v4124, %v4125
    %v4127 = vsel %vm4114, %v2356, -inf
    %v4128 = vsel %vm4114, %v2412, -inf
    %v4129 = vmax.f32 %v4127, %v4128
    %v4130 = vsel %vm4114, %v2363, -inf
    %v4131 = vsel %vm4114, %v2419, -inf
    %v4132 = vmax.f32 %v4130, %v4131
    %v4133 = vsel %vm4114, %v2370, -inf
    %v4134 = vsel %vm4114, %v2426, -inf
    %v4135 = vmax.f32 %v4133, %v4134
    %v4136 = vsel %vm4114, %v2377, -inf
    %v4137 = vsel %vm4114, %v2433, -inf
    %v4138 = vmax.f32 %v4136, %v4137
    %v4139 = vsel %vm4114, %v2440, -inf
    %v4140 = vsel %vm4114, %v2496, -inf
    %v4141 = vmax.f32 %v4139, %v4140
    %v4142 = vsel %vm4114, %v2447, -inf
    %v4143 = vsel %vm4114, %v2503, -inf
    %v4144 = vmax.f32 %v4142, %v4143
    %v4145 = vsel %vm4114, %v2454, -inf
    %v4146 = vsel %vm4114, %v2510, -inf
    %v4147 = vmax.f32 %v4145, %v4146
    %v4148 = vsel %vm4114, %v2461, -inf
    %v4149 = vsel %vm4114, %v2517, -inf
    %v4150 = vmax.f32 %v4148, %v4149
    %v4151 = vsel %vm4114, %v2468, -inf
    %v4152 = vsel %vm4114, %v2524, -inf
    %v4153 = vmax.f32 %v4151, %v4152
    %v4154 = vsel %vm4114, %v2475, -inf
    %v4155 = vsel %vm4114, %v2531, -inf
    %v4156 = vmax.f32 %v4154, %v4155
    %v4157 = vsel %vm4114, %v2482, -inf
    %v4158 = vsel %vm4114, %v2538, -inf
    %v4159 = vmax.f32 %v4157, %v4158
    %v4160 = vsel %vm4114, %v2489, -inf
    %v4161 = vsel %vm4114, %v2545, -inf
    %v4162 = vmax.f32 %v4160, %v4161
    %v4163 = vsel %vm4114, %v2552, -inf
    %v4164 = vsel %vm4114, %v2608, -inf
    %v4165 = vmax.f32 %v4163, %v4164
    %v4166 = vsel %vm4114, %v2559, -inf
    %v4167 = vsel %vm4114, %v2615, -inf
    %v4168 = vmax.f32 %v4166, %v4167
    %v4169 = vsel %vm4114, %v2566, -inf
    %v4170 = vsel %vm4114, %v2622, -inf
    %v4171 = vmax.f32 %v4169, %v4170
    %v4172 = vsel %vm4114, %v2573, -inf
    %v4173 = vsel %vm4114, %v2629, -inf
    %v4174 = vmax.f32 %v4172, %v4173
    %v4175 = vsel %vm4114, %v2580, -inf
    %v4176 = vsel %vm4114, %v2636, -inf
    %v4177 = vmax.f32 %v4175, %v4176
    %v4178 = vsel %vm4114, %v2587, -inf
    %v4179 = vsel %vm4114, %v2643, -inf
    %v4180 = vmax.f32 %v4178, %v4179
    %v4181 = vsel %vm4114, %v2594, -inf
    %v4182 = vsel %vm4114, %v2650, -inf
    %v4183 = vmax.f32 %v4181, %v4182
    %v4184 = vsel %vm4114, %v2601, -inf
    %v4185 = vsel %vm4114, %v2657, -inf
    %v4186 = vmax.f32 %v4184, %v4185
    %v4187 = vsel %vm4114, %v2664, -inf
    %v4188 = vsel %vm4114, %v2720, -inf
    %v4189 = vmax.f32 %v4187, %v4188
    %v4190 = vsel %vm4114, %v2671, -inf
    %v4191 = vsel %vm4114, %v2727, -inf
    %v4192 = vmax.f32 %v4190, %v4191
    %v4193 = vsel %vm4114, %v2678, -inf
    %v4194 = vsel %vm4114, %v2734, -inf
    %v4195 = vmax.f32 %v4193, %v4194
    %v4196 = vsel %vm4114, %v2685, -inf
    %v4197 = vsel %vm4114, %v2741, -inf
    %v4198 = vmax.f32 %v4196, %v4197
    %v4199 = vsel %vm4114, %v2692, -inf
    %v4200 = vsel %vm4114, %v2748, -inf
    %v4201 = vmax.f32 %v4199, %v4200
    %v4202 = vsel %vm4114, %v2699, -inf
    %v4203 = vsel %vm4114, %v2755, -inf
    %v4204 = vmax.f32 %v4202, %v4203
    %v4205 = vsel %vm4114, %v2706, -inf
    %v4206 = vsel %vm4114, %v2762, -inf
    %v4207 = vmax.f32 %v4205, %v4206
    %v4208 = vsel %vm4114, %v2713, -inf
    %v4209 = vsel %vm4114, %v2769, -inf
    %v4210 = vmax.f32 %v4208, %v4209
    %v4211 = vsel %vm4114, %v2776, -inf
    %v4212 = vsel %vm4114, %v2832, -inf
    %v4213 = vmax.f32 %v4211, %v4212
    %v4214 = vsel %vm4114, %v2783, -inf
    %v4215 = vsel %vm4114, %v2839, -inf
    %v4216 = vmax.f32 %v4214, %v4215
    %v4217 = vsel %vm4114, %v2790, -inf
    %v4218 = vsel %vm4114, %v2846, -inf
    %v4219 = vmax.f32 %v4217, %v4218
    %v4220 = vsel %vm4114, %v2797, -inf
    %v4221 = vsel %vm4114, %v2853, -inf
    %v4222 = vmax.f32 %v4220, %v4221
    %v4223 = vsel %vm4114, %v2804, -inf
    %v4224 = vsel %vm4114, %v2860, -inf
    %v4225 = vmax.f32 %v4223, %v4224
    %v4226 = vsel %vm4114, %v2811, -inf
    %v4227 = vsel %vm4114, %v2867, -inf
    %v4228 = vmax.f32 %v4226, %v4227
    %v4229 = vsel %vm4114, %v2818, -inf
    %v4230 = vsel %vm4114, %v2874, -inf
    %v4231 = vmax.f32 %v4229, %v4230
    %v4232 = vsel %vm4114, %v2825, -inf
    %v4233 = vsel %vm4114, %v2881, -inf
    %v4234 = vmax.f32 %v4232, %v4233
    %v4235 = vsel %vm4114, %v2888, -inf
    %v4236 = vsel %vm4114, %v2944, -inf
    %v4237 = vmax.f32 %v4235, %v4236
    %v4238 = vsel %vm4114, %v2895, -inf
    %v4239 = vsel %vm4114, %v2951, -inf
    %v4240 = vmax.f32 %v4238, %v4239
    %v4241 = vsel %vm4114, %v2902, -inf
    %v4242 = vsel %vm4114, %v2958, -inf
    %v4243 = vmax.f32 %v4241, %v4242
    %v4244 = vsel %vm4114, %v2909, -inf
    %v4245 = vsel %vm4114, %v2965, -inf
    %v4246 = vmax.f32 %v4244, %v4245
    %v4247 = vsel %vm4114, %v2916, -inf
    %v4248 = vsel %vm4114, %v2972, -inf
    %v4249 = vmax.f32 %v4247, %v4248
    %v4250 = vsel %vm4114, %v2923, -inf
    %v4251 = vsel %vm4114, %v2979, -inf
    %v4252 = vmax.f32 %v4250, %v4251
    %v4253 = vsel %vm4114, %v2930, -inf
    %v4254 = vsel %vm4114, %v2986, -inf
    %v4255 = vmax.f32 %v4253, %v4254
    %v4256 = vsel %vm4114, %v2937, -inf
    %v4257 = vsel %vm4114, %v2993, -inf
    %v4258 = vmax.f32 %v4256, %v4257
    %v4259 = vsel %vm4114, %v3000, -inf
    %v4260 = vsel %vm4114, %v3056, -inf
    %v4261 = vmax.f32 %v4259, %v4260
    %v4262 = vsel %vm4114, %v3007, -inf
    %v4263 = vsel %vm4114, %v3063, -inf
    %v4264 = vmax.f32 %v4262, %v4263
    %v4265 = vsel %vm4114, %v3014, -inf
    %v4266 = vsel %vm4114, %v3070, -inf
    %v4267 = vmax.f32 %v4265, %v4266
    %v4268 = vsel %vm4114, %v3021, -inf
    %v4269 = vsel %vm4114, %v3077, -inf
    %v4270 = vmax.f32 %v4268, %v4269
    %v4271 = vsel %vm4114, %v3028, -inf
    %v4272 = vsel %vm4114, %v3084, -inf
    %v4273 = vmax.f32 %v4271, %v4272
    %v4274 = vsel %vm4114, %v3035, -inf
    %v4275 = vsel %vm4114, %v3091, -inf
    %v4276 = vmax.f32 %v4274, %v4275
    %v4277 = vsel %vm4114, %v3042, -inf
    %v4278 = vsel %vm4114, %v3098, -inf
    %v4279 = vmax.f32 %v4277, %v4278
    %v4280 = vsel %vm4114, %v3049, -inf
    %v4281 = vsel %vm4114, %v3105, -inf
    %v4282 = vmax.f32 %v4280, %v4281
    %v4283 = vsel %vm4114, %v3112, -inf
    %v4284 = vsel %vm4114, %v3168, -inf
    %v4285 = vmax.f32 %v4283, %v4284
    %v4286 = vsel %vm4114, %v3119, -inf
    %v4287 = vsel %vm4114, %v3175, -inf
    %v4288 = vmax.f32 %v4286, %v4287
    %v4289 = vsel %vm4114, %v3126, -inf
    %v4290 = vsel %vm4114, %v3182, -inf
    %v4291 = vmax.f32 %v4289, %v4290
    %v4292 = vsel %vm4114, %v3133, -inf
    %v4293 = vsel %vm4114, %v3189, -inf
    %v4294 = vmax.f32 %v4292, %v4293
    %v4295 = vsel %vm4114, %v3140, -inf
    %v4296 = vsel %vm4114, %v3196, -inf
    %v4297 = vmax.f32 %v4295, %v4296
    %v4298 = vsel %vm4114, %v3147, -inf
    %v4299 = vsel %vm4114, %v3203, -inf
    %v4300 = vmax.f32 %v4298, %v4299
    %v4301 = vsel %vm4114, %v3154, -inf
    %v4302 = vsel %vm4114, %v3210, -inf
    %v4303 = vmax.f32 %v4301, %v4302
    %v4304 = vsel %vm4114, %v3161, -inf
    %v4305 = vsel %vm4114, %v3217, -inf
    %v4306 = vmax.f32 %v4304, %v4305
    %v4307 = vsel %vm4114, %v3224, -inf
    %v4308 = vsel %vm4114, %v3280, -inf
    %v4309 = vmax.f32 %v4307, %v4308
    %v4310 = vsel %vm4114, %v3231, -inf
    %v4311 = vsel %vm4114, %v3287, -inf
    %v4312 = vmax.f32 %v4310, %v4311
    %v4313 = vsel %vm4114, %v3238, -inf
    %v4314 = vsel %vm4114, %v3294, -inf
    %v4315 = vmax.f32 %v4313, %v4314
    %v4316 = vsel %vm4114, %v3245, -inf
    %v4317 = vsel %vm4114, %v3301, -inf
    %v4318 = vmax.f32 %v4316, %v4317
    %v4319 = vsel %vm4114, %v3252, -inf
    %v4320 = vsel %vm4114, %v3308, -inf
    %v4321 = vmax.f32 %v4319, %v4320
    %v4322 = vsel %vm4114, %v3259, -inf
    %v4323 = vsel %vm4114, %v3315, -inf
    %v4324 = vmax.f32 %v4322, %v4323
    %v4325 = vsel %vm4114, %v3266, -inf
    %v4326 = vsel %vm4114, %v3322, -inf
    %v4327 = vmax.f32 %v4325, %v4326
    %v4328 = vsel %vm4114, %v3273, -inf
    %v4329 = vsel %vm4114, %v3329, -inf
    %v4330 = vmax.f32 %v4328, %v4329
    %v4331 = vsel %vm4114, %v3336, -inf
    %v4332 = vsel %vm4114, %v3392, -inf
    %v4333 = vmax.f32 %v4331, %v4332
    %v4334 = vsel %vm4114, %v3343, -inf
    %v4335 = vsel %vm4114, %v3399, -inf
    %v4336 = vmax.f32 %v4334, %v4335
    %v4337 = vsel %vm4114, %v3350, -inf
    %v4338 = vsel %vm4114, %v3406, -inf
    %v4339 = vmax.f32 %v4337, %v4338
    %v4340 = vsel %vm4114, %v3357, -inf
    %v4341 = vsel %vm4114, %v3413, -inf
    %v4342 = vmax.f32 %v4340, %v4341
    %v4343 = vsel %vm4114, %v3364, -inf
    %v4344 = vsel %vm4114, %v3420, -inf
    %v4345 = vmax.f32 %v4343, %v4344
    %v4346 = vsel %vm4114, %v3371, -inf
    %v4347 = vsel %vm4114, %v3427, -inf
    %v4348 = vmax.f32 %v4346, %v4347
    %v4349 = vsel %vm4114, %v3378, -inf
    %v4350 = vsel %vm4114, %v3434, -inf
    %v4351 = vmax.f32 %v4349, %v4350
    %v4352 = vsel %vm4114, %v3385, -inf
    %v4353 = vsel %vm4114, %v3441, -inf
    %v4354 = vmax.f32 %v4352, %v4353
    %v4355 = vsel %vm4114, %v3448, -inf
    %v4356 = vsel %vm4114, %v3504, -inf
    %v4357 = vmax.f32 %v4355, %v4356
    %v4358 = vsel %vm4114, %v3455, -inf
    %v4359 = vsel %vm4114, %v3511, -inf
    %v4360 = vmax.f32 %v4358, %v4359
    %v4361 = vsel %vm4114, %v3462, -inf
    %v4362 = vsel %vm4114, %v3518, -inf
    %v4363 = vmax.f32 %v4361, %v4362
    %v4364 = vsel %vm4114, %v3469, -inf
    %v4365 = vsel %vm4114, %v3525, -inf
    %v4366 = vmax.f32 %v4364, %v4365
    %v4367 = vsel %vm4114, %v3476, -inf
    %v4368 = vsel %vm4114, %v3532, -inf
    %v4369 = vmax.f32 %v4367, %v4368
    %v4370 = vsel %vm4114, %v3483, -inf
    %v4371 = vsel %vm4114, %v3539, -inf
    %v4372 = vmax.f32 %v4370, %v4371
    %v4373 = vsel %vm4114, %v3490, -inf
    %v4374 = vsel %vm4114, %v3546, -inf
    %v4375 = vmax.f32 %v4373, %v4374
    %v4376 = vsel %vm4114, %v3497, -inf
    %v4377 = vsel %vm4114, %v3553, -inf
    %v4378 = vmax.f32 %v4376, %v4377
    %v4379 = vsel %vm4114, %v3560, -inf
    %v4380 = vsel %vm4114, %v3616, -inf
    %v4381 = vmax.f32 %v4379, %v4380
    %v4382 = vsel %vm4114, %v3567, -inf
    %v4383 = vsel %vm4114, %v3623, -inf
    %v4384 = vmax.f32 %v4382, %v4383
    %v4385 = vsel %vm4114, %v3574, -inf
    %v4386 = vsel %vm4114, %v3630, -inf
    %v4387 = vmax.f32 %v4385, %v4386
    %v4388 = vsel %vm4114, %v3581, -inf
    %v4389 = vsel %vm4114, %v3637, -inf
    %v4390 = vmax.f32 %v4388, %v4389
    %v4391 = vsel %vm4114, %v3588, -inf
    %v4392 = vsel %vm4114, %v3644, -inf
    %v4393 = vmax.f32 %v4391, %v4392
    %v4394 = vsel %vm4114, %v3595, -inf
    %v4395 = vsel %vm4114, %v3651, -inf
    %v4396 = vmax.f32 %v4394, %v4395
    %v4397 = vsel %vm4114, %v3602, -inf
    %v4398 = vsel %vm4114, %v3658, -inf
    %v4399 = vmax.f32 %v4397, %v4398
    %v4400 = vsel %vm4114, %v3609, -inf
    %v4401 = vsel %vm4114, %v3665, -inf
    %v4402 = vmax.f32 %v4400, %v4401
    %v4403 = vsel %vm4114, %v3672, -inf
    %v4404 = vsel %vm4114, %v3728, -inf
    %v4405 = vmax.f32 %v4403, %v4404
    %v4406 = vsel %vm4114, %v3679, -inf
    %v4407 = vsel %vm4114, %v3735, -inf
    %v4408 = vmax.f32 %v4406, %v4407
    %v4409 = vsel %vm4114, %v3686, -inf
    %v4410 = vsel %vm4114, %v3742, -inf
    %v4411 = vmax.f32 %v4409, %v4410
    %v4412 = vsel %vm4114, %v3693, -inf
    %v4413 = vsel %vm4114, %v3749, -inf
    %v4414 = vmax.f32 %v4412, %v4413
    %v4415 = vsel %vm4114, %v3700, -inf
    %v4416 = vsel %vm4114, %v3756, -inf
    %v4417 = vmax.f32 %v4415, %v4416
    %v4418 = vsel %vm4114, %v3707, -inf
    %v4419 = vsel %vm4114, %v3763, -inf
    %v4420 = vmax.f32 %v4418, %v4419
    %v4421 = vsel %vm4114, %v3714, -inf
    %v4422 = vsel %vm4114, %v3770, -inf
    %v4423 = vmax.f32 %v4421, %v4422
    %v4424 = vsel %vm4114, %v3721, -inf
    %v4425 = vsel %vm4114, %v3777, -inf
    %v4426 = vmax.f32 %v4424, %v4425
    %v4427 = vsel %vm4114, %v3784, -inf
    %v4428 = vsel %vm4114, %v3840, -inf
    %v4429 = vmax.f32 %v4427, %v4428
    %v4430 = vsel %vm4114, %v3791, -inf
    %v4431 = vsel %vm4114, %v3847, -inf
    %v4432 = vmax.f32 %v4430, %v4431
    %v4433 = vsel %vm4114, %v3798, -inf
    %v4434 = vsel %vm4114, %v3854, -inf
    %v4435 = vmax.f32 %v4433, %v4434
    %v4436 = vsel %vm4114, %v3805, -inf
    %v4437 = vsel %vm4114, %v3861, -inf
    %v4438 = vmax.f32 %v4436, %v4437
    %v4439 = vsel %vm4114, %v3812, -inf
    %v4440 = vsel %vm4114, %v3868, -inf
    %v4441 = vmax.f32 %v4439, %v4440
    %v4442 = vsel %vm4114, %v3819, -inf
    %v4443 = vsel %vm4114, %v3875, -inf
    %v4444 = vmax.f32 %v4442, %v4443
    %v4445 = vsel %vm4114, %v3826, -inf
    %v4446 = vsel %vm4114, %v3882, -inf
    %v4447 = vmax.f32 %v4445, %v4446
    %v4448 = vsel %vm4114, %v3833, -inf
    %v4449 = vsel %vm4114, %v3889, -inf
    %v4450 = vmax.f32 %v4448, %v4449
    %v4451 = vsel %vm4114, %v3896, -inf
    %v4452 = vsel %vm4114, %v3952, -inf
    %v4453 = vmax.f32 %v4451, %v4452
    %v4454 = vsel %vm4114, %v3903, -inf
    %v4455 = vsel %vm4114, %v3959, -inf
    %v4456 = vmax.f32 %v4454, %v4455
    %v4457 = vsel %vm4114, %v3910, -inf
    %v4458 = vsel %vm4114, %v3966, -inf
    %v4459 = vmax.f32 %v4457, %v4458
    %v4460 = vsel %vm4114, %v3917, -inf
    %v4461 = vsel %vm4114, %v3973, -inf
    %v4462 = vmax.f32 %v4460, %v4461
    %v4463 = vsel %vm4114, %v3924, -inf
    %v4464 = vsel %vm4114, %v3980, -inf
    %v4465 = vmax.f32 %v4463, %v4464
    %v4466 = vsel %vm4114, %v3931, -inf
    %v4467 = vsel %vm4114, %v3987, -inf
    %v4468 = vmax.f32 %v4466, %v4467
    %v4469 = vsel %vm4114, %v3938, -inf
    %v4470 = vsel %vm4114, %v3994, -inf
    %v4471 = vmax.f32 %v4469, %v4470
    %v4472 = vsel %vm4114, %v3945, -inf
    %v4473 = vsel %vm4114, %v4001, -inf
    %v4474 = vmax.f32 %v4472, %v4473
    %v4475 = vsel %vm4114, %v4008, -inf
    %v4476 = vsel %vm4114, %v4064, -inf
    %v4477 = vmax.f32 %v4475, %v4476
    %v4478 = vsel %vm4114, %v4015, -inf
    %v4479 = vsel %vm4114, %v4071, -inf
    %v4480 = vmax.f32 %v4478, %v4479
    %v4481 = vsel %vm4114, %v4022, -inf
    %v4482 = vsel %vm4114, %v4078, -inf
    %v4483 = vmax.f32 %v4481, %v4482
    %v4484 = vsel %vm4114, %v4029, -inf
    %v4485 = vsel %vm4114, %v4085, -inf
    %v4486 = vmax.f32 %v4484, %v4485
    %v4487 = vsel %vm4114, %v4036, -inf
    %v4488 = vsel %vm4114, %v4092, -inf
    %v4489 = vmax.f32 %v4487, %v4488
    %v4490 = vsel %vm4114, %v4043, -inf
    %v4491 = vsel %vm4114, %v4099, -inf
    %v4492 = vmax.f32 %v4490, %v4491
    %v4493 = vsel %vm4114, %v4050, -inf
    %v4494 = vsel %vm4114, %v4106, -inf
    %v4495 = vmax.f32 %v4493, %v4494
    %v4496 = vsel %vm4114, %v4057, -inf
    %v4497 = vsel %vm4114, %v4113, -inf
    %v4498 = vmax.f32 %v4496, %v4497
    %4499 = vst.msk [vmem:[#allocation2] sm:$0xff] %vm4114, 0.0
    %4500 = vst.msk [vmem:[#allocation2 + $0x8] sm:$0xff] %vm4114, 0.0
    %4501 = vst.msk [vmem:[#allocation2 + $0x10] sm:$0xff] %vm4114, 0.0
    %4502 = vst.msk [vmem:[#allocation2 + $0x18] sm:$0xff] %vm4114, 0.0
    %4503 = vst.msk [vmem:[#allocation2 + $0x20] sm:$0xff] %vm4114, 0.0
    %4504 = vst.msk [vmem:[#allocation2 + $0x28] sm:$0xff] %vm4114, 0.0
    %4505 = vst.msk [vmem:[#allocation2 + $0x30] sm:$0xff] %vm4114, 0.0
    %4506 = vst.msk [vmem:[#allocation2 + $0x38] sm:$0xff] %vm4114, 0.0
    %4507 = vst.msk [vmem:[#allocation2 + $0x40] sm:$0xff] %vm4114, 0.0
    %4508 = vst.msk [vmem:[#allocation2 + $0x48] sm:$0xff] %vm4114, 0.0
    %4509 = vst.msk [vmem:[#allocation2 + $0x50] sm:$0xff] %vm4114, 0.0
    %4510 = vst.msk [vmem:[#allocation2 + $0x58] sm:$0xff] %vm4114, 0.0
    %4511 = vst.msk [vmem:[#allocation2 + $0x60] sm:$0xff] %vm4114, 0.0
    %4512 = vst.msk [vmem:[#allocation2 + $0x68] sm:$0xff] %vm4114, 0.0
    %4513 = vst.msk [vmem:[#allocation2 + $0x70] sm:$0xff] %vm4114, 0.0
    %4514 = vst.msk [vmem:[#allocation2 + $0x78] sm:$0xff] %vm4114, 0.0
    %4515 = vst.msk [vmem:[#allocation2 + $0x80] sm:$0xff] %vm4114, 0.0
    %4516 = vst.msk [vmem:[#allocation2 + $0x88] sm:$0xff] %vm4114, 0.0
    %4517 = vst.msk [vmem:[#allocation2 + $0x90] sm:$0xff] %vm4114, 0.0
    %4518 = vst.msk [vmem:[#allocation2 + $0x98] sm:$0xff] %vm4114, 0.0
    %4519 = vst.msk [vmem:[#allocation2 + $0xa0] sm:$0xff] %vm4114, 0.0
    %4520 = vst.msk [vmem:[#allocation2 + $0xa8] sm:$0xff] %vm4114, 0.0
    %4521 = vst.msk [vmem:[#allocation2 + $0xb0] sm:$0xff] %vm4114, 0.0
    %4522 = vst.msk [vmem:[#allocation2 + $0xb8] sm:$0xff] %vm4114, 0.0
    %4523 = vst.msk [vmem:[#allocation2 + $0xc0] sm:$0xff] %vm4114, 0.0
    %4524 = vst.msk [vmem:[#allocation2 + $0xc8] sm:$0xff] %vm4114, 0.0
    %4525 = vst.msk [vmem:[#allocation2 + $0xd0] sm:$0xff] %vm4114, 0.0
    %4526 = vst.msk [vmem:[#allocation2 + $0xd8] sm:$0xff] %vm4114, 0.0
    %4527 = vst.msk [vmem:[#allocation2 + $0xe0] sm:$0xff] %vm4114, 0.0
    %4528 = vst.msk [vmem:[#allocation2 + $0xe8] sm:$0xff] %vm4114, 0.0
    %4529 = vst.msk [vmem:[#allocation2 + $0xf0] sm:$0xff] %vm4114, 0.0
    %4530 = vst.msk [vmem:[#allocation2 + $0xf8] sm:$0xff] %vm4114, 0.0
    %4531 = vst.msk [vmem:[#allocation2 + $0x100] sm:$0xff] %vm4114, 0.0
    %4532 = vst.msk [vmem:[#allocation2 + $0x108] sm:$0xff] %vm4114, 0.0
    %4533 = vst.msk [vmem:[#allocation2 + $0x110] sm:$0xff] %vm4114, 0.0
    %4534 = vst.msk [vmem:[#allocation2 + $0x118] sm:$0xff] %vm4114, 0.0
    %4535 = vst.msk [vmem:[#allocation2 + $0x120] sm:$0xff] %vm4114, 0.0
    %4536 = vst.msk [vmem:[#allocation2 + $0x128] sm:$0xff] %vm4114, 0.0
    %4537 = vst.msk [vmem:[#allocation2 + $0x130] sm:$0xff] %vm4114, 0.0
    %4538 = vst.msk [vmem:[#allocation2 + $0x138] sm:$0xff] %vm4114, 0.0
    %4539 = vst.msk [vmem:[#allocation2 + $0x140] sm:$0xff] %vm4114, 0.0
    %4540 = vst.msk [vmem:[#allocation2 + $0x148] sm:$0xff] %vm4114, 0.0
    %4541 = vst.msk [vmem:[#allocation2 + $0x150] sm:$0xff] %vm4114, 0.0
    %4542 = vst.msk [vmem:[#allocation2 + $0x158] sm:$0xff] %vm4114, 0.0
    %4543 = vst.msk [vmem:[#allocation2 + $0x160] sm:$0xff] %vm4114, 0.0
    %4544 = vst.msk [vmem:[#allocation2 + $0x168] sm:$0xff] %vm4114, 0.0
    %4545 = vst.msk [vmem:[#allocation2 + $0x170] sm:$0xff] %vm4114, 0.0
    %4546 = vst.msk [vmem:[#allocation2 + $0x178] sm:$0xff] %vm4114, 0.0
    %4547 = vst.msk [vmem:[#allocation2 + $0x180] sm:$0xff] %vm4114, 0.0
    %4548 = vst.msk [vmem:[#allocation2 + $0x188] sm:$0xff] %vm4114, 0.0
    %4549 = vst.msk [vmem:[#allocation2 + $0x190] sm:$0xff] %vm4114, 0.0
    %4550 = vst.msk [vmem:[#allocation2 + $0x198] sm:$0xff] %vm4114, 0.0
    %4551 = vst.msk [vmem:[#allocation2 + $0x1a0] sm:$0xff] %vm4114, 0.0
    %4552 = vst.msk [vmem:[#allocation2 + $0x1a8] sm:$0xff] %vm4114, 0.0
    %4553 = vst.msk [vmem:[#allocation2 + $0x1b0] sm:$0xff] %vm4114, 0.0
    %4554 = vst.msk [vmem:[#allocation2 + $0x1b8] sm:$0xff] %vm4114, 0.0
    %4555 = vst.msk [vmem:[#allocation2 + $0x1c0] sm:$0xff] %vm4114, 0.0
    %4556 = vst.msk [vmem:[#allocation2 + $0x1c8] sm:$0xff] %vm4114, 0.0
    %4557 = vst.msk [vmem:[#allocation2 + $0x1d0] sm:$0xff] %vm4114, 0.0
    %4558 = vst.msk [vmem:[#allocation2 + $0x1d8] sm:$0xff] %vm4114, 0.0
    %vm4687 = vcmask 1041409
    %v4688 = vsel %vm4687, %v4120, %v4117
    %vm4689 = vcmask 1042434
    %v4690 = vsel %vm4689, %v4123, %v4688
    %vm4691 = vcmask 1043459
    %v4692 = vsel %vm4691, %v4126, %v4690
    %vm4693 = vcmask 1044484
    %v4694 = vsel %vm4693, %v4129, %v4692
    %vm4695 = vcmask 1045509
    %v4696 = vsel %vm4695, %v4132, %v4694
    %vm4697 = vcmask 1046534
    %v4698 = vsel %vm4697, %v4135, %v4696
    %vm4699 = vcmask 1047559
    %v4700 = vsel %vm4699, %v4138, %v4698
    %v4701 = vsel %vm4687, %v4144, %v4141
    %v4702 = vsel %vm4689, %v4147, %v4701
    %v4703 = vsel %vm4691, %v4150, %v4702
    %v4704 = vsel %vm4693, %v4153, %v4703
    %v4705 = vsel %vm4695, %v4156, %v4704
    %v4706 = vsel %vm4697, %v4159, %v4705
    %v4707 = vsel %vm4699, %v4162, %v4706
    %v4708 = vsel %vm4687, %v4168, %v4165
    %v4709 = vsel %vm4689, %v4171, %v4708
    %v4710 = vsel %vm4691, %v4174, %v4709
    %v4711 = vsel %vm4693, %v4177, %v4710
    %v4712 = vsel %vm4695, %v4180, %v4711
    %v4713 = vsel %vm4697, %v4183, %v4712
    %v4714 = vsel %vm4699, %v4186, %v4713
    %v4715 = vsel %vm4687, %v4192, %v4189
    %v4716 = vsel %vm4689, %v4195, %v4715
    %v4717 = vsel %vm4691, %v4198, %v4716
    %v4718 = vsel %vm4693, %v4201, %v4717
    %v4719 = vsel %vm4695, %v4204, %v4718
    %v4720 = vsel %vm4697, %v4207, %v4719
    %v4721 = vsel %vm4699, %v4210, %v4720
    %v4722 = vsel %vm4687, %v4216, %v4213
    %v4723 = vsel %vm4689, %v4219, %v4722
    %v4724 = vsel %vm4691, %v4222, %v4723
    %v4725 = vsel %vm4693, %v4225, %v4724
    %v4726 = vsel %vm4695, %v4228, %v4725
    %v4727 = vsel %vm4697, %v4231, %v4726
    %v4728 = vsel %vm4699, %v4234, %v4727
    %v4729 = vsel %vm4687, %v4240, %v4237
    %v4730 = vsel %vm4689, %v4243, %v4729
    %v4731 = vsel %vm4691, %v4246, %v4730
    %v4732 = vsel %vm4693, %v4249, %v4731
    %v4733 = vsel %vm4695, %v4252, %v4732
    %v4734 = vsel %vm4697, %v4255, %v4733
    %v4735 = vsel %vm4699, %v4258, %v4734
    %v4736 = vsel %vm4687, %v4264, %v4261
    %v4737 = vsel %vm4689, %v4267, %v4736
    %v4738 = vsel %vm4691, %v4270, %v4737
    %v4739 = vsel %vm4693, %v4273, %v4738
    %v4740 = vsel %vm4695, %v4276, %v4739
    %v4741 = vsel %vm4697, %v4279, %v4740
    %v4742 = vsel %vm4699, %v4282, %v4741
    %v4743 = vsel %vm4687, %v4288, %v4285
    %v4744 = vsel %vm4689, %v4291, %v4743
    %v4745 = vsel %vm4691, %v4294, %v4744
    %v4746 = vsel %vm4693, %v4297, %v4745
    %v4747 = vsel %vm4695, %v4300, %v4746
    %v4748 = vsel %vm4697, %v4303, %v4747
    %v4749 = vsel %vm4699, %v4306, %v4748
    %v4750 = vsel %vm4687, %v4312, %v4309
    %v4751 = vsel %vm4689, %v4315, %v4750
    %v4752 = vsel %vm4691, %v4318, %v4751
    %v4753 = vsel %vm4693, %v4321, %v4752
    %v4754 = vsel %vm4695, %v4324, %v4753
    %v4755 = vsel %vm4697, %v4327, %v4754
    %v4756 = vsel %vm4699, %v4330, %v4755
    %v4757 = vsel %vm4687, %v4336, %v4333
    %v4758 = vsel %vm4689, %v4339, %v4757
    %v4759 = vsel %vm4691, %v4342, %v4758
    %v4760 = vsel %vm4693, %v4345, %v4759
    %v4761 = vsel %vm4695, %v4348, %v4760
    %v4762 = vsel %vm4697, %v4351, %v4761
    %v4763 = vsel %vm4699, %v4354, %v4762
    %v4764 = vsel %vm4687, %v4360, %v4357
    %v4765 = vsel %vm4689, %v4363, %v4764
    %v4766 = vsel %vm4691, %v4366, %v4765
    %v4767 = vsel %vm4693, %v4369, %v4766
    %v4768 = vsel %vm4695, %v4372, %v4767
    %v4769 = vsel %vm4697, %v4375, %v4768
    %v4770 = vsel %vm4699, %v4378, %v4769
    %v4771 = vsel %vm4687, %v4384, %v4381
    %v4772 = vsel %vm4689, %v4387, %v4771
    %v4773 = vsel %vm4691, %v4390, %v4772
    %v4774 = vsel %vm4693, %v4393, %v4773
    %v4775 = vsel %vm4695, %v4396, %v4774
    %v4776 = vsel %vm4697, %v4399, %v4775
    %v4777 = vsel %vm4699, %v4402, %v4776
    %v4778 = vsel %vm4687, %v4408, %v4405
    %v4779 = vsel %vm4689, %v4411, %v4778
    %v4780 = vsel %vm4691, %v4414, %v4779
    %v4781 = vsel %vm4693, %v4417, %v4780
    %v4782 = vsel %vm4695, %v4420, %v4781
    %v4783 = vsel %vm4697, %v4423, %v4782
    %v4784 = vsel %vm4699, %v4426, %v4783
    %v4785 = vsel %vm4687, %v4432, %v4429
    %v4786 = vsel %vm4689, %v4435, %v4785
    %v4787 = vsel %vm4691, %v4438, %v4786
    %v4788 = vsel %vm4693, %v4441, %v4787
    %v4789 = vsel %vm4695, %v4444, %v4788
    %v4790 = vsel %vm4697, %v4447, %v4789
    %v4791 = vsel %vm4699, %v4450, %v4790
    %v4792 = vsel %vm4687, %v4456, %v4453
    %v4793 = vsel %vm4689, %v4459, %v4792
    %v4794 = vsel %vm4691, %v4462, %v4793
    %v4795 = vsel %vm4693, %v4465, %v4794
    %v4796 = vsel %vm4695, %v4468, %v4795
    %v4797 = vsel %vm4697, %v4471, %v4796
    %v4798 = vsel %vm4699, %v4474, %v4797
    %v4799 = vsel %vm4687, %v4480, %v4477
    %v4800 = vsel %vm4689, %v4483, %v4799
    %v4801 = vsel %vm4691, %v4486, %v4800
    %v4802 = vsel %vm4693, %v4489, %v4801
    %v4803 = vsel %vm4695, %v4492, %v4802
    %v4804 = vsel %vm4697, %v4495, %v4803
    %v4805 = vsel %vm4699, %v4498, %v4804
    %s4822 = scalar_lea.vmem [#allocation2], 24
    %4823 = vst.msk [vmem:[%s4822 + $0x8] sm:$0xff] %vm4114, %v4700
    %4824 = vst.msk [vmem:[%s4822 + $0x20] sm:$0xff] %vm4114, %v4707
    %4825 = vst.msk [vmem:[%s4822 + $0x38] sm:$0xff] %vm4114, %v4714
    %4826 = vst.msk [vmem:[%s4822 + $0x50] sm:$0xff] %vm4114, %v4721
    %4827 = vst.msk [vmem:[%s4822 + $0x68] sm:$0xff] %vm4114, %v4728
    %4828 = vst.msk [vmem:[%s4822 + $0x80] sm:$0xff] %vm4114, %v4735
    %4829 = vst.msk [vmem:[%s4822 + $0x98] sm:$0xff] %vm4114, %v4742
    %4830 = vst.msk [vmem:[%s4822 + $0xb0] sm:$0xff] %vm4114, %v4749
    %4831 = vst.msk [vmem:[%s4822 + $0xf8] sm:$0xff] %vm4114, %v4756
    %4832 = vst.msk [vmem:[%s4822 + $0x110] sm:$0xff] %vm4114, %v4763
    %4833 = vst.msk [vmem:[%s4822 + $0x128] sm:$0xff] %vm4114, %v4770
    %4834 = vst.msk [vmem:[%s4822 + $0x140] sm:$0xff] %vm4114, %v4777
    %4835 = vst.msk [vmem:[%s4822 + $0x158] sm:$0xff] %vm4114, %v4784
    %4836 = vst.msk [vmem:[%s4822 + $0x170] sm:$0xff] %vm4114, %v4791
    %4837 = vst.msk [vmem:[%s4822 + $0x188] sm:$0xff] %vm4114, %v4798
    %4838 = vst.msk [vmem:[%s4822 + $0x1a0] sm:$0xff] %vm4114, %v4805
    %v4839 = vld [vmem:[#allocation2] sm:$0xff]
    %v4840 = vld [vmem:[#allocation2 + $0x8] sm:$0xff]
    %v4841 = vld [vmem:[#allocation2 + $0x10] sm:$0xff]
    %v4842 = vld [vmem:[#allocation2 + $0x18] sm:$0xff]
    %v4843 = vld [vmem:[#allocation2 + $0x20] sm:$0xff]
    %v4844 = vld [vmem:[#allocation2 + $0x28] sm:$0xff]
    %v4845 = vld [vmem:[#allocation2 + $0x30] sm:$0xff]
    %v4846 = vld [vmem:[#allocation2 + $0x38] sm:$0xff]
    %v4847 = vld [vmem:[#allocation2 + $0x40] sm:$0xff]
    %v4848 = vld [vmem:[#allocation2 + $0x48] sm:$0xff]
    %v4849 = vld [vmem:[#allocation2 + $0x50] sm:$0xff]
    %v4850 = vld [vmem:[#allocation2 + $0x58] sm:$0xff]
    %v4851 = vld [vmem:[#allocation2 + $0x60] sm:$0xff]
    %v4852 = vld [vmem:[#allocation2 + $0x68] sm:$0xff]
    %v4853 = vld [vmem:[#allocation2 + $0x70] sm:$0xff]
    %v4854 = vld [vmem:[#allocation2 + $0x78] sm:$0xff]
    %v4855 = vld [vmem:[#allocation2 + $0x80] sm:$0xff]
    %v4856 = vld [vmem:[#allocation2 + $0x88] sm:$0xff]
    %v4857 = vld [vmem:[#allocation2 + $0x90] sm:$0xff]
    %v4858 = vld [vmem:[#allocation2 + $0x98] sm:$0xff]
    %v4859 = vld [vmem:[#allocation2 + $0xa0] sm:$0xff]
    %v4860 = vld [vmem:[#allocation2 + $0xa8] sm:$0xff]
    %v4861 = vld [vmem:[#allocation2 + $0xb0] sm:$0xff]
    %v4862 = vld [vmem:[#allocation2 + $0xb8] sm:$0xff]
    %v4863 = vld [vmem:[#allocation2 + $0xc0] sm:$0xff]
    %v4864 = vld [vmem:[#allocation2 + $0xc8] sm:$0xff]
    %v4865 = vld [vmem:[#allocation2 + $0xd0] sm:$0xff]
    %v4866 = vld [vmem:[#allocation2 + $0xd8] sm:$0xff]
    %v4867 = vld [vmem:[#allocation2 + $0xe0] sm:$0xff]
    %v4868 = vld [vmem:[#allocation2 + $0xe8] sm:$0xff]
    %v4869 = vld [vmem:[#allocation2 + $0xf0] sm:$0xff]
    %v4870 = vld [vmem:[#allocation2 + $0xf8] sm:$0xff]
    %v4871 = vld [vmem:[#allocation2 + $0x100] sm:$0xff]
    %v4872 = vld [vmem:[#allocation2 + $0x108] sm:$0xff]
    %v4873 = vld [vmem:[#allocation2 + $0x110] sm:$0xff]
    %v4874 = vld [vmem:[#allocation2 + $0x118] sm:$0xff]
    %v4875 = vld [vmem:[#allocation2 + $0x120] sm:$0xff]
    %v4876 = vld [vmem:[#allocation2 + $0x128] sm:$0xff]
    %v4877 = vld [vmem:[#allocation2 + $0x130] sm:$0xff]
    %v4878 = vld [vmem:[#allocation2 + $0x138] sm:$0xff]
    %v4879 = vld [vmem:[#allocation2 + $0x140] sm:$0xff]
    %v4880 = vld [vmem:[#allocation2 + $0x148] sm:$0xff]
    %v4881 = vld [vmem:[#allocation2 + $0x150] sm:$0xff]
    %v4882 = vld [vmem:[#allocation2 + $0x158] sm:$0xff]
    %v4883 = vld [vmem:[#allocation2 + $0x160] sm:$0xff]
    %v4884 = vld [vmem:[#allocation2 + $0x168] sm:$0xff]
    %v4885 = vld [vmem:[#allocation2 + $0x170] sm:$0xff]
    %v4886 = vld [vmem:[#allocation2 + $0x178] sm:$0xff]
    %v4887 = vld [vmem:[#allocation2 + $0x180] sm:$0xff]
    %v4888 = vld [vmem:[#allocation2 + $0x188] sm:$0xff]
    %v4889 = vld [vmem:[#allocation2 + $0x190] sm:$0xff]
    %v4890 = vld [vmem:[#allocation2 + $0x198] sm:$0xff]
    %v4891 = vld [vmem:[#allocation2 + $0x1a0] sm:$0xff]
    %v4892 = vld [vmem:[#allocation2 + $0x1a8] sm:$0xff]
    %v4893 = vld [vmem:[#allocation2 + $0x1b0] sm:$0xff]
    %v4894 = vld [vmem:[#allocation2 + $0x1b8] sm:$0xff]
    %v4895 = vld [vmem:[#allocation2 + $0x1c0] sm:$0xff]
    %v4896 = vld [vmem:[#allocation2 + $0x1c8] sm:$0xff]
    %v4897 = vld [vmem:[#allocation2 + $0x1d0] sm:$0xff]
    %v4898 = vld [vmem:[#allocation2 + $0x1d8] sm:$0xff]
    %vm4931 = vcmask 1040384
    %v4932 = vrot.slane %v4839, 7
    %v4933 = vrot.slane %v4840, 7
    %v4934 = vsel %vm4931, %v4932, %v4933
    %v4935 = vrot.slane %v4842, 7
    %v4936 = vrot.slane %v4843, 7
    %v4937 = vsel %vm4931, %v4935, %v4936
    %v4938 = vrot.slane %v4845, 7
    %v4939 = vrot.slane %v4846, 7
    %v4940 = vsel %vm4931, %v4938, %v4939
    %v4941 = vrot.slane %v4848, 7
    %v4942 = vrot.slane %v4849, 7
    %v4943 = vsel %vm4931, %v4941, %v4942
    %v4944 = vrot.slane %v4851, 7
    %v4945 = vrot.slane %v4852, 7
    %v4946 = vsel %vm4931, %v4944, %v4945
    %v4947 = vrot.slane %v4854, 7
    %v4948 = vrot.slane %v4855, 7
    %v4949 = vsel %vm4931, %v4947, %v4948
    %v4950 = vrot.slane %v4857, 7
    %v4951 = vrot.slane %v4858, 7
    %v4952 = vsel %vm4931, %v4950, %v4951
    %v4953 = vrot.slane %v4860, 7
    %v4954 = vrot.slane %v4861, 7
    %v4955 = vsel %vm4931, %v4953, %v4954
    %v4956 = vrot.slane %v4869, 7
    %v4957 = vrot.slane %v4870, 7
    %v4958 = vsel %vm4931, %v4956, %v4957
    %v4959 = vrot.slane %v4872, 7
    %v4960 = vrot.slane %v4873, 7
    %v4961 = vsel %vm4931, %v4959, %v4960
    %v4962 = vrot.slane %v4875, 7
    %v4963 = vrot.slane %v4876, 7
    %v4964 = vsel %vm4931, %v4962, %v4963
    %v4965 = vrot.slane %v4878, 7
    %v4966 = vrot.slane %v4879, 7
    %v4967 = vsel %vm4931, %v4965, %v4966
    %v4968 = vrot.slane %v4881, 7
    %v4969 = vrot.slane %v4882, 7
    %v4970 = vsel %vm4931, %v4968, %v4969
    %v4971 = vrot.slane %v4884, 7
    %v4972 = vrot.slane %v4885, 7
    %v4973 = vsel %vm4931, %v4971, %v4972
    %v4974 = vrot.slane %v4887, 7
    %v4975 = vrot.slane %v4888, 7
    %v4976 = vsel %vm4931, %v4974, %v4975
    %v4977 = vrot.slane %v4890, 7
    %v4978 = vrot.slane %v4891, 7
    %v4979 = vsel %vm4931, %v4977, %v4978
    %v4980 = vld [vmem:[%s4] sm:$0xff]
    %v4981 = vld [vmem:[%s4 + $0x8] sm:$0xff]
    %s4982 = scalar_lea.vmem %s4, 16
    %v4983 = vld [vmem:[%s4982] sm:$0xff]
    %v4984 = vld [vmem:[%s4982 + $0x8] sm:$0xff]
    %v4985 = vsel %vm4114, %v4840, 0
    %v4987 = vsel %vm4114, %v4843, 0
    %v4989 = vsel %vm4114, %v4846, 0
    %v4991 = vsel %vm4114, %v4849, 0
    %v4993 = vsel %vm4114, %v4852, 0
    %v4995 = vsel %vm4114, %v4855, 0
    %v4997 = vsel %vm4114, %v4858, 0
    %v4999 = vsel %vm4114, %v4861, 0
    %v5001 = vsel %vm4114, %v4870, 0
    %v5003 = vsel %vm4114, %v4873, 0
    %v5005 = vsel %vm4114, %v4876, 0
    %v5007 = vsel %vm4114, %v4879, 0
    %v5009 = vsel %vm4114, %v4882, 0
    %v5011 = vsel %vm4114, %v4885, 0
    %v5013 = vsel %vm4114, %v4888, 0
    %v5015 = vsel %vm4114, %v4891, 0
    %5017 = vmatprep.subr.mxu0 0.0
    %5018 = vmatpush1.msra.mxu0 %v4983
    %5019 = vmatprep.subr.mxu0 0.0
    %5020 = vmatpush1.msra.mxu0 %v4984
    %5021 = vmatprep.subr.mxu0 0.0
    %5022 = vmatpush1.msra.mxu0 0.0
    %5023 = vmatprep.subr.mxu0 0.0
    %5024 = vmatpush1.msra.mxu0 0.0
    %5025 = vmatprep.subr.mxu0 0.0
    %5026 = vmatpush1.msra.mxu0 0.0
    %5027 = vmatprep.subr.mxu0 0.0
    %5028 = vmatpush1.msra.mxu0 0.0
    %5029 = vmatprep.subr.mxu0 0.0
    %5030 = vmatpush1.msra.mxu0 0.0
    %5031 = vmatprep.subr.mxu0 0.0
    %5032 = vmatpush1.msra.mxu0 0.0
    %5033 = vmatprep.subr.mxu0 0.0
    %5034 = vmatpush1.msra.mxu0 0.0
    %5035 = vmatprep.subr.mxu0 0.0
    %5036 = vmatpush1.msra.mxu0 0.0
    %5037 = vmatprep.subr.mxu0 0.0
    %5038 = vmatpush1.msra.mxu0 0.0
    %5039 = vmatprep.subr.mxu0 0.0
    %5040 = vmatpush1.msra.mxu0 0.0
    %5041 = vmatprep.subr.mxu0 0.0
    %5042 = vmatpush1.msra.mxu0 0.0
    %5043 = vmatprep.subr.mxu0 0.0
    %5044 = vmatpush1.msra.mxu0 0.0
    %5045 = vmatprep.subr.mxu0 0.0
    %5046 = vmatpush1.msra.mxu0 0.0
    %5047 = vmatprep.subr.mxu0 0.0
    %5048 = vmatpush1.msra.mxu0 0.0
    %5049 = vmatprep.subr.mxu0 0.0
    %5050 = vmatpush1.msra.mxu0 0.0
    %5051 = vmatprep.subr.mxu0 0.0
    %5052 = vmatpush1.msra.mxu0 0.0
    %5053 = vmatprep.subr.mxu0 0.0
    %5054 = vmatpush1.msra.mxu0 0.0
    %5055 = vmatprep.subr.mxu0 0.0
    %5056 = vmatpush1.msra.mxu0 0.0
    %5057 = vmatprep.subr.mxu0 0.0
    %5058 = vmatpush1.msra.mxu0 0.0
    %5059 = vmatprep.subr.mxu0 0.0
    %5060 = vmatpush1.msra.mxu0 0.0
    %5061 = vmatprep.subr.mxu0 0.0
    %5062 = vmatpush1.msra.mxu0 0.0
    %5063 = vmatprep.subr.mxu0 0.0
    %5064 = vmatpush1.msra.mxu0 0.0
    %5065 = vmatprep.subr.mxu0 0.0
    %5066 = vmatpush1.msra.mxu0 0.0
    %5067 = vmatprep.subr.mxu0 0.0
    %5068 = vmatpush1.msra.mxu0 0.0
    %5069 = vmatprep.subr.mxu0 0.0
    %5070 = vmatpush1.msra.mxu0 0.0
    %5071 = vmatprep.subr.mxu0 0.0
    %5072 = vmatpush1.msra.mxu0 0.0
    %5073 = vmatprep.subr.mxu0 0.0
    %5074 = vmatpush1.msra.mxu0 0.0
    %5075 = vmatprep.subr.mxu0 0.0
    %5076 = vmatpush1.msra.mxu0 0.0
    %5077 = vmatprep.subr.mxu0 0.0
    %5078 = vmatpush1.msra.mxu0 0.0
    %5079 = vmatprep.subr.mxu0 0.0
    %5080 = vmatpush1.msra.mxu0 0.0
    %5081 = vmatprep.mubr.f32.mxu0 0.0
    %5082 = vmatmul.mubr.f32.gmra.mrb[0].mxu0 %v4985
    %v5083 = vpop.f32.mrb[0].mxu0
    %v5084 = vadd.f32 0.0, %v5083
    %v5085 = vpop.f32.mrb[0].mxu0
    %5086 = vmatprep.mubr.f32.mxu0 0.0
    %5087 = vmatmul.mubr.f32.gmra.mrb[0].mxu0 %v4987
    %v5088 = vpop.f32.mrb[0].mxu0
    %v5089 = vadd.f32 0.0, %v5088
    %v5090 = vpop.f32.mrb[0].mxu0
    %5091 = vmatprep.mubr.f32.mxu0 0.0
    %5092 = vmatmul.mubr.f32.gmra.mrb[0].mxu0 %v4989
    %v5093 = vpop.f32.mrb[0].mxu0
    %v5094 = vadd.f32 0.0, %v5093
    %v5095 = vpop.f32.mrb[0].mxu0
    %5096 = vmatprep.mubr.f32.mxu0 0.0
    %5097 = vmatmul.mubr.f32.gmra.mrb[0].mxu0 %v4991
    %v5098 = vpop.f32.mrb[0].mxu0
    %v5099 = vadd.f32 0.0, %v5098
    %v5100 = vpop.f32.mrb[0].mxu0
    %5101 = vmatprep.mubr.f32.mxu0 0.0
    %5102 = vmatmul.mubr.f32.gmra.mrb[0].mxu0 %v4993
    %v5103 = vpop.f32.mrb[0].mxu0
    %v5104 = vadd.f32 0.0, %v5103
    %v5105 = vpop.f32.mrb[0].mxu0
    %5106 = vmatprep.mubr.f32.mxu0 0.0
    %5107 = vmatmul.mubr.f32.gmra.mrb[0].mxu0 %v4995
    %v5108 = vpop.f32.mrb[0].mxu0
    %v5109 = vadd.f32 0.0, %v5108
    %v5110 = vpop.f32.mrb[0].mxu0
    %5111 = vmatprep.mubr.f32.mxu0 0.0
    %5112 = vmatmul.mubr.f32.gmra.mrb[0].mxu0 %v4997
    %v5113 = vpop.f32.mrb[0].mxu0
    %v5114 = vadd.f32 0.0, %v5113
    %v5115 = vpop.f32.mrb[0].mxu0
    %5116 = vmatprep.mubr.f32.mxu0 0.0
    %5117 = vmatmul.mubr.f32.gmra.mrb[0].mxu0 %v4999
    %v5118 = vpop.f32.mrb[0].mxu0
    %v5119 = vadd.f32 0.0, %v5118
    %v5120 = vpop.f32.mrb[0].mxu0
    %5121 = vmatprep.mubr.f32.mxu0 0.0
    %5122 = vmatmul.mubr.f32.gmra.mrb[0].mxu0 %v5001
    %v5123 = vpop.f32.mrb[0].mxu0
    %v5124 = vadd.f32 0.0, %v5123
    %v5125 = vpop.f32.mrb[0].mxu0
    %5126 = vmatprep.mubr.f32.mxu0 0.0
    %5127 = vmatmul.mubr.f32.gmra.mrb[0].mxu0 %v5003
    %v5128 = vpop.f32.mrb[0].mxu0
    %v5129 = vadd.f32 0.0, %v5128
    %v5130 = vpop.f32.mrb[0].mxu0
    %5131 = vmatprep.mubr.f32.mxu0 0.0
    %5132 = vmatmul.mubr.f32.gmra.mrb[0].mxu0 %v5005
    %v5133 = vpop.f32.mrb[0].mxu0
    %v5134 = vadd.f32 0.0, %v5133
    %v5135 = vpop.f32.mrb[0].mxu0
    %5136 = vmatprep.mubr.f32.mxu0 0.0
    %5137 = vmatmul.mubr.f32.gmra.mrb[0].mxu0 %v5007
    %v5138 = vpop.f32.mrb[0].mxu0
    %v5139 = vadd.f32 0.0, %v5138
    %v5140 = vpop.f32.mrb[0].mxu0
    %5141 = vmatprep.mubr.f32.mxu0 0.0
    %5142 = vmatmul.mubr.f32.gmra.mrb[0].mxu0 %v5009
    %v5143 = vpop.f32.mrb[0].mxu0
    %v5144 = vadd.f32 0.0, %v5143
    %v5145 = vpop.f32.mrb[0].mxu0
    %5146 = vmatprep.mubr.f32.mxu0 0.0
    %5147 = vmatmul.mubr.f32.gmra.mrb[0].mxu0 %v5011
    %v5148 = vpop.f32.mrb[0].mxu0
    %v5149 = vadd.f32 0.0, %v5148
    %v5150 = vpop.f32.mrb[0].mxu0
    %5151 = vmatprep.mubr.f32.mxu0 0.0
    %5152 = vmatmul.mubr.f32.gmra.mrb[0].mxu0 %v5013
    %v5153 = vpop.f32.mrb[0].mxu0
    %v5154 = vadd.f32 0.0, %v5153
    %v5155 = vpop.f32.mrb[0].mxu0
    %5156 = vmatprep.mubr.f32.mxu0 0.0
    %5157 = vmatmul.mubr.f32.gmra.mrb[0].mxu0 %v5015
    %v5158 = vpop.f32.mrb[0].mxu0
    %v5159 = vadd.f32 0.0, %v5158
    %v5160 = vpop.f32.mrb[0].mxu0
    %5161 = vdwg.mxu0
    %v5162 = vsel %vm4114, %v4934, 0
    %v5164 = vsel %vm4114, %v4937, 0
    %v5166 = vsel %vm4114, %v4940, 0
    %v5168 = vsel %vm4114, %v4943, 0
    %v5170 = vsel %vm4114, %v4946, 0
    %v5172 = vsel %vm4114, %v4949, 0
    %v5174 = vsel %vm4114, %v4952, 0
    %v5176 = vsel %vm4114, %v4955, 0
    %v5178 = vsel %vm4114, %v4958, 0
    %v5180 = vsel %vm4114, %v4961, 0
    %v5182 = vsel %vm4114, %v4964, 0
    %v5184 = vsel %vm4114, %v4967, 0
    %v5186 = vsel %vm4114, %v4970, 0
    %v5188 = vsel %vm4114, %v4973, 0
    %v5190 = vsel %vm4114, %v4976, 0
    %v5192 = vsel %vm4114, %v4979, 0
    %5194 = vmatprep.subr.mxu0 0.0
    %5195 = vmatpush1.msra.mxu0 %v4980
    %5196 = vmatprep.subr.mxu0 0.0
    %5197 = vmatpush1.msra.mxu0 %v4981
    %5198 = vmatprep.subr.mxu0 0.0
    %5199 = vmatpush1.msra.mxu0 0.0
    %5200 = vmatprep.subr.mxu0 0.0
    %5201 = vmatpush1.msra.mxu0 0.0
    %5202 = vmatprep.subr.mxu0 0.0
    %5203 = vmatpush1.msra.mxu0 0.0
    %5204 = vmatprep.subr.mxu0 0.0
    %5205 = vmatpush1.msra.mxu0 0.0
    %5206 = vmatprep.subr.mxu0 0.0
    %5207 = vmatpush1.msra.mxu0 0.0
    %5208 = vmatprep.subr.mxu0 0.0
    %5209 = vmatpush1.msra.mxu0 0.0
    %5210 = vmatprep.subr.mxu0 0.0
    %5211 = vmatpush1.msra.mxu0 0.0
    %5212 = vmatprep.subr.mxu0 0.0
    %5213 = vmatpush1.msra.mxu0 0.0
    %5214 = vmatprep.subr.mxu0 0.0
    %5215 = vmatpush1.msra.mxu0 0.0
    %5216 = vmatprep.subr.mxu0 0.0
    %5217 = vmatpush1.msra.mxu0 0.0
    %5218 = vmatprep.subr.mxu0 0.0
    %5219 = vmatpush1.msra.mxu0 0.0
    %5220 = vmatprep.subr.mxu0 0.0
    %5221 = vmatpush1.msra.mxu0 0.0
    %5222 = vmatprep.subr.mxu0 0.0
    %5223 = vmatpush1.msra.mxu0 0.0
    %5224 = vmatprep.subr.mxu0 0.0
    %5225 = vmatpush1.msra.mxu0 0.0
    %5226 = vmatprep.subr.mxu0 0.0
    %5227 = vmatpush1.msra.mxu0 0.0
    %5228 = vmatprep.subr.mxu0 0.0
    %5229 = vmatpush1.msra.mxu0 0.0
    %5230 = vmatprep.subr.mxu0 0.0
    %5231 = vmatpush1.msra.mxu0 0.0
    %5232 = vmatprep.subr.mxu0 0.0
    %5233 = vmatpush1.msra.mxu0 0.0
    %5234 = vmatprep.subr.mxu0 0.0
    %5235 = vmatpush1.msra.mxu0 0.0
    %5236 = vmatprep.subr.mxu0 0.0
    %5237 = vmatpush1.msra.mxu0 0.0
    %5238 = vmatprep.subr.mxu0 0.0
    %5239 = vmatpush1.msra.mxu0 0.0
    %5240 = vmatprep.subr.mxu0 0.0
    %5241 = vmatpush1.msra.mxu0 0.0
    %5242 = vmatprep.subr.mxu0 0.0
    %5243 = vmatpush1.msra.mxu0 0.0
    %5244 = vmatprep.subr.mxu0 0.0
    %5245 = vmatpush1.msra.mxu0 0.0
    %5246 = vmatprep.subr.mxu0 0.0
    %5247 = vmatpush1.msra.mxu0 0.0
    %5248 = vmatprep.subr.mxu0 0.0
    %5249 = vmatpush1.msra.mxu0 0.0
    %5250 = vmatprep.subr.mxu0 0.0
    %5251 = vmatpush1.msra.mxu0 0.0
    %5252 = vmatprep.subr.mxu0 0.0
    %5253 = vmatpush1.msra.mxu0 0.0
    %5254 = vmatprep.subr.mxu0 0.0
    %5255 = vmatpush1.msra.mxu0 0.0
    %5256 = vmatprep.subr.mxu0 0.0
    %5257 = vmatpush1.msra.mxu0 0.0
    %5258 = vmatprep.mubr.f32.mxu0 0.0
    %5259 = vmatmul.mubr.f32.gmra.mrb[0].mxu0 %v5162
    %v5260 = vpop.f32.mrb[0].mxu0
    %v5261 = vadd.f32 %v5084, %v5260
    %v5262 = vpop.f32.mrb[0].mxu0
    %5263 = vmatprep.mubr.f32.mxu0 0.0
    %5264 = vmatmul.mubr.f32.gmra.mrb[0].mxu0 %v5164
    %v5265 = vpop.f32.mrb[0].mxu0
    %v5266 = vadd.f32 %v5089, %v5265
    %v5267 = vpop.f32.mrb[0].mxu0
    %5268 = vmatprep.mubr.f32.mxu0 0.0
    %5269 = vmatmul.mubr.f32.gmra.mrb[0].mxu0 %v5166
    %v5270 = vpop.f32.mrb[0].mxu0
    %v5271 = vadd.f32 %v5094, %v5270
    %v5272 = vpop.f32.mrb[0].mxu0
    %5273 = vmatprep.mubr.f32.mxu0 0.0
    %5274 = vmatmul.mubr.f32.gmra.mrb[0].mxu0 %v5168
    %v5275 = vpop.f32.mrb[0].mxu0
    %v5276 = vadd.f32 %v5099, %v5275
    %v5277 = vpop.f32.mrb[0].mxu0
    %5278 = vmatprep.mubr.f32.mxu0 0.0
    %5279 = vmatmul.mubr.f32.gmra.mrb[0].mxu0 %v5170
    %v5280 = vpop.f32.mrb[0].mxu0
    %v5281 = vadd.f32 %v5104, %v5280
    %v5282 = vpop.f32.mrb[0].mxu0
    %5283 = vmatprep.mubr.f32.mxu0 0.0
    %5284 = vmatmul.mubr.f32.gmra.mrb[0].mxu0 %v5172
    %v5285 = vpop.f32.mrb[0].mxu0
    %v5286 = vadd.f32 %v5109, %v5285
    %v5287 = vpop.f32.mrb[0].mxu0
    %5288 = vmatprep.mubr.f32.mxu0 0.0
    %5289 = vmatmul.mubr.f32.gmra.mrb[0].mxu0 %v5174
    %v5290 = vpop.f32.mrb[0].mxu0
    %v5291 = vadd.f32 %v5114, %v5290
    %v5292 = vpop.f32.mrb[0].mxu0
    %5293 = vmatprep.mubr.f32.mxu0 0.0
    %5294 = vmatmul.mubr.f32.gmra.mrb[0].mxu0 %v5176
    %v5295 = vpop.f32.mrb[0].mxu0
    %v5296 = vadd.f32 %v5119, %v5295
    %v5297 = vpop.f32.mrb[0].mxu0
    %5298 = vmatprep.mubr.f32.mxu0 0.0
    %5299 = vmatmul.mubr.f32.gmra.mrb[0].mxu0 %v5178
    %v5300 = vpop.f32.mrb[0].mxu0
    %v5301 = vadd.f32 %v5124, %v5300
    %v5302 = vpop.f32.mrb[0].mxu0
    %5303 = vmatprep.mubr.f32.mxu0 0.0
    %5304 = vmatmul.mubr.f32.gmra.mrb[0].mxu0 %v5180
    %v5305 = vpop.f32.mrb[0].mxu0
    %v5306 = vadd.f32 %v5129, %v5305
    %v5307 = vpop.f32.mrb[0].mxu0
    %5308 = vmatprep.mubr.f32.mxu0 0.0
    %5309 = vmatmul.mubr.f32.gmra.mrb[0].mxu0 %v5182
    %v5310 = vpop.f32.mrb[0].mxu0
    %v5311 = vadd.f32 %v5134, %v5310
    %v5312 = vpop.f32.mrb[0].mxu0
    %5313 = vmatprep.mubr.f32.mxu0 0.0
    %5314 = vmatmul.mubr.f32.gmra.mrb[0].mxu0 %v5184
    %v5315 = vpop.f32.mrb[0].mxu0
    %v5316 = vadd.f32 %v5139, %v5315
    %v5317 = vpop.f32.mrb[0].mxu0
    %5318 = vmatprep.mubr.f32.mxu0 0.0
    %5319 = vmatmul.mubr.f32.gmra.mrb[0].mxu0 %v5186
    %v5320 = vpop.f32.mrb[0].mxu0
    %v5321 = vadd.f32 %v5144, %v5320
    %v5322 = vpop.f32.mrb[0].mxu0
    %5323 = vmatprep.mubr.f32.mxu0 0.0
    %5324 = vmatmul.mubr.f32.gmra.mrb[0].mxu0 %v5188
    %v5325 = vpop.f32.mrb[0].mxu0
    %v5326 = vadd.f32 %v5149, %v5325
    %v5327 = vpop.f32.mrb[0].mxu0
    %5328 = vmatprep.mubr.f32.mxu0 0.0
    %5329 = vmatmul.mubr.f32.gmra.mrb[0].mxu0 %v5190
    %v5330 = vpop.f32.mrb[0].mxu0
    %v5331 = vadd.f32 %v5154, %v5330
    %v5332 = vpop.f32.mrb[0].mxu0
    %5333 = vmatprep.mubr.f32.mxu0 0.0
    %5334 = vmatmul.mubr.f32.gmra.mrb[0].mxu0 %v5192
    %v5335 = vpop.f32.mrb[0].mxu0
    %v5336 = vadd.f32 %v5159, %v5335
    %v5337 = vpop.f32.mrb[0].mxu0
    %5338 = vdwg.mxu0
    %vm5355 = vcmask 1046528
    %v5356 = vrot.slane %v4840, 1
    %v5357 = vrot.slane %v4841, 1
    %v5358 = vsel %vm5355, %v5356, %v5357
    %v5359 = vrot.slane %v4843, 1
    %v5360 = vrot.slane %v4844, 1
    %v5361 = vsel %vm5355, %v5359, %v5360
    %v5362 = vrot.slane %v4846, 1
    %v5363 = vrot.slane %v4847, 1
    %v5364 = vsel %vm5355, %v5362, %v5363
    %v5365 = vrot.slane %v4849, 1
    %v5366 = vrot.slane %v4850, 1
    %v5367 = vsel %vm5355, %v5365, %v5366
    %v5368 = vrot.slane %v4852, 1
    %v5369 = vrot.slane %v4853, 1
    %v5370 = vsel %vm5355, %v5368, %v5369
    %v5371 = vrot.slane %v4855, 1
    %v5372 = vrot.slane %v4856, 1
    %v5373 = vsel %vm5355, %v5371, %v5372
    %v5374 = vrot.slane %v4858, 1
    %v5375 = vrot.slane %v4859, 1
    %v5376 = vsel %vm5355, %v5374, %v5375
    %v5377 = vrot.slane %v4861, 1
    %v5378 = vrot.slane %v4862, 1
    %v5379 = vsel %vm5355, %v5377, %v5378
    %v5380 = vrot.slane %v4870, 1
    %v5381 = vrot.slane %v4871, 1
    %v5382 = vsel %vm5355, %v5380, %v5381
    %v5383 = vrot.slane %v4873, 1
    %v5384 = vrot.slane %v4874, 1
    %v5385 = vsel %vm5355, %v5383, %v5384
    %v5386 = vrot.slane %v4876, 1
    %v5387 = vrot.slane %v4877, 1
    %v5388 = vsel %vm5355, %v5386, %v5387
    %v5389 = vrot.slane %v4879, 1
    %v5390 = vrot.slane %v4880, 1
    %v5391 = vsel %vm5355, %v5389, %v5390
    %v5392 = vrot.slane %v4882, 1
    %v5393 = vrot.slane %v4883, 1
    %v5394 = vsel %vm5355, %v5392, %v5393
    %v5395 = vrot.slane %v4885, 1
    %v5396 = vrot.slane %v4886, 1
    %v5397 = vsel %vm5355, %v5395, %v5396
    %v5398 = vrot.slane %v4888, 1
    %v5399 = vrot.slane %v4889, 1
    %v5400 = vsel %vm5355, %v5398, %v5399
    %v5401 = vrot.slane %v4891, 1
    %v5402 = vrot.slane %v4892, 1
    %v5403 = vsel %vm5355, %v5401, %v5402
    %s5404 = scalar_lea.vmem %s4, 32
    %v5405 = vld [vmem:[%s5404] sm:$0xff]
    %v5406 = vld [vmem:[%s5404 + $0x8] sm:$0xff]
    %v5407 = vsel %vm4114, %v5358, 0
    %v5409 = vsel %vm4114, %v5361, 0
    %v5411 = vsel %vm4114, %v5364, 0
    %v5413 = vsel %vm4114, %v5367, 0
    %v5415 = vsel %vm4114, %v5370, 0
    %v5417 = vsel %vm4114, %v5373, 0
    %v5419 = vsel %vm4114, %v5376, 0
    %v5421 = vsel %vm4114, %v5379, 0
    %v5423 = vsel %vm4114, %v5382, 0
    %v5425 = vsel %vm4114, %v5385, 0
    %v5427 = vsel %vm4114, %v5388, 0
    %v5429 = vsel %vm4114, %v5391, 0
    %v5431 = vsel %vm4114, %v5394, 0
    %v5433 = vsel %vm4114, %v5397, 0
    %v5435 = vsel %vm4114, %v5400, 0
    %v5437 = vsel %vm4114, %v5403, 0
    %5439 = vmatprep.subr.mxu0 0.0
    %5440 = vmatpush1.msra.mxu0 %v5405
    %5441 = vmatprep.subr.mxu0 0.0
    %5442 = vmatpush1.msra.mxu0 %v5406
    %5443 = vmatprep.subr.mxu0 0.0
    %5444 = vmatpush1.msra.mxu0 0.0
    %5445 = vmatprep.subr.mxu0 0.0
    %5446 = vmatpush1.msra.mxu0 0.0
    %5447 = vmatprep.subr.mxu0 0.0
    %5448 = vmatpush1.msra.mxu0 0.0
    %5449 = vmatprep.subr.mxu0 0.0
    %5450 = vmatpush1.msra.mxu0 0.0
    %5451 = vmatprep.subr.mxu0 0.0
    %5452 = vmatpush1.msra.mxu0 0.0
    %5453 = vmatprep.subr.mxu0 0.0
    %5454 = vmatpush1.msra.mxu0 0.0
    %5455 = vmatprep.subr.mxu0 0.0
    %5456 = vmatpush1.msra.mxu0 0.0
    %5457 = vmatprep.subr.mxu0 0.0
    %5458 = vmatpush1.msra.mxu0 0.0
    %5459 = vmatprep.subr.mxu0 0.0
    %5460 = vmatpush1.msra.mxu0 0.0
    %5461 = vmatprep.subr.mxu0 0.0
    %5462 = vmatpush1.msra.mxu0 0.0
    %5463 = vmatprep.subr.mxu0 0.0
    %5464 = vmatpush1.msra.mxu0 0.0
    %5465 = vmatprep.subr.mxu0 0.0
    %5466 = vmatpush1.msra.mxu0 0.0
    %5467 = vmatprep.subr.mxu0 0.0
    %5468 = vmatpush1.msra.mxu0 0.0
    %5469 = vmatprep.subr.mxu0 0.0
    %5470 = vmatpush1.msra.mxu0 0.0
    %5471 = vmatprep.subr.mxu0 0.0
    %5472 = vmatpush1.msra.mxu0 0.0
    %5473 = vmatprep.subr.mxu0 0.0
    %5474 = vmatpush1.msra.mxu0 0.0
    %5475 = vmatprep.subr.mxu0 0.0
    %5476 = vmatpush1.msra.mxu0 0.0
    %5477 = vmatprep.subr.mxu0 0.0
    %5478 = vmatpush1.msra.mxu0 0.0
    %5479 = vmatprep.subr.mxu0 0.0
    %5480 = vmatpush1.msra.mxu0 0.0
    %5481 = vmatprep.subr.mxu0 0.0
    %5482 = vmatpush1.msra.mxu0 0.0
    %5483 = vmatprep.subr.mxu0 0.0
    %5484 = vmatpush1.msra.mxu0 0.0
    %5485 = vmatprep.subr.mxu0 0.0
    %5486 = vmatpush1.msra.mxu0 0.0
    %5487 = vmatprep.subr.mxu0 0.0
    %5488 = vmatpush1.msra.mxu0 0.0
    %5489 = vmatprep.subr.mxu0 0.0
    %5490 = vmatpush1.msra.mxu0 0.0
    %5491 = vmatprep.subr.mxu0 0.0
    %5492 = vmatpush1.msra.mxu0 0.0
    %5493 = vmatprep.subr.mxu0 0.0
    %5494 = vmatpush1.msra.mxu0 0.0
    %5495 = vmatprep.subr.mxu0 0.0
    %5496 = vmatpush1.msra.mxu0 0.0
    %5497 = vmatprep.subr.mxu0 0.0
    %5498 = vmatpush1.msra.mxu0 0.0
    %5499 = vmatprep.subr.mxu0 0.0
    %5500 = vmatpush1.msra.mxu0 0.0
    %5501 = vmatprep.subr.mxu0 0.0
    %5502 = vmatpush1.msra.mxu0 0.0
    %5503 = vmatprep.mubr.f32.mxu0 0.0
    %5504 = vmatmul.mubr.f32.gmra.mrb[0].mxu0 %v5407
    %v5505 = vpop.f32.mrb[0].mxu0
    %v5506 = vadd.f32 0.0, %v5505
    %v5507 = vpop.f32.mrb[0].mxu0
    %5508 = vmatprep.mubr.f32.mxu0 0.0
    %5509 = vmatmul.mubr.f32.gmra.mrb[0].mxu0 %v5409
    %v5510 = vpop.f32.mrb[0].mxu0
    %v5511 = vadd.f32 0.0, %v5510
    %v5512 = vpop.f32.mrb[0].mxu0
    %5513 = vmatprep.mubr.f32.mxu0 0.0
    %5514 = vmatmul.mubr.f32.gmra.mrb[0].mxu0 %v5411
    %v5515 = vpop.f32.mrb[0].mxu0
    %v5516 = vadd.f32 0.0, %v5515
    %v5517 = vpop.f32.mrb[0].mxu0
    %5518 = vmatprep.mubr.f32.mxu0 0.0
    %5519 = vmatmul.mubr.f32.gmra.mrb[0].mxu0 %v5413
    %v5520 = vpop.f32.mrb[0].mxu0
    %v5521 = vadd.f32 0.0, %v5520
    %v5522 = vpop.f32.mrb[0].mxu0
    %5523 = vmatprep.mubr.f32.mxu0 0.0
    %5524 = vmatmul.mubr.f32.gmra.mrb[0].mxu0 %v5415
    %v5525 = vpop.f32.mrb[0].mxu0
    %v5526 = vadd.f32 0.0, %v5525
    %v5527 = vpop.f32.mrb[0].mxu0
    %5528 = vmatprep.mubr.f32.mxu0 0.0
    %5529 = vmatmul.mubr.f32.gmra.mrb[0].mxu0 %v5417
    %v5530 = vpop.f32.mrb[0].mxu0
    %v5531 = vadd.f32 0.0, %v5530
    %v5532 = vpop.f32.mrb[0].mxu0
    %5533 = vmatprep.mubr.f32.mxu0 0.0
    %5534 = vmatmul.mubr.f32.gmra.mrb[0].mxu0 %v5419
    %v5535 = vpop.f32.mrb[0].mxu0
    %v5536 = vadd.f32 0.0, %v5535
    %v5537 = vpop.f32.mrb[0].mxu0
    %5538 = vmatprep.mubr.f32.mxu0 0.0
    %5539 = vmatmul.mubr.f32.gmra.mrb[0].mxu0 %v5421
    %v5540 = vpop.f32.mrb[0].mxu0
    %v5541 = vadd.f32 0.0, %v5540
    %v5542 = vpop.f32.mrb[0].mxu0
    %5543 = vmatprep.mubr.f32.mxu0 0.0
    %5544 = vmatmul.mubr.f32.gmra.mrb[0].mxu0 %v5423
    %v5545 = vpop.f32.mrb[0].mxu0
    %v5546 = vadd.f32 0.0, %v5545
    %v5547 = vpop.f32.mrb[0].mxu0
    %5548 = vmatprep.mubr.f32.mxu0 0.0
    %5549 = vmatmul.mubr.f32.gmra.mrb[0].mxu0 %v5425
    %v5550 = vpop.f32.mrb[0].mxu0
    %v5551 = vadd.f32 0.0, %v5550
    %v5552 = vpop.f32.mrb[0].mxu0
    %5553 = vmatprep.mubr.f32.mxu0 0.0
    %5554 = vmatmul.mubr.f32.gmra.mrb[0].mxu0 %v5427
    %v5555 = vpop.f32.mrb[0].mxu0
    %v5556 = vadd.f32 0.0, %v5555
    %v5557 = vpop.f32.mrb[0].mxu0
    %5558 = vmatprep.mubr.f32.mxu0 0.0
    %5559 = vmatmul.mubr.f32.gmra.mrb[0].mxu0 %v5429
    %v5560 = vpop.f32.mrb[0].mxu0
    %v5561 = vadd.f32 0.0, %v5560
    %v5562 = vpop.f32.mrb[0].mxu0
    %5563 = vmatprep.mubr.f32.mxu0 0.0
    %5564 = vmatmul.mubr.f32.gmra.mrb[0].mxu0 %v5431
    %v5565 = vpop.f32.mrb[0].mxu0
    %v5566 = vadd.f32 0.0, %v5565
    %v5567 = vpop.f32.mrb[0].mxu0
    %5568 = vmatprep.mubr.f32.mxu0 0.0
    %5569 = vmatmul.mubr.f32.gmra.mrb[0].mxu0 %v5433
    %v5570 = vpop.f32.mrb[0].mxu0
    %v5571 = vadd.f32 0.0, %v5570
    %v5572 = vpop.f32.mrb[0].mxu0
    %5573 = vmatprep.mubr.f32.mxu0 0.0
    %5574 = vmatmul.mubr.f32.gmra.mrb[0].mxu0 %v5435
    %v5575 = vpop.f32.mrb[0].mxu0
    %v5576 = vadd.f32 0.0, %v5575
    %v5577 = vpop.f32.mrb[0].mxu0
    %5578 = vmatprep.mubr.f32.mxu0 0.0
    %5579 = vmatmul.mubr.f32.gmra.mrb[0].mxu0 %v5437
    %v5580 = vpop.f32.mrb[0].mxu0
    %v5581 = vadd.f32 0.0, %v5580
    %v5582 = vpop.f32.mrb[0].mxu0
    %5583 = vdwg.mxu0
    %v5584 = vadd.f32 %v5261, %v5506
    %v5585 = vadd.f32 %v5266, %v5511
    %v5586 = vadd.f32 %v5271, %v5516
    %v5587 = vadd.f32 %v5276, %v5521
    %v5588 = vadd.f32 %v5281, %v5526
    %v5589 = vadd.f32 %v5286, %v5531
    %v5590 = vadd.f32 %v5291, %v5536
    %v5591 = vadd.f32 %v5296, %v5541
    %v5592 = vadd.f32 %v5301, %v5546
    %v5593 = vadd.f32 %v5306, %v5551
    %v5594 = vadd.f32 %v5311, %v5556
    %v5595 = vadd.f32 %v5316, %v5561
    %v5596 = vadd.f32 %v5321, %v5566
    %v5597 = vadd.f32 %v5326, %v5571
    %v5598 = vadd.f32 %v5331, %v5576
    %v5599 = vadd.f32 %v5336, %v5581
    %v5604 = vrot.slane %v4863, 7
    %v5605 = vrot.slane %v4864, 7
    %v5606 = vsel %vm4931, %v5604, %v5605
    %v5607 = vrot.slane %v4893, 7
    %v5608 = vrot.slane %v4894, 7
    %v5609 = vsel %vm4931, %v5607, %v5608
    %s5610 = scalar_lea.vmem %s4, 48
    %v5611 = vld [vmem:[%s5610] sm:$0xff]
    %v5612 = vld [vmem:[%s5610 + $0x8] sm:$0xff]
    %v5613 = vsel %vm4114, %v5606, 0
    %v5615 = vsel %vm4114, %v5609, 0
    %5617 = vmatprep.subr.mxu0 0.0
    %5618 = vmatpush1.msra.mxu0 %v5611
    %5619 = vmatprep.subr.mxu0 0.0
    %5620 = vmatpush1.msra.mxu0 %v5612
    %5621 = vmatprep.subr.mxu0 0.0
    %5622 = vmatpush1.msra.mxu0 0.0
    %5623 = vmatprep.subr.mxu0 0.0
    %5624 = vmatpush1.msra.mxu0 0.0
    %5625 = vmatprep.subr.mxu0 0.0
    %5626 = vmatpush1.msra.mxu0 0.0
    %5627 = vmatprep.subr.mxu0 0.0
    %5628 = vmatpush1.msra.mxu0 0.0
    %5629 = vmatprep.subr.mxu0 0.0
    %5630 = vmatpush1.msra.mxu0 0.0
    %5631 = vmatprep.subr.mxu0 0.0
    %5632 = vmatpush1.msra.mxu0 0.0
    %5633 = vmatprep.subr.mxu0 0.0
    %5634 = vmatpush1.msra.mxu0 0.0
    %5635 = vmatprep.subr.mxu0 0.0
    %5636 = vmatpush1.msra.mxu0 0.0
    %5637 = vmatprep.subr.mxu0 0.0
    %5638 = vmatpush1.msra.mxu0 0.0
    %5639 = vmatprep.subr.mxu0 0.0
    %5640 = vmatpush1.msra.mxu0 0.0
    %5641 = vmatprep.subr.mxu0 0.0
    %5642 = vmatpush1.msra.mxu0 0.0
    %5643 = vmatprep.subr.mxu0 0.0
    %5644 = vmatpush1.msra.mxu0 0.0
    %5645 = vmatprep.subr.mxu0 0.0
    %5646 = vmatpush1.msra.mxu0 0.0
    %5647 = vmatprep.subr.mxu0 0.0
    %5648 = vmatpush1.msra.mxu0 0.0
    %5649 = vmatprep.subr.mxu0 0.0
    %5650 = vmatpush1.msra.mxu0 0.0
    %5651 = vmatprep.subr.mxu0 0.0
    %5652 = vmatpush1.msra.mxu0 0.0
    %5653 = vmatprep.subr.mxu0 0.0
    %5654 = vmatpush1.msra.mxu0 0.0
    %5655 = vmatprep.subr.mxu0 0.0
    %5656 = vmatpush1.msra.mxu0 0.0
    %5657 = vmatprep.subr.mxu0 0.0
    %5658 = vmatpush1.msra.mxu0 0.0
    %5659 = vmatprep.subr.mxu0 0.0
    %5660 = vmatpush1.msra.mxu0 0.0
    %5661 = vmatprep.subr.mxu0 0.0
    %5662 = vmatpush1.msra.mxu0 0.0
    %5663 = vmatprep.subr.mxu0 0.0
    %5664 = vmatpush1.msra.mxu0 0.0
    %5665 = vmatprep.subr.mxu0 0.0
    %5666 = vmatpush1.msra.mxu0 0.0
    %5667 = vmatprep.subr.mxu0 0.0
    %5668 = vmatpush1.msra.mxu0 0.0
    %5669 = vmatprep.subr.mxu0 0.0
    %5670 = vmatpush1.msra.mxu0 0.0
    %5671 = vmatprep.subr.mxu0 0.0
    %5672 = vmatpush1.msra.mxu0 0.0
    %5673 = vmatprep.subr.mxu0 0.0
    %5674 = vmatpush1.msra.mxu0 0.0
    %5675 = vmatprep.subr.mxu0 0.0
    %5676 = vmatpush1.msra.mxu0 0.0
    %5677 = vmatprep.subr.mxu0 0.0
    %5678 = vmatpush1.msra.mxu0 0.0
    %5679 = vmatprep.subr.mxu0 0.0
    %5680 = vmatpush1.msra.mxu0 0.0
    %5681 = vmatprep.mubr.f32.mxu0 0.0
    %5682 = vmatmul.mubr.f32.gmra.mrb[0].mxu0 %v5164
    %v5683 = vpop.f32.mrb[0].mxu0
    %v5684 = vadd.f32 0.0, %v5683
    %v5685 = vpop.f32.mrb[0].mxu0
    %5686 = vmatprep.mubr.f32.mxu0 0.0
    %5687 = vmatmul.mubr.f32.gmra.mrb[0].mxu0 %v5166
    %v5688 = vpop.f32.mrb[0].mxu0
    %v5689 = vadd.f32 0.0, %v5688
    %v5690 = vpop.f32.mrb[0].mxu0
    %5691 = vmatprep.mubr.f32.mxu0 0.0
    %5692 = vmatmul.mubr.f32.gmra.mrb[0].mxu0 %v5168
    %v5693 = vpop.f32.mrb[0].mxu0
    %v5694 = vadd.f32 0.0, %v5693
    %v5695 = vpop.f32.mrb[0].mxu0
    %5696 = vmatprep.mubr.f32.mxu0 0.0
    %5697 = vmatmul.mubr.f32.gmra.mrb[0].mxu0 %v5170
    %v5698 = vpop.f32.mrb[0].mxu0
    %v5699 = vadd.f32 0.0, %v5698
    %v5700 = vpop.f32.mrb[0].mxu0
    %5701 = vmatprep.mubr.f32.mxu0 0.0
    %5702 = vmatmul.mubr.f32.gmra.mrb[0].mxu0 %v5172
    %v5703 = vpop.f32.mrb[0].mxu0
    %v5704 = vadd.f32 0.0, %v5703
    %v5705 = vpop.f32.mrb[0].mxu0
    %5706 = vmatprep.mubr.f32.mxu0 0.0
    %5707 = vmatmul.mubr.f32.gmra.mrb[0].mxu0 %v5174
    %v5708 = vpop.f32.mrb[0].mxu0
    %v5709 = vadd.f32 0.0, %v5708
    %v5710 = vpop.f32.mrb[0].mxu0
    %5711 = vmatprep.mubr.f32.mxu0 0.0
    %5712 = vmatmul.mubr.f32.gmra.mrb[0].mxu0 %v5176
    %v5713 = vpop.f32.mrb[0].mxu0
    %v5714 = vadd.f32 0.0, %v5713
    %v5715 = vpop.f32.mrb[0].mxu0
    %5716 = vmatprep.mubr.f32.mxu0 0.0
    %5717 = vmatmul.mubr.f32.gmra.mrb[0].mxu0 %v5613
    %v5718 = vpop.f32.mrb[0].mxu0
    %v5719 = vadd.f32 0.0, %v5718
    %v5720 = vpop.f32.mrb[0].mxu0
    %5721 = vmatprep.mubr.f32.mxu0 0.0
    %5722 = vmatmul.mubr.f32.gmra.mrb[0].mxu0 %v5180
    %v5723 = vpop.f32.mrb[0].mxu0
    %v5724 = vadd.f32 0.0, %v5723
    %v5725 = vpop.f32.mrb[0].mxu0
    %5726 = vmatprep.mubr.f32.mxu0 0.0
    %5727 = vmatmul.mubr.f32.gmra.mrb[0].mxu0 %v5182
    %v5728 = vpop.f32.mrb[0].mxu0
    %v5729 = vadd.f32 0.0, %v5728
    %v5730 = vpop.f32.mrb[0].mxu0
    %5731 = vmatprep.mubr.f32.mxu0 0.0
    %5732 = vmatmul.mubr.f32.gmra.mrb[0].mxu0 %v5184
    %v5733 = vpop.f32.mrb[0].mxu0
    %v5734 = vadd.f32 0.0, %v5733
    %v5735 = vpop.f32.mrb[0].mxu0
    %5736 = vmatprep.mubr.f32.mxu0 0.0
    %5737 = vmatmul.mubr.f32.gmra.mrb[0].mxu0 %v5186
    %v5738 = vpop.f32.mrb[0].mxu0
    %v5739 = vadd.f32 0.0, %v5738
    %v5740 = vpop.f32.mrb[0].mxu0
    %5741 = vmatprep.mubr.f32.mxu0 0.0
    %5742 = vmatmul.mubr.f32.gmra.mrb[0].mxu0 %v5188
    %v5743 = vpop.f32.mrb[0].mxu0
    %v5744 = vadd.f32 0.0, %v5743
    %v5745 = vpop.f32.mrb[0].mxu0
    %5746 = vmatprep.mubr.f32.mxu0 0.0
    %5747 = vmatmul.mubr.f32.gmra.mrb[0].mxu0 %v5190
    %v5748 = vpop.f32.mrb[0].mxu0
    %v5749 = vadd.f32 0.0, %v5748
    %v5750 = vpop.f32.mrb[0].mxu0
    %5751 = vmatprep.mubr.f32.mxu0 0.0
    %5752 = vmatmul.mubr.f32.gmra.mrb[0].mxu0 %v5192
    %v5753 = vpop.f32.mrb[0].mxu0
    %v5754 = vadd.f32 0.0, %v5753
    %v5755 = vpop.f32.mrb[0].mxu0
    %5756 = vmatprep.mubr.f32.mxu0 0.0
    %5757 = vmatmul.mubr.f32.gmra.mrb[0].mxu0 %v5615
    %v5758 = vpop.f32.mrb[0].mxu0
    %v5759 = vadd.f32 0.0, %v5758
    %v5760 = vpop.f32.mrb[0].mxu0
    %5761 = vdwg.mxu0
    %v5762 = vadd.f32 %v5584, %v5684
    %v5763 = vadd.f32 %v5585, %v5689
    %v5764 = vadd.f32 %v5586, %v5694
    %v5765 = vadd.f32 %v5587, %v5699
    %v5766 = vadd.f32 %v5588, %v5704
    %v5767 = vadd.f32 %v5589, %v5709
    %v5768 = vadd.f32 %v5590, %v5714
    %v5769 = vadd.f32 %v5591, %v5719
    %v5770 = vadd.f32 %v5592, %v5724
    %v5771 = vadd.f32 %v5593, %v5729
    %v5772 = vadd.f32 %v5594, %v5734
    %v5773 = vadd.f32 %v5595, %v5739
    %v5774 = vadd.f32 %v5596, %v5744
    %v5775 = vadd.f32 %v5597, %v5749
    %v5776 = vadd.f32 %v5598, %v5754
    %v5777 = vadd.f32 %v5599, %v5759
    %s5778 = scalar_lea.vmem %s4, 64
    %v5779 = vld [vmem:[%s5778] sm:$0xff]
    %v5780 = vld [vmem:[%s5778 + $0x8] sm:$0xff]
    %v5781 = vsel %vm4114, %v4864, 0
    %v5783 = vsel %vm4114, %v4894, 0
    %5785 = vmatprep.subr.mxu0 0.0
    %5786 = vmatpush1.msra.mxu0 %v5779
    %5787 = vmatprep.subr.mxu0 0.0
    %5788 = vmatpush1.msra.mxu0 %v5780
    %5789 = vmatprep.subr.mxu0 0.0
    %5790 = vmatpush1.msra.mxu0 0.0
    %5791 = vmatprep.subr.mxu0 0.0
    %5792 = vmatpush1.msra.mxu0 0.0
    %5793 = vmatprep.subr.mxu0 0.0
    %5794 = vmatpush1.msra.mxu0 0.0
    %5795 = vmatprep.subr.mxu0 0.0
    %5796 = vmatpush1.msra.mxu0 0.0
    %5797 = vmatprep.subr.mxu0 0.0
    %5798 = vmatpush1.msra.mxu0 0.0
    %5799 = vmatprep.subr.mxu0 0.0
    %5800 = vmatpush1.msra.mxu0 0.0
    %5801 = vmatprep.subr.mxu0 0.0
    %5802 = vmatpush1.msra.mxu0 0.0
    %5803 = vmatprep.subr.mxu0 0.0
    %5804 = vmatpush1.msra.mxu0 0.0
    %5805 = vmatprep.subr.mxu0 0.0
    %5806 = vmatpush1.msra.mxu0 0.0
    %5807 = vmatprep.subr.mxu0 0.0
    %5808 = vmatpush1.msra.mxu0 0.0
    %5809 = vmatprep.subr.mxu0 0.0
    %5810 = vmatpush1.msra.mxu0 0.0
    %5811 = vmatprep.subr.mxu0 0.0
    %5812 = vmatpush1.msra.mxu0 0.0
    %5813 = vmatprep.subr.mxu0 0.0
    %5814 = vmatpush1.msra.mxu0 0.0
    %5815 = vmatprep.subr.mxu0 0.0
    %5816 = vmatpush1.msra.mxu0 0.0
    %5817 = vmatprep.subr.mxu0 0.0
    %5818 = vmatpush1.msra.mxu0 0.0
    %5819 = vmatprep.subr.mxu0 0.0
    %5820 = vmatpush1.msra.mxu0 0.0
    %5821 = vmatprep.subr.mxu0 0.0
    %5822 = vmatpush1.msra.mxu0 0.0
    %5823 = vmatprep.subr.mxu0 0.0
    %5824 = vmatpush1.msra.mxu0 0.0
    %5825 = vmatprep.subr.mxu0 0.0
    %5826 = vmatpush1.msra.mxu0 0.0
    %5827 = vmatprep.subr.mxu0 0.0
    %5828 = vmatpush1.msra.mxu0 0.0
    %5829 = vmatprep.subr.mxu0 0.0
    %5830 = vmatpush1.msra.mxu0 0.0
    %5831 = vmatprep.subr.mxu0 0.0
    %5832 = vmatpush1.msra.mxu0 0.0
    %5833 = vmatprep.subr.mxu0 0.0
    %5834 = vmatpush1.msra.mxu0 0.0
    %5835 = vmatprep.subr.mxu0 0.0
    %5836 = vmatpush1.msra.mxu0 0.0
    %5837 = vmatprep.subr.mxu0 0.0
    %5838 = vmatpush1.msra.mxu0 0.0
    %5839 = vmatprep.subr.mxu0 0.0
    %5840 = vmatpush1.msra.mxu0 0.0
    %5841 = vmatprep.subr.mxu0 0.0
    %5842 = vmatpush1.msra.mxu0 0.0
    %5843 = vmatprep.subr.mxu0 0.0
    %5844 = vmatpush1.msra.mxu0 0.0
    %5845 = vmatprep.subr.mxu0 0.0
    %5846 = vmatpush1.msra.mxu0 0.0
    %5847 = vmatprep.subr.mxu0 0.0
    %5848 = vmatpush1.msra.mxu0 0.0
    %5849 = vmatprep.mubr.f32.mxu0 0.0
    %5850 = vmatmul.mubr.f32.gmra.mrb[0].mxu0 %v4987
    %v5851 = vpop.f32.mrb[0].mxu0
    %v5852 = vadd.f32 0.0, %v5851
    %v5853 = vpop.f32.mrb[0].mxu0
    %5854 = vmatprep.mubr.f32.mxu0 0.0
    %5855 = vmatmul.mubr.f32.gmra.mrb[0].mxu0 %v4989
    %v5856 = vpop.f32.mrb[0].mxu0
    %v5857 = vadd.f32 0.0, %v5856
    %v5858 = vpop.f32.mrb[0].mxu0
    %5859 = vmatprep.mubr.f32.mxu0 0.0
    %5860 = vmatmul.mubr.f32.gmra.mrb[0].mxu0 %v4991
    %v5861 = vpop.f32.mrb[0].mxu0
    %v5862 = vadd.f32 0.0, %v5861
    %v5863 = vpop.f32.mrb[0].mxu0
    %5864 = vmatprep.mubr.f32.mxu0 0.0
    %5865 = vmatmul.mubr.f32.gmra.mrb[0].mxu0 %v4993
    %v5866 = vpop.f32.mrb[0].mxu0
    %v5867 = vadd.f32 0.0, %v5866
    %v5868 = vpop.f32.mrb[0].mxu0
    %5869 = vmatprep.mubr.f32.mxu0 0.0
    %5870 = vmatmul.mubr.f32.gmra.mrb[0].mxu0 %v4995
    %v5871 = vpop.f32.mrb[0].mxu0
    %v5872 = vadd.f32 0.0, %v5871
    %v5873 = vpop.f32.mrb[0].mxu0
    %5874 = vmatprep.mubr.f32.mxu0 0.0
    %5875 = vmatmul.mubr.f32.gmra.mrb[0].mxu0 %v4997
    %v5876 = vpop.f32.mrb[0].mxu0
    %v5877 = vadd.f32 0.0, %v5876
    %v5878 = vpop.f32.mrb[0].mxu0
    %5879 = vmatprep.mubr.f32.mxu0 0.0
    %5880 = vmatmul.mubr.f32.gmra.mrb[0].mxu0 %v4999
    %v5881 = vpop.f32.mrb[0].mxu0
    %v5882 = vadd.f32 0.0, %v5881
    %v5883 = vpop.f32.mrb[0].mxu0
    %5884 = vmatprep.mubr.f32.mxu0 0.0
    %5885 = vmatmul.mubr.f32.gmra.mrb[0].mxu0 %v5781
    %v5886 = vpop.f32.mrb[0].mxu0
    %v5887 = vadd.f32 0.0, %v5886
    %v5888 = vpop.f32.mrb[0].mxu0
    %5889 = vmatprep.mubr.f32.mxu0 0.0
    %5890 = vmatmul.mubr.f32.gmra.mrb[0].mxu0 %v5003
    %v5891 = vpop.f32.mrb[0].mxu0
    %v5892 = vadd.f32 0.0, %v5891
    %v5893 = vpop.f32.mrb[0].mxu0
    %5894 = vmatprep.mubr.f32.mxu0 0.0
    %5895 = vmatmul.mubr.f32.gmra.mrb[0].mxu0 %v5005
    %v5896 = vpop.f32.mrb[0].mxu0
    %v5897 = vadd.f32 0.0, %v5896
    %v5898 = vpop.f32.mrb[0].mxu0
    %5899 = vmatprep.mubr.f32.mxu0 0.0
    %5900 = vmatmul.mubr.f32.gmra.mrb[0].mxu0 %v5007
    %v5901 = vpop.f32.mrb[0].mxu0
    %v5902 = vadd.f32 0.0, %v5901
    %v5903 = vpop.f32.mrb[0].mxu0
    %5904 = vmatprep.mubr.f32.mxu0 0.0
    %5905 = vmatmul.mubr.f32.gmra.mrb[0].mxu0 %v5009
    %v5906 = vpop.f32.mrb[0].mxu0
    %v5907 = vadd.f32 0.0, %v5906
    %v5908 = vpop.f32.mrb[0].mxu0
    %5909 = vmatprep.mubr.f32.mxu0 0.0
    %5910 = vmatmul.mubr.f32.gmra.mrb[0].mxu0 %v5011
    %v5911 = vpop.f32.mrb[0].mxu0
    %v5912 = vadd.f32 0.0, %v5911
    %v5913 = vpop.f32.mrb[0].mxu0
    %5914 = vmatprep.mubr.f32.mxu0 0.0
    %5915 = vmatmul.mubr.f32.gmra.mrb[0].mxu0 %v5013
    %v5916 = vpop.f32.mrb[0].mxu0
    %v5917 = vadd.f32 0.0, %v5916
    %v5918 = vpop.f32.mrb[0].mxu0
    %5919 = vmatprep.mubr.f32.mxu0 0.0
    %5920 = vmatmul.mubr.f32.gmra.mrb[0].mxu0 %v5015
    %v5921 = vpop.f32.mrb[0].mxu0
    %v5922 = vadd.f32 0.0, %v5921
    %v5923 = vpop.f32.mrb[0].mxu0
    %5924 = vmatprep.mubr.f32.mxu0 0.0
    %5925 = vmatmul.mubr.f32.gmra.mrb[0].mxu0 %v5783
    %v5926 = vpop.f32.mrb[0].mxu0
    %v5927 = vadd.f32 0.0, %v5926
    %v5928 = vpop.f32.mrb[0].mxu0
    %5929 = vdwg.mxu0
    %v5930 = vadd.f32 %v5762, %v5852
    %v5931 = vadd.f32 %v5763, %v5857
    %v5932 = vadd.f32 %v5764, %v5862
    %v5933 = vadd.f32 %v5765, %v5867
    %v5934 = vadd.f32 %v5766, %v5872
    %v5935 = vadd.f32 %v5767, %v5877
    %v5936 = vadd.f32 %v5768, %v5882
    %v5937 = vadd.f32 %v5769, %v5887
    %v5938 = vadd.f32 %v5770, %v5892
    %v5939 = vadd.f32 %v5771, %v5897
    %v5940 = vadd.f32 %v5772, %v5902
    %v5941 = vadd.f32 %v5773, %v5907
    %v5942 = vadd.f32 %v5774, %v5912
    %v5943 = vadd.f32 %v5775, %v5917
    %v5944 = vadd.f32 %v5776, %v5922
    %v5945 = vadd.f32 %v5777, %v5927
    %v5948 = vrot.slane %v4864, 1
    %v5949 = vrot.slane %v4865, 1
    %v5950 = vsel %vm5355, %v5948, %v5949
    %v5951 = vrot.slane %v4894, 1
    %v5952 = vrot.slane %v4895, 1
    %v5953 = vsel %vm5355, %v5951, %v5952
    %s5954 = scalar_lea.vmem %s4, 80
    %v5955 = vld [vmem:[%s5954] sm:$0xff]
    %v5956 = vld [vmem:[%s5954 + $0x8] sm:$0xff]
    %v5957 = vsel %vm4114, %v5950, 0
    %v5959 = vsel %vm4114, %v5953, 0
    %5961 = vmatprep.subr.mxu0 0.0
    %5962 = vmatpush1.msra.mxu0 %v5955
    %5963 = vmatprep.subr.mxu0 0.0
    %5964 = vmatpush1.msra.mxu0 %v5956
    %5965 = vmatprep.subr.mxu0 0.0
    %5966 = vmatpush1.msra.mxu0 0.0
    %5967 = vmatprep.subr.mxu0 0.0
    %5968 = vmatpush1.msra.mxu0 0.0
    %5969 = vmatprep.subr.mxu0 0.0
    %5970 = vmatpush1.msra.mxu0 0.0
    %5971 = vmatprep.subr.mxu0 0.0
    %5972 = vmatpush1.msra.mxu0 0.0
    %5973 = vmatprep.subr.mxu0 0.0
    %5974 = vmatpush1.msra.mxu0 0.0
    %5975 = vmatprep.subr.mxu0 0.0
    %5976 = vmatpush1.msra.mxu0 0.0
    %5977 = vmatprep.subr.mxu0 0.0
    %5978 = vmatpush1.msra.mxu0 0.0
    %5979 = vmatprep.subr.mxu0 0.0
    %5980 = vmatpush1.msra.mxu0 0.0
    %5981 = vmatprep.subr.mxu0 0.0
    %5982 = vmatpush1.msra.mxu0 0.0
    %5983 = vmatprep.subr.mxu0 0.0
    %5984 = vmatpush1.msra.mxu0 0.0
    %5985 = vmatprep.subr.mxu0 0.0
    %5986 = vmatpush1.msra.mxu0 0.0
    %5987 = vmatprep.subr.mxu0 0.0
    %5988 = vmatpush1.msra.mxu0 0.0
    %5989 = vmatprep.subr.mxu0 0.0
    %5990 = vmatpush1.msra.mxu0 0.0
    %5991 = vmatprep.subr.mxu0 0.0
    %5992 = vmatpush1.msra.mxu0 0.0
    %5993 = vmatprep.subr.mxu0 0.0
    %5994 = vmatpush1.msra.mxu0 0.0
    %5995 = vmatprep.subr.mxu0 0.0
    %5996 = vmatpush1.msra.mxu0 0.0
    %5997 = vmatprep.subr.mxu0 0.0
    %5998 = vmatpush1.msra.mxu0 0.0
    %5999 = vmatprep.subr.mxu0 0.0
    %6000 = vmatpush1.msra.mxu0 0.0
    %6001 = vmatprep.subr.mxu0 0.0
    %6002 = vmatpush1.msra.mxu0 0.0
    %6003 = vmatprep.subr.mxu0 0.0
    %6004 = vmatpush1.msra.mxu0 0.0
    %6005 = vmatprep.subr.mxu0 0.0
    %6006 = vmatpush1.msra.mxu0 0.0
    %6007 = vmatprep.subr.mxu0 0.0
    %6008 = vmatpush1.msra.mxu0 0.0
    %6009 = vmatprep.subr.mxu0 0.0
    %6010 = vmatpush1.msra.mxu0 0.0
    %6011 = vmatprep.subr.mxu0 0.0
    %6012 = vmatpush1.msra.mxu0 0.0
    %6013 = vmatprep.subr.mxu0 0.0
    %6014 = vmatpush1.msra.mxu0 0.0
    %6015 = vmatprep.subr.mxu0 0.0
    %6016 = vmatpush1.msra.mxu0 0.0
    %6017 = vmatprep.subr.mxu0 0.0
    %6018 = vmatpush1.msra.mxu0 0.0
    %6019 = vmatprep.subr.mxu0 0.0
    %6020 = vmatpush1.msra.mxu0 0.0
    %6021 = vmatprep.subr.mxu0 0.0
    %6022 = vmatpush1.msra.mxu0 0.0
    %6023 = vmatprep.subr.mxu0 0.0
    %6024 = vmatpush1.msra.mxu0 0.0
    %6025 = vmatprep.mubr.f32.mxu0 0.0
    %6026 = vmatmul.mubr.f32.gmra.mrb[0].mxu0 %v5409
    %v6027 = vpop.f32.mrb[0].mxu0
    %v6028 = vadd.f32 0.0, %v6027
    %v6029 = vpop.f32.mrb[0].mxu0
    %6030 = vmatprep.mubr.f32.mxu0 0.0
    %6031 = vmatmul.mubr.f32.gmra.mrb[0].mxu0 %v5411
    %v6032 = vpop.f32.mrb[0].mxu0
    %v6033 = vadd.f32 0.0, %v6032
    %v6034 = vpop.f32.mrb[0].mxu0
    %6035 = vmatprep.mubr.f32.mxu0 0.0
    %6036 = vmatmul.mubr.f32.gmra.mrb[0].mxu0 %v5413
    %v6037 = vpop.f32.mrb[0].mxu0
    %v6038 = vadd.f32 0.0, %v6037
    %v6039 = vpop.f32.mrb[0].mxu0
    %6040 = vmatprep.mubr.f32.mxu0 0.0
    %6041 = vmatmul.mubr.f32.gmra.mrb[0].mxu0 %v5415
    %v6042 = vpop.f32.mrb[0].mxu0
    %v6043 = vadd.f32 0.0, %v6042
    %v6044 = vpop.f32.mrb[0].mxu0
    %6045 = vmatprep.mubr.f32.mxu0 0.0
    %6046 = vmatmul.mubr.f32.gmra.mrb[0].mxu0 %v5417
    %v6047 = vpop.f32.mrb[0].mxu0
    %v6048 = vadd.f32 0.0, %v6047
    %v6049 = vpop.f32.mrb[0].mxu0
    %6050 = vmatprep.mubr.f32.mxu0 0.0
    %6051 = vmatmul.mubr.f32.gmra.mrb[0].mxu0 %v5419
    %v6052 = vpop.f32.mrb[0].mxu0
    %v6053 = vadd.f32 0.0, %v6052
    %v6054 = vpop.f32.mrb[0].mxu0
    %6055 = vmatprep.mubr.f32.mxu0 0.0
    %6056 = vmatmul.mubr.f32.gmra.mrb[0].mxu0 %v5421
    %v6057 = vpop.f32.mrb[0].mxu0
    %v6058 = vadd.f32 0.0, %v6057
    %v6059 = vpop.f32.mrb[0].mxu0
    %6060 = vmatprep.mubr.f32.mxu0 0.0
    %6061 = vmatmul.mubr.f32.gmra.mrb[0].mxu0 %v5957
    %v6062 = vpop.f32.mrb[0].mxu0
    %v6063 = vadd.f32 0.0, %v6062
    %v6064 = vpop.f32.mrb[0].mxu0
    %6065 = vmatprep.mubr.f32.mxu0 0.0
    %6066 = vmatmul.mubr.f32.gmra.mrb[0].mxu0 %v5425
    %v6067 = vpop.f32.mrb[0].mxu0
    %v6068 = vadd.f32 0.0, %v6067
    %v6069 = vpop.f32.mrb[0].mxu0
    %6070 = vmatprep.mubr.f32.mxu0 0.0
    %6071 = vmatmul.mubr.f32.gmra.mrb[0].mxu0 %v5427
    %v6072 = vpop.f32.mrb[0].mxu0
    %v6073 = vadd.f32 0.0, %v6072
    %v6074 = vpop.f32.mrb[0].mxu0
    %6075 = vmatprep.mubr.f32.mxu0 0.0
    %6076 = vmatmul.mubr.f32.gmra.mrb[0].mxu0 %v5429
    %v6077 = vpop.f32.mrb[0].mxu0
    %v6078 = vadd.f32 0.0, %v6077
    %v6079 = vpop.f32.mrb[0].mxu0
    %6080 = vmatprep.mubr.f32.mxu0 0.0
    %6081 = vmatmul.mubr.f32.gmra.mrb[0].mxu0 %v5431
    %v6082 = vpop.f32.mrb[0].mxu0
    %v6083 = vadd.f32 0.0, %v6082
    %v6084 = vpop.f32.mrb[0].mxu0
    %6085 = vmatprep.mubr.f32.mxu0 0.0
    %6086 = vmatmul.mubr.f32.gmra.mrb[0].mxu0 %v5433
    %v6087 = vpop.f32.mrb[0].mxu0
    %v6088 = vadd.f32 0.0, %v6087
    %v6089 = vpop.f32.mrb[0].mxu0
    %6090 = vmatprep.mubr.f32.mxu0 0.0
    %6091 = vmatmul.mubr.f32.gmra.mrb[0].mxu0 %v5435
    %v6092 = vpop.f32.mrb[0].mxu0
    %v6093 = vadd.f32 0.0, %v6092
    %v6094 = vpop.f32.mrb[0].mxu0
    %6095 = vmatprep.mubr.f32.mxu0 0.0
    %6096 = vmatmul.mubr.f32.gmra.mrb[0].mxu0 %v5437
    %v6097 = vpop.f32.mrb[0].mxu0
    %v6098 = vadd.f32 0.0, %v6097
    %v6099 = vpop.f32.mrb[0].mxu0
    %6100 = vmatprep.mubr.f32.mxu0 0.0
    %6101 = vmatmul.mubr.f32.gmra.mrb[0].mxu0 %v5959
    %v6102 = vpop.f32.mrb[0].mxu0
    %v6103 = vadd.f32 0.0, %v6102
    %v6104 = vpop.f32.mrb[0].mxu0
    %6105 = vdwg.mxu0
    %v6106 = vadd.f32 %v5930, %v6028
    %v6107 = vadd.f32 %v5931, %v6033
    %v6108 = vadd.f32 %v5932, %v6038
    %v6109 = vadd.f32 %v5933, %v6043
    %v6110 = vadd.f32 %v5934, %v6048
    %v6111 = vadd.f32 %v5935, %v6053
    %v6112 = vadd.f32 %v5936, %v6058
    %v6113 = vadd.f32 %v5937, %v6063
    %v6114 = vadd.f32 %v5938, %v6068
    %v6115 = vadd.f32 %v5939, %v6073
    %v6116 = vadd.f32 %v5940, %v6078
    %v6117 = vadd.f32 %v5941, %v6083
    %v6118 = vadd.f32 %v5942, %v6088
    %v6119 = vadd.f32 %v5943, %v6093
    %v6120 = vadd.f32 %v5944, %v6098
    %v6121 = vadd.f32 %v5945, %v6103
    %v6126 = vrot.slane %v4866, 7
    %v6127 = vrot.slane %v4867, 7
    %v6128 = vsel %vm4931, %v6126, %v6127
    %v6129 = vrot.slane %v4896, 7
    %v6130 = vrot.slane %v4897, 7
    %v6131 = vsel %vm4931, %v6129, %v6130
    %s6132 = scalar_lea.vmem %s4, 96
    %v6133 = vld [vmem:[%s6132] sm:$0xff]
    %v6134 = vld [vmem:[%s6132 + $0x8] sm:$0xff]
    %v6135 = vsel %vm4114, %v6128, 0
    %v6137 = vsel %vm4114, %v6131, 0
    %6139 = vmatprep.subr.mxu0 0.0
    %6140 = vmatpush1.msra.mxu0 %v6133
    %6141 = vmatprep.subr.mxu0 0.0
    %6142 = vmatpush1.msra.mxu0 %v6134
    %6143 = vmatprep.subr.mxu0 0.0
    %6144 = vmatpush1.msra.mxu0 0.0
    %6145 = vmatprep.subr.mxu0 0.0
    %6146 = vmatpush1.msra.mxu0 0.0
    %6147 = vmatprep.subr.mxu0 0.0
    %6148 = vmatpush1.msra.mxu0 0.0
    %6149 = vmatprep.subr.mxu0 0.0
    %6150 = vmatpush1.msra.mxu0 0.0
    %6151 = vmatprep.subr.mxu0 0.0
    %6152 = vmatpush1.msra.mxu0 0.0
    %6153 = vmatprep.subr.mxu0 0.0
    %6154 = vmatpush1.msra.mxu0 0.0
    %6155 = vmatprep.subr.mxu0 0.0
    %6156 = vmatpush1.msra.mxu0 0.0
    %6157 = vmatprep.subr.mxu0 0.0
    %6158 = vmatpush1.msra.mxu0 0.0
    %6159 = vmatprep.subr.mxu0 0.0
    %6160 = vmatpush1.msra.mxu0 0.0
    %6161 = vmatprep.subr.mxu0 0.0
    %6162 = vmatpush1.msra.mxu0 0.0
    %6163 = vmatprep.subr.mxu0 0.0
    %6164 = vmatpush1.msra.mxu0 0.0
    %6165 = vmatprep.subr.mxu0 0.0
    %6166 = vmatpush1.msra.mxu0 0.0
    %6167 = vmatprep.subr.mxu0 0.0
    %6168 = vmatpush1.msra.mxu0 0.0
    %6169 = vmatprep.subr.mxu0 0.0
    %6170 = vmatpush1.msra.mxu0 0.0
    %6171 = vmatprep.subr.mxu0 0.0
    %6172 = vmatpush1.msra.mxu0 0.0
    %6173 = vmatprep.subr.mxu0 0.0
    %6174 = vmatpush1.msra.mxu0 0.0
    %6175 = vmatprep.subr.mxu0 0.0
    %6176 = vmatpush1.msra.mxu0 0.0
    %6177 = vmatprep.subr.mxu0 0.0
    %6178 = vmatpush1.msra.mxu0 0.0
    %6179 = vmatprep.subr.mxu0 0.0
    %6180 = vmatpush1.msra.mxu0 0.0
    %6181 = vmatprep.subr.mxu0 0.0
    %6182 = vmatpush1.msra.mxu0 0.0
    %6183 = vmatprep.subr.mxu0 0.0
    %6184 = vmatpush1.msra.mxu0 0.0
    %6185 = vmatprep.subr.mxu0 0.0
    %6186 = vmatpush1.msra.mxu0 0.0
    %6187 = vmatprep.subr.mxu0 0.0
    %6188 = vmatpush1.msra.mxu0 0.0
    %6189 = vmatprep.subr.mxu0 0.0
    %6190 = vmatpush1.msra.mxu0 0.0
    %6191 = vmatprep.subr.mxu0 0.0
    %6192 = vmatpush1.msra.mxu0 0.0
    %6193 = vmatprep.subr.mxu0 0.0
    %6194 = vmatpush1.msra.mxu0 0.0
    %6195 = vmatprep.subr.mxu0 0.0
    %6196 = vmatpush1.msra.mxu0 0.0
    %6197 = vmatprep.subr.mxu0 0.0
    %6198 = vmatpush1.msra.mxu0 0.0
    %6199 = vmatprep.subr.mxu0 0.0
    %6200 = vmatpush1.msra.mxu0 0.0
    %6201 = vmatprep.subr.mxu0 0.0
    %6202 = vmatpush1.msra.mxu0 0.0
    %6203 = vmatprep.mubr.f32.mxu0 0.0
    %6204 = vmatmul.mubr.f32.gmra.mrb[0].mxu0 %v5166
    %v6205 = vpop.f32.mrb[0].mxu0
    %v6206 = vadd.f32 0.0, %v6205
    %v6207 = vpop.f32.mrb[0].mxu0
    %6208 = vmatprep.mubr.f32.mxu0 0.0
    %6209 = vmatmul.mubr.f32.gmra.mrb[0].mxu0 %v5168
    %v6210 = vpop.f32.mrb[0].mxu0
    %v6211 = vadd.f32 0.0, %v6210
    %v6212 = vpop.f32.mrb[0].mxu0
    %6213 = vmatprep.mubr.f32.mxu0 0.0
    %6214 = vmatmul.mubr.f32.gmra.mrb[0].mxu0 %v5170
    %v6215 = vpop.f32.mrb[0].mxu0
    %v6216 = vadd.f32 0.0, %v6215
    %v6217 = vpop.f32.mrb[0].mxu0
    %6218 = vmatprep.mubr.f32.mxu0 0.0
    %6219 = vmatmul.mubr.f32.gmra.mrb[0].mxu0 %v5172
    %v6220 = vpop.f32.mrb[0].mxu0
    %v6221 = vadd.f32 0.0, %v6220
    %v6222 = vpop.f32.mrb[0].mxu0
    %6223 = vmatprep.mubr.f32.mxu0 0.0
    %6224 = vmatmul.mubr.f32.gmra.mrb[0].mxu0 %v5174
    %v6225 = vpop.f32.mrb[0].mxu0
    %v6226 = vadd.f32 0.0, %v6225
    %v6227 = vpop.f32.mrb[0].mxu0
    %6228 = vmatprep.mubr.f32.mxu0 0.0
    %6229 = vmatmul.mubr.f32.gmra.mrb[0].mxu0 %v5176
    %v6230 = vpop.f32.mrb[0].mxu0
    %v6231 = vadd.f32 0.0, %v6230
    %v6232 = vpop.f32.mrb[0].mxu0
    %6233 = vmatprep.mubr.f32.mxu0 0.0
    %6234 = vmatmul.mubr.f32.gmra.mrb[0].mxu0 %v5613
    %v6235 = vpop.f32.mrb[0].mxu0
    %v6236 = vadd.f32 0.0, %v6235
    %v6237 = vpop.f32.mrb[0].mxu0
    %6238 = vmatprep.mubr.f32.mxu0 0.0
    %6239 = vmatmul.mubr.f32.gmra.mrb[0].mxu0 %v6135
    %v6240 = vpop.f32.mrb[0].mxu0
    %v6241 = vadd.f32 0.0, %v6240
    %v6242 = vpop.f32.mrb[0].mxu0
    %6243 = vmatprep.mubr.f32.mxu0 0.0
    %6244 = vmatmul.mubr.f32.gmra.mrb[0].mxu0 %v5182
    %v6245 = vpop.f32.mrb[0].mxu0
    %v6246 = vadd.f32 0.0, %v6245
    %v6247 = vpop.f32.mrb[0].mxu0
    %6248 = vmatprep.mubr.f32.mxu0 0.0
    %6249 = vmatmul.mubr.f32.gmra.mrb[0].mxu0 %v5184
    %v6250 = vpop.f32.mrb[0].mxu0
    %v6251 = vadd.f32 0.0, %v6250
    %v6252 = vpop.f32.mrb[0].mxu0
    %6253 = vmatprep.mubr.f32.mxu0 0.0
    %6254 = vmatmul.mubr.f32.gmra.mrb[0].mxu0 %v5186
    %v6255 = vpop.f32.mrb[0].mxu0
    %v6256 = vadd.f32 0.0, %v6255
    %v6257 = vpop.f32.mrb[0].mxu0
    %6258 = vmatprep.mubr.f32.mxu0 0.0
    %6259 = vmatmul.mubr.f32.gmra.mrb[0].mxu0 %v5188
    %v6260 = vpop.f32.mrb[0].mxu0
    %v6261 = vadd.f32 0.0, %v6260
    %v6262 = vpop.f32.mrb[0].mxu0
    %6263 = vmatprep.mubr.f32.mxu0 0.0
    %6264 = vmatmul.mubr.f32.gmra.mrb[0].mxu0 %v5190
    %v6265 = vpop.f32.mrb[0].mxu0
    %v6266 = vadd.f32 0.0, %v6265
    %v6267 = vpop.f32.mrb[0].mxu0
    %6268 = vmatprep.mubr.f32.mxu0 0.0
    %6269 = vmatmul.mubr.f32.gmra.mrb[0].mxu0 %v5192
    %v6270 = vpop.f32.mrb[0].mxu0
    %v6271 = vadd.f32 0.0, %v6270
    %v6272 = vpop.f32.mrb[0].mxu0
    %6273 = vmatprep.mubr.f32.mxu0 0.0
    %6274 = vmatmul.mubr.f32.gmra.mrb[0].mxu0 %v5615
    %v6275 = vpop.f32.mrb[0].mxu0
    %v6276 = vadd.f32 0.0, %v6275
    %v6277 = vpop.f32.mrb[0].mxu0
    %6278 = vmatprep.mubr.f32.mxu0 0.0
    %6279 = vmatmul.mubr.f32.gmra.mrb[0].mxu0 %v6137
    %v6280 = vpop.f32.mrb[0].mxu0
    %v6281 = vadd.f32 0.0, %v6280
    %v6282 = vpop.f32.mrb[0].mxu0
    %6283 = vdwg.mxu0
    %v6284 = vadd.f32 %v6106, %v6206
    %v6285 = vadd.f32 %v6107, %v6211
    %v6286 = vadd.f32 %v6108, %v6216
    %v6287 = vadd.f32 %v6109, %v6221
    %v6288 = vadd.f32 %v6110, %v6226
    %v6289 = vadd.f32 %v6111, %v6231
    %v6290 = vadd.f32 %v6112, %v6236
    %v6291 = vadd.f32 %v6113, %v6241
    %v6292 = vadd.f32 %v6114, %v6246
    %v6293 = vadd.f32 %v6115, %v6251
    %v6294 = vadd.f32 %v6116, %v6256
    %v6295 = vadd.f32 %v6117, %v6261
    %v6296 = vadd.f32 %v6118, %v6266
    %v6297 = vadd.f32 %v6119, %v6271
    %v6298 = vadd.f32 %v6120, %v6276
    %v6299 = vadd.f32 %v6121, %v6281
    %s6300 = scalar_lea.vmem %s4, 112
    %v6301 = vld [vmem:[%s6300] sm:$0xff]
    %v6302 = vld [vmem:[%s6300 + $0x8] sm:$0xff]
    %v6303 = vsel %vm4114, %v4867, 0
    %v6305 = vsel %vm4114, %v4897, 0
    %6307 = vmatprep.subr.mxu0 0.0
    %6308 = vmatpush1.msra.mxu0 %v6301
    %6309 = vmatprep.subr.mxu0 0.0
    %6310 = vmatpush1.msra.mxu0 %v6302
    %6311 = vmatprep.subr.mxu0 0.0
    %6312 = vmatpush1.msra.mxu0 0.0
    %6313 = vmatprep.subr.mxu0 0.0
    %6314 = vmatpush1.msra.mxu0 0.0
    %6315 = vmatprep.subr.mxu0 0.0
    %6316 = vmatpush1.msra.mxu0 0.0
    %6317 = vmatprep.subr.mxu0 0.0
    %6318 = vmatpush1.msra.mxu0 0.0
    %6319 = vmatprep.subr.mxu0 0.0
    %6320 = vmatpush1.msra.mxu0 0.0
    %6321 = vmatprep.subr.mxu0 0.0
    %6322 = vmatpush1.msra.mxu0 0.0
    %6323 = vmatprep.subr.mxu0 0.0
    %6324 = vmatpush1.msra.mxu0 0.0
    %6325 = vmatprep.subr.mxu0 0.0
    %6326 = vmatpush1.msra.mxu0 0.0
    %6327 = vmatprep.subr.mxu0 0.0
    %6328 = vmatpush1.msra.mxu0 0.0
    %6329 = vmatprep.subr.mxu0 0.0
    %6330 = vmatpush1.msra.mxu0 0.0
    %6331 = vmatprep.subr.mxu0 0.0
    %6332 = vmatpush1.msra.mxu0 0.0
    %6333 = vmatprep.subr.mxu0 0.0
    %6334 = vmatpush1.msra.mxu0 0.0
    %6335 = vmatprep.subr.mxu0 0.0
    %6336 = vmatpush1.msra.mxu0 0.0
    %6337 = vmatprep.subr.mxu0 0.0
    %6338 = vmatpush1.msra.mxu0 0.0
    %6339 = vmatprep.subr.mxu0 0.0
    %6340 = vmatpush1.msra.mxu0 0.0
    %6341 = vmatprep.subr.mxu0 0.0
    %6342 = vmatpush1.msra.mxu0 0.0
    %6343 = vmatprep.subr.mxu0 0.0
    %6344 = vmatpush1.msra.mxu0 0.0
    %6345 = vmatprep.subr.mxu0 0.0
    %6346 = vmatpush1.msra.mxu0 0.0
    %6347 = vmatprep.subr.mxu0 0.0
    %6348 = vmatpush1.msra.mxu0 0.0
    %6349 = vmatprep.subr.mxu0 0.0
    %6350 = vmatpush1.msra.mxu0 0.0
    %6351 = vmatprep.subr.mxu0 0.0
    %6352 = vmatpush1.msra.mxu0 0.0
    %6353 = vmatprep.subr.mxu0 0.0
    %6354 = vmatpush1.msra.mxu0 0.0
    %6355 = vmatprep.subr.mxu0 0.0
    %6356 = vmatpush1.msra.mxu0 0.0
    %6357 = vmatprep.subr.mxu0 0.0
    %6358 = vmatpush1.msra.mxu0 0.0
    %6359 = vmatprep.subr.mxu0 0.0
    %6360 = vmatpush1.msra.mxu0 0.0
    %6361 = vmatprep.subr.mxu0 0.0
    %6362 = vmatpush1.msra.mxu0 0.0
    %6363 = vmatprep.subr.mxu0 0.0
    %6364 = vmatpush1.msra.mxu0 0.0
    %6365 = vmatprep.subr.mxu0 0.0
    %6366 = vmatpush1.msra.mxu0 0.0
    %6367 = vmatprep.subr.mxu0 0.0
    %6368 = vmatpush1.msra.mxu0 0.0
    %6369 = vmatprep.subr.mxu0 0.0
    %6370 = vmatpush1.msra.mxu0 0.0
    %6371 = vmatprep.mubr.f32.mxu0 0.0
    %6372 = vmatmul.mubr.f32.gmra.mrb[0].mxu0 %v4989
    %v6373 = vpop.f32.mrb[0].mxu0
    %v6374 = vadd.f32 0.0, %v6373
    %v6375 = vpop.f32.mrb[0].mxu0
    %6376 = vmatprep.mubr.f32.mxu0 0.0
    %6377 = vmatmul.mubr.f32.gmra.mrb[0].mxu0 %v4991
    %v6378 = vpop.f32.mrb[0].mxu0
    %v6379 = vadd.f32 0.0, %v6378
    %v6380 = vpop.f32.mrb[0].mxu0
    %6381 = vmatprep.mubr.f32.mxu0 0.0
    %6382 = vmatmul.mubr.f32.gmra.mrb[0].mxu0 %v4993
    %v6383 = vpop.f32.mrb[0].mxu0
    %v6384 = vadd.f32 0.0, %v6383
    %v6385 = vpop.f32.mrb[0].mxu0
    %6386 = vmatprep.mubr.f32.mxu0 0.0
    %6387 = vmatmul.mubr.f32.gmra.mrb[0].mxu0 %v4995
    %v6388 = vpop.f32.mrb[0].mxu0
    %v6389 = vadd.f32 0.0, %v6388
    %v6390 = vpop.f32.mrb[0].mxu0
    %6391 = vmatprep.mubr.f32.mxu0 0.0
    %6392 = vmatmul.mubr.f32.gmra.mrb[0].mxu0 %v4997
    %v6393 = vpop.f32.mrb[0].mxu0
    %v6394 = vadd.f32 0.0, %v6393
    %v6395 = vpop.f32.mrb[0].mxu0
    %6396 = vmatprep.mubr.f32.mxu0 0.0
    %6397 = vmatmul.mubr.f32.gmra.mrb[0].mxu0 %v4999
    %v6398 = vpop.f32.mrb[0].mxu0
    %v6399 = vadd.f32 0.0, %v6398
    %v6400 = vpop.f32.mrb[0].mxu0
    %6401 = vmatprep.mubr.f32.mxu0 0.0
    %6402 = vmatmul.mubr.f32.gmra.mrb[0].mxu0 %v5781
    %v6403 = vpop.f32.mrb[0].mxu0
    %v6404 = vadd.f32 0.0, %v6403
    %v6405 = vpop.f32.mrb[0].mxu0
    %6406 = vmatprep.mubr.f32.mxu0 0.0
    %6407 = vmatmul.mubr.f32.gmra.mrb[0].mxu0 %v6303
    %v6408 = vpop.f32.mrb[0].mxu0
    %v6409 = vadd.f32 0.0, %v6408
    %v6410 = vpop.f32.mrb[0].mxu0
    %6411 = vmatprep.mubr.f32.mxu0 0.0
    %6412 = vmatmul.mubr.f32.gmra.mrb[0].mxu0 %v5005
    %v6413 = vpop.f32.mrb[0].mxu0
    %v6414 = vadd.f32 0.0, %v6413
    %v6415 = vpop.f32.mrb[0].mxu0
    %6416 = vmatprep.mubr.f32.mxu0 0.0
    %6417 = vmatmul.mubr.f32.gmra.mrb[0].mxu0 %v5007
    %v6418 = vpop.f32.mrb[0].mxu0
    %v6419 = vadd.f32 0.0, %v6418
    %v6420 = vpop.f32.mrb[0].mxu0
    %6421 = vmatprep.mubr.f32.mxu0 0.0
    %6422 = vmatmul.mubr.f32.gmra.mrb[0].mxu0 %v5009
    %v6423 = vpop.f32.mrb[0].mxu0
    %v6424 = vadd.f32 0.0, %v6423
    %v6425 = vpop.f32.mrb[0].mxu0
    %6426 = vmatprep.mubr.f32.mxu0 0.0
    %6427 = vmatmul.mubr.f32.gmra.mrb[0].mxu0 %v5011
    %v6428 = vpop.f32.mrb[0].mxu0
    %v6429 = vadd.f32 0.0, %v6428
    %v6430 = vpop.f32.mrb[0].mxu0
    %6431 = vmatprep.mubr.f32.mxu0 0.0
    %6432 = vmatmul.mubr.f32.gmra.mrb[0].mxu0 %v5013
    %v6433 = vpop.f32.mrb[0].mxu0
    %v6434 = vadd.f32 0.0, %v6433
    %v6435 = vpop.f32.mrb[0].mxu0
    %6436 = vmatprep.mubr.f32.mxu0 0.0
    %6437 = vmatmul.mubr.f32.gmra.mrb[0].mxu0 %v5015
    %v6438 = vpop.f32.mrb[0].mxu0
    %v6439 = vadd.f32 0.0, %v6438
    %v6440 = vpop.f32.mrb[0].mxu0
    %6441 = vmatprep.mubr.f32.mxu0 0.0
    %6442 = vmatmul.mubr.f32.gmra.mrb[0].mxu0 %v5783
    %v6443 = vpop.f32.mrb[0].mxu0
    %v6444 = vadd.f32 0.0, %v6443
    %v6445 = vpop.f32.mrb[0].mxu0
    %6446 = vmatprep.mubr.f32.mxu0 0.0
    %6447 = vmatmul.mubr.f32.gmra.mrb[0].mxu0 %v6305
    %v6448 = vpop.f32.mrb[0].mxu0
    %v6449 = vadd.f32 0.0, %v6448
    %v6450 = vpop.f32.mrb[0].mxu0
    %6451 = vdwg.mxu0
    %v6452 = vadd.f32 %v6284, %v6374
    %v6453 = vadd.f32 %v6285, %v6379
    %v6454 = vadd.f32 %v6286, %v6384
    %v6455 = vadd.f32 %v6287, %v6389
    %v6456 = vadd.f32 %v6288, %v6394
    %v6457 = vadd.f32 %v6289, %v6399
    %v6458 = vadd.f32 %v6290, %v6404
    %v6459 = vadd.f32 %v6291, %v6409
    %v6460 = vadd.f32 %v6292, %v6414
    %v6461 = vadd.f32 %v6293, %v6419
    %v6462 = vadd.f32 %v6294, %v6424
    %v6463 = vadd.f32 %v6295, %v6429
    %v6464 = vadd.f32 %v6296, %v6434
    %v6465 = vadd.f32 %v6297, %v6439
    %v6466 = vadd.f32 %v6298, %v6444
    %v6467 = vadd.f32 %v6299, %v6449
    %v6470 = vrot.slane %v4867, 1
    %v6471 = vrot.slane %v4868, 1
    %v6472 = vsel %vm5355, %v6470, %v6471
    %v6473 = vrot.slane %v4897, 1
    %v6474 = vrot.slane %v4898, 1
    %v6475 = vsel %vm5355, %v6473, %v6474
    %s6476 = scalar_lea.vmem %s4, 128
    %v6477 = vld [vmem:[%s6476] sm:$0xff]
    %v6478 = vld [vmem:[%s6476 + $0x8] sm:$0xff]
    %v6479 = vsel %vm4114, %v6472, 0
    %v6481 = vsel %vm4114, %v6475, 0
    %6483 = vmatprep.subr.mxu0 0.0
    %6484 = vmatpush1.msra.mxu0 %v6477
    %6485 = vmatprep.subr.mxu0 0.0
    %6486 = vmatpush1.msra.mxu0 %v6478
    %6487 = vmatprep.subr.mxu0 0.0
    %6488 = vmatpush1.msra.mxu0 0.0
    %6489 = vmatprep.subr.mxu0 0.0
    %6490 = vmatpush1.msra.mxu0 0.0
    %6491 = vmatprep.subr.mxu0 0.0
    %6492 = vmatpush1.msra.mxu0 0.0
    %6493 = vmatprep.subr.mxu0 0.0
    %6494 = vmatpush1.msra.mxu0 0.0
    %6495 = vmatprep.subr.mxu0 0.0
    %6496 = vmatpush1.msra.mxu0 0.0
    %6497 = vmatprep.subr.mxu0 0.0
    %6498 = vmatpush1.msra.mxu0 0.0
    %6499 = vmatprep.subr.mxu0 0.0
    %6500 = vmatpush1.msra.mxu0 0.0
    %6501 = vmatprep.subr.mxu0 0.0
    %6502 = vmatpush1.msra.mxu0 0.0
    %6503 = vmatprep.subr.mxu0 0.0
    %6504 = vmatpush1.msra.mxu0 0.0
    %6505 = vmatprep.subr.mxu0 0.0
    %6506 = vmatpush1.msra.mxu0 0.0
    %6507 = vmatprep.subr.mxu0 0.0
    %6508 = vmatpush1.msra.mxu0 0.0
    %6509 = vmatprep.subr.mxu0 0.0
    %6510 = vmatpush1.msra.mxu0 0.0
    %6511 = vmatprep.subr.mxu0 0.0
    %6512 = vmatpush1.msra.mxu0 0.0
    %6513 = vmatprep.subr.mxu0 0.0
    %6514 = vmatpush1.msra.mxu0 0.0
    %6515 = vmatprep.subr.mxu0 0.0
    %6516 = vmatpush1.msra.mxu0 0.0
    %6517 = vmatprep.subr.mxu0 0.0
    %6518 = vmatpush1.msra.mxu0 0.0
    %6519 = vmatprep.subr.mxu0 0.0
    %6520 = vmatpush1.msra.mxu0 0.0
    %6521 = vmatprep.subr.mxu0 0.0
    %6522 = vmatpush1.msra.mxu0 0.0
    %6523 = vmatprep.subr.mxu0 0.0
    %6524 = vmatpush1.msra.mxu0 0.0
    %6525 = vmatprep.subr.mxu0 0.0
    %6526 = vmatpush1.msra.mxu0 0.0
    %6527 = vmatprep.subr.mxu0 0.0
    %6528 = vmatpush1.msra.mxu0 0.0
    %6529 = vmatprep.subr.mxu0 0.0
    %6530 = vmatpush1.msra.mxu0 0.0
    %6531 = vmatprep.subr.mxu0 0.0
    %6532 = vmatpush1.msra.mxu0 0.0
    %6533 = vmatprep.subr.mxu0 0.0
    %6534 = vmatpush1.msra.mxu0 0.0
    %6535 = vmatprep.subr.mxu0 0.0
    %6536 = vmatpush1.msra.mxu0 0.0
    %6537 = vmatprep.subr.mxu0 0.0
    %6538 = vmatpush1.msra.mxu0 0.0
    %6539 = vmatprep.subr.mxu0 0.0
    %6540 = vmatpush1.msra.mxu0 0.0
    %6541 = vmatprep.subr.mxu0 0.0
    %6542 = vmatpush1.msra.mxu0 0.0
    %6543 = vmatprep.subr.mxu0 0.0
    %6544 = vmatpush1.msra.mxu0 0.0
    %6545 = vmatprep.subr.mxu0 0.0
    %6546 = vmatpush1.msra.mxu0 0.0
    %6547 = vmatprep.mubr.f32.mxu0 0.0
    %6548 = vmatmul.mubr.f32.gmra.mrb[0].mxu0 %v5411
    %v6549 = vpop.f32.mrb[0].mxu0
    %v6550 = vadd.f32 0.0, %v6549
    %v6551 = vpop.f32.mrb[0].mxu0
    %6552 = vmatprep.mubr.f32.mxu0 0.0
    %6553 = vmatmul.mubr.f32.gmra.mrb[0].mxu0 %v5413
    %v6554 = vpop.f32.mrb[0].mxu0
    %v6555 = vadd.f32 0.0, %v6554
    %v6556 = vpop.f32.mrb[0].mxu0
    %6557 = vmatprep.mubr.f32.mxu0 0.0
    %6558 = vmatmul.mubr.f32.gmra.mrb[0].mxu0 %v5415
    %v6559 = vpop.f32.mrb[0].mxu0
    %v6560 = vadd.f32 0.0, %v6559
    %v6561 = vpop.f32.mrb[0].mxu0
    %6562 = vmatprep.mubr.f32.mxu0 0.0
    %6563 = vmatmul.mubr.f32.gmra.mrb[0].mxu0 %v5417
    %v6564 = vpop.f32.mrb[0].mxu0
    %v6565 = vadd.f32 0.0, %v6564
    %v6566 = vpop.f32.mrb[0].mxu0
    %6567 = vmatprep.mubr.f32.mxu0 0.0
    %6568 = vmatmul.mubr.f32.gmra.mrb[0].mxu0 %v5419
    %v6569 = vpop.f32.mrb[0].mxu0
    %v6570 = vadd.f32 0.0, %v6569
    %v6571 = vpop.f32.mrb[0].mxu0
    %6572 = vmatprep.mubr.f32.mxu0 0.0
    %6573 = vmatmul.mubr.f32.gmra.mrb[0].mxu0 %v5421
    %v6574 = vpop.f32.mrb[0].mxu0
    %v6575 = vadd.f32 0.0, %v6574
    %v6576 = vpop.f32.mrb[0].mxu0
    %6577 = vmatprep.mubr.f32.mxu0 0.0
    %6578 = vmatmul.mubr.f32.gmra.mrb[0].mxu0 %v5957
    %v6579 = vpop.f32.mrb[0].mxu0
    %v6580 = vadd.f32 0.0, %v6579
    %v6581 = vpop.f32.mrb[0].mxu0
    %6582 = vmatprep.mubr.f32.mxu0 0.0
    %6583 = vmatmul.mubr.f32.gmra.mrb[0].mxu0 %v6479
    %v6584 = vpop.f32.mrb[0].mxu0
    %v6585 = vadd.f32 0.0, %v6584
    %v6586 = vpop.f32.mrb[0].mxu0
    %6587 = vmatprep.mubr.f32.mxu0 0.0
    %6588 = vmatmul.mubr.f32.gmra.mrb[0].mxu0 %v5427
    %v6589 = vpop.f32.mrb[0].mxu0
    %v6590 = vadd.f32 0.0, %v6589
    %v6591 = vpop.f32.mrb[0].mxu0
    %6592 = vmatprep.mubr.f32.mxu0 0.0
    %6593 = vmatmul.mubr.f32.gmra.mrb[0].mxu0 %v5429
    %v6594 = vpop.f32.mrb[0].mxu0
    %v6595 = vadd.f32 0.0, %v6594
    %v6596 = vpop.f32.mrb[0].mxu0
    %6597 = vmatprep.mubr.f32.mxu0 0.0
    %6598 = vmatmul.mubr.f32.gmra.mrb[0].mxu0 %v5431
    %v6599 = vpop.f32.mrb[0].mxu0
    %v6600 = vadd.f32 0.0, %v6599
    %v6601 = vpop.f32.mrb[0].mxu0
    %6602 = vmatprep.mubr.f32.mxu0 0.0
    %6603 = vmatmul.mubr.f32.gmra.mrb[0].mxu0 %v5433
    %v6604 = vpop.f32.mrb[0].mxu0
    %v6605 = vadd.f32 0.0, %v6604
    %v6606 = vpop.f32.mrb[0].mxu0
    %6607 = vmatprep.mubr.f32.mxu0 0.0
    %6608 = vmatmul.mubr.f32.gmra.mrb[0].mxu0 %v5435
    %v6609 = vpop.f32.mrb[0].mxu0
    %v6610 = vadd.f32 0.0, %v6609
    %v6611 = vpop.f32.mrb[0].mxu0
    %6612 = vmatprep.mubr.f32.mxu0 0.0
    %6613 = vmatmul.mubr.f32.gmra.mrb[0].mxu0 %v5437
    %v6614 = vpop.f32.mrb[0].mxu0
    %v6615 = vadd.f32 0.0, %v6614
    %v6616 = vpop.f32.mrb[0].mxu0
    %6617 = vmatprep.mubr.f32.mxu0 0.0
    %6618 = vmatmul.mubr.f32.gmra.mrb[0].mxu0 %v5959
    %v6619 = vpop.f32.mrb[0].mxu0
    %v6620 = vadd.f32 0.0, %v6619
    %v6621 = vpop.f32.mrb[0].mxu0
    %6622 = vmatprep.mubr.f32.mxu0 0.0
    %6623 = vmatmul.mubr.f32.gmra.mrb[0].mxu0 %v6481
    %v6624 = vpop.f32.mrb[0].mxu0
    %v6625 = vadd.f32 0.0, %v6624
    %v6626 = vpop.f32.mrb[0].mxu0
    %6627 = vdwg.mxu0
    %v6628 = vadd.f32 %v6452, %v6550
    %v6629 = vadd.f32 %v6453, %v6555
    %v6630 = vadd.f32 %v6454, %v6560
    %v6631 = vadd.f32 %v6455, %v6565
    %v6632 = vadd.f32 %v6456, %v6570
    %v6633 = vadd.f32 %v6457, %v6575
    %v6634 = vadd.f32 %v6458, %v6580
    %v6635 = vadd.f32 %v6459, %v6585
    %v6636 = vadd.f32 %v6460, %v6590
    %v6637 = vadd.f32 %v6461, %v6595
    %v6638 = vadd.f32 %v6462, %v6600
    %v6639 = vadd.f32 %v6463, %v6605
    %v6640 = vadd.f32 %v6464, %v6610
    %v6641 = vadd.f32 %v6465, %v6615
    %v6642 = vadd.f32 %v6466, %v6620
    %v6643 = vadd.f32 %v6467, %v6625
    %v6644 = vld [vmem:[%s5] sm:$0x1]
    %v6646 = vlaneseq
    %v6647 = vshrl.u32 %v6646, 7
    %v6648 = vsub.s32 0, %v6647
    %v6649 = vrot.slane %v6644, %v6648
    %v6651 = vmul.f32 %v6628, %v6649
    %v6652 = vmul.f32 %v6629, %v6649
    %v6653 = vmul.f32 %v6630, %v6649
    %v6654 = vmul.f32 %v6631, %v6649
    %v6655 = vmul.f32 %v6632, %v6649
    %v6656 = vmul.f32 %v6633, %v6649
    %v6657 = vmul.f32 %v6634, %v6649
    %v6658 = vmul.f32 %v6635, %v6649
    %v6659 = vmul.f32 %v6636, %v6649
    %v6660 = vmul.f32 %v6637, %v6649
    %v6661 = vmul.f32 %v6638, %v6649
    %v6662 = vmul.f32 %v6639, %v6649
    %v6663 = vmul.f32 %v6640, %v6649
    %v6664 = vmul.f32 %v6641, %v6649
    %v6665 = vmul.f32 %v6642, %v6649
    %v6666 = vmul.f32 %v6643, %v6649
    %v6667 = vld [vmem:[%s6] sm:$0x1]
    %v6669 = vlaneseq
    %v6670 = vshrl.u32 %v6669, 7
    %v6671 = vsub.s32 0, %v6670
    %v6672 = vrot.slane %v6667, %v6671
    %v6674 = vadd.f32 %v6651, %v6672
    %v6675 = vadd.f32 %v6652, %v6672
    %v6676 = vadd.f32 %v6653, %v6672
    %v6677 = vadd.f32 %v6654, %v6672
    %v6678 = vadd.f32 %v6655, %v6672
    %v6679 = vadd.f32 %v6656, %v6672
    %v6680 = vadd.f32 %v6657, %v6672
    %v6681 = vadd.f32 %v6658, %v6672
    %v6682 = vadd.f32 %v6659, %v6672
    %v6683 = vadd.f32 %v6660, %v6672
    %v6684 = vadd.f32 %v6661, %v6672
    %v6685 = vadd.f32 %v6662, %v6672
    %v6686 = vadd.f32 %v6663, %v6672
    %v6687 = vadd.f32 %v6664, %v6672
    %v6688 = vadd.f32 %v6665, %v6672
    %v6689 = vadd.f32 %v6666, %v6672
    %v6690 = vmax.f32 %v6674, 0.0
    %v6691 = vmax.f32 %v6675, 0.0
    %v6692 = vmax.f32 %v6676, 0.0
    %v6693 = vmax.f32 %v6677, 0.0
    %v6694 = vmax.f32 %v6678, 0.0
    %v6695 = vmax.f32 %v6679, 0.0
    %v6696 = vmax.f32 %v6680, 0.0
    %v6697 = vmax.f32 %v6681, 0.0
    %v6698 = vmax.f32 %v6682, 0.0
    %v6699 = vmax.f32 %v6683, 0.0
    %v6700 = vmax.f32 %v6684, 0.0
    %v6701 = vmax.f32 %v6685, 0.0
    %v6702 = vmax.f32 %v6686, 0.0
    %v6703 = vmax.f32 %v6687, 0.0
    %v6704 = vmax.f32 %v6688, 0.0
    %v6705 = vmax.f32 %v6689, 0.0
    %v6722 = vcombine.high %v6690, %v6690
    %v6724 = vunpack.c.l.s4 1983009808
    %v6725 = vunpack.c.0.s8 %v6724
    %v6726 = vlaneseq
    %v6727 = vshrl.u32 %v6726, 7
    %v6728 = vsub.s32 %v6725, %v6727
    %v6729 = vrot.slane %v6690, %v6728
    %v6731 = vunpack.c.l.s4 1983009808
    %v6732 = vunpack.c.0.s8 %v6731
    %v6733 = vlaneseq
    %v6734 = vshrl.u32 %v6733, 7
    %v6735 = vsub.s32 %v6732, %v6734
    %v6736 = vrot.slane %v6722, %v6735
    %v6737 = vcombine.high %v6729, %v6729
    %v6738 = vcombine.high %v6736, %v6736
    %v6739 = vcombine.high %v6691, %v6691
    %v6741 = vunpack.c.l.s4 1983009808
    %v6742 = vunpack.c.0.s8 %v6741
    %v6743 = vlaneseq
    %v6744 = vshrl.u32 %v6743, 7
    %v6745 = vsub.s32 %v6742, %v6744
    %v6746 = vrot.slane %v6691, %v6745
    %v6748 = vunpack.c.l.s4 1983009808
    %v6749 = vunpack.c.0.s8 %v6748
    %v6750 = vlaneseq
    %v6751 = vshrl.u32 %v6750, 7
    %v6752 = vsub.s32 %v6749, %v6751
    %v6753 = vrot.slane %v6739, %v6752
    %v6754 = vcombine.high %v6746, %v6746
    %v6755 = vcombine.high %v6753, %v6753
    %v6756 = vcombine.high %v6692, %v6692
    %v6758 = vunpack.c.l.s4 1983009808
    %v6759 = vunpack.c.0.s8 %v6758
    %v6760 = vlaneseq
    %v6761 = vshrl.u32 %v6760, 7
    %v6762 = vsub.s32 %v6759, %v6761
    %v6763 = vrot.slane %v6692, %v6762
    %v6765 = vunpack.c.l.s4 1983009808
    %v6766 = vunpack.c.0.s8 %v6765
    %v6767 = vlaneseq
    %v6768 = vshrl.u32 %v6767, 7
    %v6769 = vsub.s32 %v6766, %v6768
    %v6770 = vrot.slane %v6756, %v6769
    %v6771 = vcombine.high %v6763, %v6763
    %v6772 = vcombine.high %v6770, %v6770
    %v6773 = vcombine.high %v6693, %v6693
    %v6775 = vunpack.c.l.s4 1983009808
    %v6776 = vunpack.c.0.s8 %v6775
    %v6777 = vlaneseq
    %v6778 = vshrl.u32 %v6777, 7
    %v6779 = vsub.s32 %v6776, %v6778
    %v6780 = vrot.slane %v6693, %v6779
    %v6782 = vunpack.c.l.s4 1983009808
    %v6783 = vunpack.c.0.s8 %v6782
    %v6784 = vlaneseq
    %v6785 = vshrl.u32 %v6784, 7
    %v6786 = vsub.s32 %v6783, %v6785
    %v6787 = vrot.slane %v6773, %v6786
    %v6788 = vcombine.high %v6780, %v6780
    %v6789 = vcombine.high %v6787, %v6787
    %v6790 = vcombine.high %v6694, %v6694
    %v6792 = vunpack.c.l.s4 1983009808
    %v6793 = vunpack.c.0.s8 %v6792
    %v6794 = vlaneseq
    %v6795 = vshrl.u32 %v6794, 7
    %v6796 = vsub.s32 %v6793, %v6795
    %v6797 = vrot.slane %v6694, %v6796
    %v6799 = vunpack.c.l.s4 1983009808
    %v6800 = vunpack.c.0.s8 %v6799
    %v6801 = vlaneseq
    %v6802 = vshrl.u32 %v6801, 7
    %v6803 = vsub.s32 %v6800, %v6802
    %v6804 = vrot.slane %v6790, %v6803
    %v6805 = vcombine.high %v6797, %v6797
    %v6806 = vcombine.high %v6804, %v6804
    %v6807 = vcombine.high %v6695, %v6695
    %v6809 = vunpack.c.l.s4 1983009808
    %v6810 = vunpack.c.0.s8 %v6809
    %v6811 = vlaneseq
    %v6812 = vshrl.u32 %v6811, 7
    %v6813 = vsub.s32 %v6810, %v6812
    %v6814 = vrot.slane %v6695, %v6813
    %v6816 = vunpack.c.l.s4 1983009808
    %v6817 = vunpack.c.0.s8 %v6816
    %v6818 = vlaneseq
    %v6819 = vshrl.u32 %v6818, 7
    %v6820 = vsub.s32 %v6817, %v6819
    %v6821 = vrot.slane %v6807, %v6820
    %v6822 = vcombine.high %v6814, %v6814
    %v6823 = vcombine.high %v6821, %v6821
    %v6824 = vcombine.high %v6696, %v6696
    %v6826 = vunpack.c.l.s4 1983009808
    %v6827 = vunpack.c.0.s8 %v6826
    %v6828 = vlaneseq
    %v6829 = vshrl.u32 %v6828, 7
    %v6830 = vsub.s32 %v6827, %v6829
    %v6831 = vrot.slane %v6696, %v6830
    %v6833 = vunpack.c.l.s4 1983009808
    %v6834 = vunpack.c.0.s8 %v6833
    %v6835 = vlaneseq
    %v6836 = vshrl.u32 %v6835, 7
    %v6837 = vsub.s32 %v6834, %v6836
    %v6838 = vrot.slane %v6824, %v6837
    %v6839 = vcombine.high %v6831, %v6831
    %v6840 = vcombine.high %v6838, %v6838
    %v6841 = vcombine.high %v6697, %v6697
    %v6843 = vunpack.c.l.s4 1983009808
    %v6844 = vunpack.c.0.s8 %v6843
    %v6845 = vlaneseq
    %v6846 = vshrl.u32 %v6845, 7
    %v6847 = vsub.s32 %v6844, %v6846
    %v6848 = vrot.slane %v6697, %v6847
    %v6850 = vunpack.c.l.s4 1983009808
    %v6851 = vunpack.c.0.s8 %v6850
    %v6852 = vlaneseq
    %v6853 = vshrl.u32 %v6852, 7
    %v6854 = vsub.s32 %v6851, %v6853
    %v6855 = vrot.slane %v6841, %v6854
    %v6856 = vcombine.high %v6848, %v6848
    %v6857 = vcombine.high %v6855, %v6855
    %v6858 = vcombine.high %v6698, %v6698
    %v6860 = vunpack.c.l.s4 1983009808
    %v6861 = vunpack.c.0.s8 %v6860
    %v6862 = vlaneseq
    %v6863 = vshrl.u32 %v6862, 7
    %v6864 = vsub.s32 %v6861, %v6863
    %v6865 = vrot.slane %v6698, %v6864
    %v6867 = vunpack.c.l.s4 1983009808
    %v6868 = vunpack.c.0.s8 %v6867
    %v6869 = vlaneseq
    %v6870 = vshrl.u32 %v6869, 7
    %v6871 = vsub.s32 %v6868, %v6870
    %v6872 = vrot.slane %v6858, %v6871
    %v6873 = vcombine.high %v6865, %v6865
    %v6874 = vcombine.high %v6872, %v6872
    %v6875 = vcombine.high %v6699, %v6699
    %v6877 = vunpack.c.l.s4 1983009808
    %v6878 = vunpack.c.0.s8 %v6877
    %v6879 = vlaneseq
    %v6880 = vshrl.u32 %v6879, 7
    %v6881 = vsub.s32 %v6878, %v6880
    %v6882 = vrot.slane %v6699, %v6881
    %v6884 = vunpack.c.l.s4 1983009808
    %v6885 = vunpack.c.0.s8 %v6884
    %v6886 = vlaneseq
    %v6887 = vshrl.u32 %v6886, 7
    %v6888 = vsub.s32 %v6885, %v6887
    %v6889 = vrot.slane %v6875, %v6888
    %v6890 = vcombine.high %v6882, %v6882
    %v6891 = vcombine.high %v6889, %v6889
    %v6892 = vcombine.high %v6700, %v6700
    %v6894 = vunpack.c.l.s4 1983009808
    %v6895 = vunpack.c.0.s8 %v6894
    %v6896 = vlaneseq
    %v6897 = vshrl.u32 %v6896, 7
    %v6898 = vsub.s32 %v6895, %v6897
    %v6899 = vrot.slane %v6700, %v6898
    %v6901 = vunpack.c.l.s4 1983009808
    %v6902 = vunpack.c.0.s8 %v6901
    %v6903 = vlaneseq
    %v6904 = vshrl.u32 %v6903, 7
    %v6905 = vsub.s32 %v6902, %v6904
    %v6906 = vrot.slane %v6892, %v6905
    %v6907 = vcombine.high %v6899, %v6899
    %v6908 = vcombine.high %v6906, %v6906
    %v6909 = vcombine.high %v6701, %v6701
    %v6911 = vunpack.c.l.s4 1983009808
    %v6912 = vunpack.c.0.s8 %v6911
    %v6913 = vlaneseq
    %v6914 = vshrl.u32 %v6913, 7
    %v6915 = vsub.s32 %v6912, %v6914
    %v6916 = vrot.slane %v6701, %v6915
    %v6918 = vunpack.c.l.s4 1983009808
    %v6919 = vunpack.c.0.s8 %v6918
    %v6920 = vlaneseq
    %v6921 = vshrl.u32 %v6920, 7
    %v6922 = vsub.s32 %v6919, %v6921
    %v6923 = vrot.slane %v6909, %v6922
    %v6924 = vcombine.high %v6916, %v6916
    %v6925 = vcombine.high %v6923, %v6923
    %v6926 = vcombine.high %v6702, %v6702
    %v6928 = vunpack.c.l.s4 1983009808
    %v6929 = vunpack.c.0.s8 %v6928
    %v6930 = vlaneseq
    %v6931 = vshrl.u32 %v6930, 7
    %v6932 = vsub.s32 %v6929, %v6931
    %v6933 = vrot.slane %v6702, %v6932
    %v6935 = vunpack.c.l.s4 1983009808
    %v6936 = vunpack.c.0.s8 %v6935
    %v6937 = vlaneseq
    %v6938 = vshrl.u32 %v6937, 7
    %v6939 = vsub.s32 %v6936, %v6938
    %v6940 = vrot.slane %v6926, %v6939
    %v6941 = vcombine.high %v6933, %v6933
    %v6942 = vcombine.high %v6940, %v6940
    %v6943 = vcombine.high %v6703, %v6703
    %v6945 = vunpack.c.l.s4 1983009808
    %v6946 = vunpack.c.0.s8 %v6945
    %v6947 = vlaneseq
    %v6948 = vshrl.u32 %v6947, 7
    %v6949 = vsub.s32 %v6946, %v6948
    %v6950 = vrot.slane %v6703, %v6949
    %v6952 = vunpack.c.l.s4 1983009808
    %v6953 = vunpack.c.0.s8 %v6952
    %v6954 = vlaneseq
    %v6955 = vshrl.u32 %v6954, 7
    %v6956 = vsub.s32 %v6953, %v6955
    %v6957 = vrot.slane %v6943, %v6956
    %v6958 = vcombine.high %v6950, %v6950
    %v6959 = vcombine.high %v6957, %v6957
    %v6960 = vcombine.high %v6704, %v6704
    %v6962 = vunpack.c.l.s4 1983009808
    %v6963 = vunpack.c.0.s8 %v6962
    %v6964 = vlaneseq
    %v6965 = vshrl.u32 %v6964, 7
    %v6966 = vsub.s32 %v6963, %v6965
    %v6967 = vrot.slane %v6704, %v6966
    %v6969 = vunpack.c.l.s4 1983009808
    %v6970 = vunpack.c.0.s8 %v6969
    %v6971 = vlaneseq
    %v6972 = vshrl.u32 %v6971, 7
    %v6973 = vsub.s32 %v6970, %v6972
    %v6974 = vrot.slane %v6960, %v6973
    %v6975 = vcombine.high %v6967, %v6967
    %v6976 = vcombine.high %v6974, %v6974
    %v6977 = vcombine.high %v6705, %v6705
    %v6979 = vunpack.c.l.s4 1983009808
    %v6980 = vunpack.c.0.s8 %v6979
    %v6981 = vlaneseq
    %v6982 = vshrl.u32 %v6981, 7
    %v6983 = vsub.s32 %v6980, %v6982
    %v6984 = vrot.slane %v6705, %v6983
    %v6986 = vunpack.c.l.s4 1983009808
    %v6987 = vunpack.c.0.s8 %v6986
    %v6988 = vlaneseq
    %v6989 = vshrl.u32 %v6988, 7
    %v6990 = vsub.s32 %v6987, %v6989
    %v6991 = vrot.slane %v6977, %v6990
    %v6992 = vcombine.high %v6984, %v6984
    %v6993 = vcombine.high %v6991, %v6991
    %vm7058 = vcmask 254976
    %v7059 = vsel %vm7058, %v6729, -inf
    %v7060 = vrot.slane %v7059, 4
    %v7061 = vmax.f32 %v7059, %v7060
    %v7062 = vrot.slane %v7061, 2
    %v7063 = vmax.f32 %v7061, %v7062
    %v7064 = vrot.slane %v7063, 1
    %v7065 = vmax.f32 %v7063, %v7064
    %v7066 = vsel %vm7058, %v6737, -inf
    %v7067 = vrot.slane %v7066, 4
    %v7068 = vmax.f32 %v7066, %v7067
    %v7069 = vrot.slane %v7068, 2
    %v7070 = vmax.f32 %v7068, %v7069
    %v7071 = vrot.slane %v7070, 1
    %v7072 = vmax.f32 %v7070, %v7071
    %v7073 = vsel %vm7058, %v6736, -inf
    %v7074 = vrot.slane %v7073, 4
    %v7075 = vmax.f32 %v7073, %v7074
    %v7076 = vrot.slane %v7075, 2
    %v7077 = vmax.f32 %v7075, %v7076
    %v7078 = vrot.slane %v7077, 1
    %v7079 = vmax.f32 %v7077, %v7078
    %v7080 = vsel %vm7058, %v6738, -inf
    %v7081 = vrot.slane %v7080, 4
    %v7082 = vmax.f32 %v7080, %v7081
    %v7083 = vrot.slane %v7082, 2
    %v7084 = vmax.f32 %v7082, %v7083
    %v7085 = vrot.slane %v7084, 1
    %v7086 = vmax.f32 %v7084, %v7085
    %v7087 = vsel %vm7058, %v6746, -inf
    %v7088 = vrot.slane %v7087, 4
    %v7089 = vmax.f32 %v7087, %v7088
    %v7090 = vrot.slane %v7089, 2
    %v7091 = vmax.f32 %v7089, %v7090
    %v7092 = vrot.slane %v7091, 1
    %v7093 = vmax.f32 %v7091, %v7092
    %v7094 = vsel %vm7058, %v6754, -inf
    %v7095 = vrot.slane %v7094, 4
    %v7096 = vmax.f32 %v7094, %v7095
    %v7097 = vrot.slane %v7096, 2
    %v7098 = vmax.f32 %v7096, %v7097
    %v7099 = vrot.slane %v7098, 1
    %v7100 = vmax.f32 %v7098, %v7099
    %v7101 = vsel %vm7058, %v6753, -inf
    %v7102 = vrot.slane %v7101, 4
    %v7103 = vmax.f32 %v7101, %v7102
    %v7104 = vrot.slane %v7103, 2
    %v7105 = vmax.f32 %v7103, %v7104
    %v7106 = vrot.slane %v7105, 1
    %v7107 = vmax.f32 %v7105, %v7106
    %v7108 = vsel %vm7058, %v6755, -inf
    %v7109 = vrot.slane %v7108, 4
    %v7110 = vmax.f32 %v7108, %v7109
    %v7111 = vrot.slane %v7110, 2
    %v7112 = vmax.f32 %v7110, %v7111
    %v7113 = vrot.slane %v7112, 1
    %v7114 = vmax.f32 %v7112, %v7113
    %v7115 = vsel %vm7058, %v6763, -inf
    %v7116 = vrot.slane %v7115, 4
    %v7117 = vmax.f32 %v7115, %v7116
    %v7118 = vrot.slane %v7117, 2
    %v7119 = vmax.f32 %v7117, %v7118
    %v7120 = vrot.slane %v7119, 1
    %v7121 = vmax.f32 %v7119, %v7120
    %v7122 = vsel %vm7058, %v6771, -inf
    %v7123 = vrot.slane %v7122, 4
    %v7124 = vmax.f32 %v7122, %v7123
    %v7125 = vrot.slane %v7124, 2
    %v7126 = vmax.f32 %v7124, %v7125
    %v7127 = vrot.slane %v7126, 1
    %v7128 = vmax.f32 %v7126, %v7127
    %v7129 = vsel %vm7058, %v6770, -inf
    %v7130 = vrot.slane %v7129, 4
    %v7131 = vmax.f32 %v7129, %v7130
    %v7132 = vrot.slane %v7131, 2
    %v7133 = vmax.f32 %v7131, %v7132
    %v7134 = vrot.slane %v7133, 1
    %v7135 = vmax.f32 %v7133, %v7134
    %v7136 = vsel %vm7058, %v6772, -inf
    %v7137 = vrot.slane %v7136, 4
    %v7138 = vmax.f32 %v7136, %v7137
    %v7139 = vrot.slane %v7138, 2
    %v7140 = vmax.f32 %v7138, %v7139
    %v7141 = vrot.slane %v7140, 1
    %v7142 = vmax.f32 %v7140, %v7141
    %v7143 = vsel %vm7058, %v6780, -inf
    %v7144 = vrot.slane %v7143, 4
    %v7145 = vmax.f32 %v7143, %v7144
    %v7146 = vrot.slane %v7145, 2
    %v7147 = vmax.f32 %v7145, %v7146
    %v7148 = vrot.slane %v7147, 1
    %v7149 = vmax.f32 %v7147, %v7148
    %v7150 = vsel %vm7058, %v6788, -inf
    %v7151 = vrot.slane %v7150, 4
    %v7152 = vmax.f32 %v7150, %v7151
    %v7153 = vrot.slane %v7152, 2
    %v7154 = vmax.f32 %v7152, %v7153
    %v7155 = vrot.slane %v7154, 1
    %v7156 = vmax.f32 %v7154, %v7155
    %v7157 = vsel %vm7058, %v6787, -inf
    %v7158 = vrot.slane %v7157, 4
    %v7159 = vmax.f32 %v7157, %v7158
    %v7160 = vrot.slane %v7159, 2
    %v7161 = vmax.f32 %v7159, %v7160
    %v7162 = vrot.slane %v7161, 1
    %v7163 = vmax.f32 %v7161, %v7162
    %v7164 = vsel %vm7058, %v6789, -inf
    %v7165 = vrot.slane %v7164, 4
    %v7166 = vmax.f32 %v7164, %v7165
    %v7167 = vrot.slane %v7166, 2
    %v7168 = vmax.f32 %v7166, %v7167
    %v7169 = vrot.slane %v7168, 1
    %v7170 = vmax.f32 %v7168, %v7169
    %v7171 = vsel %vm7058, %v6797, -inf
    %v7172 = vrot.slane %v7171, 4
    %v7173 = vmax.f32 %v7171, %v7172
    %v7174 = vrot.slane %v7173, 2
    %v7175 = vmax.f32 %v7173, %v7174
    %v7176 = vrot.slane %v7175, 1
    %v7177 = vmax.f32 %v7175, %v7176
    %v7178 = vsel %vm7058, %v6805, -inf
    %v7179 = vrot.slane %v7178, 4
    %v7180 = vmax.f32 %v7178, %v7179
    %v7181 = vrot.slane %v7180, 2
    %v7182 = vmax.f32 %v7180, %v7181
    %v7183 = vrot.slane %v7182, 1
    %v7184 = vmax.f32 %v7182, %v7183
    %v7185 = vsel %vm7058, %v6804, -inf
    %v7186 = vrot.slane %v7185, 4
    %v7187 = vmax.f32 %v7185, %v7186
    %v7188 = vrot.slane %v7187, 2
    %v7189 = vmax.f32 %v7187, %v7188
    %v7190 = vrot.slane %v7189, 1
    %v7191 = vmax.f32 %v7189, %v7190
    %v7192 = vsel %vm7058, %v6806, -inf
    %v7193 = vrot.slane %v7192, 4
    %v7194 = vmax.f32 %v7192, %v7193
    %v7195 = vrot.slane %v7194, 2
    %v7196 = vmax.f32 %v7194, %v7195
    %v7197 = vrot.slane %v7196, 1
    %v7198 = vmax.f32 %v7196, %v7197
    %v7199 = vsel %vm7058, %v6814, -inf
    %v7200 = vrot.slane %v7199, 4
    %v7201 = vmax.f32 %v7199, %v7200
    %v7202 = vrot.slane %v7201, 2
    %v7203 = vmax.f32 %v7201, %v7202
    %v7204 = vrot.slane %v7203, 1
    %v7205 = vmax.f32 %v7203, %v7204
    %v7206 = vsel %vm7058, %v6822, -inf
    %v7207 = vrot.slane %v7206, 4
    %v7208 = vmax.f32 %v7206, %v7207
    %v7209 = vrot.slane %v7208, 2
    %v7210 = vmax.f32 %v7208, %v7209
    %v7211 = vrot.slane %v7210, 1
    %v7212 = vmax.f32 %v7210, %v7211
    %v7213 = vsel %vm7058, %v6821, -inf
    %v7214 = vrot.slane %v7213, 4
    %v7215 = vmax.f32 %v7213, %v7214
    %v7216 = vrot.slane %v7215, 2
    %v7217 = vmax.f32 %v7215, %v7216
    %v7218 = vrot.slane %v7217, 1
    %v7219 = vmax.f32 %v7217, %v7218
    %v7220 = vsel %vm7058, %v6823, -inf
    %v7221 = vrot.slane %v7220, 4
    %v7222 = vmax.f32 %v7220, %v7221
    %v7223 = vrot.slane %v7222, 2
    %v7224 = vmax.f32 %v7222, %v7223
    %v7225 = vrot.slane %v7224, 1
    %v7226 = vmax.f32 %v7224, %v7225
    %v7227 = vsel %vm7058, %v6831, -inf
    %v7228 = vrot.slane %v7227, 4
    %v7229 = vmax.f32 %v7227, %v7228
    %v7230 = vrot.slane %v7229, 2
    %v7231 = vmax.f32 %v7229, %v7230
    %v7232 = vrot.slane %v7231, 1
    %v7233 = vmax.f32 %v7231, %v7232
    %v7234 = vsel %vm7058, %v6839, -inf
    %v7235 = vrot.slane %v7234, 4
    %v7236 = vmax.f32 %v7234, %v7235
    %v7237 = vrot.slane %v7236, 2
    %v7238 = vmax.f32 %v7236, %v7237
    %v7239 = vrot.slane %v7238, 1
    %v7240 = vmax.f32 %v7238, %v7239
    %v7241 = vsel %vm7058, %v6838, -inf
    %v7242 = vrot.slane %v7241, 4
    %v7243 = vmax.f32 %v7241, %v7242
    %v7244 = vrot.slane %v7243, 2
    %v7245 = vmax.f32 %v7243, %v7244
    %v7246 = vrot.slane %v7245, 1
    %v7247 = vmax.f32 %v7245, %v7246
    %v7248 = vsel %vm7058, %v6840, -inf
    %v7249 = vrot.slane %v7248, 4
    %v7250 = vmax.f32 %v7248, %v7249
    %v7251 = vrot.slane %v7250, 2
    %v7252 = vmax.f32 %v7250, %v7251
    %v7253 = vrot.slane %v7252, 1
    %v7254 = vmax.f32 %v7252, %v7253
    %v7255 = vsel %vm7058, %v6848, -inf
    %v7256 = vrot.slane %v7255, 4
    %v7257 = vmax.f32 %v7255, %v7256
    %v7258 = vrot.slane %v7257, 2
    %v7259 = vmax.f32 %v7257, %v7258
    %v7260 = vrot.slane %v7259, 1
    %v7261 = vmax.f32 %v7259, %v7260
    %v7262 = vsel %vm7058, %v6856, -inf
    %v7263 = vrot.slane %v7262, 4
    %v7264 = vmax.f32 %v7262, %v7263
    %v7265 = vrot.slane %v7264, 2
    %v7266 = vmax.f32 %v7264, %v7265
    %v7267 = vrot.slane %v7266, 1
    %v7268 = vmax.f32 %v7266, %v7267
    %v7269 = vsel %vm7058, %v6855, -inf
    %v7270 = vrot.slane %v7269, 4
    %v7271 = vmax.f32 %v7269, %v7270
    %v7272 = vrot.slane %v7271, 2
    %v7273 = vmax.f32 %v7271, %v7272
    %v7274 = vrot.slane %v7273, 1
    %v7275 = vmax.f32 %v7273, %v7274
    %v7276 = vsel %vm7058, %v6857, -inf
    %v7277 = vrot.slane %v7276, 4
    %v7278 = vmax.f32 %v7276, %v7277
    %v7279 = vrot.slane %v7278, 2
    %v7280 = vmax.f32 %v7278, %v7279
    %v7281 = vrot.slane %v7280, 1
    %v7282 = vmax.f32 %v7280, %v7281
    %v7283 = vsel %vm7058, %v6865, -inf
    %v7284 = vrot.slane %v7283, 4
    %v7285 = vmax.f32 %v7283, %v7284
    %v7286 = vrot.slane %v7285, 2
    %v7287 = vmax.f32 %v7285, %v7286
    %v7288 = vrot.slane %v7287, 1
    %v7289 = vmax.f32 %v7287, %v7288
    %v7290 = vsel %vm7058, %v6873, -inf
    %v7291 = vrot.slane %v7290, 4
    %v7292 = vmax.f32 %v7290, %v7291
    %v7293 = vrot.slane %v7292, 2
    %v7294 = vmax.f32 %v7292, %v7293
    %v7295 = vrot.slane %v7294, 1
    %v7296 = vmax.f32 %v7294, %v7295
    %v7297 = vsel %vm7058, %v6872, -inf
    %v7298 = vrot.slane %v7297, 4
    %v7299 = vmax.f32 %v7297, %v7298
    %v7300 = vrot.slane %v7299, 2
    %v7301 = vmax.f32 %v7299, %v7300
    %v7302 = vrot.slane %v7301, 1
    %v7303 = vmax.f32 %v7301, %v7302
    %v7304 = vsel %vm7058, %v6874, -inf
    %v7305 = vrot.slane %v7304, 4
    %v7306 = vmax.f32 %v7304, %v7305
    %v7307 = vrot.slane %v7306, 2
    %v7308 = vmax.f32 %v7306, %v7307
    %v7309 = vrot.slane %v7308, 1
    %v7310 = vmax.f32 %v7308, %v7309
    %v7311 = vsel %vm7058, %v6882, -inf
    %v7312 = vrot.slane %v7311, 4
    %v7313 = vmax.f32 %v7311, %v7312
    %v7314 = vrot.slane %v7313, 2
    %v7315 = vmax.f32 %v7313, %v7314
    %v7316 = vrot.slane %v7315, 1
    %v7317 = vmax.f32 %v7315, %v7316
    %v7318 = vsel %vm7058, %v6890, -inf
    %v7319 = vrot.slane %v7318, 4
    %v7320 = vmax.f32 %v7318, %v7319
    %v7321 = vrot.slane %v7320, 2
    %v7322 = vmax.f32 %v7320, %v7321
    %v7323 = vrot.slane %v7322, 1
    %v7324 = vmax.f32 %v7322, %v7323
    %v7325 = vsel %vm7058, %v6889, -inf
    %v7326 = vrot.slane %v7325, 4
    %v7327 = vmax.f32 %v7325, %v7326
    %v7328 = vrot.slane %v7327, 2
    %v7329 = vmax.f32 %v7327, %v7328
    %v7330 = vrot.slane %v7329, 1
    %v7331 = vmax.f32 %v7329, %v7330
    %v7332 = vsel %vm7058, %v6891, -inf
    %v7333 = vrot.slane %v7332, 4
    %v7334 = vmax.f32 %v7332, %v7333
    %v7335 = vrot.slane %v7334, 2
    %v7336 = vmax.f32 %v7334, %v7335
    %v7337 = vrot.slane %v7336, 1
    %v7338 = vmax.f32 %v7336, %v7337
    %v7339 = vsel %vm7058, %v6899, -inf
    %v7340 = vrot.slane %v7339, 4
    %v7341 = vmax.f32 %v7339, %v7340
    %v7342 = vrot.slane %v7341, 2
    %v7343 = vmax.f32 %v7341, %v7342
    %v7344 = vrot.slane %v7343, 1
    %v7345 = vmax.f32 %v7343, %v7344
    %v7346 = vsel %vm7058, %v6907, -inf
    %v7347 = vrot.slane %v7346, 4
    %v7348 = vmax.f32 %v7346, %v7347
    %v7349 = vrot.slane %v7348, 2
    %v7350 = vmax.f32 %v7348, %v7349
    %v7351 = vrot.slane %v7350, 1
    %v7352 = vmax.f32 %v7350, %v7351
    %v7353 = vsel %vm7058, %v6906, -inf
    %v7354 = vrot.slane %v7353, 4
    %v7355 = vmax.f32 %v7353, %v7354
    %v7356 = vrot.slane %v7355, 2
    %v7357 = vmax.f32 %v7355, %v7356
    %v7358 = vrot.slane %v7357, 1
    %v7359 = vmax.f32 %v7357, %v7358
    %v7360 = vsel %vm7058, %v6908, -inf
    %v7361 = vrot.slane %v7360, 4
    %v7362 = vmax.f32 %v7360, %v7361
    %v7363 = vrot.slane %v7362, 2
    %v7364 = vmax.f32 %v7362, %v7363
    %v7365 = vrot.slane %v7364, 1
    %v7366 = vmax.f32 %v7364, %v7365
    %v7367 = vsel %vm7058, %v6916, -inf
    %v7368 = vrot.slane %v7367, 4
    %v7369 = vmax.f32 %v7367, %v7368
    %v7370 = vrot.slane %v7369, 2
    %v7371 = vmax.f32 %v7369, %v7370
    %v7372 = vrot.slane %v7371, 1
    %v7373 = vmax.f32 %v7371, %v7372
    %v7374 = vsel %vm7058, %v6924, -inf
    %v7375 = vrot.slane %v7374, 4
    %v7376 = vmax.f32 %v7374, %v7375
    %v7377 = vrot.slane %v7376, 2
    %v7378 = vmax.f32 %v7376, %v7377
    %v7379 = vrot.slane %v7378, 1
    %v7380 = vmax.f32 %v7378, %v7379
    %v7381 = vsel %vm7058, %v6923, -inf
    %v7382 = vrot.slane %v7381, 4
    %v7383 = vmax.f32 %v7381, %v7382
    %v7384 = vrot.slane %v7383, 2
    %v7385 = vmax.f32 %v7383, %v7384
    %v7386 = vrot.slane %v7385, 1
    %v7387 = vmax.f32 %v7385, %v7386
    %v7388 = vsel %vm7058, %v6925, -inf
    %v7389 = vrot.slane %v7388, 4
    %v7390 = vmax.f32 %v7388, %v7389
    %v7391 = vrot.slane %v7390, 2
    %v7392 = vmax.f32 %v7390, %v7391
    %v7393 = vrot.slane %v7392, 1
    %v7394 = vmax.f32 %v7392, %v7393
    %v7395 = vsel %vm7058, %v6933, -inf
    %v7396 = vrot.slane %v7395, 4
    %v7397 = vmax.f32 %v7395, %v7396
    %v7398 = vrot.slane %v7397, 2
    %v7399 = vmax.f32 %v7397, %v7398
    %v7400 = vrot.slane %v7399, 1
    %v7401 = vmax.f32 %v7399, %v7400
    %v7402 = vsel %vm7058, %v6941, -inf
    %v7403 = vrot.slane %v7402, 4
    %v7404 = vmax.f32 %v7402, %v7403
    %v7405 = vrot.slane %v7404, 2
    %v7406 = vmax.f32 %v7404, %v7405
    %v7407 = vrot.slane %v7406, 1
    %v7408 = vmax.f32 %v7406, %v7407
    %v7409 = vsel %vm7058, %v6940, -inf
    %v7410 = vrot.slane %v7409, 4
    %v7411 = vmax.f32 %v7409, %v7410
    %v7412 = vrot.slane %v7411, 2
    %v7413 = vmax.f32 %v7411, %v7412
    %v7414 = vrot.slane %v7413, 1
    %v7415 = vmax.f32 %v7413, %v7414
    %v7416 = vsel %vm7058, %v6942, -inf
    %v7417 = vrot.slane %v7416, 4
    %v7418 = vmax.f32 %v7416, %v7417
    %v7419 = vrot.slane %v7418, 2
    %v7420 = vmax.f32 %v7418, %v7419
    %v7421 = vrot.slane %v7420, 1
    %v7422 = vmax.f32 %v7420, %v7421
    %v7423 = vsel %vm7058, %v6950, -inf
    %v7424 = vrot.slane %v7423, 4
    %v7425 = vmax.f32 %v7423, %v7424
    %v7426 = vrot.slane %v7425, 2
    %v7427 = vmax.f32 %v7425, %v7426
    %v7428 = vrot.slane %v7427, 1
    %v7429 = vmax.f32 %v7427, %v7428
    %v7430 = vsel %vm7058, %v6958, -inf
    %v7431 = vrot.slane %v7430, 4
    %v7432 = vmax.f32 %v7430, %v7431
    %v7433 = vrot.slane %v7432, 2
    %v7434 = vmax.f32 %v7432, %v7433
    %v7435 = vrot.slane %v7434, 1
    %v7436 = vmax.f32 %v7434, %v7435
    %v7437 = vsel %vm7058, %v6957, -inf
    %v7438 = vrot.slane %v7437, 4
    %v7439 = vmax.f32 %v7437, %v7438
    %v7440 = vrot.slane %v7439, 2
    %v7441 = vmax.f32 %v7439, %v7440
    %v7442 = vrot.slane %v7441, 1
    %v7443 = vmax.f32 %v7441, %v7442
    %v7444 = vsel %vm7058, %v6959, -inf
    %v7445 = vrot.slane %v7444, 4
    %v7446 = vmax.f32 %v7444, %v7445
    %v7447 = vrot.slane %v7446, 2
    %v7448 = vmax.f32 %v7446, %v7447
    %v7449 = vrot.slane %v7448, 1
    %v7450 = vmax.f32 %v7448, %v7449
    %v7451 = vsel %vm7058, %v6967, -inf
    %v7452 = vrot.slane %v7451, 4
    %v7453 = vmax.f32 %v7451, %v7452
    %v7454 = vrot.slane %v7453, 2
    %v7455 = vmax.f32 %v7453, %v7454
    %v7456 = vrot.slane %v7455, 1
    %v7457 = vmax.f32 %v7455, %v7456
    %v7458 = vsel %vm7058, %v6975, -inf
    %v7459 = vrot.slane %v7458, 4
    %v7460 = vmax.f32 %v7458, %v7459
    %v7461 = vrot.slane %v7460, 2
    %v7462 = vmax.f32 %v7460, %v7461
    %v7463 = vrot.slane %v7462, 1
    %v7464 = vmax.f32 %v7462, %v7463
    %v7465 = vsel %vm7058, %v6974, -inf
    %v7466 = vrot.slane %v7465, 4
    %v7467 = vmax.f32 %v7465, %v7466
    %v7468 = vrot.slane %v7467, 2
    %v7469 = vmax.f32 %v7467, %v7468
    %v7470 = vrot.slane %v7469, 1
    %v7471 = vmax.f32 %v7469, %v7470
    %v7472 = vsel %vm7058, %v6976, -inf
    %v7473 = vrot.slane %v7472, 4
    %v7474 = vmax.f32 %v7472, %v7473
    %v7475 = vrot.slane %v7474, 2
    %v7476 = vmax.f32 %v7474, %v7475
    %v7477 = vrot.slane %v7476, 1
    %v7478 = vmax.f32 %v7476, %v7477
    %v7479 = vsel %vm7058, %v6984, -inf
    %v7480 = vrot.slane %v7479, 4
    %v7481 = vmax.f32 %v7479, %v7480
    %v7482 = vrot.slane %v7481, 2
    %v7483 = vmax.f32 %v7481, %v7482
    %v7484 = vrot.slane %v7483, 1
    %v7485 = vmax.f32 %v7483, %v7484
    %v7486 = vsel %vm7058, %v6992, -inf
    %v7487 = vrot.slane %v7486, 4
    %v7488 = vmax.f32 %v7486, %v7487
    %v7489 = vrot.slane %v7488, 2
    %v7490 = vmax.f32 %v7488, %v7489
    %v7491 = vrot.slane %v7490, 1
    %v7492 = vmax.f32 %v7490, %v7491
    %v7493 = vsel %vm7058, %v6991, -inf
    %v7494 = vrot.slane %v7493, 4
    %v7495 = vmax.f32 %v7493, %v7494
    %v7496 = vrot.slane %v7495, 2
    %v7497 = vmax.f32 %v7495, %v7496
    %v7498 = vrot.slane %v7497, 1
    %v7499 = vmax.f32 %v7497, %v7498
    %v7500 = vsel %vm7058, %v6993, -inf
    %v7501 = vrot.slane %v7500, 4
    %v7502 = vmax.f32 %v7500, %v7501
    %v7503 = vrot.slane %v7502, 2
    %v7504 = vmax.f32 %v7502, %v7503
    %v7505 = vrot.slane %v7504, 1
    %v7506 = vmax.f32 %v7504, %v7505
    %vm7507 = vcmask 261120
    %v7508 = vsel %vm7507, %v7065, -inf
    %v7509 = vsel %vm7507, %v7093, -inf
    %v7510 = vmax.f32 %v7508, %v7509
    %v7511 = vsel %vm7507, %v7072, -inf
    %v7512 = vsel %vm7507, %v7100, -inf
    %v7513 = vmax.f32 %v7511, %v7512
    %v7514 = vsel %vm7507, %v7079, -inf
    %v7515 = vsel %vm7507, %v7107, -inf
    %v7516 = vmax.f32 %v7514, %v7515
    %v7517 = vsel %vm7507, %v7086, -inf
    %v7518 = vsel %vm7507, %v7114, -inf
    %v7519 = vmax.f32 %v7517, %v7518
    %v7520 = vsel %vm7507, %v7121, -inf
    %v7521 = vsel %vm7507, %v7149, -inf
    %v7522 = vmax.f32 %v7520, %v7521
    %v7523 = vsel %vm7507, %v7128, -inf
    %v7524 = vsel %vm7507, %v7156, -inf
    %v7525 = vmax.f32 %v7523, %v7524
    %v7526 = vsel %vm7507, %v7135, -inf
    %v7527 = vsel %vm7507, %v7163, -inf
    %v7528 = vmax.f32 %v7526, %v7527
    %v7529 = vsel %vm7507, %v7142, -inf
    %v7530 = vsel %vm7507, %v7170, -inf
    %v7531 = vmax.f32 %v7529, %v7530
    %v7532 = vsel %vm7507, %v7177, -inf
    %v7533 = vsel %vm7507, %v7205, -inf
    %v7534 = vmax.f32 %v7532, %v7533
    %v7535 = vsel %vm7507, %v7184, -inf
    %v7536 = vsel %vm7507, %v7212, -inf
    %v7537 = vmax.f32 %v7535, %v7536
    %v7538 = vsel %vm7507, %v7191, -inf
    %v7539 = vsel %vm7507, %v7219, -inf
    %v7540 = vmax.f32 %v7538, %v7539
    %v7541 = vsel %vm7507, %v7198, -inf
    %v7542 = vsel %vm7507, %v7226, -inf
    %v7543 = vmax.f32 %v7541, %v7542
    %v7544 = vsel %vm7507, %v7233, -inf
    %v7545 = vsel %vm7507, %v7261, -inf
    %v7546 = vmax.f32 %v7544, %v7545
    %v7547 = vsel %vm7507, %v7240, -inf
    %v7548 = vsel %vm7507, %v7268, -inf
    %v7549 = vmax.f32 %v7547, %v7548
    %v7550 = vsel %vm7507, %v7247, -inf
    %v7551 = vsel %vm7507, %v7275, -inf
    %v7552 = vmax.f32 %v7550, %v7551
    %v7553 = vsel %vm7507, %v7254, -inf
    %v7554 = vsel %vm7507, %v7282, -inf
    %v7555 = vmax.f32 %v7553, %v7554
    %v7556 = vsel %vm7507, %v7289, -inf
    %v7557 = vsel %vm7507, %v7317, -inf
    %v7558 = vmax.f32 %v7556, %v7557
    %v7559 = vsel %vm7507, %v7296, -inf
    %v7560 = vsel %vm7507, %v7324, -inf
    %v7561 = vmax.f32 %v7559, %v7560
    %v7562 = vsel %vm7507, %v7303, -inf
    %v7563 = vsel %vm7507, %v7331, -inf
    %v7564 = vmax.f32 %v7562, %v7563
    %v7565 = vsel %vm7507, %v7310, -inf
    %v7566 = vsel %vm7507, %v7338, -inf
    %v7567 = vmax.f32 %v7565, %v7566
    %v7568 = vsel %vm7507, %v7345, -inf
    %v7569 = vsel %vm7507, %v7373, -inf
    %v7570 = vmax.f32 %v7568, %v7569
    %v7571 = vsel %vm7507, %v7352, -inf
    %v7572 = vsel %vm7507, %v7380, -inf
    %v7573 = vmax.f32 %v7571, %v7572
    %v7574 = vsel %vm7507, %v7359, -inf
    %v7575 = vsel %vm7507, %v7387, -inf
    %v7576 = vmax.f32 %v7574, %v7575
    %v7577 = vsel %vm7507, %v7366, -inf
    %v7578 = vsel %vm7507, %v7394, -inf
    %v7579 = vmax.f32 %v7577, %v7578
    %v7580 = vsel %vm7507, %v7401, -inf
    %v7581 = vsel %vm7507, %v7429, -inf
    %v7582 = vmax.f32 %v7580, %v7581
    %v7583 = vsel %vm7507, %v7408, -inf
    %v7584 = vsel %vm7507, %v7436, -inf
    %v7585 = vmax.f32 %v7583, %v7584
    %v7586 = vsel %vm7507, %v7415, -inf
    %v7587 = vsel %vm7507, %v7443, -inf
    %v7588 = vmax.f32 %v7586, %v7587
    %v7589 = vsel %vm7507, %v7422, -inf
    %v7590 = vsel %vm7507, %v7450, -inf
    %v7591 = vmax.f32 %v7589, %v7590
    %v7592 = vsel %vm7507, %v7457, -inf
    %v7593 = vsel %vm7507, %v7485, -inf
    %v7594 = vmax.f32 %v7592, %v7593
    %v7595 = vsel %vm7507, %v7464, -inf
    %v7596 = vsel %vm7507, %v7492, -inf
    %v7597 = vmax.f32 %v7595, %v7596
    %v7598 = vsel %vm7507, %v7471, -inf
    %v7599 = vsel %vm7507, %v7499, -inf
    %v7600 = vmax.f32 %v7598, %v7599
    %v7601 = vsel %vm7507, %v7478, -inf
    %v7602 = vsel %vm7507, %v7506, -inf
    %v7603 = vmax.f32 %v7601, %v7602
    %7604 = vst.msk [vmem:[#allocation3] sm:$0xff] %vm7507, 0.0
    %7605 = vst.msk [vmem:[#allocation3 + $0x8] sm:$0xff] %vm7507, 0.0
    %vm7606 = vcmask 257024
    %7607 = vst.msk [vmem:[#allocation3 + $0x10] sm:$0xf] %vm7606, 0.0
    %7608 = vst.msk [vmem:[#allocation3 + $0x18] sm:$0xff] %vm7507, 0.0
    %7609 = vst.msk [vmem:[#allocation3 + $0x20] sm:$0xff] %vm7507, 0.0
    %7610 = vst.msk [vmem:[#allocation3 + $0x28] sm:$0xf] %vm7606, 0.0
    %7611 = vst.msk [vmem:[#allocation3 + $0x30] sm:$0xff] %vm7507, 0.0
    %7612 = vst.msk [vmem:[#allocation3 + $0x38] sm:$0xff] %vm7507, 0.0
    %7613 = vst.msk [vmem:[#allocation3 + $0x40] sm:$0xf] %vm7606, 0.0
    %7614 = vst.msk [vmem:[#allocation3 + $0x48] sm:$0xff] %vm7507, 0.0
    %7615 = vst.msk [vmem:[#allocation3 + $0x50] sm:$0xff] %vm7507, 0.0
    %7616 = vst.msk [vmem:[#allocation3 + $0x58] sm:$0xf] %vm7606, 0.0
    %7617 = vst.msk [vmem:[#allocation3 + $0x60] sm:$0xff] %vm7507, 0.0
    %7618 = vst.msk [vmem:[#allocation3 + $0x68] sm:$0xff] %vm7507, 0.0
    %7619 = vst.msk [vmem:[#allocation3 + $0x70] sm:$0xf] %vm7606, 0.0
    %7620 = vst.msk [vmem:[#allocation3 + $0x78] sm:$0xff] %vm7507, 0.0
    %7621 = vst.msk [vmem:[#allocation3 + $0x80] sm:$0xff] %vm7507, 0.0
    %7622 = vst.msk [vmem:[#allocation3 + $0x88] sm:$0xf] %vm7606, 0.0
    %7623 = vst.msk [vmem:[#allocation3 + $0x90] sm:$0xff] %vm7507, 0.0
    %7624 = vst.msk [vmem:[#allocation3 + $0x98] sm:$0xff] %vm7507, 0.0
    %7625 = vst.msk [vmem:[#allocation3 + $0xa0] sm:$0xf] %vm7606, 0.0
    %7626 = vst.msk [vmem:[#allocation3 + $0xa8] sm:$0xff] %vm7507, 0.0
    %7627 = vst.msk [vmem:[#allocation3 + $0xb0] sm:$0xff] %vm7507, 0.0
    %7628 = vst.msk [vmem:[#allocation3 + $0xb8] sm:$0xf] %vm7606, 0.0
    %7629 = vst.msk [vmem:[#allocation3 + $0xc0] sm:$0xff] %vm7507, 0.0
    %7630 = vst.msk [vmem:[#allocation3 + $0xc8] sm:$0xff] %vm7507, 0.0
    %7631 = vst.msk [vmem:[#allocation3 + $0xd0] sm:$0xf] %vm7606, 0.0
    %7632 = vst.msk [vmem:[#allocation3 + $0xd8] sm:$0xff] %vm7507, 0.0
    %7633 = vst.msk [vmem:[#allocation3 + $0xe0] sm:$0xff] %vm7507, 0.0
    %7634 = vst.msk [vmem:[#allocation3 + $0xe8] sm:$0xf] %vm7606, 0.0
    %7635 = vst.msk [vmem:[#allocation3 + $0xf0] sm:$0xff] %vm7507, 0.0
    %7636 = vst.msk [vmem:[#allocation3 + $0xf8] sm:$0xff] %vm7507, 0.0
    %7637 = vst.msk [vmem:[#allocation3 + $0x100] sm:$0xf] %vm7606, 0.0
    %7638 = vst.msk [vmem:[#allocation3 + $0x108] sm:$0xff] %vm7507, 0.0
    %7639 = vst.msk [vmem:[#allocation3 + $0x110] sm:$0xff] %vm7507, 0.0
    %7640 = vst.msk [vmem:[#allocation3 + $0x118] sm:$0xf] %vm7606, 0.0
    %v7673 = vsel %vm4687, %v7513, %v7510
    %v7674 = vsel %vm4689, %v7516, %v7673
    %v7675 = vsel %vm4691, %v7519, %v7674
    %v7676 = vsel %vm4687, %v7525, %v7522
    %v7677 = vsel %vm4689, %v7528, %v7676
    %v7678 = vsel %vm4691, %v7531, %v7677
    %v7679 = vsel %vm4687, %v7537, %v7534
    %v7680 = vsel %vm4689, %v7540, %v7679
    %v7681 = vsel %vm4691, %v7543, %v7680
    %v7682 = vsel %vm4687, %v7549, %v7546
    %v7683 = vsel %vm4689, %v7552, %v7682
    %v7684 = vsel %vm4691, %v7555, %v7683
    %v7685 = vsel %vm4687, %v7561, %v7558
    %v7686 = vsel %vm4689, %v7564, %v7685
    %v7687 = vsel %vm4691, %v7567, %v7686
    %v7688 = vsel %vm4687, %v7573, %v7570
    %v7689 = vsel %vm4689, %v7576, %v7688
    %v7690 = vsel %vm4691, %v7579, %v7689
    %v7691 = vsel %vm4687, %v7585, %v7582
    %v7692 = vsel %vm4689, %v7588, %v7691
    %v7693 = vsel %vm4691, %v7591, %v7692
    %v7694 = vsel %vm4687, %v7597, %v7594
    %v7695 = vsel %vm4689, %v7600, %v7694
    %v7696 = vsel %vm4691, %v7603, %v7695
    %s7705 = scalar_lea.vmem [#allocation3], 24
    %7706 = vst.msk [vmem:[%s7705 + $0x8] sm:$0xf] %vm7606, %v7675
    %7707 = vst.msk [vmem:[%s7705 + $0x20] sm:$0xf] %vm7606, %v7678
    %7708 = vst.msk [vmem:[%s7705 + $0x38] sm:$0xf] %vm7606, %v7681
    %7709 = vst.msk [vmem:[%s7705 + $0x50] sm:$0xf] %vm7606, %v7684
    %7710 = vst.msk [vmem:[%s7705 + $0x98] sm:$0xf] %vm7606, %v7687
    %7711 = vst.msk [vmem:[%s7705 + $0xb0] sm:$0xf] %vm7606, %v7690
    %7712 = vst.msk [vmem:[%s7705 + $0xc8] sm:$0xf] %vm7606, %v7693
    %7713 = vst.msk [vmem:[%s7705 + $0xe0] sm:$0xf] %vm7606, %v7696
    %v7714 = vld [vmem:[#allocation3] sm:$0xff]
    %v7715 = vld [vmem:[#allocation3 + $0x8] sm:$0xff]
    %v7716 = vld [vmem:[#allocation3 + $0x18] sm:$0xff]
    %v7717 = vld [vmem:[#allocation3 + $0x20] sm:$0xff]
    %v7718 = vld [vmem:[#allocation3 + $0x30] sm:$0xff]
    %v7719 = vld [vmem:[#allocation3 + $0x38] sm:$0xff]
    %v7720 = vld [vmem:[#allocation3 + $0x48] sm:$0xff]
    %v7721 = vld [vmem:[#allocation3 + $0x50] sm:$0xff]
    %v7722 = vld [vmem:[#allocation3 + $0x60] sm:$0xff]
    %v7723 = vld [vmem:[#allocation3 + $0x68] sm:$0xff]
    %v7724 = vld [vmem:[#allocation3 + $0x78] sm:$0xff]
    %v7725 = vld [vmem:[#allocation3 + $0x80] sm:$0xff]
    %v7726 = vld [vmem:[#allocation3 + $0x90] sm:$0xff]
    %v7727 = vld [vmem:[#allocation3 + $0x98] sm:$0xff]
    %v7728 = vld [vmem:[#allocation3 + $0xa8] sm:$0xff]
    %v7729 = vld [vmem:[#allocation3 + $0xb0] sm:$0xff]
    %v7730 = vld [vmem:[#allocation3 + $0xc0] sm:$0xff]
    %v7731 = vld [vmem:[#allocation3 + $0xc8] sm:$0xff]
    %v7732 = vld [vmem:[#allocation3 + $0xd8] sm:$0xff]
    %v7733 = vld [vmem:[#allocation3 + $0xe0] sm:$0xff]
    %v7734 = vld [vmem:[#allocation3 + $0xf0] sm:$0xff]
    %v7735 = vld [vmem:[#allocation3 + $0xf8] sm:$0xff]
    %v7736 = vld [vmem:[#allocation3 + $0x108] sm:$0xff]
    %v7737 = vld [vmem:[#allocation3 + $0x110] sm:$0xff]
    %v7754 = vcombine.high %v7714, %v7714
    %v7755 = vcombine.high %v7716, %v7716
    %v7756 = vcombine.high %v7718, %v7718
    %v7757 = vcombine.high %v7720, %v7720
    %v7758 = vcombine.high %v7726, %v7726
    %v7759 = vcombine.high %v7728, %v7728
    %v7760 = vcombine.high %v7730, %v7730
    %v7761 = vcombine.high %v7732, %v7732
    %vm7762 = vmor %vm4931, %vm4693
    %v7763 = vrot.slane %v7754, 7
    %v7764 = vrot.slane %v7763, 4
    %v7765 = vrot.slane %v7715, 7
    %v7766 = vsel %vm7762, %v7764, %v7765
    %v7767 = vrot.slane %v7755, 7
    %v7768 = vrot.slane %v7767, 4
    %v7769 = vrot.slane %v7717, 7
    %v7770 = vsel %vm7762, %v7768, %v7769
    %v7771 = vrot.slane %v7756, 7
    %v7772 = vrot.slane %v7771, 4
    %v7773 = vrot.slane %v7719, 7
    %v7774 = vsel %vm7762, %v7772, %v7773
    %v7775 = vrot.slane %v7757, 7
    %v7776 = vrot.slane %v7775, 4
    %v7777 = vrot.slane %v7721, 7
    %v7778 = vsel %vm7762, %v7776, %v7777
    %v7779 = vrot.slane %v7758, 7
    %v7780 = vrot.slane %v7779, 4
    %v7781 = vrot.slane %v7727, 7
    %v7782 = vsel %vm7762, %v7780, %v7781
    %v7783 = vrot.slane %v7759, 7
    %v7784 = vrot.slane %v7783, 4
    %v7785 = vrot.slane %v7729, 7
    %v7786 = vsel %vm7762, %v7784, %v7785
    %v7787 = vrot.slane %v7760, 7
    %v7788 = vrot.slane %v7787, 4
    %v7789 = vrot.slane %v7731, 7
    %v7790 = vsel %vm7762, %v7788, %v7789
    %v7791 = vrot.slane %v7761, 7
    %v7792 = vrot.slane %v7791, 4
    %v7793 = vrot.slane %v7733, 7
    %v7794 = vsel %vm7762, %v7792, %v7793
    %v7795 = vld [vmem:[%s7] sm:$0xff]
    %v7796 = vld [vmem:[%s7 + $0x8] sm:$0xff]
    %v7797 = vld [vmem:[%s7 + $0x10] sm:$0xff]
    %v7798 = vld [vmem:[%s7 + $0x18] sm:$0xff]
    %s7799 = scalar_lea.vmem %s7, 32
    %v7800 = vld [vmem:[%s7799] sm:$0xff]
    %v7801 = vld [vmem:[%s7799 + $0x8] sm:$0xff]
    %v7802 = vld [vmem:[%s7799 + $0x10] sm:$0xff]
    %v7803 = vld [vmem:[%s7799 + $0x18] sm:$0xff]
    %v7804 = vcombine.low %v7715, %v7717
    %v7805 = vcombine.low %v7719, %v7721
    %v7806 = vcombine.low %v7727, %v7729
    %v7807 = vcombine.low %v7731, %v7733
    %v7808 = vsel %vm7507, %v7804, 0
    %v7810 = vsel %vm7507, %v7805, 0
    %v7812 = vsel %vm7507, %v7806, 0
    %v7814 = vsel %vm7507, %v7807, 0
    %7816 = vmatprep.subr.mxu0 0.0
    %7817 = vmatpush1.msra.mxu0 %v7800
    %7818 = vmatprep.subr.mxu0 0.0
    %7819 = vmatpush1.msra.mxu0 %v7801
    %7820 = vmatprep.subr.mxu0 0.0
    %7821 = vmatpush1.msra.mxu0 %v7802
    %7822 = vmatprep.subr.mxu0 0.0
    %7823 = vmatpush1.msra.mxu0 %v7803
    %7824 = vmatprep.subr.mxu0 0.0
    %7825 = vmatpush1.msra.mxu0 0.0
    %7826 = vmatprep.subr.mxu0 0.0
    %7827 = vmatpush1.msra.mxu0 0.0
    %7828 = vmatprep.subr.mxu0 0.0
    %7829 = vmatpush1.msra.mxu0 0.0
    %7830 = vmatprep.subr.mxu0 0.0
    %7831 = vmatpush1.msra.mxu0 0.0
    %7832 = vmatprep.subr.mxu0 0.0
    %7833 = vmatpush1.msra.mxu0 0.0
    %7834 = vmatprep.subr.mxu0 0.0
    %7835 = vmatpush1.msra.mxu0 0.0
    %7836 = vmatprep.subr.mxu0 0.0
    %7837 = vmatpush1.msra.mxu0 0.0
    %7838 = vmatprep.subr.mxu0 0.0
    %7839 = vmatpush1.msra.mxu0 0.0
    %7840 = vmatprep.subr.mxu0 0.0
    %7841 = vmatpush1.msra.mxu0 0.0
    %7842 = vmatprep.subr.mxu0 0.0
    %7843 = vmatpush1.msra.mxu0 0.0
    %7844 = vmatprep.subr.mxu0 0.0
    %7845 = vmatpush1.msra.mxu0 0.0
    %7846 = vmatprep.subr.mxu0 0.0
    %7847 = vmatpush1.msra.mxu0 0.0
    %7848 = vmatprep.subr.mxu0 0.0
    %7849 = vmatpush1.msra.mxu0 0.0
    %7850 = vmatprep.subr.mxu0 0.0
    %7851 = vmatpush1.msra.mxu0 0.0
    %7852 = vmatprep.subr.mxu0 0.0
    %7853 = vmatpush1.msra.mxu0 0.0
    %7854 = vmatprep.subr.mxu0 0.0
    %7855 = vmatpush1.msra.mxu0 0.0
    %7856 = vmatprep.subr.mxu0 0.0
    %7857 = vmatpush1.msra.mxu0 0.0
    %7858 = vmatprep.subr.mxu0 0.0
    %7859 = vmatpush1.msra.mxu0 0.0
    %7860 = vmatprep.subr.mxu0 0.0
    %7861 = vmatpush1.msra.mxu0 0.0
    %7862 = vmatprep.subr.mxu0 0.0
    %7863 = vmatpush1.msra.mxu0 0.0
    %7864 = vmatprep.subr.mxu0 0.0
    %7865 = vmatpush1.msra.mxu0 0.0
    %7866 = vmatprep.subr.mxu0 0.0
    %7867 = vmatpush1.msra.mxu0 0.0
    %7868 = vmatprep.subr.mxu0 0.0
    %7869 = vmatpush1.msra.mxu0 0.0
    %7870 = vmatprep.subr.mxu0 0.0
    %7871 = vmatpush1.msra.mxu0 0.0
    %7872 = vmatprep.subr.mxu0 0.0
    %7873 = vmatpush1.msra.mxu0 0.0
    %7874 = vmatprep.subr.mxu0 0.0
    %7875 = vmatpush1.msra.mxu0 0.0
    %7876 = vmatprep.subr.mxu0 0.0
    %7877 = vmatpush1.msra.mxu0 0.0
    %7878 = vmatprep.subr.mxu0 0.0
    %7879 = vmatpush1.msra.mxu0 0.0
    %7880 = vmatprep.mubr.f32.mxu0 0.0
    %7881 = vmatmul.mubr.f32.gmra.mrb[0].mxu0 %v7808
    %v7882 = vpop.f32.mrb[0].mxu0
    %v7883 = vadd.f32 0.0, %v7882
    %v7884 = vpop.f32.mrb[0].mxu0
    %7885 = vmatprep.mubr.f32.mxu0 0.0
    %7886 = vmatmul.mubr.f32.gmra.mrb[0].mxu0 %v7810
    %v7887 = vpop.f32.mrb[0].mxu0
    %v7888 = vadd.f32 0.0, %v7887
    %v7889 = vpop.f32.mrb[0].mxu0
    %7890 = vmatprep.mubr.f32.mxu0 0.0
    %7891 = vmatmul.mubr.f32.gmra.mrb[0].mxu0 %v7812
    %v7892 = vpop.f32.mrb[0].mxu0
    %v7893 = vadd.f32 0.0, %v7892
    %v7894 = vpop.f32.mrb[0].mxu0
    %7895 = vmatprep.mubr.f32.mxu0 0.0
    %7896 = vmatmul.mubr.f32.gmra.mrb[0].mxu0 %v7814
    %v7897 = vpop.f32.mrb[0].mxu0
    %v7898 = vadd.f32 0.0, %v7897
    %v7899 = vpop.f32.mrb[0].mxu0
    %7900 = vdwg.mxu0
    %v7901 = vcombine.low %v7766, %v7770
    %v7902 = vcombine.low %v7774, %v7778
    %v7903 = vcombine.low %v7782, %v7786
    %v7904 = vcombine.low %v7790, %v7794
    %v7905 = vsel %vm7507, %v7901, 0
    %v7907 = vsel %vm7507, %v7902, 0
    %v7909 = vsel %vm7507, %v7903, 0
    %v7911 = vsel %vm7507, %v7904, 0
    %7913 = vmatprep.subr.mxu0 0.0
    %7914 = vmatpush1.msra.mxu0 %v7795
    %7915 = vmatprep.subr.mxu0 0.0
    %7916 = vmatpush1.msra.mxu0 %v7796
    %7917 = vmatprep.subr.mxu0 0.0
    %7918 = vmatpush1.msra.mxu0 %v7797
    %7919 = vmatprep.subr.mxu0 0.0
    %7920 = vmatpush1.msra.mxu0 %v7798
    %7921 = vmatprep.subr.mxu0 0.0
    %7922 = vmatpush1.msra.mxu0 0.0
    %7923 = vmatprep.subr.mxu0 0.0
    %7924 = vmatpush1.msra.mxu0 0.0
    %7925 = vmatprep.subr.mxu0 0.0
    %7926 = vmatpush1.msra.mxu0 0.0
    %7927 = vmatprep.subr.mxu0 0.0
    %7928 = vmatpush1.msra.mxu0 0.0
    %7929 = vmatprep.subr.mxu0 0.0
    %7930 = vmatpush1.msra.mxu0 0.0
    %7931 = vmatprep.subr.mxu0 0.0
    %7932 = vmatpush1.msra.mxu0 0.0
    %7933 = vmatprep.subr.mxu0 0.0
    %7934 = vmatpush1.msra.mxu0 0.0
    %7935 = vmatprep.subr.mxu0 0.0
    %7936 = vmatpush1.msra.mxu0 0.0
    %7937 = vmatprep.subr.mxu0 0.0
    %7938 = vmatpush1.msra.mxu0 0.0
    %7939 = vmatprep.subr.mxu0 0.0
    %7940 = vmatpush1.msra.mxu0 0.0
    %7941 = vmatprep.subr.mxu0 0.0
    %7942 = vmatpush1.msra.mxu0 0.0
    %7943 = vmatprep.subr.mxu0 0.0
    %7944 = vmatpush1.msra.mxu0 0.0
    %7945 = vmatprep.subr.mxu0 0.0
    %7946 = vmatpush1.msra.mxu0 0.0
    %7947 = vmatprep.subr.mxu0 0.0
    %7948 = vmatpush1.msra.mxu0 0.0
    %7949 = vmatprep.subr.mxu0 0.0
    %7950 = vmatpush1.msra.mxu0 0.0
    %7951 = vmatprep.subr.mxu0 0.0
    %7952 = vmatpush1.msra.mxu0 0.0
    %7953 = vmatprep.subr.mxu0 0.0
    %7954 = vmatpush1.msra.mxu0 0.0
    %7955 = vmatprep.subr.mxu0 0.0
    %7956 = vmatpush1.msra.mxu0 0.0
    %7957 = vmatprep.subr.mxu0 0.0
    %7958 = vmatpush1.msra.mxu0 0.0
    %7959 = vmatprep.subr.mxu0 0.0
    %7960 = vmatpush1.msra.mxu0 0.0
    %7961 = vmatprep.subr.mxu0 0.0
    %7962 = vmatpush1.msra.mxu0 0.0
    %7963 = vmatprep.subr.mxu0 0.0
    %7964 = vmatpush1.msra.mxu0 0.0
    %7965 = vmatprep.subr.mxu0 0.0
    %7966 = vmatpush1.msra.mxu0 0.0
    %7967 = vmatprep.subr.mxu0 0.0
    %7968 = vmatpush1.msra.mxu0 0.0
    %7969 = vmatprep.subr.mxu0 0.0
    %7970 = vmatpush1.msra.mxu0 0.0
    %7971 = vmatprep.subr.mxu0 0.0
    %7972 = vmatpush1.msra.mxu0 0.0
    %7973 = vmatprep.subr.mxu0 0.0
    %7974 = vmatpush1.msra.mxu0 0.0
    %7975 = vmatprep.subr.mxu0 0.0
    %7976 = vmatpush1.msra.mxu0 0.0
    %7977 = vmatprep.mubr.f32.mxu0 0.0
    %7978 = vmatmul.mubr.f32.gmra.mrb[0].mxu0 %v7905
    %v7979 = vpop.f32.mrb[0].mxu0
    %v7980 = vadd.f32 %v7883, %v7979
    %v7981 = vpop.f32.mrb[0].mxu0
    %7982 = vmatprep.mubr.f32.mxu0 0.0
    %7983 = vmatmul.mubr.f32.gmra.mrb[0].mxu0 %v7907
    %v7984 = vpop.f32.mrb[0].mxu0
    %v7985 = vadd.f32 %v7888, %v7984
    %v7986 = vpop.f32.mrb[0].mxu0
    %7987 = vmatprep.mubr.f32.mxu0 0.0
    %7988 = vmatmul.mubr.f32.gmra.mrb[0].mxu0 %v7909
    %v7989 = vpop.f32.mrb[0].mxu0
    %v7990 = vadd.f32 %v7893, %v7989
    %v7991 = vpop.f32.mrb[0].mxu0
    %7992 = vmatprep.mubr.f32.mxu0 0.0
    %7993 = vmatmul.mubr.f32.gmra.mrb[0].mxu0 %v7911
    %v7994 = vpop.f32.mrb[0].mxu0
    %v7995 = vadd.f32 %v7898, %v7994
    %v7996 = vpop.f32.mrb[0].mxu0
    %7997 = vdwg.mxu0
    %v7998 = vcombine.high %v7715, %v7715
    %v7999 = vcombine.high %v7717, %v7717
    %v8000 = vcombine.high %v7719, %v7719
    %v8001 = vcombine.high %v7721, %v7721
    %v8002 = vcombine.high %v7727, %v7727
    %v8003 = vcombine.high %v7729, %v7729
    %v8004 = vcombine.high %v7731, %v7731
    %v8005 = vcombine.high %v7733, %v7733
    %vm8006 = vcmask 1046532
    %vm8007 = vmor %vm318, %vm8006
    %v8008 = vrot.slane %v7715, 5
    %v8009 = vrot.slane %v8008, 4
    %v8010 = vrot.slane %v7998, 5
    %v8011 = vsel %vm8007, %v8009, %v8010
    %v8012 = vrot.slane %v7717, 5
    %v8013 = vrot.slane %v8012, 4
    %v8014 = vrot.slane %v7999, 5
    %v8015 = vsel %vm8007, %v8013, %v8014
    %v8016 = vrot.slane %v7719, 5
    %v8017 = vrot.slane %v8016, 4
    %v8018 = vrot.slane %v8000, 5
    %v8019 = vsel %vm8007, %v8017, %v8018
    %v8020 = vrot.slane %v7721, 5
    %v8021 = vrot.slane %v8020, 4
    %v8022 = vrot.slane %v8001, 5
    %v8023 = vsel %vm8007, %v8021, %v8022
    %v8024 = vrot.slane %v7727, 5
    %v8025 = vrot.slane %v8024, 4
    %v8026 = vrot.slane %v8002, 5
    %v8027 = vsel %vm8007, %v8025, %v8026
    %v8028 = vrot.slane %v7729, 5
    %v8029 = vrot.slane %v8028, 4
    %v8030 = vrot.slane %v8003, 5
    %v8031 = vsel %vm8007, %v8029, %v8030
    %v8032 = vrot.slane %v7731, 5
    %v8033 = vrot.slane %v8032, 4
    %v8034 = vrot.slane %v8004, 5
    %v8035 = vsel %vm8007, %v8033, %v8034
    %v8036 = vrot.slane %v7733, 5
    %v8037 = vrot.slane %v8036, 4
    %v8038 = vrot.slane %v8005, 5
    %v8039 = vsel %vm8007, %v8037, %v8038
    %s8040 = scalar_lea.vmem %s7, 64
    %v8041 = vld [vmem:[%s8040] sm:$0xff]
    %v8042 = vld [vmem:[%s8040 + $0x8] sm:$0xff]
    %v8043 = vld [vmem:[%s8040 + $0x10] sm:$0xff]
    %v8044 = vld [vmem:[%s8040 + $0x18] sm:$0xff]
    %v8045 = vcombine.low %v8011, %v8015
    %v8046 = vcombine.low %v8019, %v8023
    %v8047 = vcombine.low %v8027, %v8031
    %v8048 = vcombine.low %v8035, %v8039
    %v8049 = vsel %vm7507, %v8045, 0
    %v8051 = vsel %vm7507, %v8046, 0
    %v8053 = vsel %vm7507, %v8047, 0
    %v8055 = vsel %vm7507, %v8048, 0
    %8057 = vmatprep.subr.mxu0 0.0
    %8058 = vmatpush1.msra.mxu0 %v8041
    %8059 = vmatprep.subr.mxu0 0.0
    %8060 = vmatpush1.msra.mxu0 %v8042
    %8061 = vmatprep.subr.mxu0 0.0
    %8062 = vmatpush1.msra.mxu0 %v8043
    %8063 = vmatprep.subr.mxu0 0.0
    %8064 = vmatpush1.msra.mxu0 %v8044
    %8065 = vmatprep.subr.mxu0 0.0
    %8066 = vmatpush1.msra.mxu0 0.0
    %8067 = vmatprep.subr.mxu0 0.0
    %8068 = vmatpush1.msra.mxu0 0.0
    %8069 = vmatprep.subr.mxu0 0.0
    %8070 = vmatpush1.msra.mxu0 0.0
    %8071 = vmatprep.subr.mxu0 0.0
    %8072 = vmatpush1.msra.mxu0 0.0
    %8073 = vmatprep.subr.mxu0 0.0
    %8074 = vmatpush1.msra.mxu0 0.0
    %8075 = vmatprep.subr.mxu0 0.0
    %8076 = vmatpush1.msra.mxu0 0.0
    %8077 = vmatprep.subr.mxu0 0.0
    %8078 = vmatpush1.msra.mxu0 0.0
    %8079 = vmatprep.subr.mxu0 0.0
    %8080 = vmatpush1.msra.mxu0 0.0
    %8081 = vmatprep.subr.mxu0 0.0
    %8082 = vmatpush1.msra.mxu0 0.0
    %8083 = vmatprep.subr.mxu0 0.0
    %8084 = vmatpush1.msra.mxu0 0.0
    %8085 = vmatprep.subr.mxu0 0.0
    %8086 = vmatpush1.msra.mxu0 0.0
    %8087 = vmatprep.subr.mxu0 0.0
    %8088 = vmatpush1.msra.mxu0 0.0
    %8089 = vmatprep.subr.mxu0 0.0
    %8090 = vmatpush1.msra.mxu0 0.0
    %8091 = vmatprep.subr.mxu0 0.0
    %8092 = vmatpush1.msra.mxu0 0.0
    %8093 = vmatprep.subr.mxu0 0.0
    %8094 = vmatpush1.msra.mxu0 0.0
    %8095 = vmatprep.subr.mxu0 0.0
    %8096 = vmatpush1.msra.mxu0 0.0
    %8097 = vmatprep.subr.mxu0 0.0
    %8098 = vmatpush1.msra.mxu0 0.0
    %8099 = vmatprep.subr.mxu0 0.0
    %8100 = vmatpush1.msra.mxu0 0.0
    %8101 = vmatprep.subr.mxu0 0.0
    %8102 = vmatpush1.msra.mxu0 0.0
    %8103 = vmatprep.subr.mxu0 0.0
    %8104 = vmatpush1.msra.mxu0 0.0
    %8105 = vmatprep.subr.mxu0 0.0
    %8106 = vmatpush1.msra.mxu0 0.0
    %8107 = vmatprep.subr.mxu0 0.0
    %8108 = vmatpush1.msra.mxu0 0.0
    %8109 = vmatprep.subr.mxu0 0.0
    %8110 = vmatpush1.msra.mxu0 0.0
    %8111 = vmatprep.subr.mxu0 0.0
    %8112 = vmatpush1.msra.mxu0 0.0
    %8113 = vmatprep.subr.mxu0 0.0
    %8114 = vmatpush1.msra.mxu0 0.0
    %8115 = vmatprep.subr.mxu0 0.0
    %8116 = vmatpush1.msra.mxu0 0.0
    %8117 = vmatprep.subr.mxu0 0.0
    %8118 = vmatpush1.msra.mxu0 0.0
    %8119 = vmatprep.subr.mxu0 0.0
    %8120 = vmatpush1.msra.mxu0 0.0
    %8121 = vmatprep.mubr.f32.mxu0 0.0
    %8122 = vmatmul.mubr.f32.gmra.mrb[0].mxu0 %v8049
    %v8123 = vpop.f32.mrb[0].mxu0
    %v8124 = vadd.f32 0.0, %v8123
    %v8125 = vpop.f32.mrb[0].mxu0
    %8126 = vmatprep.mubr.f32.mxu0 0.0
    %8127 = vmatmul.mubr.f32.gmra.mrb[0].mxu0 %v8051
    %v8128 = vpop.f32.mrb[0].mxu0
    %v8129 = vadd.f32 0.0, %v8128
    %v8130 = vpop.f32.mrb[0].mxu0
    %8131 = vmatprep.mubr.f32.mxu0 0.0
    %8132 = vmatmul.mubr.f32.gmra.mrb[0].mxu0 %v8053
    %v8133 = vpop.f32.mrb[0].mxu0
    %v8134 = vadd.f32 0.0, %v8133
    %v8135 = vpop.f32.mrb[0].mxu0
    %8136 = vmatprep.mubr.f32.mxu0 0.0
    %8137 = vmatmul.mubr.f32.gmra.mrb[0].mxu0 %v8055
    %v8138 = vpop.f32.mrb[0].mxu0
    %v8139 = vadd.f32 0.0, %v8138
    %v8140 = vpop.f32.mrb[0].mxu0
    %8141 = vdwg.mxu0
    %v8142 = vadd.f32 %v7980, %v8124
    %v8143 = vadd.f32 %v7985, %v8129
    %v8144 = vadd.f32 %v7990, %v8134
    %v8145 = vadd.f32 %v7995, %v8139
    %v8150 = vcombine.high %v7722, %v7722
    %v8151 = vcombine.high %v7734, %v7734
    %v8152 = vrot.slane %v8150, 7
    %v8153 = vrot.slane %v8152, 4
    %v8154 = vrot.slane %v7723, 7
    %v8155 = vsel %vm7762, %v8153, %v8154
    %v8156 = vrot.slane %v8151, 7
    %v8157 = vrot.slane %v8156, 4
    %v8158 = vrot.slane %v7735, 7
    %v8159 = vsel %vm7762, %v8157, %v8158
    %s8160 = scalar_lea.vmem %s7, 96
    %v8161 = vld [vmem:[%s8160] sm:$0xff]
    %v8162 = vld [vmem:[%s8160 + $0x8] sm:$0xff]
    %v8163 = vld [vmem:[%s8160 + $0x10] sm:$0xff]
    %v8164 = vld [vmem:[%s8160 + $0x18] sm:$0xff]
    %v8165 = vcombine.low %v7770, %v7774
    %v8166 = vcombine.low %v7778, %v8155
    %v8167 = vcombine.low %v7786, %v7790
    %v8168 = vcombine.low %v7794, %v8159
    %v8169 = vsel %vm7507, %v8165, 0
    %v8171 = vsel %vm7507, %v8166, 0
    %v8173 = vsel %vm7507, %v8167, 0
    %v8175 = vsel %vm7507, %v8168, 0
    %8177 = vmatprep.subr.mxu0 0.0
    %8178 = vmatpush1.msra.mxu0 %v8161
    %8179 = vmatprep.subr.mxu0 0.0
    %8180 = vmatpush1.msra.mxu0 %v8162
    %8181 = vmatprep.subr.mxu0 0.0
    %8182 = vmatpush1.msra.mxu0 %v8163
    %8183 = vmatprep.subr.mxu0 0.0
    %8184 = vmatpush1.msra.mxu0 %v8164
    %8185 = vmatprep.subr.mxu0 0.0
    %8186 = vmatpush1.msra.mxu0 0.0
    %8187 = vmatprep.subr.mxu0 0.0
    %8188 = vmatpush1.msra.mxu0 0.0
    %8189 = vmatprep.subr.mxu0 0.0
    %8190 = vmatpush1.msra.mxu0 0.0
    %8191 = vmatprep.subr.mxu0 0.0
    %8192 = vmatpush1.msra.mxu0 0.0
    %8193 = vmatprep.subr.mxu0 0.0
    %8194 = vmatpush1.msra.mxu0 0.0
    %8195 = vmatprep.subr.mxu0 0.0
    %8196 = vmatpush1.msra.mxu0 0.0
    %8197 = vmatprep.subr.mxu0 0.0
    %8198 = vmatpush1.msra.mxu0 0.0
    %8199 = vmatprep.subr.mxu0 0.0
    %8200 = vmatpush1.msra.mxu0 0.0
    %8201 = vmatprep.subr.mxu0 0.0
    %8202 = vmatpush1.msra.mxu0 0.0
    %8203 = vmatprep.subr.mxu0 0.0
    %8204 = vmatpush1.msra.mxu0 0.0
    %8205 = vmatprep.subr.mxu0 0.0
    %8206 = vmatpush1.msra.mxu0 0.0
    %8207 = vmatprep.subr.mxu0 0.0
    %8208 = vmatpush1.msra.mxu0 0.0
    %8209 = vmatprep.subr.mxu0 0.0
    %8210 = vmatpush1.msra.mxu0 0.0
    %8211 = vmatprep.subr.mxu0 0.0
    %8212 = vmatpush1.msra.mxu0 0.0
    %8213 = vmatprep.subr.mxu0 0.0
    %8214 = vmatpush1.msra.mxu0 0.0
    %8215 = vmatprep.subr.mxu0 0.0
    %8216 = vmatpush1.msra.mxu0 0.0
    %8217 = vmatprep.subr.mxu0 0.0
    %8218 = vmatpush1.msra.mxu0 0.0
    %8219 = vmatprep.subr.mxu0 0.0
    %8220 = vmatpush1.msra.mxu0 0.0
    %8221 = vmatprep.subr.mxu0 0.0
    %8222 = vmatpush1.msra.mxu0 0.0
    %8223 = vmatprep.subr.mxu0 0.0
    %8224 = vmatpush1.msra.mxu0 0.0
    %8225 = vmatprep.subr.mxu0 0.0
    %8226 = vmatpush1.msra.mxu0 0.0
    %8227 = vmatprep.subr.mxu0 0.0
    %8228 = vmatpush1.msra.mxu0 0.0
    %8229 = vmatprep.subr.mxu0 0.0
    %8230 = vmatpush1.msra.mxu0 0.0
    %8231 = vmatprep.subr.mxu0 0.0
    %8232 = vmatpush1.msra.mxu0 0.0
    %8233 = vmatprep.subr.mxu0 0.0
    %8234 = vmatpush1.msra.mxu0 0.0
    %8235 = vmatprep.subr.mxu0 0.0
    %8236 = vmatpush1.msra.mxu0 0.0
    %8237 = vmatprep.subr.mxu0 0.0
    %8238 = vmatpush1.msra.mxu0 0.0
    %8239 = vmatprep.subr.mxu0 0.0
    %8240 = vmatpush1.msra.mxu0 0.0
    %8241 = vmatprep.mubr.f32.mxu0 0.0
    %8242 = vmatmul.mubr.f32.gmra.mrb[0].mxu0 %v8169
    %v8243 = vpop.f32.mrb[0].mxu0
    %v8244 = vadd.f32 0.0, %v8243
    %v8245 = vpop.f32.mrb[0].mxu0
    %8246 = vmatprep.mubr.f32.mxu0 0.0
    %8247 = vmatmul.mubr.f32.gmra.mrb[0].mxu0 %v8171
    %v8248 = vpop.f32.mrb[0].mxu0
    %v8249 = vadd.f32 0.0, %v8248
    %v8250 = vpop.f32.mrb[0].mxu0
    %8251 = vmatprep.mubr.f32.mxu0 0.0
    %8252 = vmatmul.mubr.f32.gmra.mrb[0].mxu0 %v8173
    %v8253 = vpop.f32.mrb[0].mxu0
    %v8254 = vadd.f32 0.0, %v8253
    %v8255 = vpop.f32.mrb[0].mxu0
    %8256 = vmatprep.mubr.f32.mxu0 0.0
    %8257 = vmatmul.mubr.f32.gmra.mrb[0].mxu0 %v8175
    %v8258 = vpop.f32.mrb[0].mxu0
    %v8259 = vadd.f32 0.0, %v8258
    %v8260 = vpop.f32.mrb[0].mxu0
    %8261 = vdwg.mxu0
    %v8262 = vadd.f32 %v8142, %v8244
    %v8263 = vadd.f32 %v8143, %v8249
    %v8264 = vadd.f32 %v8144, %v8254
    %v8265 = vadd.f32 %v8145, %v8259
    %s8266 = scalar_lea.vmem %s7, 128
    %v8267 = vld [vmem:[%s8266] sm:$0xff]
    %v8268 = vld [vmem:[%s8266 + $0x8] sm:$0xff]
    %v8269 = vld [vmem:[%s8266 + $0x10] sm:$0xff]
    %v8270 = vld [vmem:[%s8266 + $0x18] sm:$0xff]
    %v8271 = vcombine.low %v7717, %v7719
    %v8272 = vcombine.low %v7721, %v7723
    %v8273 = vcombine.low %v7729, %v7731
    %v8274 = vcombine.low %v7733, %v7735
    %v8275 = vsel %vm7507, %v8271, 0
    %v8277 = vsel %vm7507, %v8272, 0
    %v8279 = vsel %vm7507, %v8273, 0
    %v8281 = vsel %vm7507, %v8274, 0
    %8283 = vmatprep.subr.mxu0 0.0
    %8284 = vmatpush1.msra.mxu0 %v8267
    %8285 = vmatprep.subr.mxu0 0.0
    %8286 = vmatpush1.msra.mxu0 %v8268
    %8287 = vmatprep.subr.mxu0 0.0
    %8288 = vmatpush1.msra.mxu0 %v8269
    %8289 = vmatprep.subr.mxu0 0.0
    %8290 = vmatpush1.msra.mxu0 %v8270
    %8291 = vmatprep.subr.mxu0 0.0
    %8292 = vmatpush1.msra.mxu0 0.0
    %8293 = vmatprep.subr.mxu0 0.0
    %8294 = vmatpush1.msra.mxu0 0.0
    %8295 = vmatprep.subr.mxu0 0.0
    %8296 = vmatpush1.msra.mxu0 0.0
    %8297 = vmatprep.subr.mxu0 0.0
    %8298 = vmatpush1.msra.mxu0 0.0
    %8299 = vmatprep.subr.mxu0 0.0
    %8300 = vmatpush1.msra.mxu0 0.0
    %8301 = vmatprep.subr.mxu0 0.0
    %8302 = vmatpush1.msra.mxu0 0.0
    %8303 = vmatprep.subr.mxu0 0.0
    %8304 = vmatpush1.msra.mxu0 0.0
    %8305 = vmatprep.subr.mxu0 0.0
    %8306 = vmatpush1.msra.mxu0 0.0
    %8307 = vmatprep.subr.mxu0 0.0
    %8308 = vmatpush1.msra.mxu0 0.0
    %8309 = vmatprep.subr.mxu0 0.0
    %8310 = vmatpush1.msra.mxu0 0.0
    %8311 = vmatprep.subr.mxu0 0.0
    %8312 = vmatpush1.msra.mxu0 0.0
    %8313 = vmatprep.subr.mxu0 0.0
    %8314 = vmatpush1.msra.mxu0 0.0
    %8315 = vmatprep.subr.mxu0 0.0
    %8316 = vmatpush1.msra.mxu0 0.0
    %8317 = vmatprep.subr.mxu0 0.0
    %8318 = vmatpush1.msra.mxu0 0.0
    %8319 = vmatprep.subr.mxu0 0.0
    %8320 = vmatpush1.msra.mxu0 0.0
    %8321 = vmatprep.subr.mxu0 0.0
    %8322 = vmatpush1.msra.mxu0 0.0
    %8323 = vmatprep.subr.mxu0 0.0
    %8324 = vmatpush1.msra.mxu0 0.0
    %8325 = vmatprep.subr.mxu0 0.0
    %8326 = vmatpush1.msra.mxu0 0.0
    %8327 = vmatprep.subr.mxu0 0.0
    %8328 = vmatpush1.msra.mxu0 0.0
    %8329 = vmatprep.subr.mxu0 0.0
    %8330 = vmatpush1.msra.mxu0 0.0
    %8331 = vmatprep.subr.mxu0 0.0
    %8332 = vmatpush1.msra.mxu0 0.0
    %8333 = vmatprep.subr.mxu0 0.0
    %8334 = vmatpush1.msra.mxu0 0.0
    %8335 = vmatprep.subr.mxu0 0.0
    %8336 = vmatpush1.msra.mxu0 0.0
    %8337 = vmatprep.subr.mxu0 0.0
    %8338 = vmatpush1.msra.mxu0 0.0
    %8339 = vmatprep.subr.mxu0 0.0
    %8340 = vmatpush1.msra.mxu0 0.0
    %8341 = vmatprep.subr.mxu0 0.0
    %8342 = vmatpush1.msra.mxu0 0.0
    %8343 = vmatprep.subr.mxu0 0.0
    %8344 = vmatpush1.msra.mxu0 0.0
    %8345 = vmatprep.subr.mxu0 0.0
    %8346 = vmatpush1.msra.mxu0 0.0
    %8347 = vmatprep.mubr.f32.mxu0 0.0
    %8348 = vmatmul.mubr.f32.gmra.mrb[0].mxu0 %v8275
    %v8349 = vpop.f32.mrb[0].mxu0
    %v8350 = vadd.f32 0.0, %v8349
    %v8351 = vpop.f32.mrb[0].mxu0
    %8352 = vmatprep.mubr.f32.mxu0 0.0
    %8353 = vmatmul.mubr.f32.gmra.mrb[0].mxu0 %v8277
    %v8354 = vpop.f32.mrb[0].mxu0
    %v8355 = vadd.f32 0.0, %v8354
    %v8356 = vpop.f32.mrb[0].mxu0
    %8357 = vmatprep.mubr.f32.mxu0 0.0
    %8358 = vmatmul.mubr.f32.gmra.mrb[0].mxu0 %v8279
    %v8359 = vpop.f32.mrb[0].mxu0
    %v8360 = vadd.f32 0.0, %v8359
    %v8361 = vpop.f32.mrb[0].mxu0
    %8362 = vmatprep.mubr.f32.mxu0 0.0
    %8363 = vmatmul.mubr.f32.gmra.mrb[0].mxu0 %v8281
    %v8364 = vpop.f32.mrb[0].mxu0
    %v8365 = vadd.f32 0.0, %v8364
    %v8366 = vpop.f32.mrb[0].mxu0
    %8367 = vdwg.mxu0
    %v8368 = vadd.f32 %v8262, %v8350
    %v8369 = vadd.f32 %v8263, %v8355
    %v8370 = vadd.f32 %v8264, %v8360
    %v8371 = vadd.f32 %v8265, %v8365
    %v8372 = vcombine.high %v7723, %v7723
    %v8373 = vcombine.high %v7735, %v7735
    %v8374 = vrot.slane %v7723, 5
    %v8375 = vrot.slane %v8374, 4
    %v8376 = vrot.slane %v8372, 5
    %v8377 = vsel %vm8007, %v8375, %v8376
    %v8378 = vrot.slane %v7735, 5
    %v8379 = vrot.slane %v8378, 4
    %v8380 = vrot.slane %v8373, 5
    %v8381 = vsel %vm8007, %v8379, %v8380
    %s8382 = scalar_lea.vmem %s7, 160
    %v8383 = vld [vmem:[%s8382] sm:$0xff]
    %v8384 = vld [vmem:[%s8382 + $0x8] sm:$0xff]
    %v8385 = vld [vmem:[%s8382 + $0x10] sm:$0xff]
    %v8386 = vld [vmem:[%s8382 + $0x18] sm:$0xff]
    %v8387 = vcombine.low %v8015, %v8019
    %v8388 = vcombine.low %v8023, %v8377
    %v8389 = vcombine.low %v8031, %v8035
    %v8390 = vcombine.low %v8039, %v8381
    %v8391 = vsel %vm7507, %v8387, 0
    %v8393 = vsel %vm7507, %v8388, 0
    %v8395 = vsel %vm7507, %v8389, 0
    %v8397 = vsel %vm7507, %v8390, 0
    %8399 = vmatprep.subr.mxu0 0.0
    %8400 = vmatpush1.msra.mxu0 %v8383
    %8401 = vmatprep.subr.mxu0 0.0
    %8402 = vmatpush1.msra.mxu0 %v8384
    %8403 = vmatprep.subr.mxu0 0.0
    %8404 = vmatpush1.msra.mxu0 %v8385
    %8405 = vmatprep.subr.mxu0 0.0
    %8406 = vmatpush1.msra.mxu0 %v8386
    %8407 = vmatprep.subr.mxu0 0.0
    %8408 = vmatpush1.msra.mxu0 0.0
    %8409 = vmatprep.subr.mxu0 0.0
    %8410 = vmatpush1.msra.mxu0 0.0
    %8411 = vmatprep.subr.mxu0 0.0
    %8412 = vmatpush1.msra.mxu0 0.0
    %8413 = vmatprep.subr.mxu0 0.0
    %8414 = vmatpush1.msra.mxu0 0.0
    %8415 = vmatprep.subr.mxu0 0.0
    %8416 = vmatpush1.msra.mxu0 0.0
    %8417 = vmatprep.subr.mxu0 0.0
    %8418 = vmatpush1.msra.mxu0 0.0
    %8419 = vmatprep.subr.mxu0 0.0
    %8420 = vmatpush1.msra.mxu0 0.0
    %8421 = vmatprep.subr.mxu0 0.0
    %8422 = vmatpush1.msra.mxu0 0.0
    %8423 = vmatprep.subr.mxu0 0.0
    %8424 = vmatpush1.msra.mxu0 0.0
    %8425 = vmatprep.subr.mxu0 0.0
    %8426 = vmatpush1.msra.mxu0 0.0
    %8427 = vmatprep.subr.mxu0 0.0
    %8428 = vmatpush1.msra.mxu0 0.0
    %8429 = vmatprep.subr.mxu0 0.0
    %8430 = vmatpush1.msra.mxu0 0.0
    %8431 = vmatprep.subr.mxu0 0.0
    %8432 = vmatpush1.msra.mxu0 0.0
    %8433 = vmatprep.subr.mxu0 0.0
    %8434 = vmatpush1.msra.mxu0 0.0
    %8435 = vmatprep.subr.mxu0 0.0
    %8436 = vmatpush1.msra.mxu0 0.0
    %8437 = vmatprep.subr.mxu0 0.0
    %8438 = vmatpush1.msra.mxu0 0.0
    %8439 = vmatprep.subr.mxu0 0.0
    %8440 = vmatpush1.msra.mxu0 0.0
    %8441 = vmatprep.subr.mxu0 0.0
    %8442 = vmatpush1.msra.mxu0 0.0
    %8443 = vmatprep.subr.mxu0 0.0
    %8444 = vmatpush1.msra.mxu0 0.0
    %8445 = vmatprep.subr.mxu0 0.0
    %8446 = vmatpush1.msra.mxu0 0.0
    %8447 = vmatprep.subr.mxu0 0.0
    %8448 = vmatpush1.msra.mxu0 0.0
    %8449 = vmatprep.subr.mxu0 0.0
    %8450 = vmatpush1.msra.mxu0 0.0
    %8451 = vmatprep.subr.mxu0 0.0
    %8452 = vmatpush1.msra.mxu0 0.0
    %8453 = vmatprep.subr.mxu0 0.0
    %8454 = vmatpush1.msra.mxu0 0.0
    %8455 = vmatprep.subr.mxu0 0.0
    %8456 = vmatpush1.msra.mxu0 0.0
    %8457 = vmatprep.subr.mxu0 0.0
    %8458 = vmatpush1.msra.mxu0 0.0
    %8459 = vmatprep.subr.mxu0 0.0
    %8460 = vmatpush1.msra.mxu0 0.0
    %8461 = vmatprep.subr.mxu0 0.0
    %8462 = vmatpush1.msra.mxu0 0.0
    %8463 = vmatprep.mubr.f32.mxu0 0.0
    %8464 = vmatmul.mubr.f32.gmra.mrb[0].mxu0 %v8391
    %v8465 = vpop.f32.mrb[0].mxu0
    %v8466 = vadd.f32 0.0, %v8465
    %v8467 = vpop.f32.mrb[0].mxu0
    %8468 = vmatprep.mubr.f32.mxu0 0.0
    %8469 = vmatmul.mubr.f32.gmra.mrb[0].mxu0 %v8393
    %v8470 = vpop.f32.mrb[0].mxu0
    %v8471 = vadd.f32 0.0, %v8470
    %v8472 = vpop.f32.mrb[0].mxu0
    %8473 = vmatprep.mubr.f32.mxu0 0.0
    %8474 = vmatmul.mubr.f32.gmra.mrb[0].mxu0 %v8395
    %v8475 = vpop.f32.mrb[0].mxu0
    %v8476 = vadd.f32 0.0, %v8475
    %v8477 = vpop.f32.mrb[0].mxu0
    %8478 = vmatprep.mubr.f32.mxu0 0.0
    %8479 = vmatmul.mubr.f32.gmra.mrb[0].mxu0 %v8397
    %v8480 = vpop.f32.mrb[0].mxu0
    %v8481 = vadd.f32 0.0, %v8480
    %v8482 = vpop.f32.mrb[0].mxu0
    %8483 = vdwg.mxu0
    %v8484 = vadd.f32 %v8368, %v8466
    %v8485 = vadd.f32 %v8369, %v8471
    %v8486 = vadd.f32 %v8370, %v8476
    %v8487 = vadd.f32 %v8371, %v8481
    %v8492 = vcombine.high %v7724, %v7724
    %v8493 = vcombine.high %v7736, %v7736
    %v8494 = vrot.slane %v8492, 7
    %v8495 = vrot.slane %v8494, 4
    %v8496 = vrot.slane %v7725, 7
    %v8497 = vsel %vm7762, %v8495, %v8496
    %v8498 = vrot.slane %v8493, 7
    %v8499 = vrot.slane %v8498, 4
    %v8500 = vrot.slane %v7737, 7
    %v8501 = vsel %vm7762, %v8499, %v8500
    %s8502 = scalar_lea.vmem %s7, 192
    %v8503 = vld [vmem:[%s8502] sm:$0xff]
    %v8504 = vld [vmem:[%s8502 + $0x8] sm:$0xff]
    %v8505 = vld [vmem:[%s8502 + $0x10] sm:$0xff]
    %v8506 = vld [vmem:[%s8502 + $0x18] sm:$0xff]
    %v8507 = vcombine.low %v8155, %v8497
    %v8508 = vcombine.low %v8159, %v8501
    %v8509 = vsel %vm7507, %v8507, 0
    %v8511 = vsel %vm7507, %v8508, 0
    %8513 = vmatprep.subr.mxu0 0.0
    %8514 = vmatpush1.msra.mxu0 %v8503
    %8515 = vmatprep.subr.mxu0 0.0
    %8516 = vmatpush1.msra.mxu0 %v8504
    %8517 = vmatprep.subr.mxu0 0.0
    %8518 = vmatpush1.msra.mxu0 %v8505
    %8519 = vmatprep.subr.mxu0 0.0
    %8520 = vmatpush1.msra.mxu0 %v8506
    %8521 = vmatprep.subr.mxu0 0.0
    %8522 = vmatpush1.msra.mxu0 0.0
    %8523 = vmatprep.subr.mxu0 0.0
    %8524 = vmatpush1.msra.mxu0 0.0
    %8525 = vmatprep.subr.mxu0 0.0
    %8526 = vmatpush1.msra.mxu0 0.0
    %8527 = vmatprep.subr.mxu0 0.0
    %8528 = vmatpush1.msra.mxu0 0.0
    %8529 = vmatprep.subr.mxu0 0.0
    %8530 = vmatpush1.msra.mxu0 0.0
    %8531 = vmatprep.subr.mxu0 0.0
    %8532 = vmatpush1.msra.mxu0 0.0
    %8533 = vmatprep.subr.mxu0 0.0
    %8534 = vmatpush1.msra.mxu0 0.0
    %8535 = vmatprep.subr.mxu0 0.0
    %8536 = vmatpush1.msra.mxu0 0.0
    %8537 = vmatprep.subr.mxu0 0.0
    %8538 = vmatpush1.msra.mxu0 0.0
    %8539 = vmatprep.subr.mxu0 0.0
    %8540 = vmatpush1.msra.mxu0 0.0
    %8541 = vmatprep.subr.mxu0 0.0
    %8542 = vmatpush1.msra.mxu0 0.0
    %8543 = vmatprep.subr.mxu0 0.0
    %8544 = vmatpush1.msra.mxu0 0.0
    %8545 = vmatprep.subr.mxu0 0.0
    %8546 = vmatpush1.msra.mxu0 0.0
    %8547 = vmatprep.subr.mxu0 0.0
    %8548 = vmatpush1.msra.mxu0 0.0
    %8549 = vmatprep.subr.mxu0 0.0
    %8550 = vmatpush1.msra.mxu0 0.0
    %8551 = vmatprep.subr.mxu0 0.0
    %8552 = vmatpush1.msra.mxu0 0.0
    %8553 = vmatprep.subr.mxu0 0.0
    %8554 = vmatpush1.msra.mxu0 0.0
    %8555 = vmatprep.subr.mxu0 0.0
    %8556 = vmatpush1.msra.mxu0 0.0
    %8557 = vmatprep.subr.mxu0 0.0
    %8558 = vmatpush1.msra.mxu0 0.0
    %8559 = vmatprep.subr.mxu0 0.0
    %8560 = vmatpush1.msra.mxu0 0.0
    %8561 = vmatprep.subr.mxu0 0.0
    %8562 = vmatpush1.msra.mxu0 0.0
    %8563 = vmatprep.subr.mxu0 0.0
    %8564 = vmatpush1.msra.mxu0 0.0
    %8565 = vmatprep.subr.mxu0 0.0
    %8566 = vmatpush1.msra.mxu0 0.0
    %8567 = vmatprep.subr.mxu0 0.0
    %8568 = vmatpush1.msra.mxu0 0.0
    %8569 = vmatprep.subr.mxu0 0.0
    %8570 = vmatpush1.msra.mxu0 0.0
    %8571 = vmatprep.subr.mxu0 0.0
    %8572 = vmatpush1.msra.mxu0 0.0
    %8573 = vmatprep.subr.mxu0 0.0
    %8574 = vmatpush1.msra.mxu0 0.0
    %8575 = vmatprep.subr.mxu0 0.0
    %8576 = vmatpush1.msra.mxu0 0.0
    %8577 = vmatprep.mubr.f32.mxu0 0.0
    %8578 = vmatmul.mubr.f32.gmra.mrb[0].mxu0 %v7907
    %v8579 = vpop.f32.mrb[0].mxu0
    %v8580 = vadd.f32 0.0, %v8579
    %v8581 = vpop.f32.mrb[0].mxu0
    %8582 = vmatprep.mubr.f32.mxu0 0.0
    %8583 = vmatmul.mubr.f32.gmra.mrb[0].mxu0 %v8509
    %v8584 = vpop.f32.mrb[0].mxu0
    %v8585 = vadd.f32 0.0, %v8584
    %v8586 = vpop.f32.mrb[0].mxu0
    %8587 = vmatprep.mubr.f32.mxu0 0.0
    %8588 = vmatmul.mubr.f32.gmra.mrb[0].mxu0 %v7911
    %v8589 = vpop.f32.mrb[0].mxu0
    %v8590 = vadd.f32 0.0, %v8589
    %v8591 = vpop.f32.mrb[0].mxu0
    %8592 = vmatprep.mubr.f32.mxu0 0.0
    %8593 = vmatmul.mubr.f32.gmra.mrb[0].mxu0 %v8511
    %v8594 = vpop.f32.mrb[0].mxu0
    %v8595 = vadd.f32 0.0, %v8594
    %v8596 = vpop.f32.mrb[0].mxu0
    %8597 = vdwg.mxu0
    %v8598 = vadd.f32 %v8484, %v8580
    %v8599 = vadd.f32 %v8485, %v8585
    %v8600 = vadd.f32 %v8486, %v8590
    %v8601 = vadd.f32 %v8487, %v8595
    %s8602 = scalar_lea.vmem %s7, 224
    %v8603 = vld [vmem:[%s8602] sm:$0xff]
    %v8604 = vld [vmem:[%s8602 + $0x8] sm:$0xff]
    %v8605 = vld [vmem:[%s8602 + $0x10] sm:$0xff]
    %v8606 = vld [vmem:[%s8602 + $0x18] sm:$0xff]
    %v8607 = vcombine.low %v7723, %v7725
    %v8608 = vcombine.low %v7735, %v7737
    %v8609 = vsel %vm7507, %v8607, 0
    %v8611 = vsel %vm7507, %v8608, 0
    %8613 = vmatprep.subr.mxu0 0.0
    %8614 = vmatpush1.msra.mxu0 %v8603
    %8615 = vmatprep.subr.mxu0 0.0
    %8616 = vmatpush1.msra.mxu0 %v8604
    %8617 = vmatprep.subr.mxu0 0.0
    %8618 = vmatpush1.msra.mxu0 %v8605
    %8619 = vmatprep.subr.mxu0 0.0
    %8620 = vmatpush1.msra.mxu0 %v8606
    %8621 = vmatprep.subr.mxu0 0.0
    %8622 = vmatpush1.msra.mxu0 0.0
    %8623 = vmatprep.subr.mxu0 0.0
    %8624 = vmatpush1.msra.mxu0 0.0
    %8625 = vmatprep.subr.mxu0 0.0
    %8626 = vmatpush1.msra.mxu0 0.0
    %8627 = vmatprep.subr.mxu0 0.0
    %8628 = vmatpush1.msra.mxu0 0.0
    %8629 = vmatprep.subr.mxu0 0.0
    %8630 = vmatpush1.msra.mxu0 0.0
    %8631 = vmatprep.subr.mxu0 0.0
    %8632 = vmatpush1.msra.mxu0 0.0
    %8633 = vmatprep.subr.mxu0 0.0
    %8634 = vmatpush1.msra.mxu0 0.0
    %8635 = vmatprep.subr.mxu0 0.0
    %8636 = vmatpush1.msra.mxu0 0.0
    %8637 = vmatprep.subr.mxu0 0.0
    %8638 = vmatpush1.msra.mxu0 0.0
    %8639 = vmatprep.subr.mxu0 0.0
    %8640 = vmatpush1.msra.mxu0 0.0
    %8641 = vmatprep.subr.mxu0 0.0
    %8642 = vmatpush1.msra.mxu0 0.0
    %8643 = vmatprep.subr.mxu0 0.0
    %8644 = vmatpush1.msra.mxu0 0.0
    %8645 = vmatprep.subr.mxu0 0.0
    %8646 = vmatpush1.msra.mxu0 0.0
    %8647 = vmatprep.subr.mxu0 0.0
    %8648 = vmatpush1.msra.mxu0 0.0
    %8649 = vmatprep.subr.mxu0 0.0
    %8650 = vmatpush1.msra.mxu0 0.0
    %8651 = vmatprep.subr.mxu0 0.0
    %8652 = vmatpush1.msra.mxu0 0.0
    %8653 = vmatprep.subr.mxu0 0.0
    %8654 = vmatpush1.msra.mxu0 0.0
    %8655 = vmatprep.subr.mxu0 0.0
    %8656 = vmatpush1.msra.mxu0 0.0
    %8657 = vmatprep.subr.mxu0 0.0
    %8658 = vmatpush1.msra.mxu0 0.0
    %8659 = vmatprep.subr.mxu0 0.0
    %8660 = vmatpush1.msra.mxu0 0.0
    %8661 = vmatprep.subr.mxu0 0.0
    %8662 = vmatpush1.msra.mxu0 0.0
    %8663 = vmatprep.subr.mxu0 0.0
    %8664 = vmatpush1.msra.mxu0 0.0
    %8665 = vmatprep.subr.mxu0 0.0
    %8666 = vmatpush1.msra.mxu0 0.0
    %8667 = vmatprep.subr.mxu0 0.0
    %8668 = vmatpush1.msra.mxu0 0.0
    %8669 = vmatprep.subr.mxu0 0.0
    %8670 = vmatpush1.msra.mxu0 0.0
    %8671 = vmatprep.subr.mxu0 0.0
    %8672 = vmatpush1.msra.mxu0 0.0
    %8673 = vmatprep.subr.mxu0 0.0
    %8674 = vmatpush1.msra.mxu0 0.0
    %8675 = vmatprep.subr.mxu0 0.0
    %8676 = vmatpush1.msra.mxu0 0.0
    %8677 = vmatprep.mubr.f32.mxu0 0.0
    %8678 = vmatmul.mubr.f32.gmra.mrb[0].mxu0 %v7810
    %v8679 = vpop.f32.mrb[0].mxu0
    %v8680 = vadd.f32 0.0, %v8679
    %v8681 = vpop.f32.mrb[0].mxu0
    %8682 = vmatprep.mubr.f32.mxu0 0.0
    %8683 = vmatmul.mubr.f32.gmra.mrb[0].mxu0 %v8609
    %v8684 = vpop.f32.mrb[0].mxu0
    %v8685 = vadd.f32 0.0, %v8684
    %v8686 = vpop.f32.mrb[0].mxu0
    %8687 = vmatprep.mubr.f32.mxu0 0.0
    %8688 = vmatmul.mubr.f32.gmra.mrb[0].mxu0 %v7814
    %v8689 = vpop.f32.mrb[0].mxu0
    %v8690 = vadd.f32 0.0, %v8689
    %v8691 = vpop.f32.mrb[0].mxu0
    %8692 = vmatprep.mubr.f32.mxu0 0.0
    %8693 = vmatmul.mubr.f32.gmra.mrb[0].mxu0 %v8611
    %v8694 = vpop.f32.mrb[0].mxu0
    %v8695 = vadd.f32 0.0, %v8694
    %v8696 = vpop.f32.mrb[0].mxu0
    %8697 = vdwg.mxu0
    %v8698 = vadd.f32 %v8598, %v8680
    %v8699 = vadd.f32 %v8599, %v8685
    %v8700 = vadd.f32 %v8600, %v8690
    %v8701 = vadd.f32 %v8601, %v8695
    %v8702 = vcombine.high %v7725, %v7725
    %v8703 = vcombine.high %v7737, %v7737
    %v8704 = vrot.slane %v7725, 5
    %v8705 = vrot.slane %v8704, 4
    %v8706 = vrot.slane %v8702, 5
    %v8707 = vsel %vm8007, %v8705, %v8706
    %v8708 = vrot.slane %v7737, 5
    %v8709 = vrot.slane %v8708, 4
    %v8710 = vrot.slane %v8703, 5
    %v8711 = vsel %vm8007, %v8709, %v8710
    %s8712 = scalar_lea.vmem %s7, 256
    %v8713 = vld [vmem:[%s8712] sm:$0xff]
    %v8714 = vld [vmem:[%s8712 + $0x8] sm:$0xff]
    %v8715 = vld [vmem:[%s8712 + $0x10] sm:$0xff]
    %v8716 = vld [vmem:[%s8712 + $0x18] sm:$0xff]
    %v8717 = vcombine.low %v8377, %v8707
    %v8718 = vcombine.low %v8381, %v8711
    %v8719 = vsel %vm7507, %v8717, 0
    %v8721 = vsel %vm7507, %v8718, 0
    %8723 = vmatprep.subr.mxu0 0.0
    %8724 = vmatpush1.msra.mxu0 %v8713
    %8725 = vmatprep.subr.mxu0 0.0
    %8726 = vmatpush1.msra.mxu0 %v8714
    %8727 = vmatprep.subr.mxu0 0.0
    %8728 = vmatpush1.msra.mxu0 %v8715
    %8729 = vmatprep.subr.mxu0 0.0
    %8730 = vmatpush1.msra.mxu0 %v8716
    %8731 = vmatprep.subr.mxu0 0.0
    %8732 = vmatpush1.msra.mxu0 0.0
    %8733 = vmatprep.subr.mxu0 0.0
    %8734 = vmatpush1.msra.mxu0 0.0
    %8735 = vmatprep.subr.mxu0 0.0
    %8736 = vmatpush1.msra.mxu0 0.0
    %8737 = vmatprep.subr.mxu0 0.0
    %8738 = vmatpush1.msra.mxu0 0.0
    %8739 = vmatprep.subr.mxu0 0.0
    %8740 = vmatpush1.msra.mxu0 0.0
    %8741 = vmatprep.subr.mxu0 0.0
    %8742 = vmatpush1.msra.mxu0 0.0
    %8743 = vmatprep.subr.mxu0 0.0
    %8744 = vmatpush1.msra.mxu0 0.0
    %8745 = vmatprep.subr.mxu0 0.0
    %8746 = vmatpush1.msra.mxu0 0.0
    %8747 = vmatprep.subr.mxu0 0.0
    %8748 = vmatpush1.msra.mxu0 0.0
    %8749 = vmatprep.subr.mxu0 0.0
    %8750 = vmatpush1.msra.mxu0 0.0
    %8751 = vmatprep.subr.mxu0 0.0
    %8752 = vmatpush1.msra.mxu0 0.0
    %8753 = vmatprep.subr.mxu0 0.0
    %8754 = vmatpush1.msra.mxu0 0.0
    %8755 = vmatprep.subr.mxu0 0.0
    %8756 = vmatpush1.msra.mxu0 0.0
    %8757 = vmatprep.subr.mxu0 0.0
    %8758 = vmatpush1.msra.mxu0 0.0
    %8759 = vmatprep.subr.mxu0 0.0
    %8760 = vmatpush1.msra.mxu0 0.0
    %8761 = vmatprep.subr.mxu0 0.0
    %8762 = vmatpush1.msra.mxu0 0.0
    %8763 = vmatprep.subr.mxu0 0.0
    %8764 = vmatpush1.msra.mxu0 0.0
    %8765 = vmatprep.subr.mxu0 0.0
    %8766 = vmatpush1.msra.mxu0 0.0
    %8767 = vmatprep.subr.mxu0 0.0
    %8768 = vmatpush1.msra.mxu0 0.0
    %8769 = vmatprep.subr.mxu0 0.0
    %8770 = vmatpush1.msra.mxu0 0.0
    %8771 = vmatprep.subr.mxu0 0.0
    %8772 = vmatpush1.msra.mxu0 0.0
    %8773 = vmatprep.subr.mxu0 0.0
    %8774 = vmatpush1.msra.mxu0 0.0
    %8775 = vmatprep.subr.mxu0 0.0
    %8776 = vmatpush1.msra.mxu0 0.0
    %8777 = vmatprep.subr.mxu0 0.0
    %8778 = vmatpush1.msra.mxu0 0.0
    %8779 = vmatprep.subr.mxu0 0.0
    %8780 = vmatpush1.msra.mxu0 0.0
    %8781 = vmatprep.subr.mxu0 0.0
    %8782 = vmatpush1.msra.mxu0 0.0
    %8783 = vmatprep.subr.mxu0 0.0
    %8784 = vmatpush1.msra.mxu0 0.0
    %8785 = vmatprep.subr.mxu0 0.0
    %8786 = vmatpush1.msra.mxu0 0.0
    %8787 = vmatprep.mubr.f32.mxu0 0.0
    %8788 = vmatmul.mubr.f32.gmra.mrb[0].mxu0 %v8051
    %v8789 = vpop.f32.mrb[0].mxu0
    %v8790 = vadd.f32 0.0, %v8789
    %v8791 = vpop.f32.mrb[0].mxu0
    %8792 = vmatprep.mubr.f32.mxu0 0.0
    %8793 = vmatmul.mubr.f32.gmra.mrb[0].mxu0 %v8719
    %v8794 = vpop.f32.mrb[0].mxu0
    %v8795 = vadd.f32 0.0, %v8794
    %v8796 = vpop.f32.mrb[0].mxu0
    %8797 = vmatprep.mubr.f32.mxu0 0.0
    %8798 = vmatmul.mubr.f32.gmra.mrb[0].mxu0 %v8055
    %v8799 = vpop.f32.mrb[0].mxu0
    %v8800 = vadd.f32 0.0, %v8799
    %v8801 = vpop.f32.mrb[0].mxu0
    %8802 = vmatprep.mubr.f32.mxu0 0.0
    %8803 = vmatmul.mubr.f32.gmra.mrb[0].mxu0 %v8721
    %v8804 = vpop.f32.mrb[0].mxu0
    %v8805 = vadd.f32 0.0, %v8804
    %v8806 = vpop.f32.mrb[0].mxu0
    %8807 = vdwg.mxu0
    %v8808 = vadd.f32 %v8698, %v8790
    %v8809 = vadd.f32 %v8699, %v8795
    %v8810 = vadd.f32 %v8700, %v8800
    %v8811 = vadd.f32 %v8701, %v8805
    %v8812 = vld [vmem:[%s8] sm:$0x1]
    %v8814 = vlaneseq
    %v8815 = vshrl.u32 %v8814, 7
    %v8816 = vsub.s32 0, %v8815
    %v8817 = vrot.slane %v8812, %v8816
    %v8819 = vmul.f32 %v8808, %v8817
    %v8820 = vmul.f32 %v8809, %v8817
    %v8821 = vmul.f32 %v8810, %v8817
    %v8822 = vmul.f32 %v8811, %v8817
    %v8823 = vld [vmem:[%s9] sm:$0x1]
    %v8825 = vlaneseq
    %v8826 = vshrl.u32 %v8825, 7
    %v8827 = vsub.s32 0, %v8826
    %v8828 = vrot.slane %v8823, %v8827
    %v8830 = vadd.f32 %v8819, %v8828
    %v8831 = vadd.f32 %v8820, %v8828
    %v8832 = vadd.f32 %v8821, %v8828
    %v8833 = vadd.f32 %v8822, %v8828
    %v8834 = vmax.f32 %v8830, 0.0
    %v8835 = vmax.f32 %v8831, 0.0
    %v8836 = vmax.f32 %v8832, 0.0
    %v8837 = vmax.f32 %v8833, 0.0
    %vm8838 = vcmask 523264
    %v8839 = vsel %vm8838, %v8834, 0.0
    %v8840 = vsel %vm8838, %v8835, 0.0
    %v8841 = vadd.f32 %v8839, %v8840
    %v8842 = vrot.slane %v8841, 4
    %v8843 = vadd.f32 %v8841, %v8842
    %v8844 = vrot.slane %v8843, 2
    %v8845 = vadd.f32 %v8843, %v8844
    %v8846 = vrot.slane %v8845, 1
    %v8847 = vadd.f32 %v8845, %v8846
    %v8848 = vsel %vm8838, %v8836, 0.0
    %v8849 = vsel %vm8838, %v8837, 0.0
    %v8850 = vadd.f32 %v8848, %v8849
    %v8851 = vrot.slane %v8850, 4
    %v8852 = vadd.f32 %v8850, %v8851
    %v8853 = vrot.slane %v8852, 2
    %v8854 = vadd.f32 %v8852, %v8853
    %v8855 = vrot.slane %v8854, 1
    %v8856 = vadd.f32 %v8854, %v8855
    %v8857 = vrcp.pop 16.0
    %v8858 = vmul.f32 %v8847, %v8857
    %v8859 = vmul.f32 %v8856, %v8857
    %v8860 = vld [vmem:[%s10] sm:$0x3]
    %v8861 = vld [vmem:[%s11] sm:$0x7]
    %v8862 = vld [vmem:[%s12] sm:$0x1]
    %v8864 = vlaneseq
    %v8865 = vshrl.u32 %v8864, 7
    %v8866 = vsub.s32 0, %v8865
    %v8867 = vrot.slane %v8862, %v8866
    %vm8869 = vcmask 23552
    %v8871 = vsel %vm8869, %v8860, 0
    %v8874 = vsel %vm318, %v8861, 0
    %8876 = vmatprep.subr.mxu0 0.0
    %8877 = vmatpush1.msra.mxu0 %v8874
    %8878 = vmatprep.subr.mxu0 0.0
    %8879 = vmatpush1.msra.mxu0 0.0
    %8880 = vmatprep.subr.mxu0 0.0
    %8881 = vmatpush1.msra.mxu0 0.0
    %8882 = vmatprep.subr.mxu0 0.0
    %8883 = vmatpush1.msra.mxu0 0.0
    %8884 = vmatprep.subr.mxu0 0.0
    %8885 = vmatpush1.msra.mxu0 0.0
    %8886 = vmatprep.subr.mxu0 0.0
    %8887 = vmatpush1.msra.mxu0 0.0
    %8888 = vmatprep.subr.mxu0 0.0
    %8889 = vmatpush1.msra.mxu0 0.0
    %8890 = vmatprep.subr.mxu0 0.0
    %8891 = vmatpush1.msra.mxu0 0.0
    %8892 = vmatprep.subr.mxu0 0.0
    %8893 = vmatpush1.msra.mxu0 0.0
    %8894 = vmatprep.subr.mxu0 0.0
    %8895 = vmatpush1.msra.mxu0 0.0
    %8896 = vmatprep.subr.mxu0 0.0
    %8897 = vmatpush1.msra.mxu0 0.0
    %8898 = vmatprep.subr.mxu0 0.0
    %8899 = vmatpush1.msra.mxu0 0.0
    %8900 = vmatprep.subr.mxu0 0.0
    %8901 = vmatpush1.msra.mxu0 0.0
    %8902 = vmatprep.subr.mxu0 0.0
    %8903 = vmatpush1.msra.mxu0 0.0
    %8904 = vmatprep.subr.mxu0 0.0
    %8905 = vmatpush1.msra.mxu0 0.0
    %8906 = vmatprep.subr.mxu0 0.0
    %8907 = vmatpush1.msra.mxu0 0.0
    %8908 = vmatprep.subr.mxu0 0.0
    %8909 = vmatpush1.msra.mxu0 0.0
    %8910 = vmatprep.subr.mxu0 0.0
    %8911 = vmatpush1.msra.mxu0 0.0
    %8912 = vmatprep.subr.mxu0 0.0
    %8913 = vmatpush1.msra.mxu0 0.0
    %8914 = vmatprep.subr.mxu0 0.0
    %8915 = vmatpush1.msra.mxu0 0.0
    %8916 = vmatprep.subr.mxu0 0.0
    %8917 = vmatpush1.msra.mxu0 0.0
    %8918 = vmatprep.subr.mxu0 0.0
    %8919 = vmatpush1.msra.mxu0 0.0
    %8920 = vmatprep.subr.mxu0 0.0
    %8921 = vmatpush1.msra.mxu0 0.0
    %8922 = vmatprep.subr.mxu0 0.0
    %8923 = vmatpush1.msra.mxu0 0.0
    %8924 = vmatprep.subr.mxu0 0.0
    %8925 = vmatpush1.msra.mxu0 0.0
    %8926 = vmatprep.subr.mxu0 0.0
    %8927 = vmatpush1.msra.mxu0 0.0
    %8928 = vmatprep.subr.mxu0 0.0
    %8929 = vmatpush1.msra.mxu0 0.0
    %8930 = vmatprep.subr.mxu0 0.0
    %8931 = vmatpush1.msra.mxu0 0.0
    %8932 = vmatprep.subr.mxu0 0.0
    %8933 = vmatpush1.msra.mxu0 0.0
    %8934 = vmatprep.subr.mxu0 0.0
    %8935 = vmatpush1.msra.mxu0 0.0
    %8936 = vmatprep.subr.mxu0 0.0
    %8937 = vmatpush1.msra.mxu0 0.0
    %8938 = vmatprep.subr.mxu0 0.0
    %8939 = vmatpush1.msra.mxu0 0.0
    %8940 = vmatprep.mubr.f32.mxu0 0.0
    %8941 = vmatmul.mubr.f32.gmra.mrb[0].mxu0 %v8871
    %v8942 = vpop.f32.mrb[0].mxu0
    %v8943 = vadd.f32 %v8867, %v8942
    %v8944 = vpop.f32.mrb[0].mxu0
    %8945 = vdwg.mxu0
    %v8946 = vmax.f32 %v8943, 0.0
    %v8947 = vld [vmem:[%s13] sm:$0x1]
    %v8949 = vlaneseq
    %v8950 = vshrl.u32 %v8949, 7
    %v8951 = vsub.s32 0, %v8950
    %v8952 = vrot.slane %v8947, %v8951
    %v8954 = vmul.f32 %v8946, %v8952
    %v8955 = vld [vmem:[%s14] sm:$0x1]
    %v8957 = vlaneseq
    %v8958 = vshrl.u32 %v8957, 7
    %v8959 = vsub.s32 0, %v8958
    %v8960 = vrot.slane %v8955, %v8959
    %v8962 = vadd.f32 %v8954, %v8960
    %v8963 = vld [vmem:[%s15] sm:$0xff]
    %v8964 = vld [vmem:[%s15 + $0x8] sm:$0xff]
    %v8965 = vld [vmem:[%s15 + $0x10] sm:$0xff]
    %v8966 = vld [vmem:[%s15 + $0x18] sm:$0xff]
    %v8967 = vld [vmem:[%s15 + $0x20] sm:$0xff]
    %v8968 = vld [vmem:[%s15 + $0x28] sm:$0xff]
    %v8969 = vld [vmem:[%s15 + $0x30] sm:$0xff]
    %v8970 = vld [vmem:[%s15 + $0x38] sm:$0xff]
    %v8971 = vld [vmem:[%s16] sm:$0xff]
    %v8972 = vld [vmem:[%s16 + $0x8] sm:$0xff]
    %v8974 = vsel %vm4114, %v8962, 0
    %8976 = vmatprep.subr.mxu0 0.0
    %8977 = vmatpush1.msra.mxu0 %v8971
    %8978 = vmatprep.subr.mxu0 0.0
    %8979 = vmatpush1.msra.mxu0 %v8972
    %8980 = vmatprep.subr.mxu0 0.0
    %8981 = vmatpush1.msra.mxu0 0.0
    %8982 = vmatprep.subr.mxu0 0.0
    %8983 = vmatpush1.msra.mxu0 0.0
    %8984 = vmatprep.subr.mxu0 0.0
    %8985 = vmatpush1.msra.mxu0 0.0
    %8986 = vmatprep.subr.mxu0 0.0
    %8987 = vmatpush1.msra.mxu0 0.0
    %8988 = vmatprep.subr.mxu0 0.0
    %8989 = vmatpush1.msra.mxu0 0.0
    %8990 = vmatprep.subr.mxu0 0.0
    %8991 = vmatpush1.msra.mxu0 0.0
    %8992 = vmatprep.subr.mxu0 0.0
    %8993 = vmatpush1.msra.mxu0 0.0
    %8994 = vmatprep.subr.mxu0 0.0
    %8995 = vmatpush1.msra.mxu0 0.0
    %8996 = vmatprep.subr.mxu0 0.0
    %8997 = vmatpush1.msra.mxu0 0.0
    %8998 = vmatprep.subr.mxu0 0.0
    %8999 = vmatpush1.msra.mxu0 0.0
    %9000 = vmatprep.subr.mxu0 0.0
    %9001 = vmatpush1.msra.mxu0 0.0
    %9002 = vmatprep.subr.mxu0 0.0
    %9003 = vmatpush1.msra.mxu0 0.0
    %9004 = vmatprep.subr.mxu0 0.0
    %9005 = vmatpush1.msra.mxu0 0.0
    %9006 = vmatprep.subr.mxu0 0.0
    %9007 = vmatpush1.msra.mxu0 0.0
    %9008 = vmatprep.subr.mxu0 0.0
    %9009 = vmatpush1.msra.mxu0 0.0
    %9010 = vmatprep.subr.mxu0 0.0
    %9011 = vmatpush1.msra.mxu0 0.0
    %9012 = vmatprep.subr.mxu0 0.0
    %9013 = vmatpush1.msra.mxu0 0.0
    %9014 = vmatprep.subr.mxu0 0.0
    %9015 = vmatpush1.msra.mxu0 0.0
    %9016 = vmatprep.subr.mxu0 0.0
    %9017 = vmatpush1.msra.mxu0 0.0
    %9018 = vmatprep.subr.mxu0 0.0
    %9019 = vmatpush1.msra.mxu0 0.0
    %9020 = vmatprep.subr.mxu0 0.0
    %9021 = vmatpush1.msra.mxu0 0.0
    %9022 = vmatprep.subr.mxu0 0.0
    %9023 = vmatpush1.msra.mxu0 0.0
    %9024 = vmatprep.subr.mxu0 0.0
    %9025 = vmatpush1.msra.mxu0 0.0
    %9026 = vmatprep.subr.mxu0 0.0
    %9027 = vmatpush1.msra.mxu0 0.0
    %9028 = vmatprep.subr.mxu0 0.0
    %9029 = vmatpush1.msra.mxu0 0.0
    %9030 = vmatprep.subr.mxu0 0.0
    %9031 = vmatpush1.msra.mxu0 0.0
    %9032 = vmatprep.subr.mxu0 0.0
    %9033 = vmatpush1.msra.mxu0 0.0
    %9034 = vmatprep.subr.mxu0 0.0
    %9035 = vmatpush1.msra.mxu0 0.0
    %9036 = vmatprep.subr.mxu0 0.0
    %9037 = vmatpush1.msra.mxu0 0.0
    %9038 = vmatprep.subr.mxu0 0.0
    %9039 = vmatpush1.msra.mxu0 0.0
    %9040 = vmatprep.mubr.f32.mxu0 0.0
    %9041 = vmatmul.mubr.f32.gmra.mrb[0].mxu0 %v8974
    %v9042 = vpop.f32.mrb[0].mxu0
    %v9043 = vadd.f32 0.0, %v9042
    %v9044 = vpop.f32.mrb[0].mxu0
    %9045 = vdwg.mxu0
    %v9048 = vsel %vm4687, %v8859, %v8858
    %v9049 = vsel %vm8838, %v9048, 0
    %9051 = vmatprep.subr.mxu0 0.0
    %9052 = vmatpush1.msra.mxu0 %v8963
    %9053 = vmatprep.subr.mxu0 0.0
    %9054 = vmatpush1.msra.mxu0 %v8964
    %9055 = vmatprep.subr.mxu0 0.0
    %9056 = vmatpush1.msra.mxu0 %v8965
    %9057 = vmatprep.subr.mxu0 0.0
    %9058 = vmatpush1.msra.mxu0 %v8966
    %9059 = vmatprep.subr.mxu0 0.0
    %9060 = vmatpush1.msra.mxu0 %v8967
    %9061 = vmatprep.subr.mxu0 0.0
    %9062 = vmatpush1.msra.mxu0 %v8968
    %9063 = vmatprep.subr.mxu0 0.0
    %9064 = vmatpush1.msra.mxu0 %v8969
    %9065 = vmatprep.subr.mxu0 0.0
    %9066 = vmatpush1.msra.mxu0 %v8970
    %9067 = vmatprep.subr.mxu0 0.0
    %9068 = vmatpush1.msra.mxu0 0.0
    %9069 = vmatprep.subr.mxu0 0.0
    %9070 = vmatpush1.msra.mxu0 0.0
    %9071 = vmatprep.subr.mxu0 0.0
    %9072 = vmatpush1.msra.mxu0 0.0
    %9073 = vmatprep.subr.mxu0 0.0
    %9074 = vmatpush1.msra.mxu0 0.0
    %9075 = vmatprep.subr.mxu0 0.0
    %9076 = vmatpush1.msra.mxu0 0.0
    %9077 = vmatprep.subr.mxu0 0.0
    %9078 = vmatpush1.msra.mxu0 0.0
    %9079 = vmatprep.subr.mxu0 0.0
    %9080 = vmatpush1.msra.mxu0 0.0
    %9081 = vmatprep.subr.mxu0 0.0
    %9082 = vmatpush1.msra.mxu0 0.0
    %9083 = vmatprep.subr.mxu0 0.0
    %9084 = vmatpush1.msra.mxu0 0.0
    %9085 = vmatprep.subr.mxu0 0.0
    %9086 = vmatpush1.msra.mxu0 0.0
    %9087 = vmatprep.subr.mxu0 0.0
    %9088 = vmatpush1.msra.mxu0 0.0
    %9089 = vmatprep.subr.mxu0 0.0
    %9090 = vmatpush1.msra.mxu0 0.0
    %9091 = vmatprep.subr.mxu0 0.0
    %9092 = vmatpush1.msra.mxu0 0.0
    %9093 = vmatprep.subr.mxu0 0.0
    %9094 = vmatpush1.msra.mxu0 0.0
    %9095 = vmatprep.subr.mxu0 0.0
    %9096 = vmatpush1.msra.mxu0 0.0
    %9097 = vmatprep.subr.mxu0 0.0
    %9098 = vmatpush1.msra.mxu0 0.0
    %9099 = vmatprep.subr.mxu0 0.0
    %9100 = vmatpush1.msra.mxu0 0.0
    %9101 = vmatprep.subr.mxu0 0.0
    %9102 = vmatpush1.msra.mxu0 0.0
    %9103 = vmatprep.subr.mxu0 0.0
    %9104 = vmatpush1.msra.mxu0 0.0
    %9105 = vmatprep.subr.mxu0 0.0
    %9106 = vmatpush1.msra.mxu0 0.0
    %9107 = vmatprep.subr.mxu0 0.0
    %9108 = vmatpush1.msra.mxu0 0.0
    %9109 = vmatprep.subr.mxu0 0.0
    %9110 = vmatpush1.msra.mxu0 0.0
    %9111 = vmatprep.subr.mxu0 0.0
    %9112 = vmatpush1.msra.mxu0 0.0
    %9113 = vmatprep.subr.mxu0 0.0
    %9114 = vmatpush1.msra.mxu0 0.0
    %9115 = vmatprep.mubr.f32.mxu0 0.0
    %9116 = vmatmul.mubr.f32.gmra.mrb[0].mxu0 %v9049
    %v9117 = vpop.f32.mrb[0].mxu0
    %v9118 = vadd.f32 %v9043, %v9117
    %v9119 = vpop.f32.mrb[0].mxu0
    %9120 = vdwg.mxu0
    %vm9121 = vcmask 74752
    %v9122 = vsel %vm9121, %v9118, -inf
    %9123 = vmax.xlane.f32.xlu0 %v9122
    %v9124 = vpop.xlane.xlu0 %9123
    %v9125 = vsub.f32 %v9118, %v9124
    %v9126 = vmul.f32 %v9125, 1.442695
    %v9127 = vpow.pop %v9126
    %v9128 = vsel %vm9121, %v9127, 0.0
    %9129 = vadd.xlane.f32.xlu0 %v9128
    %v9130 = vpop.xlane.xlu0 %9129
    %v9131 = vrcp.pop %v9130
    %v9132 = vmul.f32 %v9127, %v9131
    %9133 = vst.msk [vmem:[#allocation4] sm:$0x3] %vm9121, %v9132
    // Predicated region
    $region70: #{pallas_forward.1} parent=1 // pred_check
      _
    $region71: #{pallas_forward.1} parent=1 // pred_check_branch
      %9135 = sbr.rel (0) target = $region73
    $region72: #{pallas_forward.1} parent=1 // pred_region
      %s9137 = ssub.s32 32, 32
      %9138 = vsyncadd [#allocation5], %s9137
      %s9140 = sshll.u32 [#allocation4], 4
      %s9141 = int_to_ptr.vmem [resolvable:$true] %s9140
      %9143 = dma.vmem_to_hbm [thread:$0]  %s9141, 32, %s17, [#allocation5]
    $region73: #{pallas_forward.1} parent=1 // pred_fallthru
      _
    // Predicated region
    $region74: #{pallas_forward.1} parent=1 // pred_check
      _
    $region75: #{pallas_forward.1} parent=1 // pred_check_branch
      %9145 = sbr.rel (0) target = $region77
    $region76: #{pallas_forward.1} parent=1 // pred_region
      %9146 = dma.done [#allocation5], 32
    $region77: #{pallas_forward.1} parent=1 // pred_fallthru
      _
    %9147 = vsyncpa [#allocation5], 1

</llo_original>
